<compile_context>
chip_gen: v5e
topology: v5e:2x2
jax: 0.10.0
libtpu: 0.0.40
codegen_flags: <defaults>
</compile_context>

<pallas_src>
import functools
import math

import numpy as np
import jax
import jax.numpy as jnp
from jax.experimental import pallas as pl
from jax.experimental.pallas import tpu as pltpu

# ----------------------------- model hyper-params -----------------------------
ACT_DIM = 4
COND_DIM = 8          # To * obs_dim flattened
DSED = 16             # diffusion_step_embed_dim
DIM = 16
DIM_MULTS = (1, 2)
KS = 5                # residual-block conv kernel size
PACK_W = 64           # column width of the single packed parameter/constant buffer


# ----------------------------- small helpers ----------------------------------
def _mish(x):
    return x * jnp.tanh(jax.nn.softplus(x))


def _dotf(a, b):
    # Default single-pass MXU precision, fp32 accumulation.
    return jnp.dot(a, b, preferred_element_type=jnp.float32)


def _rup8(n):
    return -(-n // 8) * 8


def sinusoidal_pos_emb(t, dim):
    half = dim // 2
    emb = math.log(10000.0) / (half - 1)
    freqs = jnp.exp(jnp.arange(half, dtype=jnp.float32) * -emb)
    args = t.astype(jnp.float32)[:, None] * freqs[None, :]
    return jnp.concatenate([jnp.sin(args), jnp.cos(args)], axis=-1)


# ----------------------------- raw (PyTorch-layout) parameter init -------------
def _init_linear(key, din, dout):
    k1, k2 = jax.random.split(key)
    bound = 1.0 / math.sqrt(din)
    return {"w": jax.random.uniform(k1, (dout, din), jnp.float32, -bound, bound),
            "b": jax.random.uniform(k2, (dout,), jnp.float32, -bound, bound)}


def _init_conv(key, cin, cout, k):
    k1, k2 = jax.random.split(key)
    bound = 1.0 / math.sqrt(cin * k)
    return {"w": jax.random.uniform(k1, (cout, cin, k), jnp.float32, -bound, bound),
            "b": jax.random.uniform(k2, (cout,), jnp.float32, -bound, bound)}


def _init_convT(key, cin, cout, k):
    k1, k2 = jax.random.split(key)
    bound = 1.0 / math.sqrt(cout * k)
    # PyTorch ConvTranspose1d weight layout: (in_channels, out_channels, K)
    return {"w": jax.random.uniform(k1, (cin, cout, k), jnp.float32, -bound, bound),
            "b": jax.random.uniform(k2, (cout,), jnp.float32, -bound, bound)}


def _init_resblock(key, cin, cout, cond_dim, ks):
    keys = jax.random.split(key, 6)
    p = {
        "conv0": _init_conv(keys[0], cin, cout, ks),
        "conv1": _init_conv(keys[1], cout, cout, ks),
        "enc1": _init_linear(keys[2], cond_dim, cout),   # larger_encoder: Lin-Mish-Lin-Mish-Lin
        "enc2": _init_linear(keys[3], cout, cout),
        "enc3": _init_linear(keys[4], cout, cout),
    }
    if cin != cout:
        p["res"] = _init_conv(keys[5], cin, cout, 1)
    return p


def init_unet_params(key, action_dim, cond_dim, dsed, dim, dim_mults, ks):
    dims = [action_dim] + [dim * m for m in dim_mults]
    in_out = list(zip(dims[:-1], dims[1:]))
    cond_block_dim = dsed + cond_dim
    keys = iter(jax.random.split(key, 128))
    params = {}
    params["time1"] = _init_linear(next(keys), dsed, dsed * 4)
    params["time2"] = _init_linear(next(keys), dsed * 4, dsed)
    mid_dim = dims[-1]
    params["mid"] = [_init_resblock(next(keys), mid_dim, mid_dim, cond_block_dim, ks)
                     for _ in range(2)]
    params["down"] = []
    for ind, (di, do) in enumerate(in_out):
        is_last = ind >= len(in_out) - 1
        mod = {"res1": _init_resblock(next(keys), di, do, cond_block_dim, ks),
               "res2": _init_resblock(next(keys), do, do, cond_block_dim, ks)}
        if not is_last:
            mod["down"] = _init_conv(next(keys), do, do, 3)   # Downsample1d: Conv1d k=3 s=2 p=1
        params["down"].append(mod)
    params["up"] = []
    for ind, (di, do) in enumerate(reversed(in_out[1:])):
        is_last = ind >= len(in_out) - 1
        mod = {"res1": _init_resblock(next(keys), do * 2, di, cond_block_dim, ks),
               "res2": _init_resblock(next(keys), di, di, cond_block_dim, ks)}
        if not is_last:
            mod["up"] = _init_convT(next(keys), di, di, 4)    # Upsample1d: ConvT k=4 s=2 p=1
        params["up"].append(mod)
    params["final0"] = _init_conv(next(keys), dim, dim, ks)   # Conv1dBlock (conv + Mish)
    params["final1"] = _init_conv(next(keys), dim, action_dim, 1)
    return params


# ----------------------------- constant shift / broadcast matrices -------------
def _shift_mats(B, Lin, Lout, K, stride, pad, transposed=False):
    """K shift/placement matrices stacked along rows -> (K*B*Lin, B*Lout).

    conv :  out[:, j] += W_k @ in[:, stride*j + k - pad]
    convT:  out[:, stride*i + k - pad] += V_k @ in[:, i]
    Zero-padding and batch-segment boundaries are encoded in the zeros.
    """
    S = np.zeros((K, B * Lin, B * Lout), np.float32)
    for k in range(K):
        for b in range(B):
            if not transposed:
                for j in range(Lout):
                    i = stride * j + k - pad
                    if 0 <= i < Lin:
                        S[k, b * Lin + i, b * Lout + j] = 1.0
            else:
                for i in range(Lin):
                    j = stride * i + k - pad
                    if 0 <= j < Lout:
                        S[k, b * Lin + i, b * Lout + j] = 1.0
    return S.reshape(K * B * Lin, B * Lout)


def _film_mat(B, L):
    """(B, B*L): broadcasts per-(batch, channel) FiLM bias over the length lanes."""
    return np.kron(np.eye(B, dtype=np.float32), np.ones((1, L), np.float32))


# ----------------------------- single packed parameter buffer ------------------
class _Packer:
    """Packs every 2-D leaf at an 8-aligned row offset of one (R, PACK_W) fp32 buffer."""

    def __init__(self, width=PACK_W):
        self.width = width
        self.rows = 0
        self.items = []
        self.index = {}          # name -> (row_offset, (rows, cols))

    def add(self, name, arr):
        arr = np.asarray(arr, np.float32)
        if arr.ndim == 1:
            arr = arr[:, None]
        assert arr.ndim == 2 and arr.shape[1] <= self.width, (name, arr.shape)
        off = self.rows
        self.index[name] = (off, arr.shape)
        self.items.append((off, arr))
        self.rows += _rup8(arr.shape[0])

    def finalize(self):
        buf = np.zeros((_rup8(self.rows), self.width), np.float32)
        for off, arr in self.items:
            buf[off:off + arr.shape[0], :arr.shape[1]] = arr
        return buf


def _pack_conv(pk, prefix, p):
    w, b = np.asarray(p["w"]), np.asarray(p["b"])      # (C_out, C_in, K)
    co, ci, k = w.shape
    pk.add(prefix + "/w", np.transpose(w, (2, 0, 1)).reshape(k * co, ci))  # taps stacked on rows
    pk.add(prefix + "/b", b)


def _pack_convT(pk, prefix, p):
    w, b = np.asarray(p["w"]), np.asarray(p["b"])      # (C_in, C_out, K)
    ci, co, k = w.shape
    pk.add(prefix + "/w", np.transpose(w, (2, 1, 0)).reshape(k * co, ci))  # V_k = w[:,:,k].T stacked
    pk.add(prefix + "/b", b)


def _pack_conv1x1(pk, prefix, p):
    pk.add(prefix + "/w", np.asarray(p["w"])[:, :, 0])
    pk.add(prefix + "/b", np.asarray(p["b"]))


def _pack_linear(pk, prefix, p):
    pk.add(prefix + "/w", np.asarray(p["w"]))
    pk.add(prefix + "/b", np.asarray(p["b"]))


def _pack_resblock(pk, prefix, p):
    _pack_conv(pk, prefix + "/conv0", p["conv0"])
    _pack_conv(pk, prefix + "/conv1", p["conv1"])
    w1 = np.asarray(p["enc1"]["w"])
    pk.add(prefix + "/enc1/wg", w1[:, :DSED])          # split so kernel never concatenates cond
    pk.add(prefix + "/enc1/ws", w1[:, DSED:])
    pk.add(prefix + "/enc1/b", np.asarray(p["enc1"]["b"]))
    _pack_linear(pk, prefix + "/enc2", p["enc2"])
    _pack_linear(pk, prefix + "/enc3", p["enc3"])
    if "res" in p:
        _pack_conv1x1(pk, prefix + "/res", p["res"])


def pack_unet(raw, B, Ta):
    """Flatten every parameter AND every constant shift / FiLM matrix into ONE buffer."""
    pk = _Packer()
    _pack_linear(pk, "time1", raw["time1"])
    _pack_linear(pk, "time2", raw["time2"])
    for i, m in enumerate(raw["down"]):
        _pack_resblock(pk, f"down{i}/res1", m["res1"])
        _pack_resblock(pk, f"down{i}/res2", m["res2"])
        if "down" in m:
            _pack_conv(pk, f"down{i}/down", m["down"])
    for i, m in enumerate(raw["mid"]):
        _pack_resblock(pk, f"mid{i}", m)
    for i, m in enumerate(raw["up"]):
        _pack_resblock(pk, f"up{i}/res1", m["res1"])
        _pack_resblock(pk, f"up{i}/res2", m["res2"])
        if "up" in m:
            _pack_convT(pk, f"up{i}/up", m["up"])
    _pack_conv(pk, "final0", raw["final0"])
    _pack_conv1x1(pk, "final1", raw["final1"])

    # ---- static execution plan + the set of lengths each constant is needed at ----
    plan = {"B": B, "Ta": Ta,
            "down_has": tuple("down" in m for m in raw["down"]),
            "n_mid": len(raw["mid"]),
            "up_has": tuple("up" in m for m in raw["up"])}
    L = Ta
    res_L, down_L, up_L, d_lens = set(), set(), set(), []
    for hd in plan["down_has"]:
        res_L.add(L)
        d_lens.append(L)
        if hd:
            down_L.add(L)
            L //= 2
    res_L.add(L)                      # mid blocks
    d_rev = d_lens[::-1]
    for i, hu in enumerate(plan["up_has"]):
        res_L.add(L)
        if i < len(d_rev) - 1 and d_rev[i + 1] == 1:
            pass
        elif hu:
            up_L.add(L)
            L *= 2
    res_L.add(L)                      # final conv length

    for Lr in sorted(res_L):
        pk.add(f"S_same_{Lr}", _shift_mats(B, Lr, Lr, KS, 1, KS // 2))
        pk.add(f"film_{Lr}", _film_mat(B, Lr))
    for Ld in sorted(down_L):
        pk.add(f"S_down_{Ld}", _shift_mats(B, Ld, Ld // 2, 3, 2, 1))          # stride-2 folded in
    for Lu in sorted(up_L):
        pk.add(f"S_up_{Lu}", _shift_mats(B, Lu, 2 * Lu, 4, 2, 1, transposed=True))

    return jnp.asarray(pk.finalize()), pk.index, plan


# ----------------------------- the single fused Pallas kernel ------------------
def _unet_kernel(x_ref, emb_ref, st_ref, buf_ref, o_ref, *, index, plan):
    B, Ta = plan["B"], plan["Ta"]

    def get(name):
        off, (r, c) = index[name]
        return buf_ref[off:off + r, 0:c]          # static slice of the packed buffer

    def taps(name, k):
        v = get(name)
        rows = v.shape[0] // k
        return [v[i * rows:(i + 1) * rows, :] for i in range(k)]

    # ---- constant shift / broadcast matrices (one load each) ----
    S_same, S_down, S_up, film = {}, {}, {}, {}
    for name in index:
        if name.startswith("S_same_"):
            S_same[int(name.rsplit("_", 1)[1])] = taps(name, KS)
        elif name.startswith("S_down_"):
            S_down[int(name.rsplit("_", 1)[1])] = taps(name, 3)
        elif name.startswith("S_up_"):
            S_up[int(name.rsplit("_", 1)[1])] = taps(name, 4)
        elif name.startswith("film_"):
            film[int(name.rsplit("_", 1)[1])] = get(name)

    def conv(parts, prefix, S_list, act):
        """Any Conv1d / strided conv / ConvT on (C, B*L): y = b + sum_k Z_k @ S_k,
        Z = W_stack @ x in ONE dot (taps stacked along rows)."""
        W = get(prefix + "/w")                    # (K*C_out, C_in_total)
        b = get(prefix + "/b")                    # (C_out, 1)
        K = len(S_list)
        c_out = W.shape[0] // K
        z, off = None, 0
        for part in parts:                        # fused channel concat -> split W columns
            c = part.shape[0]
            zz = _dotf(W[:, off:off + c], part)
            z = zz if z is None else z + zz
            off += c
        y = b
        for k in range(K):                        # tap shift / stride / placement on the MXU
            y = y + _dotf(z[k * c_out:(k + 1) * c_out, :], S_list[k])
        return _mish(y) if act else y

    def conv1x1(parts, prefix):
        W = get(prefix + "/w")
        y = get(prefix + "/b")
        off = 0
        for part in parts:
            c = part.shape[0]
            y = y + _dotf(W[:, off:off + c], part)
            off += c
        return y

    def cond_embed(prefix, g, st):
        # Linear-Mish-Linear-Mish-Linear in transposed (features, B) orientation.
        e = _mish(_dotf(get(prefix + "/enc1/wg"), g) + _dotf(get(prefix + "/enc1/ws"), st)
                  + get(prefix + "/enc1/b"))
        e = _mish(_dotf(get(prefix + "/enc2/w"), e) + get(prefix + "/enc2/b"))
        return _dotf(get(prefix + "/enc3/w"), e) + get(prefix + "/enc3/b")   # (C_out, B)

    emb = emb_ref[...]                            # (DSED, B)
    st = st_ref[...]                              # (COND_DIM, B)
    x = x_ref[...]                                # (act_dim, B*Ta)

    # diffusion-step MLP (Linear-Mish-Linear), transposed orientation
    g = _mish(_dotf(get("time1/w"), emb) + get("time1/b"))
    g = _dotf(get("time2/w"), g) + get("time2/b")

    def resblock(parts, prefix, L):
        h = conv(parts, prefix + "/conv0", S_same[L], act=True)
        h = h + _dotf(cond_embed(prefix, g, st), film[L])        # FiLM bias over length
        h = conv([h], prefix + "/conv1", S_same[L], act=True)
        if (prefix + "/res/w") in index:
            r = conv1x1(parts, prefix + "/res")
        else:
            r = parts[0]
        return h + r

    # TODO(synk): h_local (local conditioning) is always empty in this config; omitted.
    L = Ta
    skips, d_lens = [], []
    for i, has_down in enumerate(plan["down_has"]):
        x = resblock([x], f"down{i}/res1", L)
        x = resblock([x], f"down{i}/res2", L)
        skips.append(x)
        d_lens.append(L)
        if has_down:
            x = conv([x], f"down{i}/down", S_down[L], act=False)  # stride-2 folded into S
            L //= 2

    for i in range(plan["n_mid"]):
        x = resblock([x], f"mid{i}", L)

    d_rev = d_lens[::-1]
    for i, has_up in enumerate(plan["up_has"]):
        skip = skips.pop()
        x = resblock([x, skip], f"up{i}/res1", L)                 # fused channel concat
        x = resblock([x], f"up{i}/res2", L)
        if i < len(d_rev) - 1 and d_rev[i + 1] == 1:
            pass                                                  # mirrors the torch branch
        elif has_up:
            x = conv([x], f"up{i}/up", S_up[L], act=False)        # ConvT: taps + placement dots
            L *= 2

    x = conv([x], "final0", S_same[L], act=True)
    x = conv1x1([x], "final1")
    o_ref[...] = x.astype(o_ref.dtype)


# ----------------------------- forward wrapper ---------------------------------
def make_unet_forward(index, plan):
    B, Ta = plan["B"], plan["Ta"]
    kern = functools.partial(_unet_kernel, index=index, plan=plan)

    @jax.jit
    def forward(packed, x, time, state):
        """x: (B, Ta, act_dim); time: scalar or (B,); state: (B, To, obs_dim)."""
        act_dim = x.shape[-1]
        x_k = jnp.transpose(x, (2, 0, 1)).reshape(act_dim, B * Ta)   # (C, B*L) layout
        st_k = jnp.transpose(state.reshape(B, -1))                   # (COND_DIM, B)
        t = jnp.broadcast_to(jnp.asarray(time), (B,))
        emb_k = jnp.transpose(sinusoidal_pos_emb(t, DSED))           # (DSED, B)
        out = pl.pallas_call(
            kern,
            out_shape=jax.ShapeDtypeStruct((act_dim, B * Ta), jnp.float32),
            compiler_params=pltpu.CompilerParams(vmem_limit_bytes=32 * 1024 * 1024),
        )(x_k, emb_k, st_k, packed)
        return jnp.transpose(out.reshape(act_dim, B, Ta), (1, 2, 0))  # -> (B, Ta, act_dim)

    return forward


# ----------------------------- pure-JAX reference (correctness check) ----------
def ref_forward(raw, x, time, state):
    B = x.shape[0]
    hi = jax.lax.Precision.HIGHEST

    def lin(h, p):
        return jnp.dot(h, p["w"].T, precision=hi) + p["b"]

    def conv(h, p, stride=1, padding=0):
        y = jax.lax.conv_general_dilated(
            h, p["w"], (stride,), [(padding, padding)],
            dimension_numbers=("NCH", "OIH", "NCH"), precision=hi)
        return y + p["b"][None, :, None]

    def convT(h, p):  # ConvTranspose1d(k=4, s=2, p=1)
        w_eq = jnp.transpose(p["w"], (1, 0, 2))[:, :, ::-1]
        y = jax.lax.conv_general_dilated(
            h, w_eq, (1,), [(2, 2)], lhs_dilation=(2,),
            dimension_numbers=("NCH", "OIH", "NCH"), precision=hi)
        return y + p["b"][None, :, None]

    def resblock(p, h, cond):
        out = _mish(conv(h, p["conv0"], padding=KS // 2))
        e = _mish(lin(cond, p["enc1"]))
        e = _mish(lin(e, p["enc2"]))
        e = lin(e, p["enc3"])
        out = out + e[:, :, None]
        out = _mish(conv(out, p["conv1"], padding=KS // 2))
        res = conv(h, p["res"]) if "res" in p else h
        return out + res

    xc = jnp.transpose(x, (0, 2, 1))
    st = state.reshape(B, -1)
    t = jnp.broadcast_to(jnp.asarray(time), (B,))
    g = sinusoidal_pos_emb(t, DSED)
    g = _mish(lin(g, raw["time1"]))
    g = lin(g, raw["time2"])
    g = jnp.concatenate([g, st], axis=-1)

    h, d = [], []
    for mod in raw["down"]:
        xc = resblock(mod["res1"], xc, g)
        xc = resblock(mod["res2"], xc, g)
        h.append(xc)
        d.append(xc.shape[2])
        if "down" in mod:
            xc = conv(xc, mod["down"], stride=2, padding=1)
    for mod in raw["mid"]:
        xc = resblock(mod, xc, g)
    d = d[::-1]
    for idx, mod in enumerate(raw["up"]):
        xc = jnp.concatenate([xc, h.pop()], axis=1)
        xc = resblock(mod["res1"], xc, g)
        xc = resblock(mod["res2"], xc, g)
        if idx < len(d) - 1 and d[idx + 1] == 1:
            pass
        elif "up" in mod:
            xc = convT(xc, mod["up"])
    xc = _mish(conv(xc, raw["final0"], padding=KS // 2))
    xc = conv(xc, raw["final1"])
    return jnp.transpose(xc, (0, 2, 1))


# ----------------------------- main --------------------------------------------
if __name__ == "__main__":
    key = jax.random.PRNGKey(0)
    kp, kx, ks_, _ = jax.random.split(key, 4)

    B, Ta = 2, 8
    To, obs_dim = 2, 4
    assert To * obs_dim == COND_DIM

    raw = init_unet_params(kp, ACT_DIM, COND_DIM, DSED, DIM, DIM_MULTS, KS)
    packed, index, plan = pack_unet(raw, B, Ta)
    unet_forward = make_unet_forward(index, plan)

    x = jax.random.normal(kx, (B, Ta, ACT_DIM), jnp.float32)
    state = jax.random.normal(ks_, (B, To, obs_dim), jnp.float32)
    time = jnp.array([3, 7], dtype=jnp.int32)

    out = jax.block_until_ready(unet_forward(packed, x, time, state))
    assert out.shape == (B, Ta, ACT_DIM), out.shape
    assert bool(jnp.all(jnp.isfinite(out)))

    ref = jax.block_until_ready(ref_forward(raw, x, time, state))
    err = float(jnp.max(jnp.abs(out - ref)))
    # Kernel uses default (single-pass bf16) MXU precision vs. a HIGHEST-precision f32
    # reference; allow bf16-level accumulation error across ~20 serial matmul stages.
    assert err < 5e-2, f"kernel/reference mismatch: max abs err = {err}"

    print("KERNEL_OK")
</pallas_src>

<mosaic_0001>
module attributes {stable_mosaic.version = 11 : i64} {
  func.func @_unet_kernel(%arg0: memref<4x16xf32, #tpu.memory_space<vmem>>, %arg1: memref<16x2xf32, #tpu.memory_space<vmem>>, %arg2: memref<8x2xf32, #tpu.memory_space<vmem>>, %arg3: memref<4408x64xf32, #tpu.memory_space<vmem>>, %arg4: memref<4x16xf32, #tpu.memory_space<vmem>>) attributes {dimension_semantics = [], scalar_prefetch = 0 : i64, scratch_operands = 0 : i64, tpu.core_type = #tpu.core_type<tc>} {
    %c4192 = arith.constant 4192 : index
    %c0 = arith.constant 0 : index
    %0 = vector.load %arg3[%c4192, %c0] : memref<4408x64xf32, #tpu.memory_space<vmem>>, vector<40x8xf32>
    %1 = vector.extract_strided_slice %0 {offsets = [0, 0], sizes = [8, 8], strides = [1, 1]} : vector<40x8xf32> to vector<8x8xf32>
    %2 = vector.extract_strided_slice %0 {offsets = [8, 0], sizes = [8, 8], strides = [1, 1]} : vector<40x8xf32> to vector<8x8xf32>
    %3 = vector.extract_strided_slice %0 {offsets = [16, 0], sizes = [8, 8], strides = [1, 1]} : vector<40x8xf32> to vector<8x8xf32>
    %4 = vector.extract_strided_slice %0 {offsets = [24, 0], sizes = [8, 8], strides = [1, 1]} : vector<40x8xf32> to vector<8x8xf32>
    %5 = vector.extract_strided_slice %0 {offsets = [32, 0], sizes = [8, 8], strides = [1, 1]} : vector<40x8xf32> to vector<8x8xf32>
    %c4232 = arith.constant 4232 : index
    %c0_0 = arith.constant 0 : index
    %6 = vector.load %arg3[%c4232, %c0_0] : memref<4408x64xf32, #tpu.memory_space<vmem>>, vector<2x8xf32>
    %c4240 = arith.constant 4240 : index
    %c0_1 = arith.constant 0 : index
    %7 = vector.load %arg3[%c4240, %c0_1] : memref<4408x64xf32, #tpu.memory_space<vmem>>, vector<80x16xf32>
    %8 = vector.extract_strided_slice %7 {offsets = [0, 0], sizes = [16, 16], strides = [1, 1]} : vector<80x16xf32> to vector<16x16xf32>
    %9 = vector.extract_strided_slice %7 {offsets = [16, 0], sizes = [16, 16], strides = [1, 1]} : vector<80x16xf32> to vector<16x16xf32>
    %10 = vector.extract_strided_slice %7 {offsets = [32, 0], sizes = [16, 16], strides = [1, 1]} : vector<80x16xf32> to vector<16x16xf32>
    %11 = vector.extract_strided_slice %7 {offsets = [48, 0], sizes = [16, 16], strides = [1, 1]} : vector<80x16xf32> to vector<16x16xf32>
    %12 = vector.extract_strided_slice %7 {offsets = [64, 0], sizes = [16, 16], strides = [1, 1]} : vector<80x16xf32> to vector<16x16xf32>
    %c4320 = arith.constant 4320 : index
    %c0_2 = arith.constant 0 : index
    %13 = vector.load %arg3[%c4320, %c0_2] : memref<4408x64xf32, #tpu.memory_space<vmem>>, vector<2x16xf32>
    %c4328 = arith.constant 4328 : index
    %c0_3 = arith.constant 0 : index
    %14 = vector.load %arg3[%c4328, %c0_3] : memref<4408x64xf32, #tpu.memory_space<vmem>>, vector<48x8xf32>
    %15 = vector.extract_strided_slice %14 {offsets = [0, 0], sizes = [16, 8], strides = [1, 1]} : vector<48x8xf32> to vector<16x8xf32>
    %16 = vector.extract_strided_slice %14 {offsets = [16, 0], sizes = [16, 8], strides = [1, 1]} : vector<48x8xf32> to vector<16x8xf32>
    %17 = vector.extract_strided_slice %14 {offsets = [32, 0], sizes = [16, 8], strides = [1, 1]} : vector<48x8xf32> to vector<16x8xf32>
    %c4376 = arith.constant 4376 : index
    %c0_4 = arith.constant 0 : index
    %18 = vector.load %arg3[%c4376, %c0_4] : memref<4408x64xf32, #tpu.memory_space<vmem>>, vector<32x16xf32>
    %19 = vector.extract_strided_slice %18 {offsets = [0, 0], sizes = [8, 16], strides = [1, 1]} : vector<32x16xf32> to vector<8x16xf32>
    %20 = vector.extract_strided_slice %18 {offsets = [8, 0], sizes = [8, 16], strides = [1, 1]} : vector<32x16xf32> to vector<8x16xf32>
    %21 = vector.extract_strided_slice %18 {offsets = [16, 0], sizes = [8, 16], strides = [1, 1]} : vector<32x16xf32> to vector<8x16xf32>
    %22 = vector.extract_strided_slice %18 {offsets = [24, 0], sizes = [8, 16], strides = [1, 1]} : vector<32x16xf32> to vector<8x16xf32>
    %c0_5 = arith.constant 0 : index
    %c0_6 = arith.constant 0 : index
    %23 = vector.load %arg1[%c0_5, %c0_6] : memref<16x2xf32, #tpu.memory_space<vmem>>, vector<16x2xf32>
    %c0_7 = arith.constant 0 : index
    %c0_8 = arith.constant 0 : index
    %24 = vector.load %arg2[%c0_7, %c0_8] : memref<8x2xf32, #tpu.memory_space<vmem>>, vector<8x2xf32>
    %c0_9 = arith.constant 0 : index
    %c0_10 = arith.constant 0 : index
    %25 = vector.load %arg0[%c0_9, %c0_10] : memref<4x16xf32, #tpu.memory_space<vmem>>, vector<4x16xf32>
    %c0_11 = arith.constant 0 : index
    %c0_12 = arith.constant 0 : index
    %26 = vector.load %arg3[%c0_11, %c0_12] : memref<4408x64xf32, #tpu.memory_space<vmem>>, vector<64x16xf32>
    %cst = arith.constant dense<0.000000e+00> : vector<64x2xf32>
    %27 = tpu.matmul %26, %23, %cst {dimension_numbers = #tpu.dot_dimension_numbers<[1], [0], [0], [1], [0, 0, 1, 1], [], []>} : vector<64x16xf32>, vector<16x2xf32>, vector<64x2xf32> -> vector<64x2xf32>
    %c64 = arith.constant 64 : index
    %c0_13 = arith.constant 0 : index
    %28 = vector.load %arg3[%c64, %c0_13] : memref<4408x64xf32, #tpu.memory_space<vmem>>, vector<64x1xf32>
    %29 = vector.broadcast %28 : vector<64x1xf32> to vector<64x2xf32>
    %30 = arith.addf %27, %29 : vector<64x2xf32>
    %cst_14 = arith.constant 0.000000e+00 : f32
    %31 = vector.broadcast %cst_14 : f32 to vector<64x2xf32>
    %32 = arith.maximumf %30, %31 : vector<64x2xf32>
    %33 = vector.broadcast %cst_14 : f32 to vector<64x2xf32>
    %34 = arith.subf %30, %33 : vector<64x2xf32>
    %35 = arith.cmpf one, %34, %34 : vector<64x2xf32>
    %36 = vector.broadcast %cst_14 : f32 to vector<64x2xf32>
    %37 = arith.addf %30, %36 : vector<64x2xf32>
    %38 = math.absf %34 : vector<64x2xf32>
    %cst_15 = arith.constant 0.000000e+00 : f32
    %39 = vector.broadcast %cst_15 : f32 to vector<64x2xf32>
    %40 = arith.subf %39, %38 : vector<64x2xf32>
    %41 = math.exp %40 : vector<64x2xf32>
    %42 = math.log1p %41 : vector<64x2xf32>
    %43 = arith.addf %32, %42 : vector<64x2xf32>
    %44 = arith.select %35, %37, %43 : vector<64x2xi1>, vector<64x2xf32>
    %45 = math.tanh %44 : vector<64x2xf32>
    %46 = arith.mulf %30, %45 : vector<64x2xf32>
    %c128 = arith.constant 128 : index
    %c0_16 = arith.constant 0 : index
    %47 = vector.load %arg3[%c128, %c0_16] : memref<4408x64xf32, #tpu.memory_space<vmem>>, vector<16x64xf32>
    %cst_17 = arith.constant dense<0.000000e+00> : vector<16x2xf32>
    %48 = tpu.matmul %47, %46, %cst_17 {dimension_numbers = #tpu.dot_dimension_numbers<[1], [0], [0], [1], [0, 0, 1, 1], [], []>} : vector<16x64xf32>, vector<64x2xf32>, vector<16x2xf32> -> vector<16x2xf32>
    %c144 = arith.constant 144 : index
    %c0_18 = arith.constant 0 : index
    %49 = vector.load %arg3[%c144, %c0_18] : memref<4408x64xf32, #tpu.memory_space<vmem>>, vector<16x1xf32>
    %50 = vector.broadcast %49 : vector<16x1xf32> to vector<16x2xf32>
    %51 = arith.addf %48, %50 : vector<16x2xf32>
    %c160 = arith.constant 160 : index
    %c0_19 = arith.constant 0 : index
    %52 = vector.load %arg3[%c160, %c0_19] : memref<4408x64xf32, #tpu.memory_space<vmem>>, vector<80x4xf32>
    %c240 = arith.constant 240 : index
    %c0_20 = arith.constant 0 : index
    %53 = vector.load %arg3[%c240, %c0_20] : memref<4408x64xf32, #tpu.memory_space<vmem>>, vector<16x1xf32>
    %cst_21 = arith.constant dense<0.000000e+00> : vector<80x16xf32>
    %54 = tpu.matmul %52, %25, %cst_21 {dimension_numbers = #tpu.dot_dimension_numbers<[1], [0], [0], [1], [0, 0, 1, 1], [], []>} : vector<80x4xf32>, vector<4x16xf32>, vector<80x16xf32> -> vector<80x16xf32>
    %55 = vector.extract_strided_slice %54 {offsets = [0, 0], sizes = [16, 16], strides = [1, 1]} : vector<80x16xf32> to vector<16x16xf32>
    %cst_22 = arith.constant dense<0.000000e+00> : vector<16x16xf32>
    %56 = tpu.matmul %55, %8, %cst_22 {dimension_numbers = #tpu.dot_dimension_numbers<[1], [0], [0], [1], [0, 0, 1, 1], [], []>} : vector<16x16xf32>, vector<16x16xf32>, vector<16x16xf32> -> vector<16x16xf32>
    %57 = vector.broadcast %53 : vector<16x1xf32> to vector<16x16xf32>
    %58 = arith.addf %57, %56 : vector<16x16xf32>
    %59 = vector.extract_strided_slice %54 {offsets = [16, 0], sizes = [16, 16], strides = [1, 1]} : vector<80x16xf32> to vector<16x16xf32>
    %cst_23 = arith.constant dense<0.000000e+00> : vector<16x16xf32>
    %60 = tpu.matmul %59, %9, %cst_23 {dimension_numbers = #tpu.dot_dimension_numbers<[1], [0], [0], [1], [0, 0, 1, 1], [], []>} : vector<16x16xf32>, vector<16x16xf32>, vector<16x16xf32> -> vector<16x16xf32>
    %61 = arith.addf %58, %60 : vector<16x16xf32>
    %62 = vector.extract_strided_slice %54 {offsets = [32, 0], sizes = [16, 16], strides = [1, 1]} : vector<80x16xf32> to vector<16x16xf32>
    %cst_24 = arith.constant dense<0.000000e+00> : vector<16x16xf32>
    %63 = tpu.matmul %62, %10, %cst_24 {dimension_numbers = #tpu.dot_dimension_numbers<[1], [0], [0], [1], [0, 0, 1, 1], [], []>} : vector<16x16xf32>, vector<16x16xf32>, vector<16x16xf32> -> vector<16x16xf32>
    %64 = arith.addf %61, %63 : vector<16x16xf32>
    %65 = vector.extract_strided_slice %54 {offsets = [48, 0], sizes = [16, 16], strides = [1, 1]} : vector<80x16xf32> to vector<16x16xf32>
    %cst_25 = arith.constant dense<0.000000e+00> : vector<16x16xf32>
    %66 = tpu.matmul %65, %11, %cst_25 {dimension_numbers = #tpu.dot_dimension_numbers<[1], [0], [0], [1], [0, 0, 1, 1], [], []>} : vector<16x16xf32>, vector<16x16xf32>, vector<16x16xf32> -> vector<16x16xf32>
    %67 = arith.addf %64, %66 : vector<16x16xf32>
    %68 = vector.extract_strided_slice %54 {offsets = [64, 0], sizes = [16, 16], strides = [1, 1]} : vector<80x16xf32> to vector<16x16xf32>
    %cst_26 = arith.constant dense<0.000000e+00> : vector<16x16xf32>
    %69 = tpu.matmul %68, %12, %cst_26 {dimension_numbers = #tpu.dot_dimension_numbers<[1], [0], [0], [1], [0, 0, 1, 1], [], []>} : vector<16x16xf32>, vector<16x16xf32>, vector<16x16xf32> -> vector<16x16xf32>
    %70 = arith.addf %67, %69 : vector<16x16xf32>
    %cst_27 = arith.constant 0.000000e+00 : f32
    %71 = vector.broadcast %cst_27 : f32 to vector<16x16xf32>
    %72 = arith.maximumf %70, %71 : vector<16x16xf32>
    %73 = vector.broadcast %cst_27 : f32 to vector<16x16xf32>
    %74 = arith.subf %70, %73 : vector<16x16xf32>
    %75 = arith.cmpf one, %74, %74 : vector<16x16xf32>
    %76 = vector.broadcast %cst_27 : f32 to vector<16x16xf32>
    %77 = arith.addf %70, %76 : vector<16x16xf32>
    %78 = math.absf %74 : vector<16x16xf32>
    %cst_28 = arith.constant 0.000000e+00 : f32
    %79 = vector.broadcast %cst_28 : f32 to vector<16x16xf32>
    %80 = arith.subf %79, %78 : vector<16x16xf32>
    %81 = math.exp %80 : vector<16x16xf32>
    %82 = math.log1p %81 : vector<16x16xf32>
    %83 = arith.addf %72, %82 : vector<16x16xf32>
    %84 = arith.select %75, %77, %83 : vector<16x16xi1>, vector<16x16xf32>
    %85 = math.tanh %84 : vector<16x16xf32>
    %86 = arith.mulf %70, %85 : vector<16x16xf32>
    %c352 = arith.constant 352 : index
    %c0_29 = arith.constant 0 : index
    %87 = vector.load %arg3[%c352, %c0_29] : memref<4408x64xf32, #tpu.memory_space<vmem>>, vector<16x16xf32>
    %cst_30 = arith.constant dense<0.000000e+00> : vector<16x2xf32>
    %88 = tpu.matmul %87, %51, %cst_30 {dimension_numbers = #tpu.dot_dimension_numbers<[1], [0], [0], [1], [0, 0, 1, 1], [], []>} : vector<16x16xf32>, vector<16x2xf32>, vector<16x2xf32> -> vector<16x2xf32>
    %c368 = arith.constant 368 : index
    %c0_31 = arith.constant 0 : index
    %89 = vector.load %arg3[%c368, %c0_31] : memref<4408x64xf32, #tpu.memory_space<vmem>>, vector<16x8xf32>
    %cst_32 = arith.constant dense<0.000000e+00> : vector<16x2xf32>
    %90 = tpu.matmul %89, %24, %cst_32 {dimension_numbers = #tpu.dot_dimension_numbers<[1], [0], [0], [1], [0, 0, 1, 1], [], []>} : vector<16x8xf32>, vector<8x2xf32>, vector<16x2xf32> -> vector<16x2xf32>
    %91 = arith.addf %88, %90 : vector<16x2xf32>
    %c384 = arith.constant 384 : index
    %c0_33 = arith.constant 0 : index
    %92 = vector.load %arg3[%c384, %c0_33] : memref<4408x64xf32, #tpu.memory_space<vmem>>, vector<16x1xf32>
    %93 = vector.broadcast %92 : vector<16x1xf32> to vector<16x2xf32>
    %94 = arith.addf %91, %93 : vector<16x2xf32>
    %cst_34 = arith.constant 0.000000e+00 : f32
    %95 = vector.broadcast %cst_34 : f32 to vector<16x2xf32>
    %96 = arith.maximumf %94, %95 : vector<16x2xf32>
    %97 = vector.broadcast %cst_34 : f32 to vector<16x2xf32>
    %98 = arith.subf %94, %97 : vector<16x2xf32>
    %99 = arith.cmpf one, %98, %98 : vector<16x2xf32>
    %100 = vector.broadcast %cst_34 : f32 to vector<16x2xf32>
    %101 = arith.addf %94, %100 : vector<16x2xf32>
    %102 = math.absf %98 : vector<16x2xf32>
    %cst_35 = arith.constant 0.000000e+00 : f32
    %103 = vector.broadcast %cst_35 : f32 to vector<16x2xf32>
    %104 = arith.subf %103, %102 : vector<16x2xf32>
    %105 = math.exp %104 : vector<16x2xf32>
    %106 = math.log1p %105 : vector<16x2xf32>
    %107 = arith.addf %96, %106 : vector<16x2xf32>
    %108 = arith.select %99, %101, %107 : vector<16x2xi1>, vector<16x2xf32>
    %109 = math.tanh %108 : vector<16x2xf32>
    %110 = arith.mulf %94, %109 : vector<16x2xf32>
    %c400 = arith.constant 400 : index
    %c0_36 = arith.constant 0 : index
    %111 = vector.load %arg3[%c400, %c0_36] : memref<4408x64xf32, #tpu.memory_space<vmem>>, vector<16x16xf32>
    %cst_37 = arith.constant dense<0.000000e+00> : vector<16x2xf32>
    %112 = tpu.matmul %111, %110, %cst_37 {dimension_numbers = #tpu.dot_dimension_numbers<[1], [0], [0], [1], [0, 0, 1, 1], [], []>} : vector<16x16xf32>, vector<16x2xf32>, vector<16x2xf32> -> vector<16x2xf32>
    %c416 = arith.constant 416 : index
    %c0_38 = arith.constant 0 : index
    %113 = vector.load %arg3[%c416, %c0_38] : memref<4408x64xf32, #tpu.memory_space<vmem>>, vector<16x1xf32>
    %114 = vector.broadcast %113 : vector<16x1xf32> to vector<16x2xf32>
    %115 = arith.addf %112, %114 : vector<16x2xf32>
    %cst_39 = arith.constant 0.000000e+00 : f32
    %116 = vector.broadcast %cst_39 : f32 to vector<16x2xf32>
    %117 = arith.maximumf %115, %116 : vector<16x2xf32>
    %118 = vector.broadcast %cst_39 : f32 to vector<16x2xf32>
    %119 = arith.subf %115, %118 : vector<16x2xf32>
    %120 = arith.cmpf one, %119, %119 : vector<16x2xf32>
    %121 = vector.broadcast %cst_39 : f32 to vector<16x2xf32>
    %122 = arith.addf %115, %121 : vector<16x2xf32>
    %123 = math.absf %119 : vector<16x2xf32>
    %cst_40 = arith.constant 0.000000e+00 : f32
    %124 = vector.broadcast %cst_40 : f32 to vector<16x2xf32>
    %125 = arith.subf %124, %123 : vector<16x2xf32>
    %126 = math.exp %125 : vector<16x2xf32>
    %127 = math.log1p %126 : vector<16x2xf32>
    %128 = arith.addf %117, %127 : vector<16x2xf32>
    %129 = arith.select %120, %122, %128 : vector<16x2xi1>, vector<16x2xf32>
    %130 = math.tanh %129 : vector<16x2xf32>
    %131 = arith.mulf %115, %130 : vector<16x2xf32>
    %c432 = arith.constant 432 : index
    %c0_41 = arith.constant 0 : index
    %132 = vector.load %arg3[%c432, %c0_41] : memref<4408x64xf32, #tpu.memory_space<vmem>>, vector<16x16xf32>
    %cst_42 = arith.constant dense<0.000000e+00> : vector<16x2xf32>
    %133 = tpu.matmul %132, %131, %cst_42 {dimension_numbers = #tpu.dot_dimension_numbers<[1], [0], [0], [1], [0, 0, 1, 1], [], []>} : vector<16x16xf32>, vector<16x2xf32>, vector<16x2xf32> -> vector<16x2xf32>
    %c448 = arith.constant 448 : index
    %c0_43 = arith.constant 0 : index
    %134 = vector.load %arg3[%c448, %c0_43] : memref<4408x64xf32, #tpu.memory_space<vmem>>, vector<16x1xf32>
    %135 = vector.broadcast %134 : vector<16x1xf32> to vector<16x2xf32>
    %136 = arith.addf %133, %135 : vector<16x2xf32>
    %cst_44 = arith.constant dense<0.000000e+00> : vector<16x16xf32>
    %137 = tpu.matmul %136, %13, %cst_44 {dimension_numbers = #tpu.dot_dimension_numbers<[1], [0], [0], [1], [0, 0, 1, 1], [], []>} : vector<16x2xf32>, vector<2x16xf32>, vector<16x16xf32> -> vector<16x16xf32>
    %138 = arith.addf %86, %137 : vector<16x16xf32>
    %c256 = arith.constant 256 : index
    %c0_45 = arith.constant 0 : index
    %139 = vector.load %arg3[%c256, %c0_45] : memref<4408x64xf32, #tpu.memory_space<vmem>>, vector<80x16xf32>
    %c336 = arith.constant 336 : index
    %c0_46 = arith.constant 0 : index
    %140 = vector.load %arg3[%c336, %c0_46] : memref<4408x64xf32, #tpu.memory_space<vmem>>, vector<16x1xf32>
    %cst_47 = arith.constant dense<0.000000e+00> : vector<80x16xf32>
    %141 = tpu.matmul %139, %138, %cst_47 {dimension_numbers = #tpu.dot_dimension_numbers<[1], [0], [0], [1], [0, 0, 1, 1], [], []>} : vector<80x16xf32>, vector<16x16xf32>, vector<80x16xf32> -> vector<80x16xf32>
    %142 = vector.extract_strided_slice %141 {offsets = [0, 0], sizes = [16, 16], strides = [1, 1]} : vector<80x16xf32> to vector<16x16xf32>
    %cst_48 = arith.constant dense<0.000000e+00> : vector<16x16xf32>
    %143 = tpu.matmul %142, %8, %cst_48 {dimension_numbers = #tpu.dot_dimension_numbers<[1], [0], [0], [1], [0, 0, 1, 1], [], []>} : vector<16x16xf32>, vector<16x16xf32>, vector<16x16xf32> -> vector<16x16xf32>
    %144 = vector.broadcast %140 : vector<16x1xf32> to vector<16x16xf32>
    %145 = arith.addf %144, %143 : vector<16x16xf32>
    %146 = vector.extract_strided_slice %141 {offsets = [16, 0], sizes = [16, 16], strides = [1, 1]} : vector<80x16xf32> to vector<16x16xf32>
    %cst_49 = arith.constant dense<0.000000e+00> : vector<16x16xf32>
    %147 = tpu.matmul %146, %9, %cst_49 {dimension_numbers = #tpu.dot_dimension_numbers<[1], [0], [0], [1], [0, 0, 1, 1], [], []>} : vector<16x16xf32>, vector<16x16xf32>, vector<16x16xf32> -> vector<16x16xf32>
    %148 = arith.addf %145, %147 : vector<16x16xf32>
    %149 = vector.extract_strided_slice %141 {offsets = [32, 0], sizes = [16, 16], strides = [1, 1]} : vector<80x16xf32> to vector<16x16xf32>
    %cst_50 = arith.constant dense<0.000000e+00> : vector<16x16xf32>
    %150 = tpu.matmul %149, %10, %cst_50 {dimension_numbers = #tpu.dot_dimension_numbers<[1], [0], [0], [1], [0, 0, 1, 1], [], []>} : vector<16x16xf32>, vector<16x16xf32>, vector<16x16xf32> -> vector<16x16xf32>
    %151 = arith.addf %148, %150 : vector<16x16xf32>
    %152 = vector.extract_strided_slice %141 {offsets = [48, 0], sizes = [16, 16], strides = [1, 1]} : vector<80x16xf32> to vector<16x16xf32>
    %cst_51 = arith.constant dense<0.000000e+00> : vector<16x16xf32>
    %153 = tpu.matmul %152, %11, %cst_51 {dimension_numbers = #tpu.dot_dimension_numbers<[1], [0], [0], [1], [0, 0, 1, 1], [], []>} : vector<16x16xf32>, vector<16x16xf32>, vector<16x16xf32> -> vector<16x16xf32>
    %154 = arith.addf %151, %153 : vector<16x16xf32>
    %155 = vector.extract_strided_slice %141 {offsets = [64, 0], sizes = [16, 16], strides = [1, 1]} : vector<80x16xf32> to vector<16x16xf32>
    %cst_52 = arith.constant dense<0.000000e+00> : vector<16x16xf32>
    %156 = tpu.matmul %155, %12, %cst_52 {dimension_numbers = #tpu.dot_dimension_numbers<[1], [0], [0], [1], [0, 0, 1, 1], [], []>} : vector<16x16xf32>, vector<16x16xf32>, vector<16x16xf32> -> vector<16x16xf32>
    %157 = arith.addf %154, %156 : vector<16x16xf32>
    %cst_53 = arith.constant 0.000000e+00 : f32
    %158 = vector.broadcast %cst_53 : f32 to vector<16x16xf32>
    %159 = arith.maximumf %157, %158 : vector<16x16xf32>
    %160 = vector.broadcast %cst_53 : f32 to vector<16x16xf32>
    %161 = arith.subf %157, %160 : vector<16x16xf32>
    %162 = arith.cmpf one, %161, %161 : vector<16x16xf32>
    %163 = vector.broadcast %cst_53 : f32 to vector<16x16xf32>
    %164 = arith.addf %157, %163 : vector<16x16xf32>
    %165 = math.absf %161 : vector<16x16xf32>
    %cst_54 = arith.constant 0.000000e+00 : f32
    %166 = vector.broadcast %cst_54 : f32 to vector<16x16xf32>
    %167 = arith.subf %166, %165 : vector<16x16xf32>
    %168 = math.exp %167 : vector<16x16xf32>
    %169 = math.log1p %168 : vector<16x16xf32>
    %170 = arith.addf %159, %169 : vector<16x16xf32>
    %171 = arith.select %162, %164, %170 : vector<16x16xi1>, vector<16x16xf32>
    %172 = math.tanh %171 : vector<16x16xf32>
    %173 = arith.mulf %157, %172 : vector<16x16xf32>
    %c464 = arith.constant 464 : index
    %c0_55 = arith.constant 0 : index
    %174 = vector.load %arg3[%c464, %c0_55] : memref<4408x64xf32, #tpu.memory_space<vmem>>, vector<16x4xf32>
    %c480 = arith.constant 480 : index
    %c0_56 = arith.constant 0 : index
    %175 = vector.load %arg3[%c480, %c0_56] : memref<4408x64xf32, #tpu.memory_space<vmem>>, vector<16x1xf32>
    %cst_57 = arith.constant dense<0.000000e+00> : vector<16x16xf32>
    %176 = tpu.matmul %174, %25, %cst_57 {dimension_numbers = #tpu.dot_dimension_numbers<[1], [0], [0], [1], [0, 0, 1, 1], [], []>} : vector<16x4xf32>, vector<4x16xf32>, vector<16x16xf32> -> vector<16x16xf32>
    %177 = vector.broadcast %175 : vector<16x1xf32> to vector<16x16xf32>
    %178 = arith.addf %177, %176 : vector<16x16xf32>
    %179 = arith.addf %173, %178 : vector<16x16xf32>
    %c496 = arith.constant 496 : index
    %c0_58 = arith.constant 0 : index
    %180 = vector.load %arg3[%c496, %c0_58] : memref<4408x64xf32, #tpu.memory_space<vmem>>, vector<80x16xf32>
    %c576 = arith.constant 576 : index
    %c0_59 = arith.constant 0 : index
    %181 = vector.load %arg3[%c576, %c0_59] : memref<4408x64xf32, #tpu.memory_space<vmem>>, vector<16x1xf32>
    %cst_60 = arith.constant dense<0.000000e+00> : vector<80x16xf32>
    %182 = tpu.matmul %180, %179, %cst_60 {dimension_numbers = #tpu.dot_dimension_numbers<[1], [0], [0], [1], [0, 0, 1, 1], [], []>} : vector<80x16xf32>, vector<16x16xf32>, vector<80x16xf32> -> vector<80x16xf32>
    %183 = vector.extract_strided_slice %182 {offsets = [0, 0], sizes = [16, 16], strides = [1, 1]} : vector<80x16xf32> to vector<16x16xf32>
    %cst_61 = arith.constant dense<0.000000e+00> : vector<16x16xf32>
    %184 = tpu.matmul %183, %8, %cst_61 {dimension_numbers = #tpu.dot_dimension_numbers<[1], [0], [0], [1], [0, 0, 1, 1], [], []>} : vector<16x16xf32>, vector<16x16xf32>, vector<16x16xf32> -> vector<16x16xf32>
    %185 = vector.broadcast %181 : vector<16x1xf32> to vector<16x16xf32>
    %186 = arith.addf %185, %184 : vector<16x16xf32>
    %187 = vector.extract_strided_slice %182 {offsets = [16, 0], sizes = [16, 16], strides = [1, 1]} : vector<80x16xf32> to vector<16x16xf32>
    %cst_62 = arith.constant dense<0.000000e+00> : vector<16x16xf32>
    %188 = tpu.matmul %187, %9, %cst_62 {dimension_numbers = #tpu.dot_dimension_numbers<[1], [0], [0], [1], [0, 0, 1, 1], [], []>} : vector<16x16xf32>, vector<16x16xf32>, vector<16x16xf32> -> vector<16x16xf32>
    %189 = arith.addf %186, %188 : vector<16x16xf32>
    %190 = vector.extract_strided_slice %182 {offsets = [32, 0], sizes = [16, 16], strides = [1, 1]} : vector<80x16xf32> to vector<16x16xf32>
    %cst_63 = arith.constant dense<0.000000e+00> : vector<16x16xf32>
    %191 = tpu.matmul %190, %10, %cst_63 {dimension_numbers = #tpu.dot_dimension_numbers<[1], [0], [0], [1], [0, 0, 1, 1], [], []>} : vector<16x16xf32>, vector<16x16xf32>, vector<16x16xf32> -> vector<16x16xf32>
    %192 = arith.addf %189, %191 : vector<16x16xf32>
    %193 = vector.extract_strided_slice %182 {offsets = [48, 0], sizes = [16, 16], strides = [1, 1]} : vector<80x16xf32> to vector<16x16xf32>
    %cst_64 = arith.constant dense<0.000000e+00> : vector<16x16xf32>
    %194 = tpu.matmul %193, %11, %cst_64 {dimension_numbers = #tpu.dot_dimension_numbers<[1], [0], [0], [1], [0, 0, 1, 1], [], []>} : vector<16x16xf32>, vector<16x16xf32>, vector<16x16xf32> -> vector<16x16xf32>
    %195 = arith.addf %192, %194 : vector<16x16xf32>
    %196 = vector.extract_strided_slice %182 {offsets = [64, 0], sizes = [16, 16], strides = [1, 1]} : vector<80x16xf32> to vector<16x16xf32>
    %cst_65 = arith.constant dense<0.000000e+00> : vector<16x16xf32>
    %197 = tpu.matmul %196, %12, %cst_65 {dimension_numbers = #tpu.dot_dimension_numbers<[1], [0], [0], [1], [0, 0, 1, 1], [], []>} : vector<16x16xf32>, vector<16x16xf32>, vector<16x16xf32> -> vector<16x16xf32>
    %198 = arith.addf %195, %197 : vector<16x16xf32>
    %cst_66 = arith.constant 0.000000e+00 : f32
    %199 = vector.broadcast %cst_66 : f32 to vector<16x16xf32>
    %200 = arith.maximumf %198, %199 : vector<16x16xf32>
    %201 = vector.broadcast %cst_66 : f32 to vector<16x16xf32>
    %202 = arith.subf %198, %201 : vector<16x16xf32>
    %203 = arith.cmpf one, %202, %202 : vector<16x16xf32>
    %204 = vector.broadcast %cst_66 : f32 to vector<16x16xf32>
    %205 = arith.addf %198, %204 : vector<16x16xf32>
    %206 = math.absf %202 : vector<16x16xf32>
    %cst_67 = arith.constant 0.000000e+00 : f32
    %207 = vector.broadcast %cst_67 : f32 to vector<16x16xf32>
    %208 = arith.subf %207, %206 : vector<16x16xf32>
    %209 = math.exp %208 : vector<16x16xf32>
    %210 = math.log1p %209 : vector<16x16xf32>
    %211 = arith.addf %200, %210 : vector<16x16xf32>
    %212 = arith.select %203, %205, %211 : vector<16x16xi1>, vector<16x16xf32>
    %213 = math.tanh %212 : vector<16x16xf32>
    %214 = arith.mulf %198, %213 : vector<16x16xf32>
    %c688 = arith.constant 688 : index
    %c0_68 = arith.constant 0 : index
    %215 = vector.load %arg3[%c688, %c0_68] : memref<4408x64xf32, #tpu.memory_space<vmem>>, vector<16x16xf32>
    %cst_69 = arith.constant dense<0.000000e+00> : vector<16x2xf32>
    %216 = tpu.matmul %215, %51, %cst_69 {dimension_numbers = #tpu.dot_dimension_numbers<[1], [0], [0], [1], [0, 0, 1, 1], [], []>} : vector<16x16xf32>, vector<16x2xf32>, vector<16x2xf32> -> vector<16x2xf32>
    %c704 = arith.constant 704 : index
    %c0_70 = arith.constant 0 : index
    %217 = vector.load %arg3[%c704, %c0_70] : memref<4408x64xf32, #tpu.memory_space<vmem>>, vector<16x8xf32>
    %cst_71 = arith.constant dense<0.000000e+00> : vector<16x2xf32>
    %218 = tpu.matmul %217, %24, %cst_71 {dimension_numbers = #tpu.dot_dimension_numbers<[1], [0], [0], [1], [0, 0, 1, 1], [], []>} : vector<16x8xf32>, vector<8x2xf32>, vector<16x2xf32> -> vector<16x2xf32>
    %219 = arith.addf %216, %218 : vector<16x2xf32>
    %c720 = arith.constant 720 : index
    %c0_72 = arith.constant 0 : index
    %220 = vector.load %arg3[%c720, %c0_72] : memref<4408x64xf32, #tpu.memory_space<vmem>>, vector<16x1xf32>
    %221 = vector.broadcast %220 : vector<16x1xf32> to vector<16x2xf32>
    %222 = arith.addf %219, %221 : vector<16x2xf32>
    %cst_73 = arith.constant 0.000000e+00 : f32
    %223 = vector.broadcast %cst_73 : f32 to vector<16x2xf32>
    %224 = arith.maximumf %222, %223 : vector<16x2xf32>
    %225 = vector.broadcast %cst_73 : f32 to vector<16x2xf32>
    %226 = arith.subf %222, %225 : vector<16x2xf32>
    %227 = arith.cmpf one, %226, %226 : vector<16x2xf32>
    %228 = vector.broadcast %cst_73 : f32 to vector<16x2xf32>
    %229 = arith.addf %222, %228 : vector<16x2xf32>
    %230 = math.absf %226 : vector<16x2xf32>
    %cst_74 = arith.constant 0.000000e+00 : f32
    %231 = vector.broadcast %cst_74 : f32 to vector<16x2xf32>
    %232 = arith.subf %231, %230 : vector<16x2xf32>
    %233 = math.exp %232 : vector<16x2xf32>
    %234 = math.log1p %233 : vector<16x2xf32>
    %235 = arith.addf %224, %234 : vector<16x2xf32>
    %236 = arith.select %227, %229, %235 : vector<16x2xi1>, vector<16x2xf32>
    %237 = math.tanh %236 : vector<16x2xf32>
    %238 = arith.mulf %222, %237 : vector<16x2xf32>
    %c736 = arith.constant 736 : index
    %c0_75 = arith.constant 0 : index
    %239 = vector.load %arg3[%c736, %c0_75] : memref<4408x64xf32, #tpu.memory_space<vmem>>, vector<16x16xf32>
    %cst_76 = arith.constant dense<0.000000e+00> : vector<16x2xf32>
    %240 = tpu.matmul %239, %238, %cst_76 {dimension_numbers = #tpu.dot_dimension_numbers<[1], [0], [0], [1], [0, 0, 1, 1], [], []>} : vector<16x16xf32>, vector<16x2xf32>, vector<16x2xf32> -> vector<16x2xf32>
    %c752 = arith.constant 752 : index
    %c0_77 = arith.constant 0 : index
    %241 = vector.load %arg3[%c752, %c0_77] : memref<4408x64xf32, #tpu.memory_space<vmem>>, vector<16x1xf32>
    %242 = vector.broadcast %241 : vector<16x1xf32> to vector<16x2xf32>
    %243 = arith.addf %240, %242 : vector<16x2xf32>
    %cst_78 = arith.constant 0.000000e+00 : f32
    %244 = vector.broadcast %cst_78 : f32 to vector<16x2xf32>
    %245 = arith.maximumf %243, %244 : vector<16x2xf32>
    %246 = vector.broadcast %cst_78 : f32 to vector<16x2xf32>
    %247 = arith.subf %243, %246 : vector<16x2xf32>
    %248 = arith.cmpf one, %247, %247 : vector<16x2xf32>
    %249 = vector.broadcast %cst_78 : f32 to vector<16x2xf32>
    %250 = arith.addf %243, %249 : vector<16x2xf32>
    %251 = math.absf %247 : vector<16x2xf32>
    %cst_79 = arith.constant 0.000000e+00 : f32
    %252 = vector.broadcast %cst_79 : f32 to vector<16x2xf32>
    %253 = arith.subf %252, %251 : vector<16x2xf32>
    %254 = math.exp %253 : vector<16x2xf32>
    %255 = math.log1p %254 : vector<16x2xf32>
    %256 = arith.addf %245, %255 : vector<16x2xf32>
    %257 = arith.select %248, %250, %256 : vector<16x2xi1>, vector<16x2xf32>
    %258 = math.tanh %257 : vector<16x2xf32>
    %259 = arith.mulf %243, %258 : vector<16x2xf32>
    %c768 = arith.constant 768 : index
    %c0_80 = arith.constant 0 : index
    %260 = vector.load %arg3[%c768, %c0_80] : memref<4408x64xf32, #tpu.memory_space<vmem>>, vector<16x16xf32>
    %cst_81 = arith.constant dense<0.000000e+00> : vector<16x2xf32>
    %261 = tpu.matmul %260, %259, %cst_81 {dimension_numbers = #tpu.dot_dimension_numbers<[1], [0], [0], [1], [0, 0, 1, 1], [], []>} : vector<16x16xf32>, vector<16x2xf32>, vector<16x2xf32> -> vector<16x2xf32>
    %c784 = arith.constant 784 : index
    %c0_82 = arith.constant 0 : index
    %262 = vector.load %arg3[%c784, %c0_82] : memref<4408x64xf32, #tpu.memory_space<vmem>>, vector<16x1xf32>
    %263 = vector.broadcast %262 : vector<16x1xf32> to vector<16x2xf32>
    %264 = arith.addf %261, %263 : vector<16x2xf32>
    %cst_83 = arith.constant dense<0.000000e+00> : vector<16x16xf32>
    %265 = tpu.matmul %264, %13, %cst_83 {dimension_numbers = #tpu.dot_dimension_numbers<[1], [0], [0], [1], [0, 0, 1, 1], [], []>} : vector<16x2xf32>, vector<2x16xf32>, vector<16x16xf32> -> vector<16x16xf32>
    %266 = arith.addf %214, %265 : vector<16x16xf32>
    %c592 = arith.constant 592 : index
    %c0_84 = arith.constant 0 : index
    %267 = vector.load %arg3[%c592, %c0_84] : memref<4408x64xf32, #tpu.memory_space<vmem>>, vector<80x16xf32>
    %c672 = arith.constant 672 : index
    %c0_85 = arith.constant 0 : index
    %268 = vector.load %arg3[%c672, %c0_85] : memref<4408x64xf32, #tpu.memory_space<vmem>>, vector<16x1xf32>
    %cst_86 = arith.constant dense<0.000000e+00> : vector<80x16xf32>
    %269 = tpu.matmul %267, %266, %cst_86 {dimension_numbers = #tpu.dot_dimension_numbers<[1], [0], [0], [1], [0, 0, 1, 1], [], []>} : vector<80x16xf32>, vector<16x16xf32>, vector<80x16xf32> -> vector<80x16xf32>
    %270 = vector.extract_strided_slice %269 {offsets = [0, 0], sizes = [16, 16], strides = [1, 1]} : vector<80x16xf32> to vector<16x16xf32>
    %cst_87 = arith.constant dense<0.000000e+00> : vector<16x16xf32>
    %271 = tpu.matmul %270, %8, %cst_87 {dimension_numbers = #tpu.dot_dimension_numbers<[1], [0], [0], [1], [0, 0, 1, 1], [], []>} : vector<16x16xf32>, vector<16x16xf32>, vector<16x16xf32> -> vector<16x16xf32>
    %272 = vector.broadcast %268 : vector<16x1xf32> to vector<16x16xf32>
    %273 = arith.addf %272, %271 : vector<16x16xf32>
    %274 = vector.extract_strided_slice %269 {offsets = [16, 0], sizes = [16, 16], strides = [1, 1]} : vector<80x16xf32> to vector<16x16xf32>
    %cst_88 = arith.constant dense<0.000000e+00> : vector<16x16xf32>
    %275 = tpu.matmul %274, %9, %cst_88 {dimension_numbers = #tpu.dot_dimension_numbers<[1], [0], [0], [1], [0, 0, 1, 1], [], []>} : vector<16x16xf32>, vector<16x16xf32>, vector<16x16xf32> -> vector<16x16xf32>
    %276 = arith.addf %273, %275 : vector<16x16xf32>
    %277 = vector.extract_strided_slice %269 {offsets = [32, 0], sizes = [16, 16], strides = [1, 1]} : vector<80x16xf32> to vector<16x16xf32>
    %cst_89 = arith.constant dense<0.000000e+00> : vector<16x16xf32>
    %278 = tpu.matmul %277, %10, %cst_89 {dimension_numbers = #tpu.dot_dimension_numbers<[1], [0], [0], [1], [0, 0, 1, 1], [], []>} : vector<16x16xf32>, vector<16x16xf32>, vector<16x16xf32> -> vector<16x16xf32>
    %279 = arith.addf %276, %278 : vector<16x16xf32>
    %280 = vector.extract_strided_slice %269 {offsets = [48, 0], sizes = [16, 16], strides = [1, 1]} : vector<80x16xf32> to vector<16x16xf32>
    %cst_90 = arith.constant dense<0.000000e+00> : vector<16x16xf32>
    %281 = tpu.matmul %280, %11, %cst_90 {dimension_numbers = #tpu.dot_dimension_numbers<[1], [0], [0], [1], [0, 0, 1, 1], [], []>} : vector<16x16xf32>, vector<16x16xf32>, vector<16x16xf32> -> vector<16x16xf32>
    %282 = arith.addf %279, %281 : vector<16x16xf32>
    %283 = vector.extract_strided_slice %269 {offsets = [64, 0], sizes = [16, 16], strides = [1, 1]} : vector<80x16xf32> to vector<16x16xf32>
    %cst_91 = arith.constant dense<0.000000e+00> : vector<16x16xf32>
    %284 = tpu.matmul %283, %12, %cst_91 {dimension_numbers = #tpu.dot_dimension_numbers<[1], [0], [0], [1], [0, 0, 1, 1], [], []>} : vector<16x16xf32>, vector<16x16xf32>, vector<16x16xf32> -> vector<16x16xf32>
    %285 = arith.addf %282, %284 : vector<16x16xf32>
    %cst_92 = arith.constant 0.000000e+00 : f32
    %286 = vector.broadcast %cst_92 : f32 to vector<16x16xf32>
    %287 = arith.maximumf %285, %286 : vector<16x16xf32>
    %288 = vector.broadcast %cst_92 : f32 to vector<16x16xf32>
    %289 = arith.subf %285, %288 : vector<16x16xf32>
    %290 = arith.cmpf one, %289, %289 : vector<16x16xf32>
    %291 = vector.broadcast %cst_92 : f32 to vector<16x16xf32>
    %292 = arith.addf %285, %291 : vector<16x16xf32>
    %293 = math.absf %289 : vector<16x16xf32>
    %cst_93 = arith.constant 0.000000e+00 : f32
    %294 = vector.broadcast %cst_93 : f32 to vector<16x16xf32>
    %295 = arith.subf %294, %293 : vector<16x16xf32>
    %296 = math.exp %295 : vector<16x16xf32>
    %297 = math.log1p %296 : vector<16x16xf32>
    %298 = arith.addf %287, %297 : vector<16x16xf32>
    %299 = arith.select %290, %292, %298 : vector<16x16xi1>, vector<16x16xf32>
    %300 = math.tanh %299 : vector<16x16xf32>
    %301 = arith.mulf %285, %300 : vector<16x16xf32>
    %302 = arith.addf %301, %179 : vector<16x16xf32>
    %c800 = arith.constant 800 : index
    %c0_94 = arith.constant 0 : index
    %303 = vector.load %arg3[%c800, %c0_94] : memref<4408x64xf32, #tpu.memory_space<vmem>>, vector<48x16xf32>
    %c848 = arith.constant 848 : index
    %c0_95 = arith.constant 0 : index
    %304 = vector.load %arg3[%c848, %c0_95] : memref<4408x64xf32, #tpu.memory_space<vmem>>, vector<16x1xf32>
    %cst_96 = arith.constant dense<0.000000e+00> : vector<48x16xf32>
    %305 = tpu.matmul %303, %302, %cst_96 {dimension_numbers = #tpu.dot_dimension_numbers<[1], [0], [0], [1], [0, 0, 1, 1], [], []>} : vector<48x16xf32>, vector<16x16xf32>, vector<48x16xf32> -> vector<48x16xf32>
    %306 = vector.extract_strided_slice %305 {offsets = [0, 0], sizes = [16, 16], strides = [1, 1]} : vector<48x16xf32> to vector<16x16xf32>
    %cst_97 = arith.constant dense<0.000000e+00> : vector<16x8xf32>
    %307 = tpu.matmul %306, %15, %cst_97 {dimension_numbers = #tpu.dot_dimension_numbers<[1], [0], [0], [1], [0, 0, 1, 1], [], []>} : vector<16x16xf32>, vector<16x8xf32>, vector<16x8xf32> -> vector<16x8xf32>
    %308 = vector.broadcast %304 : vector<16x1xf32> to vector<16x8xf32>
    %309 = arith.addf %308, %307 : vector<16x8xf32>
    %310 = vector.extract_strided_slice %305 {offsets = [16, 0], sizes = [16, 16], strides = [1, 1]} : vector<48x16xf32> to vector<16x16xf32>
    %cst_98 = arith.constant dense<0.000000e+00> : vector<16x8xf32>
    %311 = tpu.matmul %310, %16, %cst_98 {dimension_numbers = #tpu.dot_dimension_numbers<[1], [0], [0], [1], [0, 0, 1, 1], [], []>} : vector<16x16xf32>, vector<16x8xf32>, vector<16x8xf32> -> vector<16x8xf32>
    %312 = arith.addf %309, %311 : vector<16x8xf32>
    %313 = vector.extract_strided_slice %305 {offsets = [32, 0], sizes = [16, 16], strides = [1, 1]} : vector<48x16xf32> to vector<16x16xf32>
    %cst_99 = arith.constant dense<0.000000e+00> : vector<16x8xf32>
    %314 = tpu.matmul %313, %17, %cst_99 {dimension_numbers = #tpu.dot_dimension_numbers<[1], [0], [0], [1], [0, 0, 1, 1], [], []>} : vector<16x16xf32>, vector<16x8xf32>, vector<16x8xf32> -> vector<16x8xf32>
    %315 = arith.addf %312, %314 : vector<16x8xf32>
    %c864 = arith.constant 864 : index
    %c0_100 = arith.constant 0 : index
    %316 = vector.load %arg3[%c864, %c0_100] : memref<4408x64xf32, #tpu.memory_space<vmem>>, vector<160x16xf32>
    %c1024 = arith.constant 1024 : index
    %c0_101 = arith.constant 0 : index
    %317 = vector.load %arg3[%c1024, %c0_101] : memref<4408x64xf32, #tpu.memory_space<vmem>>, vector<32x1xf32>
    %cst_102 = arith.constant dense<0.000000e+00> : vector<160x8xf32>
    %318 = tpu.matmul %316, %315, %cst_102 {dimension_numbers = #tpu.dot_dimension_numbers<[1], [0], [0], [1], [0, 0, 1, 1], [], []>} : vector<160x16xf32>, vector<16x8xf32>, vector<160x8xf32> -> vector<160x8xf32>
    %319 = vector.extract_strided_slice %318 {offsets = [0, 0], sizes = [32, 8], strides = [1, 1]} : vector<160x8xf32> to vector<32x8xf32>
    %cst_103 = arith.constant dense<0.000000e+00> : vector<32x8xf32>
    %320 = tpu.matmul %319, %1, %cst_103 {dimension_numbers = #tpu.dot_dimension_numbers<[1], [0], [0], [1], [0, 0, 1, 1], [], []>} : vector<32x8xf32>, vector<8x8xf32>, vector<32x8xf32> -> vector<32x8xf32>
    %321 = vector.broadcast %317 : vector<32x1xf32> to vector<32x8xf32>
    %322 = arith.addf %321, %320 : vector<32x8xf32>
    %323 = vector.extract_strided_slice %318 {offsets = [32, 0], sizes = [32, 8], strides = [1, 1]} : vector<160x8xf32> to vector<32x8xf32>
    %cst_104 = arith.constant dense<0.000000e+00> : vector<32x8xf32>
    %324 = tpu.matmul %323, %2, %cst_104 {dimension_numbers = #tpu.dot_dimension_numbers<[1], [0], [0], [1], [0, 0, 1, 1], [], []>} : vector<32x8xf32>, vector<8x8xf32>, vector<32x8xf32> -> vector<32x8xf32>
    %325 = arith.addf %322, %324 : vector<32x8xf32>
    %326 = vector.extract_strided_slice %318 {offsets = [64, 0], sizes = [32, 8], strides = [1, 1]} : vector<160x8xf32> to vector<32x8xf32>
    %cst_105 = arith.constant dense<0.000000e+00> : vector<32x8xf32>
    %327 = tpu.matmul %326, %3, %cst_105 {dimension_numbers = #tpu.dot_dimension_numbers<[1], [0], [0], [1], [0, 0, 1, 1], [], []>} : vector<32x8xf32>, vector<8x8xf32>, vector<32x8xf32> -> vector<32x8xf32>
    %328 = arith.addf %325, %327 : vector<32x8xf32>
    %329 = vector.extract_strided_slice %318 {offsets = [96, 0], sizes = [32, 8], strides = [1, 1]} : vector<160x8xf32> to vector<32x8xf32>
    %cst_106 = arith.constant dense<0.000000e+00> : vector<32x8xf32>
    %330 = tpu.matmul %329, %4, %cst_106 {dimension_numbers = #tpu.dot_dimension_numbers<[1], [0], [0], [1], [0, 0, 1, 1], [], []>} : vector<32x8xf32>, vector<8x8xf32>, vector<32x8xf32> -> vector<32x8xf32>
    %331 = arith.addf %328, %330 : vector<32x8xf32>
    %332 = vector.extract_strided_slice %318 {offsets = [128, 0], sizes = [32, 8], strides = [1, 1]} : vector<160x8xf32> to vector<32x8xf32>
    %cst_107 = arith.constant dense<0.000000e+00> : vector<32x8xf32>
    %333 = tpu.matmul %332, %5, %cst_107 {dimension_numbers = #tpu.dot_dimension_numbers<[1], [0], [0], [1], [0, 0, 1, 1], [], []>} : vector<32x8xf32>, vector<8x8xf32>, vector<32x8xf32> -> vector<32x8xf32>
    %334 = arith.addf %331, %333 : vector<32x8xf32>
    %cst_108 = arith.constant 0.000000e+00 : f32
    %335 = vector.broadcast %cst_108 : f32 to vector<32x8xf32>
    %336 = arith.maximumf %334, %335 : vector<32x8xf32>
    %337 = vector.broadcast %cst_108 : f32 to vector<32x8xf32>
    %338 = arith.subf %334, %337 : vector<32x8xf32>
    %339 = arith.cmpf one, %338, %338 : vector<32x8xf32>
    %340 = vector.broadcast %cst_108 : f32 to vector<32x8xf32>
    %341 = arith.addf %334, %340 : vector<32x8xf32>
    %342 = math.absf %338 : vector<32x8xf32>
    %cst_109 = arith.constant 0.000000e+00 : f32
    %343 = vector.broadcast %cst_109 : f32 to vector<32x8xf32>
    %344 = arith.subf %343, %342 : vector<32x8xf32>
    %345 = math.exp %344 : vector<32x8xf32>
    %346 = math.log1p %345 : vector<32x8xf32>
    %347 = arith.addf %336, %346 : vector<32x8xf32>
    %348 = arith.select %339, %341, %347 : vector<32x8xi1>, vector<32x8xf32>
    %349 = math.tanh %348 : vector<32x8xf32>
    %350 = arith.mulf %334, %349 : vector<32x8xf32>
    %c1248 = arith.constant 1248 : index
    %c0_110 = arith.constant 0 : index
    %351 = vector.load %arg3[%c1248, %c0_110] : memref<4408x64xf32, #tpu.memory_space<vmem>>, vector<32x16xf32>
    %cst_111 = arith.constant dense<0.000000e+00> : vector<32x2xf32>
    %352 = tpu.matmul %351, %51, %cst_111 {dimension_numbers = #tpu.dot_dimension_numbers<[1], [0], [0], [1], [0, 0, 1, 1], [], []>} : vector<32x16xf32>, vector<16x2xf32>, vector<32x2xf32> -> vector<32x2xf32>
    %c1280 = arith.constant 1280 : index
    %c0_112 = arith.constant 0 : index
    %353 = vector.load %arg3[%c1280, %c0_112] : memref<4408x64xf32, #tpu.memory_space<vmem>>, vector<32x8xf32>
    %cst_113 = arith.constant dense<0.000000e+00> : vector<32x2xf32>
    %354 = tpu.matmul %353, %24, %cst_113 {dimension_numbers = #tpu.dot_dimension_numbers<[1], [0], [0], [1], [0, 0, 1, 1], [], []>} : vector<32x8xf32>, vector<8x2xf32>, vector<32x2xf32> -> vector<32x2xf32>
    %355 = arith.addf %352, %354 : vector<32x2xf32>
    %c1312 = arith.constant 1312 : index
    %c0_114 = arith.constant 0 : index
    %356 = vector.load %arg3[%c1312, %c0_114] : memref<4408x64xf32, #tpu.memory_space<vmem>>, vector<32x1xf32>
    %357 = vector.broadcast %356 : vector<32x1xf32> to vector<32x2xf32>
    %358 = arith.addf %355, %357 : vector<32x2xf32>
    %cst_115 = arith.constant 0.000000e+00 : f32
    %359 = vector.broadcast %cst_115 : f32 to vector<32x2xf32>
    %360 = arith.maximumf %358, %359 : vector<32x2xf32>
    %361 = vector.broadcast %cst_115 : f32 to vector<32x2xf32>
    %362 = arith.subf %358, %361 : vector<32x2xf32>
    %363 = arith.cmpf one, %362, %362 : vector<32x2xf32>
    %364 = vector.broadcast %cst_115 : f32 to vector<32x2xf32>
    %365 = arith.addf %358, %364 : vector<32x2xf32>
    %366 = math.absf %362 : vector<32x2xf32>
    %cst_116 = arith.constant 0.000000e+00 : f32
    %367 = vector.broadcast %cst_116 : f32 to vector<32x2xf32>
    %368 = arith.subf %367, %366 : vector<32x2xf32>
    %369 = math.exp %368 : vector<32x2xf32>
    %370 = math.log1p %369 : vector<32x2xf32>
    %371 = arith.addf %360, %370 : vector<32x2xf32>
    %372 = arith.select %363, %365, %371 : vector<32x2xi1>, vector<32x2xf32>
    %373 = math.tanh %372 : vector<32x2xf32>
    %374 = arith.mulf %358, %373 : vector<32x2xf32>
    %c1344 = arith.constant 1344 : index
    %c0_117 = arith.constant 0 : index
    %375 = vector.load %arg3[%c1344, %c0_117] : memref<4408x64xf32, #tpu.memory_space<vmem>>, vector<32x32xf32>
    %cst_118 = arith.constant dense<0.000000e+00> : vector<32x2xf32>
    %376 = tpu.matmul %375, %374, %cst_118 {dimension_numbers = #tpu.dot_dimension_numbers<[1], [0], [0], [1], [0, 0, 1, 1], [], []>} : vector<32x32xf32>, vector<32x2xf32>, vector<32x2xf32> -> vector<32x2xf32>
    %c1376 = arith.constant 1376 : index
    %c0_119 = arith.constant 0 : index
    %377 = vector.load %arg3[%c1376, %c0_119] : memref<4408x64xf32, #tpu.memory_space<vmem>>, vector<32x1xf32>
    %378 = vector.broadcast %377 : vector<32x1xf32> to vector<32x2xf32>
    %379 = arith.addf %376, %378 : vector<32x2xf32>
    %cst_120 = arith.constant 0.000000e+00 : f32
    %380 = vector.broadcast %cst_120 : f32 to vector<32x2xf32>
    %381 = arith.maximumf %379, %380 : vector<32x2xf32>
    %382 = vector.broadcast %cst_120 : f32 to vector<32x2xf32>
    %383 = arith.subf %379, %382 : vector<32x2xf32>
    %384 = arith.cmpf one, %383, %383 : vector<32x2xf32>
    %385 = vector.broadcast %cst_120 : f32 to vector<32x2xf32>
    %386 = arith.addf %379, %385 : vector<32x2xf32>
    %387 = math.absf %383 : vector<32x2xf32>
    %cst_121 = arith.constant 0.000000e+00 : f32
    %388 = vector.broadcast %cst_121 : f32 to vector<32x2xf32>
    %389 = arith.subf %388, %387 : vector<32x2xf32>
    %390 = math.exp %389 : vector<32x2xf32>
    %391 = math.log1p %390 : vector<32x2xf32>
    %392 = arith.addf %381, %391 : vector<32x2xf32>
    %393 = arith.select %384, %386, %392 : vector<32x2xi1>, vector<32x2xf32>
    %394 = math.tanh %393 : vector<32x2xf32>
    %395 = arith.mulf %379, %394 : vector<32x2xf32>
    %c1408 = arith.constant 1408 : index
    %c0_122 = arith.constant 0 : index
    %396 = vector.load %arg3[%c1408, %c0_122] : memref<4408x64xf32, #tpu.memory_space<vmem>>, vector<32x32xf32>
    %cst_123 = arith.constant dense<0.000000e+00> : vector<32x2xf32>
    %397 = tpu.matmul %396, %395, %cst_123 {dimension_numbers = #tpu.dot_dimension_numbers<[1], [0], [0], [1], [0, 0, 1, 1], [], []>} : vector<32x32xf32>, vector<32x2xf32>, vector<32x2xf32> -> vector<32x2xf32>
    %c1440 = arith.constant 1440 : index
    %c0_124 = arith.constant 0 : index
    %398 = vector.load %arg3[%c1440, %c0_124] : memref<4408x64xf32, #tpu.memory_space<vmem>>, vector<32x1xf32>
    %399 = vector.broadcast %398 : vector<32x1xf32> to vector<32x2xf32>
    %400 = arith.addf %397, %399 : vector<32x2xf32>
    %cst_125 = arith.constant dense<0.000000e+00> : vector<32x8xf32>
    %401 = tpu.matmul %400, %6, %cst_125 {dimension_numbers = #tpu.dot_dimension_numbers<[1], [0], [0], [1], [0, 0, 1, 1], [], []>} : vector<32x2xf32>, vector<2x8xf32>, vector<32x8xf32> -> vector<32x8xf32>
    %402 = arith.addf %350, %401 : vector<32x8xf32>
    %c1056 = arith.constant 1056 : index
    %c0_126 = arith.constant 0 : index
    %403 = vector.load %arg3[%c1056, %c0_126] : memref<4408x64xf32, #tpu.memory_space<vmem>>, vector<160x32xf32>
    %c1216 = arith.constant 1216 : index
    %c0_127 = arith.constant 0 : index
    %404 = vector.load %arg3[%c1216, %c0_127] : memref<4408x64xf32, #tpu.memory_space<vmem>>, vector<32x1xf32>
    %cst_128 = arith.constant dense<0.000000e+00> : vector<160x8xf32>
    %405 = tpu.matmul %403, %402, %cst_128 {dimension_numbers = #tpu.dot_dimension_numbers<[1], [0], [0], [1], [0, 0, 1, 1], [], []>} : vector<160x32xf32>, vector<32x8xf32>, vector<160x8xf32> -> vector<160x8xf32>
    %406 = vector.extract_strided_slice %405 {offsets = [0, 0], sizes = [32, 8], strides = [1, 1]} : vector<160x8xf32> to vector<32x8xf32>
    %cst_129 = arith.constant dense<0.000000e+00> : vector<32x8xf32>
    %407 = tpu.matmul %406, %1, %cst_129 {dimension_numbers = #tpu.dot_dimension_numbers<[1], [0], [0], [1], [0, 0, 1, 1], [], []>} : vector<32x8xf32>, vector<8x8xf32>, vector<32x8xf32> -> vector<32x8xf32>
    %408 = vector.broadcast %404 : vector<32x1xf32> to vector<32x8xf32>
    %409 = arith.addf %408, %407 : vector<32x8xf32>
    %410 = vector.extract_strided_slice %405 {offsets = [32, 0], sizes = [32, 8], strides = [1, 1]} : vector<160x8xf32> to vector<32x8xf32>
    %cst_130 = arith.constant dense<0.000000e+00> : vector<32x8xf32>
    %411 = tpu.matmul %410, %2, %cst_130 {dimension_numbers = #tpu.dot_dimension_numbers<[1], [0], [0], [1], [0, 0, 1, 1], [], []>} : vector<32x8xf32>, vector<8x8xf32>, vector<32x8xf32> -> vector<32x8xf32>
    %412 = arith.addf %409, %411 : vector<32x8xf32>
    %413 = vector.extract_strided_slice %405 {offsets = [64, 0], sizes = [32, 8], strides = [1, 1]} : vector<160x8xf32> to vector<32x8xf32>
    %cst_131 = arith.constant dense<0.000000e+00> : vector<32x8xf32>
    %414 = tpu.matmul %413, %3, %cst_131 {dimension_numbers = #tpu.dot_dimension_numbers<[1], [0], [0], [1], [0, 0, 1, 1], [], []>} : vector<32x8xf32>, vector<8x8xf32>, vector<32x8xf32> -> vector<32x8xf32>
    %415 = arith.addf %412, %414 : vector<32x8xf32>
    %416 = vector.extract_strided_slice %405 {offsets = [96, 0], sizes = [32, 8], strides = [1, 1]} : vector<160x8xf32> to vector<32x8xf32>
    %cst_132 = arith.constant dense<0.000000e+00> : vector<32x8xf32>
    %417 = tpu.matmul %416, %4, %cst_132 {dimension_numbers = #tpu.dot_dimension_numbers<[1], [0], [0], [1], [0, 0, 1, 1], [], []>} : vector<32x8xf32>, vector<8x8xf32>, vector<32x8xf32> -> vector<32x8xf32>
    %418 = arith.addf %415, %417 : vector<32x8xf32>
    %419 = vector.extract_strided_slice %405 {offsets = [128, 0], sizes = [32, 8], strides = [1, 1]} : vector<160x8xf32> to vector<32x8xf32>
    %cst_133 = arith.constant dense<0.000000e+00> : vector<32x8xf32>
    %420 = tpu.matmul %419, %5, %cst_133 {dimension_numbers = #tpu.dot_dimension_numbers<[1], [0], [0], [1], [0, 0, 1, 1], [], []>} : vector<32x8xf32>, vector<8x8xf32>, vector<32x8xf32> -> vector<32x8xf32>
    %421 = arith.addf %418, %420 : vector<32x8xf32>
    %cst_134 = arith.constant 0.000000e+00 : f32
    %422 = vector.broadcast %cst_134 : f32 to vector<32x8xf32>
    %423 = arith.maximumf %421, %422 : vector<32x8xf32>
    %424 = vector.broadcast %cst_134 : f32 to vector<32x8xf32>
    %425 = arith.subf %421, %424 : vector<32x8xf32>
    %426 = arith.cmpf one, %425, %425 : vector<32x8xf32>
    %427 = vector.broadcast %cst_134 : f32 to vector<32x8xf32>
    %428 = arith.addf %421, %427 : vector<32x8xf32>
    %429 = math.absf %425 : vector<32x8xf32>
    %cst_135 = arith.constant 0.000000e+00 : f32
    %430 = vector.broadcast %cst_135 : f32 to vector<32x8xf32>
    %431 = arith.subf %430, %429 : vector<32x8xf32>
    %432 = math.exp %431 : vector<32x8xf32>
    %433 = math.log1p %432 : vector<32x8xf32>
    %434 = arith.addf %423, %433 : vector<32x8xf32>
    %435 = arith.select %426, %428, %434 : vector<32x8xi1>, vector<32x8xf32>
    %436 = math.tanh %435 : vector<32x8xf32>
    %437 = arith.mulf %421, %436 : vector<32x8xf32>
    %c1472 = arith.constant 1472 : index
    %c0_136 = arith.constant 0 : index
    %438 = vector.load %arg3[%c1472, %c0_136] : memref<4408x64xf32, #tpu.memory_space<vmem>>, vector<32x16xf32>
    %c1504 = arith.constant 1504 : index
    %c0_137 = arith.constant 0 : index
    %439 = vector.load %arg3[%c1504, %c0_137] : memref<4408x64xf32, #tpu.memory_space<vmem>>, vector<32x1xf32>
    %cst_138 = arith.constant dense<0.000000e+00> : vector<32x8xf32>
    %440 = tpu.matmul %438, %315, %cst_138 {dimension_numbers = #tpu.dot_dimension_numbers<[1], [0], [0], [1], [0, 0, 1, 1], [], []>} : vector<32x16xf32>, vector<16x8xf32>, vector<32x8xf32> -> vector<32x8xf32>
    %441 = vector.broadcast %439 : vector<32x1xf32> to vector<32x8xf32>
    %442 = arith.addf %441, %440 : vector<32x8xf32>
    %443 = arith.addf %437, %442 : vector<32x8xf32>
    %c1536 = arith.constant 1536 : index
    %c0_139 = arith.constant 0 : index
    %444 = vector.load %arg3[%c1536, %c0_139] : memref<4408x64xf32, #tpu.memory_space<vmem>>, vector<160x32xf32>
    %c1696 = arith.constant 1696 : index
    %c0_140 = arith.constant 0 : index
    %445 = vector.load %arg3[%c1696, %c0_140] : memref<4408x64xf32, #tpu.memory_space<vmem>>, vector<32x1xf32>
    %cst_141 = arith.constant dense<0.000000e+00> : vector<160x8xf32>
    %446 = tpu.matmul %444, %443, %cst_141 {dimension_numbers = #tpu.dot_dimension_numbers<[1], [0], [0], [1], [0, 0, 1, 1], [], []>} : vector<160x32xf32>, vector<32x8xf32>, vector<160x8xf32> -> vector<160x8xf32>
    %447 = vector.extract_strided_slice %446 {offsets = [0, 0], sizes = [32, 8], strides = [1, 1]} : vector<160x8xf32> to vector<32x8xf32>
    %cst_142 = arith.constant dense<0.000000e+00> : vector<32x8xf32>
    %448 = tpu.matmul %447, %1, %cst_142 {dimension_numbers = #tpu.dot_dimension_numbers<[1], [0], [0], [1], [0, 0, 1, 1], [], []>} : vector<32x8xf32>, vector<8x8xf32>, vector<32x8xf32> -> vector<32x8xf32>
    %449 = vector.broadcast %445 : vector<32x1xf32> to vector<32x8xf32>
    %450 = arith.addf %449, %448 : vector<32x8xf32>
    %451 = vector.extract_strided_slice %446 {offsets = [32, 0], sizes = [32, 8], strides = [1, 1]} : vector<160x8xf32> to vector<32x8xf32>
    %cst_143 = arith.constant dense<0.000000e+00> : vector<32x8xf32>
    %452 = tpu.matmul %451, %2, %cst_143 {dimension_numbers = #tpu.dot_dimension_numbers<[1], [0], [0], [1], [0, 0, 1, 1], [], []>} : vector<32x8xf32>, vector<8x8xf32>, vector<32x8xf32> -> vector<32x8xf32>
    %453 = arith.addf %450, %452 : vector<32x8xf32>
    %454 = vector.extract_strided_slice %446 {offsets = [64, 0], sizes = [32, 8], strides = [1, 1]} : vector<160x8xf32> to vector<32x8xf32>
    %cst_144 = arith.constant dense<0.000000e+00> : vector<32x8xf32>
    %455 = tpu.matmul %454, %3, %cst_144 {dimension_numbers = #tpu.dot_dimension_numbers<[1], [0], [0], [1], [0, 0, 1, 1], [], []>} : vector<32x8xf32>, vector<8x8xf32>, vector<32x8xf32> -> vector<32x8xf32>
    %456 = arith.addf %453, %455 : vector<32x8xf32>
    %457 = vector.extract_strided_slice %446 {offsets = [96, 0], sizes = [32, 8], strides = [1, 1]} : vector<160x8xf32> to vector<32x8xf32>
    %cst_145 = arith.constant dense<0.000000e+00> : vector<32x8xf32>
    %458 = tpu.matmul %457, %4, %cst_145 {dimension_numbers = #tpu.dot_dimension_numbers<[1], [0], [0], [1], [0, 0, 1, 1], [], []>} : vector<32x8xf32>, vector<8x8xf32>, vector<32x8xf32> -> vector<32x8xf32>
    %459 = arith.addf %456, %458 : vector<32x8xf32>
    %460 = vector.extract_strided_slice %446 {offsets = [128, 0], sizes = [32, 8], strides = [1, 1]} : vector<160x8xf32> to vector<32x8xf32>
    %cst_146 = arith.constant dense<0.000000e+00> : vector<32x8xf32>
    %461 = tpu.matmul %460, %5, %cst_146 {dimension_numbers = #tpu.dot_dimension_numbers<[1], [0], [0], [1], [0, 0, 1, 1], [], []>} : vector<32x8xf32>, vector<8x8xf32>, vector<32x8xf32> -> vector<32x8xf32>
    %462 = arith.addf %459, %461 : vector<32x8xf32>
    %cst_147 = arith.constant 0.000000e+00 : f32
    %463 = vector.broadcast %cst_147 : f32 to vector<32x8xf32>
    %464 = arith.maximumf %462, %463 : vector<32x8xf32>
    %465 = vector.broadcast %cst_147 : f32 to vector<32x8xf32>
    %466 = arith.subf %462, %465 : vector<32x8xf32>
    %467 = arith.cmpf one, %466, %466 : vector<32x8xf32>
    %468 = vector.broadcast %cst_147 : f32 to vector<32x8xf32>
    %469 = arith.addf %462, %468 : vector<32x8xf32>
    %470 = math.absf %466 : vector<32x8xf32>
    %cst_148 = arith.constant 0.000000e+00 : f32
    %471 = vector.broadcast %cst_148 : f32 to vector<32x8xf32>
    %472 = arith.subf %471, %470 : vector<32x8xf32>
    %473 = math.exp %472 : vector<32x8xf32>
    %474 = math.log1p %473 : vector<32x8xf32>
    %475 = arith.addf %464, %474 : vector<32x8xf32>
    %476 = arith.select %467, %469, %475 : vector<32x8xi1>, vector<32x8xf32>
    %477 = math.tanh %476 : vector<32x8xf32>
    %478 = arith.mulf %462, %477 : vector<32x8xf32>
    %c1920 = arith.constant 1920 : index
    %c0_149 = arith.constant 0 : index
    %479 = vector.load %arg3[%c1920, %c0_149] : memref<4408x64xf32, #tpu.memory_space<vmem>>, vector<32x16xf32>
    %cst_150 = arith.constant dense<0.000000e+00> : vector<32x2xf32>
    %480 = tpu.matmul %479, %51, %cst_150 {dimension_numbers = #tpu.dot_dimension_numbers<[1], [0], [0], [1], [0, 0, 1, 1], [], []>} : vector<32x16xf32>, vector<16x2xf32>, vector<32x2xf32> -> vector<32x2xf32>
    %c1952 = arith.constant 1952 : index
    %c0_151 = arith.constant 0 : index
    %481 = vector.load %arg3[%c1952, %c0_151] : memref<4408x64xf32, #tpu.memory_space<vmem>>, vector<32x8xf32>
    %cst_152 = arith.constant dense<0.000000e+00> : vector<32x2xf32>
    %482 = tpu.matmul %481, %24, %cst_152 {dimension_numbers = #tpu.dot_dimension_numbers<[1], [0], [0], [1], [0, 0, 1, 1], [], []>} : vector<32x8xf32>, vector<8x2xf32>, vector<32x2xf32> -> vector<32x2xf32>
    %483 = arith.addf %480, %482 : vector<32x2xf32>
    %c1984 = arith.constant 1984 : index
    %c0_153 = arith.constant 0 : index
    %484 = vector.load %arg3[%c1984, %c0_153] : memref<4408x64xf32, #tpu.memory_space<vmem>>, vector<32x1xf32>
    %485 = vector.broadcast %484 : vector<32x1xf32> to vector<32x2xf32>
    %486 = arith.addf %483, %485 : vector<32x2xf32>
    %cst_154 = arith.constant 0.000000e+00 : f32
    %487 = vector.broadcast %cst_154 : f32 to vector<32x2xf32>
    %488 = arith.maximumf %486, %487 : vector<32x2xf32>
    %489 = vector.broadcast %cst_154 : f32 to vector<32x2xf32>
    %490 = arith.subf %486, %489 : vector<32x2xf32>
    %491 = arith.cmpf one, %490, %490 : vector<32x2xf32>
    %492 = vector.broadcast %cst_154 : f32 to vector<32x2xf32>
    %493 = arith.addf %486, %492 : vector<32x2xf32>
    %494 = math.absf %490 : vector<32x2xf32>
    %cst_155 = arith.constant 0.000000e+00 : f32
    %495 = vector.broadcast %cst_155 : f32 to vector<32x2xf32>
    %496 = arith.subf %495, %494 : vector<32x2xf32>
    %497 = math.exp %496 : vector<32x2xf32>
    %498 = math.log1p %497 : vector<32x2xf32>
    %499 = arith.addf %488, %498 : vector<32x2xf32>
    %500 = arith.select %491, %493, %499 : vector<32x2xi1>, vector<32x2xf32>
    %501 = math.tanh %500 : vector<32x2xf32>
    %502 = arith.mulf %486, %501 : vector<32x2xf32>
    %c2016 = arith.constant 2016 : index
    %c0_156 = arith.constant 0 : index
    %503 = vector.load %arg3[%c2016, %c0_156] : memref<4408x64xf32, #tpu.memory_space<vmem>>, vector<32x32xf32>
    %cst_157 = arith.constant dense<0.000000e+00> : vector<32x2xf32>
    %504 = tpu.matmul %503, %502, %cst_157 {dimension_numbers = #tpu.dot_dimension_numbers<[1], [0], [0], [1], [0, 0, 1, 1], [], []>} : vector<32x32xf32>, vector<32x2xf32>, vector<32x2xf32> -> vector<32x2xf32>
    %c2048 = arith.constant 2048 : index
    %c0_158 = arith.constant 0 : index
    %505 = vector.load %arg3[%c2048, %c0_158] : memref<4408x64xf32, #tpu.memory_space<vmem>>, vector<32x1xf32>
    %506 = vector.broadcast %505 : vector<32x1xf32> to vector<32x2xf32>
    %507 = arith.addf %504, %506 : vector<32x2xf32>
    %cst_159 = arith.constant 0.000000e+00 : f32
    %508 = vector.broadcast %cst_159 : f32 to vector<32x2xf32>
    %509 = arith.maximumf %507, %508 : vector<32x2xf32>
    %510 = vector.broadcast %cst_159 : f32 to vector<32x2xf32>
    %511 = arith.subf %507, %510 : vector<32x2xf32>
    %512 = arith.cmpf one, %511, %511 : vector<32x2xf32>
    %513 = vector.broadcast %cst_159 : f32 to vector<32x2xf32>
    %514 = arith.addf %507, %513 : vector<32x2xf32>
    %515 = math.absf %511 : vector<32x2xf32>
    %cst_160 = arith.constant 0.000000e+00 : f32
    %516 = vector.broadcast %cst_160 : f32 to vector<32x2xf32>
    %517 = arith.subf %516, %515 : vector<32x2xf32>
    %518 = math.exp %517 : vector<32x2xf32>
    %519 = math.log1p %518 : vector<32x2xf32>
    %520 = arith.addf %509, %519 : vector<32x2xf32>
    %521 = arith.select %512, %514, %520 : vector<32x2xi1>, vector<32x2xf32>
    %522 = math.tanh %521 : vector<32x2xf32>
    %523 = arith.mulf %507, %522 : vector<32x2xf32>
    %c2080 = arith.constant 2080 : index
    %c0_161 = arith.constant 0 : index
    %524 = vector.load %arg3[%c2080, %c0_161] : memref<4408x64xf32, #tpu.memory_space<vmem>>, vector<32x32xf32>
    %cst_162 = arith.constant dense<0.000000e+00> : vector<32x2xf32>
    %525 = tpu.matmul %524, %523, %cst_162 {dimension_numbers = #tpu.dot_dimension_numbers<[1], [0], [0], [1], [0, 0, 1, 1], [], []>} : vector<32x32xf32>, vector<32x2xf32>, vector<32x2xf32> -> vector<32x2xf32>
    %c2112 = arith.constant 2112 : index
    %c0_163 = arith.constant 0 : index
    %526 = vector.load %arg3[%c2112, %c0_163] : memref<4408x64xf32, #tpu.memory_space<vmem>>, vector<32x1xf32>
    %527 = vector.broadcast %526 : vector<32x1xf32> to vector<32x2xf32>
    %528 = arith.addf %525, %527 : vector<32x2xf32>
    %cst_164 = arith.constant dense<0.000000e+00> : vector<32x8xf32>
    %529 = tpu.matmul %528, %6, %cst_164 {dimension_numbers = #tpu.dot_dimension_numbers<[1], [0], [0], [1], [0, 0, 1, 1], [], []>} : vector<32x2xf32>, vector<2x8xf32>, vector<32x8xf32> -> vector<32x8xf32>
    %530 = arith.addf %478, %529 : vector<32x8xf32>
    %c1728 = arith.constant 1728 : index
    %c0_165 = arith.constant 0 : index
    %531 = vector.load %arg3[%c1728, %c0_165] : memref<4408x64xf32, #tpu.memory_space<vmem>>, vector<160x32xf32>
    %c1888 = arith.constant 1888 : index
    %c0_166 = arith.constant 0 : index
    %532 = vector.load %arg3[%c1888, %c0_166] : memref<4408x64xf32, #tpu.memory_space<vmem>>, vector<32x1xf32>
    %cst_167 = arith.constant dense<0.000000e+00> : vector<160x8xf32>
    %533 = tpu.matmul %531, %530, %cst_167 {dimension_numbers = #tpu.dot_dimension_numbers<[1], [0], [0], [1], [0, 0, 1, 1], [], []>} : vector<160x32xf32>, vector<32x8xf32>, vector<160x8xf32> -> vector<160x8xf32>
    %534 = vector.extract_strided_slice %533 {offsets = [0, 0], sizes = [32, 8], strides = [1, 1]} : vector<160x8xf32> to vector<32x8xf32>
    %cst_168 = arith.constant dense<0.000000e+00> : vector<32x8xf32>
    %535 = tpu.matmul %534, %1, %cst_168 {dimension_numbers = #tpu.dot_dimension_numbers<[1], [0], [0], [1], [0, 0, 1, 1], [], []>} : vector<32x8xf32>, vector<8x8xf32>, vector<32x8xf32> -> vector<32x8xf32>
    %536 = vector.broadcast %532 : vector<32x1xf32> to vector<32x8xf32>
    %537 = arith.addf %536, %535 : vector<32x8xf32>
    %538 = vector.extract_strided_slice %533 {offsets = [32, 0], sizes = [32, 8], strides = [1, 1]} : vector<160x8xf32> to vector<32x8xf32>
    %cst_169 = arith.constant dense<0.000000e+00> : vector<32x8xf32>
    %539 = tpu.matmul %538, %2, %cst_169 {dimension_numbers = #tpu.dot_dimension_numbers<[1], [0], [0], [1], [0, 0, 1, 1], [], []>} : vector<32x8xf32>, vector<8x8xf32>, vector<32x8xf32> -> vector<32x8xf32>
    %540 = arith.addf %537, %539 : vector<32x8xf32>
    %541 = vector.extract_strided_slice %533 {offsets = [64, 0], sizes = [32, 8], strides = [1, 1]} : vector<160x8xf32> to vector<32x8xf32>
    %cst_170 = arith.constant dense<0.000000e+00> : vector<32x8xf32>
    %542 = tpu.matmul %541, %3, %cst_170 {dimension_numbers = #tpu.dot_dimension_numbers<[1], [0], [0], [1], [0, 0, 1, 1], [], []>} : vector<32x8xf32>, vector<8x8xf32>, vector<32x8xf32> -> vector<32x8xf32>
    %543 = arith.addf %540, %542 : vector<32x8xf32>
    %544 = vector.extract_strided_slice %533 {offsets = [96, 0], sizes = [32, 8], strides = [1, 1]} : vector<160x8xf32> to vector<32x8xf32>
    %cst_171 = arith.constant dense<0.000000e+00> : vector<32x8xf32>
    %545 = tpu.matmul %544, %4, %cst_171 {dimension_numbers = #tpu.dot_dimension_numbers<[1], [0], [0], [1], [0, 0, 1, 1], [], []>} : vector<32x8xf32>, vector<8x8xf32>, vector<32x8xf32> -> vector<32x8xf32>
    %546 = arith.addf %543, %545 : vector<32x8xf32>
    %547 = vector.extract_strided_slice %533 {offsets = [128, 0], sizes = [32, 8], strides = [1, 1]} : vector<160x8xf32> to vector<32x8xf32>
    %cst_172 = arith.constant dense<0.000000e+00> : vector<32x8xf32>
    %548 = tpu.matmul %547, %5, %cst_172 {dimension_numbers = #tpu.dot_dimension_numbers<[1], [0], [0], [1], [0, 0, 1, 1], [], []>} : vector<32x8xf32>, vector<8x8xf32>, vector<32x8xf32> -> vector<32x8xf32>
    %549 = arith.addf %546, %548 : vector<32x8xf32>
    %cst_173 = arith.constant 0.000000e+00 : f32
    %550 = vector.broadcast %cst_173 : f32 to vector<32x8xf32>
    %551 = arith.maximumf %549, %550 : vector<32x8xf32>
    %552 = vector.broadcast %cst_173 : f32 to vector<32x8xf32>
    %553 = arith.subf %549, %552 : vector<32x8xf32>
    %554 = arith.cmpf one, %553, %553 : vector<32x8xf32>
    %555 = vector.broadcast %cst_173 : f32 to vector<32x8xf32>
    %556 = arith.addf %549, %555 : vector<32x8xf32>
    %557 = math.absf %553 : vector<32x8xf32>
    %cst_174 = arith.constant 0.000000e+00 : f32
    %558 = vector.broadcast %cst_174 : f32 to vector<32x8xf32>
    %559 = arith.subf %558, %557 : vector<32x8xf32>
    %560 = math.exp %559 : vector<32x8xf32>
    %561 = math.log1p %560 : vector<32x8xf32>
    %562 = arith.addf %551, %561 : vector<32x8xf32>
    %563 = arith.select %554, %556, %562 : vector<32x8xi1>, vector<32x8xf32>
    %564 = math.tanh %563 : vector<32x8xf32>
    %565 = arith.mulf %549, %564 : vector<32x8xf32>
    %566 = arith.addf %565, %443 : vector<32x8xf32>
    %c2144 = arith.constant 2144 : index
    %c0_175 = arith.constant 0 : index
    %567 = vector.load %arg3[%c2144, %c0_175] : memref<4408x64xf32, #tpu.memory_space<vmem>>, vector<160x32xf32>
    %c2304 = arith.constant 2304 : index
    %c0_176 = arith.constant 0 : index
    %568 = vector.load %arg3[%c2304, %c0_176] : memref<4408x64xf32, #tpu.memory_space<vmem>>, vector<32x1xf32>
    %cst_177 = arith.constant dense<0.000000e+00> : vector<160x8xf32>
    %569 = tpu.matmul %567, %566, %cst_177 {dimension_numbers = #tpu.dot_dimension_numbers<[1], [0], [0], [1], [0, 0, 1, 1], [], []>} : vector<160x32xf32>, vector<32x8xf32>, vector<160x8xf32> -> vector<160x8xf32>
    %570 = vector.extract_strided_slice %569 {offsets = [0, 0], sizes = [32, 8], strides = [1, 1]} : vector<160x8xf32> to vector<32x8xf32>
    %cst_178 = arith.constant dense<0.000000e+00> : vector<32x8xf32>
    %571 = tpu.matmul %570, %1, %cst_178 {dimension_numbers = #tpu.dot_dimension_numbers<[1], [0], [0], [1], [0, 0, 1, 1], [], []>} : vector<32x8xf32>, vector<8x8xf32>, vector<32x8xf32> -> vector<32x8xf32>
    %572 = vector.broadcast %568 : vector<32x1xf32> to vector<32x8xf32>
    %573 = arith.addf %572, %571 : vector<32x8xf32>
    %574 = vector.extract_strided_slice %569 {offsets = [32, 0], sizes = [32, 8], strides = [1, 1]} : vector<160x8xf32> to vector<32x8xf32>
    %cst_179 = arith.constant dense<0.000000e+00> : vector<32x8xf32>
    %575 = tpu.matmul %574, %2, %cst_179 {dimension_numbers = #tpu.dot_dimension_numbers<[1], [0], [0], [1], [0, 0, 1, 1], [], []>} : vector<32x8xf32>, vector<8x8xf32>, vector<32x8xf32> -> vector<32x8xf32>
    %576 = arith.addf %573, %575 : vector<32x8xf32>
    %577 = vector.extract_strided_slice %569 {offsets = [64, 0], sizes = [32, 8], strides = [1, 1]} : vector<160x8xf32> to vector<32x8xf32>
    %cst_180 = arith.constant dense<0.000000e+00> : vector<32x8xf32>
    %578 = tpu.matmul %577, %3, %cst_180 {dimension_numbers = #tpu.dot_dimension_numbers<[1], [0], [0], [1], [0, 0, 1, 1], [], []>} : vector<32x8xf32>, vector<8x8xf32>, vector<32x8xf32> -> vector<32x8xf32>
    %579 = arith.addf %576, %578 : vector<32x8xf32>
    %580 = vector.extract_strided_slice %569 {offsets = [96, 0], sizes = [32, 8], strides = [1, 1]} : vector<160x8xf32> to vector<32x8xf32>
    %cst_181 = arith.constant dense<0.000000e+00> : vector<32x8xf32>
    %581 = tpu.matmul %580, %4, %cst_181 {dimension_numbers = #tpu.dot_dimension_numbers<[1], [0], [0], [1], [0, 0, 1, 1], [], []>} : vector<32x8xf32>, vector<8x8xf32>, vector<32x8xf32> -> vector<32x8xf32>
    %582 = arith.addf %579, %581 : vector<32x8xf32>
    %583 = vector.extract_strided_slice %569 {offsets = [128, 0], sizes = [32, 8], strides = [1, 1]} : vector<160x8xf32> to vector<32x8xf32>
    %cst_182 = arith.constant dense<0.000000e+00> : vector<32x8xf32>
    %584 = tpu.matmul %583, %5, %cst_182 {dimension_numbers = #tpu.dot_dimension_numbers<[1], [0], [0], [1], [0, 0, 1, 1], [], []>} : vector<32x8xf32>, vector<8x8xf32>, vector<32x8xf32> -> vector<32x8xf32>
    %585 = arith.addf %582, %584 : vector<32x8xf32>
    %cst_183 = arith.constant 0.000000e+00 : f32
    %586 = vector.broadcast %cst_183 : f32 to vector<32x8xf32>
    %587 = arith.maximumf %585, %586 : vector<32x8xf32>
    %588 = vector.broadcast %cst_183 : f32 to vector<32x8xf32>
    %589 = arith.subf %585, %588 : vector<32x8xf32>
    %590 = arith.cmpf one, %589, %589 : vector<32x8xf32>
    %591 = vector.broadcast %cst_183 : f32 to vector<32x8xf32>
    %592 = arith.addf %585, %591 : vector<32x8xf32>
    %593 = math.absf %589 : vector<32x8xf32>
    %cst_184 = arith.constant 0.000000e+00 : f32
    %594 = vector.broadcast %cst_184 : f32 to vector<32x8xf32>
    %595 = arith.subf %594, %593 : vector<32x8xf32>
    %596 = math.exp %595 : vector<32x8xf32>
    %597 = math.log1p %596 : vector<32x8xf32>
    %598 = arith.addf %587, %597 : vector<32x8xf32>
    %599 = arith.select %590, %592, %598 : vector<32x8xi1>, vector<32x8xf32>
    %600 = math.tanh %599 : vector<32x8xf32>
    %601 = arith.mulf %585, %600 : vector<32x8xf32>
    %c2528 = arith.constant 2528 : index
    %c0_185 = arith.constant 0 : index
    %602 = vector.load %arg3[%c2528, %c0_185] : memref<4408x64xf32, #tpu.memory_space<vmem>>, vector<32x16xf32>
    %cst_186 = arith.constant dense<0.000000e+00> : vector<32x2xf32>
    %603 = tpu.matmul %602, %51, %cst_186 {dimension_numbers = #tpu.dot_dimension_numbers<[1], [0], [0], [1], [0, 0, 1, 1], [], []>} : vector<32x16xf32>, vector<16x2xf32>, vector<32x2xf32> -> vector<32x2xf32>
    %c2560 = arith.constant 2560 : index
    %c0_187 = arith.constant 0 : index
    %604 = vector.load %arg3[%c2560, %c0_187] : memref<4408x64xf32, #tpu.memory_space<vmem>>, vector<32x8xf32>
    %cst_188 = arith.constant dense<0.000000e+00> : vector<32x2xf32>
    %605 = tpu.matmul %604, %24, %cst_188 {dimension_numbers = #tpu.dot_dimension_numbers<[1], [0], [0], [1], [0, 0, 1, 1], [], []>} : vector<32x8xf32>, vector<8x2xf32>, vector<32x2xf32> -> vector<32x2xf32>
    %606 = arith.addf %603, %605 : vector<32x2xf32>
    %c2592 = arith.constant 2592 : index
    %c0_189 = arith.constant 0 : index
    %607 = vector.load %arg3[%c2592, %c0_189] : memref<4408x64xf32, #tpu.memory_space<vmem>>, vector<32x1xf32>
    %608 = vector.broadcast %607 : vector<32x1xf32> to vector<32x2xf32>
    %609 = arith.addf %606, %608 : vector<32x2xf32>
    %cst_190 = arith.constant 0.000000e+00 : f32
    %610 = vector.broadcast %cst_190 : f32 to vector<32x2xf32>
    %611 = arith.maximumf %609, %610 : vector<32x2xf32>
    %612 = vector.broadcast %cst_190 : f32 to vector<32x2xf32>
    %613 = arith.subf %609, %612 : vector<32x2xf32>
    %614 = arith.cmpf one, %613, %613 : vector<32x2xf32>
    %615 = vector.broadcast %cst_190 : f32 to vector<32x2xf32>
    %616 = arith.addf %609, %615 : vector<32x2xf32>
    %617 = math.absf %613 : vector<32x2xf32>
    %cst_191 = arith.constant 0.000000e+00 : f32
    %618 = vector.broadcast %cst_191 : f32 to vector<32x2xf32>
    %619 = arith.subf %618, %617 : vector<32x2xf32>
    %620 = math.exp %619 : vector<32x2xf32>
    %621 = math.log1p %620 : vector<32x2xf32>
    %622 = arith.addf %611, %621 : vector<32x2xf32>
    %623 = arith.select %614, %616, %622 : vector<32x2xi1>, vector<32x2xf32>
    %624 = math.tanh %623 : vector<32x2xf32>
    %625 = arith.mulf %609, %624 : vector<32x2xf32>
    %c2624 = arith.constant 2624 : index
    %c0_192 = arith.constant 0 : index
    %626 = vector.load %arg3[%c2624, %c0_192] : memref<4408x64xf32, #tpu.memory_space<vmem>>, vector<32x32xf32>
    %cst_193 = arith.constant dense<0.000000e+00> : vector<32x2xf32>
    %627 = tpu.matmul %626, %625, %cst_193 {dimension_numbers = #tpu.dot_dimension_numbers<[1], [0], [0], [1], [0, 0, 1, 1], [], []>} : vector<32x32xf32>, vector<32x2xf32>, vector<32x2xf32> -> vector<32x2xf32>
    %c2656 = arith.constant 2656 : index
    %c0_194 = arith.constant 0 : index
    %628 = vector.load %arg3[%c2656, %c0_194] : memref<4408x64xf32, #tpu.memory_space<vmem>>, vector<32x1xf32>
    %629 = vector.broadcast %628 : vector<32x1xf32> to vector<32x2xf32>
    %630 = arith.addf %627, %629 : vector<32x2xf32>
    %cst_195 = arith.constant 0.000000e+00 : f32
    %631 = vector.broadcast %cst_195 : f32 to vector<32x2xf32>
    %632 = arith.maximumf %630, %631 : vector<32x2xf32>
    %633 = vector.broadcast %cst_195 : f32 to vector<32x2xf32>
    %634 = arith.subf %630, %633 : vector<32x2xf32>
    %635 = arith.cmpf one, %634, %634 : vector<32x2xf32>
    %636 = vector.broadcast %cst_195 : f32 to vector<32x2xf32>
    %637 = arith.addf %630, %636 : vector<32x2xf32>
    %638 = math.absf %634 : vector<32x2xf32>
    %cst_196 = arith.constant 0.000000e+00 : f32
    %639 = vector.broadcast %cst_196 : f32 to vector<32x2xf32>
    %640 = arith.subf %639, %638 : vector<32x2xf32>
    %641 = math.exp %640 : vector<32x2xf32>
    %642 = math.log1p %641 : vector<32x2xf32>
    %643 = arith.addf %632, %642 : vector<32x2xf32>
    %644 = arith.select %635, %637, %643 : vector<32x2xi1>, vector<32x2xf32>
    %645 = math.tanh %644 : vector<32x2xf32>
    %646 = arith.mulf %630, %645 : vector<32x2xf32>
    %c2688 = arith.constant 2688 : index
    %c0_197 = arith.constant 0 : index
    %647 = vector.load %arg3[%c2688, %c0_197] : memref<4408x64xf32, #tpu.memory_space<vmem>>, vector<32x32xf32>
    %cst_198 = arith.constant dense<0.000000e+00> : vector<32x2xf32>
    %648 = tpu.matmul %647, %646, %cst_198 {dimension_numbers = #tpu.dot_dimension_numbers<[1], [0], [0], [1], [0, 0, 1, 1], [], []>} : vector<32x32xf32>, vector<32x2xf32>, vector<32x2xf32> -> vector<32x2xf32>
    %c2720 = arith.constant 2720 : index
    %c0_199 = arith.constant 0 : index
    %649 = vector.load %arg3[%c2720, %c0_199] : memref<4408x64xf32, #tpu.memory_space<vmem>>, vector<32x1xf32>
    %650 = vector.broadcast %649 : vector<32x1xf32> to vector<32x2xf32>
    %651 = arith.addf %648, %650 : vector<32x2xf32>
    %cst_200 = arith.constant dense<0.000000e+00> : vector<32x8xf32>
    %652 = tpu.matmul %651, %6, %cst_200 {dimension_numbers = #tpu.dot_dimension_numbers<[1], [0], [0], [1], [0, 0, 1, 1], [], []>} : vector<32x2xf32>, vector<2x8xf32>, vector<32x8xf32> -> vector<32x8xf32>
    %653 = arith.addf %601, %652 : vector<32x8xf32>
    %c2336 = arith.constant 2336 : index
    %c0_201 = arith.constant 0 : index
    %654 = vector.load %arg3[%c2336, %c0_201] : memref<4408x64xf32, #tpu.memory_space<vmem>>, vector<160x32xf32>
    %c2496 = arith.constant 2496 : index
    %c0_202 = arith.constant 0 : index
    %655 = vector.load %arg3[%c2496, %c0_202] : memref<4408x64xf32, #tpu.memory_space<vmem>>, vector<32x1xf32>
    %cst_203 = arith.constant dense<0.000000e+00> : vector<160x8xf32>
    %656 = tpu.matmul %654, %653, %cst_203 {dimension_numbers = #tpu.dot_dimension_numbers<[1], [0], [0], [1], [0, 0, 1, 1], [], []>} : vector<160x32xf32>, vector<32x8xf32>, vector<160x8xf32> -> vector<160x8xf32>
    %657 = vector.extract_strided_slice %656 {offsets = [0, 0], sizes = [32, 8], strides = [1, 1]} : vector<160x8xf32> to vector<32x8xf32>
    %cst_204 = arith.constant dense<0.000000e+00> : vector<32x8xf32>
    %658 = tpu.matmul %657, %1, %cst_204 {dimension_numbers = #tpu.dot_dimension_numbers<[1], [0], [0], [1], [0, 0, 1, 1], [], []>} : vector<32x8xf32>, vector<8x8xf32>, vector<32x8xf32> -> vector<32x8xf32>
    %659 = vector.broadcast %655 : vector<32x1xf32> to vector<32x8xf32>
    %660 = arith.addf %659, %658 : vector<32x8xf32>
    %661 = vector.extract_strided_slice %656 {offsets = [32, 0], sizes = [32, 8], strides = [1, 1]} : vector<160x8xf32> to vector<32x8xf32>
    %cst_205 = arith.constant dense<0.000000e+00> : vector<32x8xf32>
    %662 = tpu.matmul %661, %2, %cst_205 {dimension_numbers = #tpu.dot_dimension_numbers<[1], [0], [0], [1], [0, 0, 1, 1], [], []>} : vector<32x8xf32>, vector<8x8xf32>, vector<32x8xf32> -> vector<32x8xf32>
    %663 = arith.addf %660, %662 : vector<32x8xf32>
    %664 = vector.extract_strided_slice %656 {offsets = [64, 0], sizes = [32, 8], strides = [1, 1]} : vector<160x8xf32> to vector<32x8xf32>
    %cst_206 = arith.constant dense<0.000000e+00> : vector<32x8xf32>
    %665 = tpu.matmul %664, %3, %cst_206 {dimension_numbers = #tpu.dot_dimension_numbers<[1], [0], [0], [1], [0, 0, 1, 1], [], []>} : vector<32x8xf32>, vector<8x8xf32>, vector<32x8xf32> -> vector<32x8xf32>
    %666 = arith.addf %663, %665 : vector<32x8xf32>
    %667 = vector.extract_strided_slice %656 {offsets = [96, 0], sizes = [32, 8], strides = [1, 1]} : vector<160x8xf32> to vector<32x8xf32>
    %cst_207 = arith.constant dense<0.000000e+00> : vector<32x8xf32>
    %668 = tpu.matmul %667, %4, %cst_207 {dimension_numbers = #tpu.dot_dimension_numbers<[1], [0], [0], [1], [0, 0, 1, 1], [], []>} : vector<32x8xf32>, vector<8x8xf32>, vector<32x8xf32> -> vector<32x8xf32>
    %669 = arith.addf %666, %668 : vector<32x8xf32>
    %670 = vector.extract_strided_slice %656 {offsets = [128, 0], sizes = [32, 8], strides = [1, 1]} : vector<160x8xf32> to vector<32x8xf32>
    %cst_208 = arith.constant dense<0.000000e+00> : vector<32x8xf32>
    %671 = tpu.matmul %670, %5, %cst_208 {dimension_numbers = #tpu.dot_dimension_numbers<[1], [0], [0], [1], [0, 0, 1, 1], [], []>} : vector<32x8xf32>, vector<8x8xf32>, vector<32x8xf32> -> vector<32x8xf32>
    %672 = arith.addf %669, %671 : vector<32x8xf32>
    %cst_209 = arith.constant 0.000000e+00 : f32
    %673 = vector.broadcast %cst_209 : f32 to vector<32x8xf32>
    %674 = arith.maximumf %672, %673 : vector<32x8xf32>
    %675 = vector.broadcast %cst_209 : f32 to vector<32x8xf32>
    %676 = arith.subf %672, %675 : vector<32x8xf32>
    %677 = arith.cmpf one, %676, %676 : vector<32x8xf32>
    %678 = vector.broadcast %cst_209 : f32 to vector<32x8xf32>
    %679 = arith.addf %672, %678 : vector<32x8xf32>
    %680 = math.absf %676 : vector<32x8xf32>
    %cst_210 = arith.constant 0.000000e+00 : f32
    %681 = vector.broadcast %cst_210 : f32 to vector<32x8xf32>
    %682 = arith.subf %681, %680 : vector<32x8xf32>
    %683 = math.exp %682 : vector<32x8xf32>
    %684 = math.log1p %683 : vector<32x8xf32>
    %685 = arith.addf %674, %684 : vector<32x8xf32>
    %686 = arith.select %677, %679, %685 : vector<32x8xi1>, vector<32x8xf32>
    %687 = math.tanh %686 : vector<32x8xf32>
    %688 = arith.mulf %672, %687 : vector<32x8xf32>
    %689 = arith.addf %688, %566 : vector<32x8xf32>
    %c2752 = arith.constant 2752 : index
    %c0_211 = arith.constant 0 : index
    %690 = vector.load %arg3[%c2752, %c0_211] : memref<4408x64xf32, #tpu.memory_space<vmem>>, vector<160x32xf32>
    %c2912 = arith.constant 2912 : index
    %c0_212 = arith.constant 0 : index
    %691 = vector.load %arg3[%c2912, %c0_212] : memref<4408x64xf32, #tpu.memory_space<vmem>>, vector<32x1xf32>
    %cst_213 = arith.constant dense<0.000000e+00> : vector<160x8xf32>
    %692 = tpu.matmul %690, %689, %cst_213 {dimension_numbers = #tpu.dot_dimension_numbers<[1], [0], [0], [1], [0, 0, 1, 1], [], []>} : vector<160x32xf32>, vector<32x8xf32>, vector<160x8xf32> -> vector<160x8xf32>
    %693 = vector.extract_strided_slice %692 {offsets = [0, 0], sizes = [32, 8], strides = [1, 1]} : vector<160x8xf32> to vector<32x8xf32>
    %cst_214 = arith.constant dense<0.000000e+00> : vector<32x8xf32>
    %694 = tpu.matmul %693, %1, %cst_214 {dimension_numbers = #tpu.dot_dimension_numbers<[1], [0], [0], [1], [0, 0, 1, 1], [], []>} : vector<32x8xf32>, vector<8x8xf32>, vector<32x8xf32> -> vector<32x8xf32>
    %695 = vector.broadcast %691 : vector<32x1xf32> to vector<32x8xf32>
    %696 = arith.addf %695, %694 : vector<32x8xf32>
    %697 = vector.extract_strided_slice %692 {offsets = [32, 0], sizes = [32, 8], strides = [1, 1]} : vector<160x8xf32> to vector<32x8xf32>
    %cst_215 = arith.constant dense<0.000000e+00> : vector<32x8xf32>
    %698 = tpu.matmul %697, %2, %cst_215 {dimension_numbers = #tpu.dot_dimension_numbers<[1], [0], [0], [1], [0, 0, 1, 1], [], []>} : vector<32x8xf32>, vector<8x8xf32>, vector<32x8xf32> -> vector<32x8xf32>
    %699 = arith.addf %696, %698 : vector<32x8xf32>
    %700 = vector.extract_strided_slice %692 {offsets = [64, 0], sizes = [32, 8], strides = [1, 1]} : vector<160x8xf32> to vector<32x8xf32>
    %cst_216 = arith.constant dense<0.000000e+00> : vector<32x8xf32>
    %701 = tpu.matmul %700, %3, %cst_216 {dimension_numbers = #tpu.dot_dimension_numbers<[1], [0], [0], [1], [0, 0, 1, 1], [], []>} : vector<32x8xf32>, vector<8x8xf32>, vector<32x8xf32> -> vector<32x8xf32>
    %702 = arith.addf %699, %701 : vector<32x8xf32>
    %703 = vector.extract_strided_slice %692 {offsets = [96, 0], sizes = [32, 8], strides = [1, 1]} : vector<160x8xf32> to vector<32x8xf32>
    %cst_217 = arith.constant dense<0.000000e+00> : vector<32x8xf32>
    %704 = tpu.matmul %703, %4, %cst_217 {dimension_numbers = #tpu.dot_dimension_numbers<[1], [0], [0], [1], [0, 0, 1, 1], [], []>} : vector<32x8xf32>, vector<8x8xf32>, vector<32x8xf32> -> vector<32x8xf32>
    %705 = arith.addf %702, %704 : vector<32x8xf32>
    %706 = vector.extract_strided_slice %692 {offsets = [128, 0], sizes = [32, 8], strides = [1, 1]} : vector<160x8xf32> to vector<32x8xf32>
    %cst_218 = arith.constant dense<0.000000e+00> : vector<32x8xf32>
    %707 = tpu.matmul %706, %5, %cst_218 {dimension_numbers = #tpu.dot_dimension_numbers<[1], [0], [0], [1], [0, 0, 1, 1], [], []>} : vector<32x8xf32>, vector<8x8xf32>, vector<32x8xf32> -> vector<32x8xf32>
    %708 = arith.addf %705, %707 : vector<32x8xf32>
    %cst_219 = arith.constant 0.000000e+00 : f32
    %709 = vector.broadcast %cst_219 : f32 to vector<32x8xf32>
    %710 = arith.maximumf %708, %709 : vector<32x8xf32>
    %711 = vector.broadcast %cst_219 : f32 to vector<32x8xf32>
    %712 = arith.subf %708, %711 : vector<32x8xf32>
    %713 = arith.cmpf one, %712, %712 : vector<32x8xf32>
    %714 = vector.broadcast %cst_219 : f32 to vector<32x8xf32>
    %715 = arith.addf %708, %714 : vector<32x8xf32>
    %716 = math.absf %712 : vector<32x8xf32>
    %cst_220 = arith.constant 0.000000e+00 : f32
    %717 = vector.broadcast %cst_220 : f32 to vector<32x8xf32>
    %718 = arith.subf %717, %716 : vector<32x8xf32>
    %719 = math.exp %718 : vector<32x8xf32>
    %720 = math.log1p %719 : vector<32x8xf32>
    %721 = arith.addf %710, %720 : vector<32x8xf32>
    %722 = arith.select %713, %715, %721 : vector<32x8xi1>, vector<32x8xf32>
    %723 = math.tanh %722 : vector<32x8xf32>
    %724 = arith.mulf %708, %723 : vector<32x8xf32>
    %c3136 = arith.constant 3136 : index
    %c0_221 = arith.constant 0 : index
    %725 = vector.load %arg3[%c3136, %c0_221] : memref<4408x64xf32, #tpu.memory_space<vmem>>, vector<32x16xf32>
    %cst_222 = arith.constant dense<0.000000e+00> : vector<32x2xf32>
    %726 = tpu.matmul %725, %51, %cst_222 {dimension_numbers = #tpu.dot_dimension_numbers<[1], [0], [0], [1], [0, 0, 1, 1], [], []>} : vector<32x16xf32>, vector<16x2xf32>, vector<32x2xf32> -> vector<32x2xf32>
    %c3168 = arith.constant 3168 : index
    %c0_223 = arith.constant 0 : index
    %727 = vector.load %arg3[%c3168, %c0_223] : memref<4408x64xf32, #tpu.memory_space<vmem>>, vector<32x8xf32>
    %cst_224 = arith.constant dense<0.000000e+00> : vector<32x2xf32>
    %728 = tpu.matmul %727, %24, %cst_224 {dimension_numbers = #tpu.dot_dimension_numbers<[1], [0], [0], [1], [0, 0, 1, 1], [], []>} : vector<32x8xf32>, vector<8x2xf32>, vector<32x2xf32> -> vector<32x2xf32>
    %729 = arith.addf %726, %728 : vector<32x2xf32>
    %c3200 = arith.constant 3200 : index
    %c0_225 = arith.constant 0 : index
    %730 = vector.load %arg3[%c3200, %c0_225] : memref<4408x64xf32, #tpu.memory_space<vmem>>, vector<32x1xf32>
    %731 = vector.broadcast %730 : vector<32x1xf32> to vector<32x2xf32>
    %732 = arith.addf %729, %731 : vector<32x2xf32>
    %cst_226 = arith.constant 0.000000e+00 : f32
    %733 = vector.broadcast %cst_226 : f32 to vector<32x2xf32>
    %734 = arith.maximumf %732, %733 : vector<32x2xf32>
    %735 = vector.broadcast %cst_226 : f32 to vector<32x2xf32>
    %736 = arith.subf %732, %735 : vector<32x2xf32>
    %737 = arith.cmpf one, %736, %736 : vector<32x2xf32>
    %738 = vector.broadcast %cst_226 : f32 to vector<32x2xf32>
    %739 = arith.addf %732, %738 : vector<32x2xf32>
    %740 = math.absf %736 : vector<32x2xf32>
    %cst_227 = arith.constant 0.000000e+00 : f32
    %741 = vector.broadcast %cst_227 : f32 to vector<32x2xf32>
    %742 = arith.subf %741, %740 : vector<32x2xf32>
    %743 = math.exp %742 : vector<32x2xf32>
    %744 = math.log1p %743 : vector<32x2xf32>
    %745 = arith.addf %734, %744 : vector<32x2xf32>
    %746 = arith.select %737, %739, %745 : vector<32x2xi1>, vector<32x2xf32>
    %747 = math.tanh %746 : vector<32x2xf32>
    %748 = arith.mulf %732, %747 : vector<32x2xf32>
    %c3232 = arith.constant 3232 : index
    %c0_228 = arith.constant 0 : index
    %749 = vector.load %arg3[%c3232, %c0_228] : memref<4408x64xf32, #tpu.memory_space<vmem>>, vector<32x32xf32>
    %cst_229 = arith.constant dense<0.000000e+00> : vector<32x2xf32>
    %750 = tpu.matmul %749, %748, %cst_229 {dimension_numbers = #tpu.dot_dimension_numbers<[1], [0], [0], [1], [0, 0, 1, 1], [], []>} : vector<32x32xf32>, vector<32x2xf32>, vector<32x2xf32> -> vector<32x2xf32>
    %c3264 = arith.constant 3264 : index
    %c0_230 = arith.constant 0 : index
    %751 = vector.load %arg3[%c3264, %c0_230] : memref<4408x64xf32, #tpu.memory_space<vmem>>, vector<32x1xf32>
    %752 = vector.broadcast %751 : vector<32x1xf32> to vector<32x2xf32>
    %753 = arith.addf %750, %752 : vector<32x2xf32>
    %cst_231 = arith.constant 0.000000e+00 : f32
    %754 = vector.broadcast %cst_231 : f32 to vector<32x2xf32>
    %755 = arith.maximumf %753, %754 : vector<32x2xf32>
    %756 = vector.broadcast %cst_231 : f32 to vector<32x2xf32>
    %757 = arith.subf %753, %756 : vector<32x2xf32>
    %758 = arith.cmpf one, %757, %757 : vector<32x2xf32>
    %759 = vector.broadcast %cst_231 : f32 to vector<32x2xf32>
    %760 = arith.addf %753, %759 : vector<32x2xf32>
    %761 = math.absf %757 : vector<32x2xf32>
    %cst_232 = arith.constant 0.000000e+00 : f32
    %762 = vector.broadcast %cst_232 : f32 to vector<32x2xf32>
    %763 = arith.subf %762, %761 : vector<32x2xf32>
    %764 = math.exp %763 : vector<32x2xf32>
    %765 = math.log1p %764 : vector<32x2xf32>
    %766 = arith.addf %755, %765 : vector<32x2xf32>
    %767 = arith.select %758, %760, %766 : vector<32x2xi1>, vector<32x2xf32>
    %768 = math.tanh %767 : vector<32x2xf32>
    %769 = arith.mulf %753, %768 : vector<32x2xf32>
    %c3296 = arith.constant 3296 : index
    %c0_233 = arith.constant 0 : index
    %770 = vector.load %arg3[%c3296, %c0_233] : memref<4408x64xf32, #tpu.memory_space<vmem>>, vector<32x32xf32>
    %cst_234 = arith.constant dense<0.000000e+00> : vector<32x2xf32>
    %771 = tpu.matmul %770, %769, %cst_234 {dimension_numbers = #tpu.dot_dimension_numbers<[1], [0], [0], [1], [0, 0, 1, 1], [], []>} : vector<32x32xf32>, vector<32x2xf32>, vector<32x2xf32> -> vector<32x2xf32>
    %c3328 = arith.constant 3328 : index
    %c0_235 = arith.constant 0 : index
    %772 = vector.load %arg3[%c3328, %c0_235] : memref<4408x64xf32, #tpu.memory_space<vmem>>, vector<32x1xf32>
    %773 = vector.broadcast %772 : vector<32x1xf32> to vector<32x2xf32>
    %774 = arith.addf %771, %773 : vector<32x2xf32>
    %cst_236 = arith.constant dense<0.000000e+00> : vector<32x8xf32>
    %775 = tpu.matmul %774, %6, %cst_236 {dimension_numbers = #tpu.dot_dimension_numbers<[1], [0], [0], [1], [0, 0, 1, 1], [], []>} : vector<32x2xf32>, vector<2x8xf32>, vector<32x8xf32> -> vector<32x8xf32>
    %776 = arith.addf %724, %775 : vector<32x8xf32>
    %c2944 = arith.constant 2944 : index
    %c0_237 = arith.constant 0 : index
    %777 = vector.load %arg3[%c2944, %c0_237] : memref<4408x64xf32, #tpu.memory_space<vmem>>, vector<160x32xf32>
    %c3104 = arith.constant 3104 : index
    %c0_238 = arith.constant 0 : index
    %778 = vector.load %arg3[%c3104, %c0_238] : memref<4408x64xf32, #tpu.memory_space<vmem>>, vector<32x1xf32>
    %cst_239 = arith.constant dense<0.000000e+00> : vector<160x8xf32>
    %779 = tpu.matmul %777, %776, %cst_239 {dimension_numbers = #tpu.dot_dimension_numbers<[1], [0], [0], [1], [0, 0, 1, 1], [], []>} : vector<160x32xf32>, vector<32x8xf32>, vector<160x8xf32> -> vector<160x8xf32>
    %780 = vector.extract_strided_slice %779 {offsets = [0, 0], sizes = [32, 8], strides = [1, 1]} : vector<160x8xf32> to vector<32x8xf32>
    %cst_240 = arith.constant dense<0.000000e+00> : vector<32x8xf32>
    %781 = tpu.matmul %780, %1, %cst_240 {dimension_numbers = #tpu.dot_dimension_numbers<[1], [0], [0], [1], [0, 0, 1, 1], [], []>} : vector<32x8xf32>, vector<8x8xf32>, vector<32x8xf32> -> vector<32x8xf32>
    %782 = vector.broadcast %778 : vector<32x1xf32> to vector<32x8xf32>
    %783 = arith.addf %782, %781 : vector<32x8xf32>
    %784 = vector.extract_strided_slice %779 {offsets = [32, 0], sizes = [32, 8], strides = [1, 1]} : vector<160x8xf32> to vector<32x8xf32>
    %cst_241 = arith.constant dense<0.000000e+00> : vector<32x8xf32>
    %785 = tpu.matmul %784, %2, %cst_241 {dimension_numbers = #tpu.dot_dimension_numbers<[1], [0], [0], [1], [0, 0, 1, 1], [], []>} : vector<32x8xf32>, vector<8x8xf32>, vector<32x8xf32> -> vector<32x8xf32>
    %786 = arith.addf %783, %785 : vector<32x8xf32>
    %787 = vector.extract_strided_slice %779 {offsets = [64, 0], sizes = [32, 8], strides = [1, 1]} : vector<160x8xf32> to vector<32x8xf32>
    %cst_242 = arith.constant dense<0.000000e+00> : vector<32x8xf32>
    %788 = tpu.matmul %787, %3, %cst_242 {dimension_numbers = #tpu.dot_dimension_numbers<[1], [0], [0], [1], [0, 0, 1, 1], [], []>} : vector<32x8xf32>, vector<8x8xf32>, vector<32x8xf32> -> vector<32x8xf32>
    %789 = arith.addf %786, %788 : vector<32x8xf32>
    %790 = vector.extract_strided_slice %779 {offsets = [96, 0], sizes = [32, 8], strides = [1, 1]} : vector<160x8xf32> to vector<32x8xf32>
    %cst_243 = arith.constant dense<0.000000e+00> : vector<32x8xf32>
    %791 = tpu.matmul %790, %4, %cst_243 {dimension_numbers = #tpu.dot_dimension_numbers<[1], [0], [0], [1], [0, 0, 1, 1], [], []>} : vector<32x8xf32>, vector<8x8xf32>, vector<32x8xf32> -> vector<32x8xf32>
    %792 = arith.addf %789, %791 : vector<32x8xf32>
    %793 = vector.extract_strided_slice %779 {offsets = [128, 0], sizes = [32, 8], strides = [1, 1]} : vector<160x8xf32> to vector<32x8xf32>
    %cst_244 = arith.constant dense<0.000000e+00> : vector<32x8xf32>
    %794 = tpu.matmul %793, %5, %cst_244 {dimension_numbers = #tpu.dot_dimension_numbers<[1], [0], [0], [1], [0, 0, 1, 1], [], []>} : vector<32x8xf32>, vector<8x8xf32>, vector<32x8xf32> -> vector<32x8xf32>
    %795 = arith.addf %792, %794 : vector<32x8xf32>
    %cst_245 = arith.constant 0.000000e+00 : f32
    %796 = vector.broadcast %cst_245 : f32 to vector<32x8xf32>
    %797 = arith.maximumf %795, %796 : vector<32x8xf32>
    %798 = vector.broadcast %cst_245 : f32 to vector<32x8xf32>
    %799 = arith.subf %795, %798 : vector<32x8xf32>
    %800 = arith.cmpf one, %799, %799 : vector<32x8xf32>
    %801 = vector.broadcast %cst_245 : f32 to vector<32x8xf32>
    %802 = arith.addf %795, %801 : vector<32x8xf32>
    %803 = math.absf %799 : vector<32x8xf32>
    %cst_246 = arith.constant 0.000000e+00 : f32
    %804 = vector.broadcast %cst_246 : f32 to vector<32x8xf32>
    %805 = arith.subf %804, %803 : vector<32x8xf32>
    %806 = math.exp %805 : vector<32x8xf32>
    %807 = math.log1p %806 : vector<32x8xf32>
    %808 = arith.addf %797, %807 : vector<32x8xf32>
    %809 = arith.select %800, %802, %808 : vector<32x8xi1>, vector<32x8xf32>
    %810 = math.tanh %809 : vector<32x8xf32>
    %811 = arith.mulf %795, %810 : vector<32x8xf32>
    %812 = arith.addf %811, %689 : vector<32x8xf32>
    %c3360 = arith.constant 3360 : index
    %c0_247 = arith.constant 0 : index
    %813 = vector.load %arg3[%c3360, %c0_247] : memref<4408x64xf32, #tpu.memory_space<vmem>>, vector<80x64xf32>
    %c3440 = arith.constant 3440 : index
    %c0_248 = arith.constant 0 : index
    %814 = vector.load %arg3[%c3440, %c0_248] : memref<4408x64xf32, #tpu.memory_space<vmem>>, vector<16x1xf32>
    %815 = vector.extract_strided_slice %813 {offsets = [0, 0], sizes = [80, 32], strides = [1, 1]} : vector<80x64xf32> to vector<80x32xf32>
    %cst_249 = arith.constant dense<0.000000e+00> : vector<80x8xf32>
    %816 = tpu.matmul %815, %812, %cst_249 {dimension_numbers = #tpu.dot_dimension_numbers<[1], [0], [0], [1], [0, 0, 1, 1], [], []>} : vector<80x32xf32>, vector<32x8xf32>, vector<80x8xf32> -> vector<80x8xf32>
    %817 = vector.extract_strided_slice %813 {offsets = [0, 32], sizes = [80, 32], strides = [1, 1]} : vector<80x64xf32> to vector<80x32xf32>
    %cst_250 = arith.constant dense<0.000000e+00> : vector<80x8xf32>
    %818 = tpu.matmul %817, %566, %cst_250 {dimension_numbers = #tpu.dot_dimension_numbers<[1], [0], [0], [1], [0, 0, 1, 1], [], []>} : vector<80x32xf32>, vector<32x8xf32>, vector<80x8xf32> -> vector<80x8xf32>
    %819 = arith.addf %816, %818 : vector<80x8xf32>
    %820 = vector.extract_strided_slice %819 {offsets = [0, 0], sizes = [16, 8], strides = [1, 1]} : vector<80x8xf32> to vector<16x8xf32>
    %cst_251 = arith.constant dense<0.000000e+00> : vector<16x8xf32>
    %821 = tpu.matmul %820, %1, %cst_251 {dimension_numbers = #tpu.dot_dimension_numbers<[1], [0], [0], [1], [0, 0, 1, 1], [], []>} : vector<16x8xf32>, vector<8x8xf32>, vector<16x8xf32> -> vector<16x8xf32>
    %822 = vector.broadcast %814 : vector<16x1xf32> to vector<16x8xf32>
    %823 = arith.addf %822, %821 : vector<16x8xf32>
    %824 = vector.extract_strided_slice %819 {offsets = [16, 0], sizes = [16, 8], strides = [1, 1]} : vector<80x8xf32> to vector<16x8xf32>
    %cst_252 = arith.constant dense<0.000000e+00> : vector<16x8xf32>
    %825 = tpu.matmul %824, %2, %cst_252 {dimension_numbers = #tpu.dot_dimension_numbers<[1], [0], [0], [1], [0, 0, 1, 1], [], []>} : vector<16x8xf32>, vector<8x8xf32>, vector<16x8xf32> -> vector<16x8xf32>
    %826 = arith.addf %823, %825 : vector<16x8xf32>
    %827 = vector.extract_strided_slice %819 {offsets = [32, 0], sizes = [16, 8], strides = [1, 1]} : vector<80x8xf32> to vector<16x8xf32>
    %cst_253 = arith.constant dense<0.000000e+00> : vector<16x8xf32>
    %828 = tpu.matmul %827, %3, %cst_253 {dimension_numbers = #tpu.dot_dimension_numbers<[1], [0], [0], [1], [0, 0, 1, 1], [], []>} : vector<16x8xf32>, vector<8x8xf32>, vector<16x8xf32> -> vector<16x8xf32>
    %829 = arith.addf %826, %828 : vector<16x8xf32>
    %830 = vector.extract_strided_slice %819 {offsets = [48, 0], sizes = [16, 8], strides = [1, 1]} : vector<80x8xf32> to vector<16x8xf32>
    %cst_254 = arith.constant dense<0.000000e+00> : vector<16x8xf32>
    %831 = tpu.matmul %830, %4, %cst_254 {dimension_numbers = #tpu.dot_dimension_numbers<[1], [0], [0], [1], [0, 0, 1, 1], [], []>} : vector<16x8xf32>, vector<8x8xf32>, vector<16x8xf32> -> vector<16x8xf32>
    %832 = arith.addf %829, %831 : vector<16x8xf32>
    %833 = vector.extract_strided_slice %819 {offsets = [64, 0], sizes = [16, 8], strides = [1, 1]} : vector<80x8xf32> to vector<16x8xf32>
    %cst_255 = arith.constant dense<0.000000e+00> : vector<16x8xf32>
    %834 = tpu.matmul %833, %5, %cst_255 {dimension_numbers = #tpu.dot_dimension_numbers<[1], [0], [0], [1], [0, 0, 1, 1], [], []>} : vector<16x8xf32>, vector<8x8xf32>, vector<16x8xf32> -> vector<16x8xf32>
    %835 = arith.addf %832, %834 : vector<16x8xf32>
    %cst_256 = arith.constant 0.000000e+00 : f32
    %836 = vector.broadcast %cst_256 : f32 to vector<16x8xf32>
    %837 = arith.maximumf %835, %836 : vector<16x8xf32>
    %838 = vector.broadcast %cst_256 : f32 to vector<16x8xf32>
    %839 = arith.subf %835, %838 : vector<16x8xf32>
    %840 = arith.cmpf one, %839, %839 : vector<16x8xf32>
    %841 = vector.broadcast %cst_256 : f32 to vector<16x8xf32>
    %842 = arith.addf %835, %841 : vector<16x8xf32>
    %843 = math.absf %839 : vector<16x8xf32>
    %cst_257 = arith.constant 0.000000e+00 : f32
    %844 = vector.broadcast %cst_257 : f32 to vector<16x8xf32>
    %845 = arith.subf %844, %843 : vector<16x8xf32>
    %846 = math.exp %845 : vector<16x8xf32>
    %847 = math.log1p %846 : vector<16x8xf32>
    %848 = arith.addf %837, %847 : vector<16x8xf32>
    %849 = arith.select %840, %842, %848 : vector<16x8xi1>, vector<16x8xf32>
    %850 = math.tanh %849 : vector<16x8xf32>
    %851 = arith.mulf %835, %850 : vector<16x8xf32>
    %c3552 = arith.constant 3552 : index
    %c0_258 = arith.constant 0 : index
    %852 = vector.load %arg3[%c3552, %c0_258] : memref<4408x64xf32, #tpu.memory_space<vmem>>, vector<16x16xf32>
    %cst_259 = arith.constant dense<0.000000e+00> : vector<16x2xf32>
    %853 = tpu.matmul %852, %51, %cst_259 {dimension_numbers = #tpu.dot_dimension_numbers<[1], [0], [0], [1], [0, 0, 1, 1], [], []>} : vector<16x16xf32>, vector<16x2xf32>, vector<16x2xf32> -> vector<16x2xf32>
    %c3568 = arith.constant 3568 : index
    %c0_260 = arith.constant 0 : index
    %854 = vector.load %arg3[%c3568, %c0_260] : memref<4408x64xf32, #tpu.memory_space<vmem>>, vector<16x8xf32>
    %cst_261 = arith.constant dense<0.000000e+00> : vector<16x2xf32>
    %855 = tpu.matmul %854, %24, %cst_261 {dimension_numbers = #tpu.dot_dimension_numbers<[1], [0], [0], [1], [0, 0, 1, 1], [], []>} : vector<16x8xf32>, vector<8x2xf32>, vector<16x2xf32> -> vector<16x2xf32>
    %856 = arith.addf %853, %855 : vector<16x2xf32>
    %c3584 = arith.constant 3584 : index
    %c0_262 = arith.constant 0 : index
    %857 = vector.load %arg3[%c3584, %c0_262] : memref<4408x64xf32, #tpu.memory_space<vmem>>, vector<16x1xf32>
    %858 = vector.broadcast %857 : vector<16x1xf32> to vector<16x2xf32>
    %859 = arith.addf %856, %858 : vector<16x2xf32>
    %cst_263 = arith.constant 0.000000e+00 : f32
    %860 = vector.broadcast %cst_263 : f32 to vector<16x2xf32>
    %861 = arith.maximumf %859, %860 : vector<16x2xf32>
    %862 = vector.broadcast %cst_263 : f32 to vector<16x2xf32>
    %863 = arith.subf %859, %862 : vector<16x2xf32>
    %864 = arith.cmpf one, %863, %863 : vector<16x2xf32>
    %865 = vector.broadcast %cst_263 : f32 to vector<16x2xf32>
    %866 = arith.addf %859, %865 : vector<16x2xf32>
    %867 = math.absf %863 : vector<16x2xf32>
    %cst_264 = arith.constant 0.000000e+00 : f32
    %868 = vector.broadcast %cst_264 : f32 to vector<16x2xf32>
    %869 = arith.subf %868, %867 : vector<16x2xf32>
    %870 = math.exp %869 : vector<16x2xf32>
    %871 = math.log1p %870 : vector<16x2xf32>
    %872 = arith.addf %861, %871 : vector<16x2xf32>
    %873 = arith.select %864, %866, %872 : vector<16x2xi1>, vector<16x2xf32>
    %874 = math.tanh %873 : vector<16x2xf32>
    %875 = arith.mulf %859, %874 : vector<16x2xf32>
    %c3600 = arith.constant 3600 : index
    %c0_265 = arith.constant 0 : index
    %876 = vector.load %arg3[%c3600, %c0_265] : memref<4408x64xf32, #tpu.memory_space<vmem>>, vector<16x16xf32>
    %cst_266 = arith.constant dense<0.000000e+00> : vector<16x2xf32>
    %877 = tpu.matmul %876, %875, %cst_266 {dimension_numbers = #tpu.dot_dimension_numbers<[1], [0], [0], [1], [0, 0, 1, 1], [], []>} : vector<16x16xf32>, vector<16x2xf32>, vector<16x2xf32> -> vector<16x2xf32>
    %c3616 = arith.constant 3616 : index
    %c0_267 = arith.constant 0 : index
    %878 = vector.load %arg3[%c3616, %c0_267] : memref<4408x64xf32, #tpu.memory_space<vmem>>, vector<16x1xf32>
    %879 = vector.broadcast %878 : vector<16x1xf32> to vector<16x2xf32>
    %880 = arith.addf %877, %879 : vector<16x2xf32>
    %cst_268 = arith.constant 0.000000e+00 : f32
    %881 = vector.broadcast %cst_268 : f32 to vector<16x2xf32>
    %882 = arith.maximumf %880, %881 : vector<16x2xf32>
    %883 = vector.broadcast %cst_268 : f32 to vector<16x2xf32>
    %884 = arith.subf %880, %883 : vector<16x2xf32>
    %885 = arith.cmpf one, %884, %884 : vector<16x2xf32>
    %886 = vector.broadcast %cst_268 : f32 to vector<16x2xf32>
    %887 = arith.addf %880, %886 : vector<16x2xf32>
    %888 = math.absf %884 : vector<16x2xf32>
    %cst_269 = arith.constant 0.000000e+00 : f32
    %889 = vector.broadcast %cst_269 : f32 to vector<16x2xf32>
    %890 = arith.subf %889, %888 : vector<16x2xf32>
    %891 = math.exp %890 : vector<16x2xf32>
    %892 = math.log1p %891 : vector<16x2xf32>
    %893 = arith.addf %882, %892 : vector<16x2xf32>
    %894 = arith.select %885, %887, %893 : vector<16x2xi1>, vector<16x2xf32>
    %895 = math.tanh %894 : vector<16x2xf32>
    %896 = arith.mulf %880, %895 : vector<16x2xf32>
    %c3632 = arith.constant 3632 : index
    %c0_270 = arith.constant 0 : index
    %897 = vector.load %arg3[%c3632, %c0_270] : memref<4408x64xf32, #tpu.memory_space<vmem>>, vector<16x16xf32>
    %cst_271 = arith.constant dense<0.000000e+00> : vector<16x2xf32>
    %898 = tpu.matmul %897, %896, %cst_271 {dimension_numbers = #tpu.dot_dimension_numbers<[1], [0], [0], [1], [0, 0, 1, 1], [], []>} : vector<16x16xf32>, vector<16x2xf32>, vector<16x2xf32> -> vector<16x2xf32>
    %c3648 = arith.constant 3648 : index
    %c0_272 = arith.constant 0 : index
    %899 = vector.load %arg3[%c3648, %c0_272] : memref<4408x64xf32, #tpu.memory_space<vmem>>, vector<16x1xf32>
    %900 = vector.broadcast %899 : vector<16x1xf32> to vector<16x2xf32>
    %901 = arith.addf %898, %900 : vector<16x2xf32>
    %cst_273 = arith.constant dense<0.000000e+00> : vector<16x8xf32>
    %902 = tpu.matmul %901, %6, %cst_273 {dimension_numbers = #tpu.dot_dimension_numbers<[1], [0], [0], [1], [0, 0, 1, 1], [], []>} : vector<16x2xf32>, vector<2x8xf32>, vector<16x8xf32> -> vector<16x8xf32>
    %903 = arith.addf %851, %902 : vector<16x8xf32>
    %c3456 = arith.constant 3456 : index
    %c0_274 = arith.constant 0 : index
    %904 = vector.load %arg3[%c3456, %c0_274] : memref<4408x64xf32, #tpu.memory_space<vmem>>, vector<80x16xf32>
    %c3536 = arith.constant 3536 : index
    %c0_275 = arith.constant 0 : index
    %905 = vector.load %arg3[%c3536, %c0_275] : memref<4408x64xf32, #tpu.memory_space<vmem>>, vector<16x1xf32>
    %cst_276 = arith.constant dense<0.000000e+00> : vector<80x8xf32>
    %906 = tpu.matmul %904, %903, %cst_276 {dimension_numbers = #tpu.dot_dimension_numbers<[1], [0], [0], [1], [0, 0, 1, 1], [], []>} : vector<80x16xf32>, vector<16x8xf32>, vector<80x8xf32> -> vector<80x8xf32>
    %907 = vector.extract_strided_slice %906 {offsets = [0, 0], sizes = [16, 8], strides = [1, 1]} : vector<80x8xf32> to vector<16x8xf32>
    %cst_277 = arith.constant dense<0.000000e+00> : vector<16x8xf32>
    %908 = tpu.matmul %907, %1, %cst_277 {dimension_numbers = #tpu.dot_dimension_numbers<[1], [0], [0], [1], [0, 0, 1, 1], [], []>} : vector<16x8xf32>, vector<8x8xf32>, vector<16x8xf32> -> vector<16x8xf32>
    %909 = vector.broadcast %905 : vector<16x1xf32> to vector<16x8xf32>
    %910 = arith.addf %909, %908 : vector<16x8xf32>
    %911 = vector.extract_strided_slice %906 {offsets = [16, 0], sizes = [16, 8], strides = [1, 1]} : vector<80x8xf32> to vector<16x8xf32>
    %cst_278 = arith.constant dense<0.000000e+00> : vector<16x8xf32>
    %912 = tpu.matmul %911, %2, %cst_278 {dimension_numbers = #tpu.dot_dimension_numbers<[1], [0], [0], [1], [0, 0, 1, 1], [], []>} : vector<16x8xf32>, vector<8x8xf32>, vector<16x8xf32> -> vector<16x8xf32>
    %913 = arith.addf %910, %912 : vector<16x8xf32>
    %914 = vector.extract_strided_slice %906 {offsets = [32, 0], sizes = [16, 8], strides = [1, 1]} : vector<80x8xf32> to vector<16x8xf32>
    %cst_279 = arith.constant dense<0.000000e+00> : vector<16x8xf32>
    %915 = tpu.matmul %914, %3, %cst_279 {dimension_numbers = #tpu.dot_dimension_numbers<[1], [0], [0], [1], [0, 0, 1, 1], [], []>} : vector<16x8xf32>, vector<8x8xf32>, vector<16x8xf32> -> vector<16x8xf32>
    %916 = arith.addf %913, %915 : vector<16x8xf32>
    %917 = vector.extract_strided_slice %906 {offsets = [48, 0], sizes = [16, 8], strides = [1, 1]} : vector<80x8xf32> to vector<16x8xf32>
    %cst_280 = arith.constant dense<0.000000e+00> : vector<16x8xf32>
    %918 = tpu.matmul %917, %4, %cst_280 {dimension_numbers = #tpu.dot_dimension_numbers<[1], [0], [0], [1], [0, 0, 1, 1], [], []>} : vector<16x8xf32>, vector<8x8xf32>, vector<16x8xf32> -> vector<16x8xf32>
    %919 = arith.addf %916, %918 : vector<16x8xf32>
    %920 = vector.extract_strided_slice %906 {offsets = [64, 0], sizes = [16, 8], strides = [1, 1]} : vector<80x8xf32> to vector<16x8xf32>
    %cst_281 = arith.constant dense<0.000000e+00> : vector<16x8xf32>
    %921 = tpu.matmul %920, %5, %cst_281 {dimension_numbers = #tpu.dot_dimension_numbers<[1], [0], [0], [1], [0, 0, 1, 1], [], []>} : vector<16x8xf32>, vector<8x8xf32>, vector<16x8xf32> -> vector<16x8xf32>
    %922 = arith.addf %919, %921 : vector<16x8xf32>
    %cst_282 = arith.constant 0.000000e+00 : f32
    %923 = vector.broadcast %cst_282 : f32 to vector<16x8xf32>
    %924 = arith.maximumf %922, %923 : vector<16x8xf32>
    %925 = vector.broadcast %cst_282 : f32 to vector<16x8xf32>
    %926 = arith.subf %922, %925 : vector<16x8xf32>
    %927 = arith.cmpf one, %926, %926 : vector<16x8xf32>
    %928 = vector.broadcast %cst_282 : f32 to vector<16x8xf32>
    %929 = arith.addf %922, %928 : vector<16x8xf32>
    %930 = math.absf %926 : vector<16x8xf32>
    %cst_283 = arith.constant 0.000000e+00 : f32
    %931 = vector.broadcast %cst_283 : f32 to vector<16x8xf32>
    %932 = arith.subf %931, %930 : vector<16x8xf32>
    %933 = math.exp %932 : vector<16x8xf32>
    %934 = math.log1p %933 : vector<16x8xf32>
    %935 = arith.addf %924, %934 : vector<16x8xf32>
    %936 = arith.select %927, %929, %935 : vector<16x8xi1>, vector<16x8xf32>
    %937 = math.tanh %936 : vector<16x8xf32>
    %938 = arith.mulf %922, %937 : vector<16x8xf32>
    %c3664 = arith.constant 3664 : index
    %c0_284 = arith.constant 0 : index
    %939 = vector.load %arg3[%c3664, %c0_284] : memref<4408x64xf32, #tpu.memory_space<vmem>>, vector<16x64xf32>
    %c3680 = arith.constant 3680 : index
    %c0_285 = arith.constant 0 : index
    %940 = vector.load %arg3[%c3680, %c0_285] : memref<4408x64xf32, #tpu.memory_space<vmem>>, vector<16x1xf32>
    %941 = vector.extract_strided_slice %939 {offsets = [0, 0], sizes = [16, 32], strides = [1, 1]} : vector<16x64xf32> to vector<16x32xf32>
    %cst_286 = arith.constant dense<0.000000e+00> : vector<16x8xf32>
    %942 = tpu.matmul %941, %812, %cst_286 {dimension_numbers = #tpu.dot_dimension_numbers<[1], [0], [0], [1], [0, 0, 1, 1], [], []>} : vector<16x32xf32>, vector<32x8xf32>, vector<16x8xf32> -> vector<16x8xf32>
    %943 = vector.broadcast %940 : vector<16x1xf32> to vector<16x8xf32>
    %944 = arith.addf %943, %942 : vector<16x8xf32>
    %945 = vector.extract_strided_slice %939 {offsets = [0, 32], sizes = [16, 32], strides = [1, 1]} : vector<16x64xf32> to vector<16x32xf32>
    %cst_287 = arith.constant dense<0.000000e+00> : vector<16x8xf32>
    %946 = tpu.matmul %945, %566, %cst_287 {dimension_numbers = #tpu.dot_dimension_numbers<[1], [0], [0], [1], [0, 0, 1, 1], [], []>} : vector<16x32xf32>, vector<32x8xf32>, vector<16x8xf32> -> vector<16x8xf32>
    %947 = arith.addf %944, %946 : vector<16x8xf32>
    %948 = arith.addf %938, %947 : vector<16x8xf32>
    %c3696 = arith.constant 3696 : index
    %c0_288 = arith.constant 0 : index
    %949 = vector.load %arg3[%c3696, %c0_288] : memref<4408x64xf32, #tpu.memory_space<vmem>>, vector<80x16xf32>
    %c3776 = arith.constant 3776 : index
    %c0_289 = arith.constant 0 : index
    %950 = vector.load %arg3[%c3776, %c0_289] : memref<4408x64xf32, #tpu.memory_space<vmem>>, vector<16x1xf32>
    %cst_290 = arith.constant dense<0.000000e+00> : vector<80x8xf32>
    %951 = tpu.matmul %949, %948, %cst_290 {dimension_numbers = #tpu.dot_dimension_numbers<[1], [0], [0], [1], [0, 0, 1, 1], [], []>} : vector<80x16xf32>, vector<16x8xf32>, vector<80x8xf32> -> vector<80x8xf32>
    %952 = vector.extract_strided_slice %951 {offsets = [0, 0], sizes = [16, 8], strides = [1, 1]} : vector<80x8xf32> to vector<16x8xf32>
    %cst_291 = arith.constant dense<0.000000e+00> : vector<16x8xf32>
    %953 = tpu.matmul %952, %1, %cst_291 {dimension_numbers = #tpu.dot_dimension_numbers<[1], [0], [0], [1], [0, 0, 1, 1], [], []>} : vector<16x8xf32>, vector<8x8xf32>, vector<16x8xf32> -> vector<16x8xf32>
    %954 = vector.broadcast %950 : vector<16x1xf32> to vector<16x8xf32>
    %955 = arith.addf %954, %953 : vector<16x8xf32>
    %956 = vector.extract_strided_slice %951 {offsets = [16, 0], sizes = [16, 8], strides = [1, 1]} : vector<80x8xf32> to vector<16x8xf32>
    %cst_292 = arith.constant dense<0.000000e+00> : vector<16x8xf32>
    %957 = tpu.matmul %956, %2, %cst_292 {dimension_numbers = #tpu.dot_dimension_numbers<[1], [0], [0], [1], [0, 0, 1, 1], [], []>} : vector<16x8xf32>, vector<8x8xf32>, vector<16x8xf32> -> vector<16x8xf32>
    %958 = arith.addf %955, %957 : vector<16x8xf32>
    %959 = vector.extract_strided_slice %951 {offsets = [32, 0], sizes = [16, 8], strides = [1, 1]} : vector<80x8xf32> to vector<16x8xf32>
    %cst_293 = arith.constant dense<0.000000e+00> : vector<16x8xf32>
    %960 = tpu.matmul %959, %3, %cst_293 {dimension_numbers = #tpu.dot_dimension_numbers<[1], [0], [0], [1], [0, 0, 1, 1], [], []>} : vector<16x8xf32>, vector<8x8xf32>, vector<16x8xf32> -> vector<16x8xf32>
    %961 = arith.addf %958, %960 : vector<16x8xf32>
    %962 = vector.extract_strided_slice %951 {offsets = [48, 0], sizes = [16, 8], strides = [1, 1]} : vector<80x8xf32> to vector<16x8xf32>
    %cst_294 = arith.constant dense<0.000000e+00> : vector<16x8xf32>
    %963 = tpu.matmul %962, %4, %cst_294 {dimension_numbers = #tpu.dot_dimension_numbers<[1], [0], [0], [1], [0, 0, 1, 1], [], []>} : vector<16x8xf32>, vector<8x8xf32>, vector<16x8xf32> -> vector<16x8xf32>
    %964 = arith.addf %961, %963 : vector<16x8xf32>
    %965 = vector.extract_strided_slice %951 {offsets = [64, 0], sizes = [16, 8], strides = [1, 1]} : vector<80x8xf32> to vector<16x8xf32>
    %cst_295 = arith.constant dense<0.000000e+00> : vector<16x8xf32>
    %966 = tpu.matmul %965, %5, %cst_295 {dimension_numbers = #tpu.dot_dimension_numbers<[1], [0], [0], [1], [0, 0, 1, 1], [], []>} : vector<16x8xf32>, vector<8x8xf32>, vector<16x8xf32> -> vector<16x8xf32>
    %967 = arith.addf %964, %966 : vector<16x8xf32>
    %cst_296 = arith.constant 0.000000e+00 : f32
    %968 = vector.broadcast %cst_296 : f32 to vector<16x8xf32>
    %969 = arith.maximumf %967, %968 : vector<16x8xf32>
    %970 = vector.broadcast %cst_296 : f32 to vector<16x8xf32>
    %971 = arith.subf %967, %970 : vector<16x8xf32>
    %972 = arith.cmpf one, %971, %971 : vector<16x8xf32>
    %973 = vector.broadcast %cst_296 : f32 to vector<16x8xf32>
    %974 = arith.addf %967, %973 : vector<16x8xf32>
    %975 = math.absf %971 : vector<16x8xf32>
    %cst_297 = arith.constant 0.000000e+00 : f32
    %976 = vector.broadcast %cst_297 : f32 to vector<16x8xf32>
    %977 = arith.subf %976, %975 : vector<16x8xf32>
    %978 = math.exp %977 : vector<16x8xf32>
    %979 = math.log1p %978 : vector<16x8xf32>
    %980 = arith.addf %969, %979 : vector<16x8xf32>
    %981 = arith.select %972, %974, %980 : vector<16x8xi1>, vector<16x8xf32>
    %982 = math.tanh %981 : vector<16x8xf32>
    %983 = arith.mulf %967, %982 : vector<16x8xf32>
    %c3888 = arith.constant 3888 : index
    %c0_298 = arith.constant 0 : index
    %984 = vector.load %arg3[%c3888, %c0_298] : memref<4408x64xf32, #tpu.memory_space<vmem>>, vector<16x16xf32>
    %cst_299 = arith.constant dense<0.000000e+00> : vector<16x2xf32>
    %985 = tpu.matmul %984, %51, %cst_299 {dimension_numbers = #tpu.dot_dimension_numbers<[1], [0], [0], [1], [0, 0, 1, 1], [], []>} : vector<16x16xf32>, vector<16x2xf32>, vector<16x2xf32> -> vector<16x2xf32>
    %c3904 = arith.constant 3904 : index
    %c0_300 = arith.constant 0 : index
    %986 = vector.load %arg3[%c3904, %c0_300] : memref<4408x64xf32, #tpu.memory_space<vmem>>, vector<16x8xf32>
    %cst_301 = arith.constant dense<0.000000e+00> : vector<16x2xf32>
    %987 = tpu.matmul %986, %24, %cst_301 {dimension_numbers = #tpu.dot_dimension_numbers<[1], [0], [0], [1], [0, 0, 1, 1], [], []>} : vector<16x8xf32>, vector<8x2xf32>, vector<16x2xf32> -> vector<16x2xf32>
    %988 = arith.addf %985, %987 : vector<16x2xf32>
    %c3920 = arith.constant 3920 : index
    %c0_302 = arith.constant 0 : index
    %989 = vector.load %arg3[%c3920, %c0_302] : memref<4408x64xf32, #tpu.memory_space<vmem>>, vector<16x1xf32>
    %990 = vector.broadcast %989 : vector<16x1xf32> to vector<16x2xf32>
    %991 = arith.addf %988, %990 : vector<16x2xf32>
    %cst_303 = arith.constant 0.000000e+00 : f32
    %992 = vector.broadcast %cst_303 : f32 to vector<16x2xf32>
    %993 = arith.maximumf %991, %992 : vector<16x2xf32>
    %994 = vector.broadcast %cst_303 : f32 to vector<16x2xf32>
    %995 = arith.subf %991, %994 : vector<16x2xf32>
    %996 = arith.cmpf one, %995, %995 : vector<16x2xf32>
    %997 = vector.broadcast %cst_303 : f32 to vector<16x2xf32>
    %998 = arith.addf %991, %997 : vector<16x2xf32>
    %999 = math.absf %995 : vector<16x2xf32>
    %cst_304 = arith.constant 0.000000e+00 : f32
    %1000 = vector.broadcast %cst_304 : f32 to vector<16x2xf32>
    %1001 = arith.subf %1000, %999 : vector<16x2xf32>
    %1002 = math.exp %1001 : vector<16x2xf32>
    %1003 = math.log1p %1002 : vector<16x2xf32>
    %1004 = arith.addf %993, %1003 : vector<16x2xf32>
    %1005 = arith.select %996, %998, %1004 : vector<16x2xi1>, vector<16x2xf32>
    %1006 = math.tanh %1005 : vector<16x2xf32>
    %1007 = arith.mulf %991, %1006 : vector<16x2xf32>
    %c3936 = arith.constant 3936 : index
    %c0_305 = arith.constant 0 : index
    %1008 = vector.load %arg3[%c3936, %c0_305] : memref<4408x64xf32, #tpu.memory_space<vmem>>, vector<16x16xf32>
    %cst_306 = arith.constant dense<0.000000e+00> : vector<16x2xf32>
    %1009 = tpu.matmul %1008, %1007, %cst_306 {dimension_numbers = #tpu.dot_dimension_numbers<[1], [0], [0], [1], [0, 0, 1, 1], [], []>} : vector<16x16xf32>, vector<16x2xf32>, vector<16x2xf32> -> vector<16x2xf32>
    %c3952 = arith.constant 3952 : index
    %c0_307 = arith.constant 0 : index
    %1010 = vector.load %arg3[%c3952, %c0_307] : memref<4408x64xf32, #tpu.memory_space<vmem>>, vector<16x1xf32>
    %1011 = vector.broadcast %1010 : vector<16x1xf32> to vector<16x2xf32>
    %1012 = arith.addf %1009, %1011 : vector<16x2xf32>
    %cst_308 = arith.constant 0.000000e+00 : f32
    %1013 = vector.broadcast %cst_308 : f32 to vector<16x2xf32>
    %1014 = arith.maximumf %1012, %1013 : vector<16x2xf32>
    %1015 = vector.broadcast %cst_308 : f32 to vector<16x2xf32>
    %1016 = arith.subf %1012, %1015 : vector<16x2xf32>
    %1017 = arith.cmpf one, %1016, %1016 : vector<16x2xf32>
    %1018 = vector.broadcast %cst_308 : f32 to vector<16x2xf32>
    %1019 = arith.addf %1012, %1018 : vector<16x2xf32>
    %1020 = math.absf %1016 : vector<16x2xf32>
    %cst_309 = arith.constant 0.000000e+00 : f32
    %1021 = vector.broadcast %cst_309 : f32 to vector<16x2xf32>
    %1022 = arith.subf %1021, %1020 : vector<16x2xf32>
    %1023 = math.exp %1022 : vector<16x2xf32>
    %1024 = math.log1p %1023 : vector<16x2xf32>
    %1025 = arith.addf %1014, %1024 : vector<16x2xf32>
    %1026 = arith.select %1017, %1019, %1025 : vector<16x2xi1>, vector<16x2xf32>
    %1027 = math.tanh %1026 : vector<16x2xf32>
    %1028 = arith.mulf %1012, %1027 : vector<16x2xf32>
    %c3968 = arith.constant 3968 : index
    %c0_310 = arith.constant 0 : index
    %1029 = vector.load %arg3[%c3968, %c0_310] : memref<4408x64xf32, #tpu.memory_space<vmem>>, vector<16x16xf32>
    %cst_311 = arith.constant dense<0.000000e+00> : vector<16x2xf32>
    %1030 = tpu.matmul %1029, %1028, %cst_311 {dimension_numbers = #tpu.dot_dimension_numbers<[1], [0], [0], [1], [0, 0, 1, 1], [], []>} : vector<16x16xf32>, vector<16x2xf32>, vector<16x2xf32> -> vector<16x2xf32>
    %c3984 = arith.constant 3984 : index
    %c0_312 = arith.constant 0 : index
    %1031 = vector.load %arg3[%c3984, %c0_312] : memref<4408x64xf32, #tpu.memory_space<vmem>>, vector<16x1xf32>
    %1032 = vector.broadcast %1031 : vector<16x1xf32> to vector<16x2xf32>
    %1033 = arith.addf %1030, %1032 : vector<16x2xf32>
    %cst_313 = arith.constant dense<0.000000e+00> : vector<16x8xf32>
    %1034 = tpu.matmul %1033, %6, %cst_313 {dimension_numbers = #tpu.dot_dimension_numbers<[1], [0], [0], [1], [0, 0, 1, 1], [], []>} : vector<16x2xf32>, vector<2x8xf32>, vector<16x8xf32> -> vector<16x8xf32>
    %1035 = arith.addf %983, %1034 : vector<16x8xf32>
    %c3792 = arith.constant 3792 : index
    %c0_314 = arith.constant 0 : index
    %1036 = vector.load %arg3[%c3792, %c0_314] : memref<4408x64xf32, #tpu.memory_space<vmem>>, vector<80x16xf32>
    %c3872 = arith.constant 3872 : index
    %c0_315 = arith.constant 0 : index
    %1037 = vector.load %arg3[%c3872, %c0_315] : memref<4408x64xf32, #tpu.memory_space<vmem>>, vector<16x1xf32>
    %cst_316 = arith.constant dense<0.000000e+00> : vector<80x8xf32>
    %1038 = tpu.matmul %1036, %1035, %cst_316 {dimension_numbers = #tpu.dot_dimension_numbers<[1], [0], [0], [1], [0, 0, 1, 1], [], []>} : vector<80x16xf32>, vector<16x8xf32>, vector<80x8xf32> -> vector<80x8xf32>
    %1039 = vector.extract_strided_slice %1038 {offsets = [0, 0], sizes = [16, 8], strides = [1, 1]} : vector<80x8xf32> to vector<16x8xf32>
    %cst_317 = arith.constant dense<0.000000e+00> : vector<16x8xf32>
    %1040 = tpu.matmul %1039, %1, %cst_317 {dimension_numbers = #tpu.dot_dimension_numbers<[1], [0], [0], [1], [0, 0, 1, 1], [], []>} : vector<16x8xf32>, vector<8x8xf32>, vector<16x8xf32> -> vector<16x8xf32>
    %1041 = vector.broadcast %1037 : vector<16x1xf32> to vector<16x8xf32>
    %1042 = arith.addf %1041, %1040 : vector<16x8xf32>
    %1043 = vector.extract_strided_slice %1038 {offsets = [16, 0], sizes = [16, 8], strides = [1, 1]} : vector<80x8xf32> to vector<16x8xf32>
    %cst_318 = arith.constant dense<0.000000e+00> : vector<16x8xf32>
    %1044 = tpu.matmul %1043, %2, %cst_318 {dimension_numbers = #tpu.dot_dimension_numbers<[1], [0], [0], [1], [0, 0, 1, 1], [], []>} : vector<16x8xf32>, vector<8x8xf32>, vector<16x8xf32> -> vector<16x8xf32>
    %1045 = arith.addf %1042, %1044 : vector<16x8xf32>
    %1046 = vector.extract_strided_slice %1038 {offsets = [32, 0], sizes = [16, 8], strides = [1, 1]} : vector<80x8xf32> to vector<16x8xf32>
    %cst_319 = arith.constant dense<0.000000e+00> : vector<16x8xf32>
    %1047 = tpu.matmul %1046, %3, %cst_319 {dimension_numbers = #tpu.dot_dimension_numbers<[1], [0], [0], [1], [0, 0, 1, 1], [], []>} : vector<16x8xf32>, vector<8x8xf32>, vector<16x8xf32> -> vector<16x8xf32>
    %1048 = arith.addf %1045, %1047 : vector<16x8xf32>
    %1049 = vector.extract_strided_slice %1038 {offsets = [48, 0], sizes = [16, 8], strides = [1, 1]} : vector<80x8xf32> to vector<16x8xf32>
    %cst_320 = arith.constant dense<0.000000e+00> : vector<16x8xf32>
    %1050 = tpu.matmul %1049, %4, %cst_320 {dimension_numbers = #tpu.dot_dimension_numbers<[1], [0], [0], [1], [0, 0, 1, 1], [], []>} : vector<16x8xf32>, vector<8x8xf32>, vector<16x8xf32> -> vector<16x8xf32>
    %1051 = arith.addf %1048, %1050 : vector<16x8xf32>
    %1052 = vector.extract_strided_slice %1038 {offsets = [64, 0], sizes = [16, 8], strides = [1, 1]} : vector<80x8xf32> to vector<16x8xf32>
    %cst_321 = arith.constant dense<0.000000e+00> : vector<16x8xf32>
    %1053 = tpu.matmul %1052, %5, %cst_321 {dimension_numbers = #tpu.dot_dimension_numbers<[1], [0], [0], [1], [0, 0, 1, 1], [], []>} : vector<16x8xf32>, vector<8x8xf32>, vector<16x8xf32> -> vector<16x8xf32>
    %1054 = arith.addf %1051, %1053 : vector<16x8xf32>
    %cst_322 = arith.constant 0.000000e+00 : f32
    %1055 = vector.broadcast %cst_322 : f32 to vector<16x8xf32>
    %1056 = arith.maximumf %1054, %1055 : vector<16x8xf32>
    %1057 = vector.broadcast %cst_322 : f32 to vector<16x8xf32>
    %1058 = arith.subf %1054, %1057 : vector<16x8xf32>
    %1059 = arith.cmpf one, %1058, %1058 : vector<16x8xf32>
    %1060 = vector.broadcast %cst_322 : f32 to vector<16x8xf32>
    %1061 = arith.addf %1054, %1060 : vector<16x8xf32>
    %1062 = math.absf %1058 : vector<16x8xf32>
    %cst_323 = arith.constant 0.000000e+00 : f32
    %1063 = vector.broadcast %cst_323 : f32 to vector<16x8xf32>
    %1064 = arith.subf %1063, %1062 : vector<16x8xf32>
    %1065 = math.exp %1064 : vector<16x8xf32>
    %1066 = math.log1p %1065 : vector<16x8xf32>
    %1067 = arith.addf %1056, %1066 : vector<16x8xf32>
    %1068 = arith.select %1059, %1061, %1067 : vector<16x8xi1>, vector<16x8xf32>
    %1069 = math.tanh %1068 : vector<16x8xf32>
    %1070 = arith.mulf %1054, %1069 : vector<16x8xf32>
    %1071 = arith.addf %1070, %948 : vector<16x8xf32>
    %c4000 = arith.constant 4000 : index
    %c0_324 = arith.constant 0 : index
    %1072 = vector.load %arg3[%c4000, %c0_324] : memref<4408x64xf32, #tpu.memory_space<vmem>>, vector<64x16xf32>
    %c4064 = arith.constant 4064 : index
    %c0_325 = arith.constant 0 : index
    %1073 = vector.load %arg3[%c4064, %c0_325] : memref<4408x64xf32, #tpu.memory_space<vmem>>, vector<16x1xf32>
    %cst_326 = arith.constant dense<0.000000e+00> : vector<64x8xf32>
    %1074 = tpu.matmul %1072, %1071, %cst_326 {dimension_numbers = #tpu.dot_dimension_numbers<[1], [0], [0], [1], [0, 0, 1, 1], [], []>} : vector<64x16xf32>, vector<16x8xf32>, vector<64x8xf32> -> vector<64x8xf32>
    %1075 = vector.extract_strided_slice %1074 {offsets = [0, 0], sizes = [16, 8], strides = [1, 1]} : vector<64x8xf32> to vector<16x8xf32>
    %cst_327 = arith.constant dense<0.000000e+00> : vector<16x16xf32>
    %1076 = tpu.matmul %1075, %19, %cst_327 {dimension_numbers = #tpu.dot_dimension_numbers<[1], [0], [0], [1], [0, 0, 1, 1], [], []>} : vector<16x8xf32>, vector<8x16xf32>, vector<16x16xf32> -> vector<16x16xf32>
    %1077 = vector.broadcast %1073 : vector<16x1xf32> to vector<16x16xf32>
    %1078 = arith.addf %1077, %1076 : vector<16x16xf32>
    %1079 = vector.extract_strided_slice %1074 {offsets = [16, 0], sizes = [16, 8], strides = [1, 1]} : vector<64x8xf32> to vector<16x8xf32>
    %cst_328 = arith.constant dense<0.000000e+00> : vector<16x16xf32>
    %1080 = tpu.matmul %1079, %20, %cst_328 {dimension_numbers = #tpu.dot_dimension_numbers<[1], [0], [0], [1], [0, 0, 1, 1], [], []>} : vector<16x8xf32>, vector<8x16xf32>, vector<16x16xf32> -> vector<16x16xf32>
    %1081 = arith.addf %1078, %1080 : vector<16x16xf32>
    %1082 = vector.extract_strided_slice %1074 {offsets = [32, 0], sizes = [16, 8], strides = [1, 1]} : vector<64x8xf32> to vector<16x8xf32>
    %cst_329 = arith.constant dense<0.000000e+00> : vector<16x16xf32>
    %1083 = tpu.matmul %1082, %21, %cst_329 {dimension_numbers = #tpu.dot_dimension_numbers<[1], [0], [0], [1], [0, 0, 1, 1], [], []>} : vector<16x8xf32>, vector<8x16xf32>, vector<16x16xf32> -> vector<16x16xf32>
    %1084 = arith.addf %1081, %1083 : vector<16x16xf32>
    %1085 = vector.extract_strided_slice %1074 {offsets = [48, 0], sizes = [16, 8], strides = [1, 1]} : vector<64x8xf32> to vector<16x8xf32>
    %cst_330 = arith.constant dense<0.000000e+00> : vector<16x16xf32>
    %1086 = tpu.matmul %1085, %22, %cst_330 {dimension_numbers = #tpu.dot_dimension_numbers<[1], [0], [0], [1], [0, 0, 1, 1], [], []>} : vector<16x8xf32>, vector<8x16xf32>, vector<16x16xf32> -> vector<16x16xf32>
    %1087 = arith.addf %1084, %1086 : vector<16x16xf32>
    %c4080 = arith.constant 4080 : index
    %c0_331 = arith.constant 0 : index
    %1088 = vector.load %arg3[%c4080, %c0_331] : memref<4408x64xf32, #tpu.memory_space<vmem>>, vector<80x16xf32>
    %c4160 = arith.constant 4160 : index
    %c0_332 = arith.constant 0 : index
    %1089 = vector.load %arg3[%c4160, %c0_332] : memref<4408x64xf32, #tpu.memory_space<vmem>>, vector<16x1xf32>
    %cst_333 = arith.constant dense<0.000000e+00> : vector<80x16xf32>
    %1090 = tpu.matmul %1088, %1087, %cst_333 {dimension_numbers = #tpu.dot_dimension_numbers<[1], [0], [0], [1], [0, 0, 1, 1], [], []>} : vector<80x16xf32>, vector<16x16xf32>, vector<80x16xf32> -> vector<80x16xf32>
    %1091 = vector.extract_strided_slice %1090 {offsets = [0, 0], sizes = [16, 16], strides = [1, 1]} : vector<80x16xf32> to vector<16x16xf32>
    %cst_334 = arith.constant dense<0.000000e+00> : vector<16x16xf32>
    %1092 = tpu.matmul %1091, %8, %cst_334 {dimension_numbers = #tpu.dot_dimension_numbers<[1], [0], [0], [1], [0, 0, 1, 1], [], []>} : vector<16x16xf32>, vector<16x16xf32>, vector<16x16xf32> -> vector<16x16xf32>
    %1093 = vector.broadcast %1089 : vector<16x1xf32> to vector<16x16xf32>
    %1094 = arith.addf %1093, %1092 : vector<16x16xf32>
    %1095 = vector.extract_strided_slice %1090 {offsets = [16, 0], sizes = [16, 16], strides = [1, 1]} : vector<80x16xf32> to vector<16x16xf32>
    %cst_335 = arith.constant dense<0.000000e+00> : vector<16x16xf32>
    %1096 = tpu.matmul %1095, %9, %cst_335 {dimension_numbers = #tpu.dot_dimension_numbers<[1], [0], [0], [1], [0, 0, 1, 1], [], []>} : vector<16x16xf32>, vector<16x16xf32>, vector<16x16xf32> -> vector<16x16xf32>
    %1097 = arith.addf %1094, %1096 : vector<16x16xf32>
    %1098 = vector.extract_strided_slice %1090 {offsets = [32, 0], sizes = [16, 16], strides = [1, 1]} : vector<80x16xf32> to vector<16x16xf32>
    %cst_336 = arith.constant dense<0.000000e+00> : vector<16x16xf32>
    %1099 = tpu.matmul %1098, %10, %cst_336 {dimension_numbers = #tpu.dot_dimension_numbers<[1], [0], [0], [1], [0, 0, 1, 1], [], []>} : vector<16x16xf32>, vector<16x16xf32>, vector<16x16xf32> -> vector<16x16xf32>
    %1100 = arith.addf %1097, %1099 : vector<16x16xf32>
    %1101 = vector.extract_strided_slice %1090 {offsets = [48, 0], sizes = [16, 16], strides = [1, 1]} : vector<80x16xf32> to vector<16x16xf32>
    %cst_337 = arith.constant dense<0.000000e+00> : vector<16x16xf32>
    %1102 = tpu.matmul %1101, %11, %cst_337 {dimension_numbers = #tpu.dot_dimension_numbers<[1], [0], [0], [1], [0, 0, 1, 1], [], []>} : vector<16x16xf32>, vector<16x16xf32>, vector<16x16xf32> -> vector<16x16xf32>
    %1103 = arith.addf %1100, %1102 : vector<16x16xf32>
    %1104 = vector.extract_strided_slice %1090 {offsets = [64, 0], sizes = [16, 16], strides = [1, 1]} : vector<80x16xf32> to vector<16x16xf32>
    %cst_338 = arith.constant dense<0.000000e+00> : vector<16x16xf32>
    %1105 = tpu.matmul %1104, %12, %cst_338 {dimension_numbers = #tpu.dot_dimension_numbers<[1], [0], [0], [1], [0, 0, 1, 1], [], []>} : vector<16x16xf32>, vector<16x16xf32>, vector<16x16xf32> -> vector<16x16xf32>
    %1106 = arith.addf %1103, %1105 : vector<16x16xf32>
    %cst_339 = arith.constant 0.000000e+00 : f32
    %1107 = vector.broadcast %cst_339 : f32 to vector<16x16xf32>
    %1108 = arith.maximumf %1106, %1107 : vector<16x16xf32>
    %1109 = vector.broadcast %cst_339 : f32 to vector<16x16xf32>
    %1110 = arith.subf %1106, %1109 : vector<16x16xf32>
    %1111 = arith.cmpf one, %1110, %1110 : vector<16x16xf32>
    %1112 = vector.broadcast %cst_339 : f32 to vector<16x16xf32>
    %1113 = arith.addf %1106, %1112 : vector<16x16xf32>
    %1114 = math.absf %1110 : vector<16x16xf32>
    %cst_340 = arith.constant 0.000000e+00 : f32
    %1115 = vector.broadcast %cst_340 : f32 to vector<16x16xf32>
    %1116 = arith.subf %1115, %1114 : vector<16x16xf32>
    %1117 = math.exp %1116 : vector<16x16xf32>
    %1118 = math.log1p %1117 : vector<16x16xf32>
    %1119 = arith.addf %1108, %1118 : vector<16x16xf32>
    %1120 = arith.select %1111, %1113, %1119 : vector<16x16xi1>, vector<16x16xf32>
    %1121 = math.tanh %1120 : vector<16x16xf32>
    %1122 = arith.mulf %1106, %1121 : vector<16x16xf32>
    %c4176 = arith.constant 4176 : index
    %c0_341 = arith.constant 0 : index
    %1123 = vector.load %arg3[%c4176, %c0_341] : memref<4408x64xf32, #tpu.memory_space<vmem>>, vector<4x16xf32>
    %c4184 = arith.constant 4184 : index
    %c0_342 = arith.constant 0 : index
    %1124 = vector.load %arg3[%c4184, %c0_342] : memref<4408x64xf32, #tpu.memory_space<vmem>>, vector<4x1xf32>
    %cst_343 = arith.constant dense<0.000000e+00> : vector<4x16xf32>
    %1125 = tpu.matmul %1123, %1122, %cst_343 {dimension_numbers = #tpu.dot_dimension_numbers<[1], [0], [0], [1], [0, 0, 1, 1], [], []>} : vector<4x16xf32>, vector<16x16xf32>, vector<4x16xf32> -> vector<4x16xf32>
    %1126 = vector.broadcast %1124 : vector<4x1xf32> to vector<4x16xf32>
    %1127 = arith.addf %1126, %1125 : vector<4x16xf32>
    %c0_344 = arith.constant 0 : index
    %c0_345 = arith.constant 0 : index
    %1128 = vector.load %arg4[%c0_344, %c0_345] : memref<4x16xf32, #tpu.memory_space<vmem>>, vector<4x16xf32>
    tpu.vector_store %arg4[%c0_344, %c0_345], %1127 {strides = array<i32>} : memref<4x16xf32, #tpu.memory_space<vmem>>, vector<4x16xf32>,
    return
  }
}

</mosaic_0001>

<llo_original>
// kernel: forward.1
$region0: #{forward.1}
  #allocation0 [shape = 'u32[]', space=smem, size = 0x4, offset = 0x4, fixed_abs, tag = 'smem constant byte address 0x4 - core index']
  #allocation1 [shape = 'u32[72,128]{1,0:T(1,128)}', space=vmem, size = 0x9000, scoped, tag = 'internal scratch']
  %s0 = inlined_call_operand.vmem [shape: f32[4,16], index: 0, kind: input, shape index: {}]
  %s1 = inlined_call_operand.vmem [shape: f32[16,2], index: 1, kind: input, shape index: {}]
  %s2 = inlined_call_operand.vmem [shape: f32[8,2], index: 2, kind: input, shape index: {}]
  %s3 = inlined_call_operand.vmem [shape: f32[4408,64], index: 3, kind: input, shape index: {}]
  %s4 = inlined_call_operand.vmem [shape: f32[4,16], index: 4, kind: output, shape index: {}]
  %s5 = sld [smem:[#allocation0]]
  $region26: #{forward.1} parent=0
    _
  %s7 = ssub.s32 1, %s5
  %s8 = scalar_select 0, %s7, %s5
  // Predicated region
  $region2: #{forward.1} parent=0 // pred_check
    _
  $region3: #{forward.1} parent=0 // pred_check_branch
    %10 = sbr.rel (0) target = $region5
  $region4: #{forward.1} parent=0 // pred_region
    _
  $region5: #{forward.1} parent=0 // pred_fallthru
    _
  // Predicated region
  $region6: #{forward.1} parent=0 // pred_check
    _
  $region7: #{forward.1} parent=0 // pred_check_branch
    %12 = sbr.rel (0) target = $region9
  $region8: #{forward.1} parent=0 // pred_region
    _
  $region9: #{forward.1} parent=0 // pred_fallthru
    _
  // Predicated region
  $region10: #{forward.1} parent=0 // pred_check
    _
  $region11: #{forward.1} parent=0 // pred_check_branch
    %14 = sbr.rel (0) target = $region13
  $region12: #{forward.1} parent=0 // pred_region
    _
  $region13: #{forward.1} parent=0 // pred_fallthru
    _
  // Predicated region
  $region14: #{forward.1} parent=0 // pred_check
    _
  $region15: #{forward.1} parent=0 // pred_check_branch
    %16 = sbr.rel (0) target = $region17
  $region16: #{forward.1} parent=0 // pred_region
    _
  $region17: #{forward.1} parent=0 // pred_fallthru
    _
  %v17 = vld [vmem:[%s3 + $0x1060] sm:$0xff]
  %v18 = vld [vmem:[%s3 + $0x1068] sm:$0xff]
  %v19 = vld [vmem:[%s3 + $0x1070] sm:$0xff]
  %v20 = vld [vmem:[%s3 + $0x1078] sm:$0xff]
  %v21 = vld [vmem:[%s3 + $0x1080] sm:$0xff]
  %v22 = vld [vmem:[%s3 + $0x1088] sm:$0x3]
  %v23 = vld [vmem:[%s3 + $0x1090] sm:$0xff]
  %v24 = vld [vmem:[%s3 + $0x1098] sm:$0xff]
  %v25 = vld [vmem:[%s3 + $0x10a0] sm:$0xff]
  %v26 = vld [vmem:[%s3 + $0x10a8] sm:$0xff]
  %v27 = vld [vmem:[%s3 + $0x10b0] sm:$0xff]
  %v28 = vld [vmem:[%s3 + $0x10b8] sm:$0xff]
  %v29 = vld [vmem:[%s3 + $0x10c0] sm:$0xff]
  %v30 = vld [vmem:[%s3 + $0x10c8] sm:$0xff]
  %v31 = vld [vmem:[%s3 + $0x10d0] sm:$0xff]
  %v32 = vld [vmem:[%s3 + $0x10d8] sm:$0xff]
  %v33 = vld [vmem:[%s3 + $0x10e0] sm:$0x3]
  %v34 = vld [vmem:[%s3 + $0x10e8] sm:$0xff]
  %v35 = vld [vmem:[%s3 + $0x10f0] sm:$0xff]
  %v36 = vld [vmem:[%s3 + $0x10f8] sm:$0xff]
  %v37 = vld [vmem:[%s3 + $0x1100] sm:$0xff]
  %v38 = vld [vmem:[%s3 + $0x1108] sm:$0xff]
  %v39 = vld [vmem:[%s3 + $0x1110] sm:$0xff]
  %v40 = vld [vmem:[%s3 + $0x1118] sm:$0xff]
  %v41 = vld [vmem:[%s3 + $0x1120] sm:$0xff]
  %v42 = vld [vmem:[%s3 + $0x1128] sm:$0xff]
  %v43 = vld [vmem:[%s3 + $0x1130] sm:$0xff]
  %v44 = vld [vmem:[%s1] sm:$0xff]
  %v45 = vld [vmem:[%s1 + $0x8] sm:$0xff]
  %v46 = vld [vmem:[%s2] sm:$0xff]
  %v47 = vld [vmem:[%s0] sm:$0xf]
  %v48 = vld [vmem:[%s3] sm:$0xff]
  %v49 = vld [vmem:[%s3 + $0x8] sm:$0xff]
  %v50 = vld [vmem:[%s3 + $0x10] sm:$0xff]
  %v51 = vld [vmem:[%s3 + $0x18] sm:$0xff]
  %v52 = vld [vmem:[%s3 + $0x20] sm:$0xff]
  %v53 = vld [vmem:[%s3 + $0x28] sm:$0xff]
  %v54 = vld [vmem:[%s3 + $0x30] sm:$0xff]
  %v55 = vld [vmem:[%s3 + $0x38] sm:$0xff]
  %v56 = vld [vmem:[%s3 + $0x40] sm:$0xff]
  %v57 = vld [vmem:[%s3 + $0x48] sm:$0xff]
  %v58 = vld [vmem:[%s3 + $0x50] sm:$0xff]
  %v59 = vld [vmem:[%s3 + $0x58] sm:$0xff]
  %v60 = vld [vmem:[%s3 + $0x60] sm:$0xff]
  %v61 = vld [vmem:[%s3 + $0x68] sm:$0xff]
  %v62 = vld [vmem:[%s3 + $0x70] sm:$0xff]
  %v63 = vld [vmem:[%s3 + $0x78] sm:$0xff]
  %65 = vset.pattern.permute.xlu0 0
  %66 = vperm.xlu0 %65, %v56
  %v67 = vpop.permute.xlu0 %66
  %70 = vset.pattern.permute.xlu0 0
  %71 = vperm.xlu0 %70, %v57
  %v72 = vpop.permute.xlu0 %71
  %75 = vset.pattern.permute.xlu0 0
  %76 = vperm.xlu0 %75, %v58
  %v77 = vpop.permute.xlu0 %76
  %80 = vset.pattern.permute.xlu0 0
  %81 = vperm.xlu0 %80, %v59
  %v82 = vpop.permute.xlu0 %81
  %85 = vset.pattern.permute.xlu0 0
  %86 = vperm.xlu0 %85, %v60
  %v87 = vpop.permute.xlu0 %86
  %90 = vset.pattern.permute.xlu0 0
  %91 = vperm.xlu0 %90, %v61
  %v92 = vpop.permute.xlu0 %91
  %95 = vset.pattern.permute.xlu0 0
  %96 = vperm.xlu0 %95, %v62
  %v97 = vpop.permute.xlu0 %96
  %100 = vset.pattern.permute.xlu0 0
  %101 = vperm.xlu0 %100, %v63
  %v102 = vpop.permute.xlu0 %101
  %vm104 = vcmask 130048
  %v106 = vsel %vm104, %v48, 0
  %v109 = vsel %vm104, %v49, 0
  %v112 = vsel %vm104, %v50, 0
  %v115 = vsel %vm104, %v51, 0
  %v118 = vsel %vm104, %v52, 0
  %v121 = vsel %vm104, %v53, 0
  %v124 = vsel %vm104, %v54, 0
  %v127 = vsel %vm104, %v55, 0
  %129 = vmatpush.msra.mxu0 0.0
  %130 = vmatpush.msra.mxu0 0.0
  %131 = vmatpush.msra.mxu0 0.0
  %132 = vmatpush.msra.mxu0 0.0
  %133 = vmatpush.msra.mxu0 0.0
  %134 = vmatpush.msra.mxu0 0.0
  %135 = vmatpush.msra.mxu0 0.0
  %136 = vmatpush.msra.mxu0 0.0
  %137 = vmatpush.msra.mxu0 0.0
  %138 = vmatpush.msra.mxu0 0.0
  %139 = vmatpush.msra.mxu0 0.0
  %140 = vmatpush.msra.mxu0 0.0
  %141 = vmatpush.msra.mxu0 0.0
  %142 = vmatpush.msra.mxu0 0.0
  %143 = vmatpush.msra.mxu0 %v45
  %144 = vmatpush.msra.mxu0 %v44
  %145 = vmatmul.f32.gmra.mxu0 %v106
  %v146 = vpop.f32.mrf.mxu0
  %v147 = vadd.f32 %v67, %v146
  %148 = vmatmul.f32.gmra.mxu0 %v109
  %v149 = vpop.f32.mrf.mxu0
  %v150 = vadd.f32 %v72, %v149
  %151 = vmatmul.f32.gmra.mxu0 %v112
  %v152 = vpop.f32.mrf.mxu0
  %v153 = vadd.f32 %v77, %v152
  %154 = vmatmul.f32.gmra.mxu0 %v115
  %v155 = vpop.f32.mrf.mxu0
  %v156 = vadd.f32 %v82, %v155
  %157 = vmatmul.f32.gmra.mxu0 %v118
  %v158 = vpop.f32.mrf.mxu0
  %v159 = vadd.f32 %v87, %v158
  %160 = vmatmul.f32.gmra.mxu0 %v121
  %v161 = vpop.f32.mrf.mxu0
  %v162 = vadd.f32 %v92, %v161
  %163 = vmatmul.f32.gmra.mxu0 %v124
  %v164 = vpop.f32.mrf.mxu0
  %v165 = vadd.f32 %v97, %v164
  %166 = vmatmul.f32.gmra.mxu0 %v127
  %v167 = vpop.f32.mrf.mxu0
  %v168 = vadd.f32 %v102, %v167
  %169 = vdwg.mxu0
  %v170 = vmax.f32 %v147, 0.0
  %v171 = vmax.f32 %v150, 0.0
  %v172 = vmax.f32 %v153, 0.0
  %v173 = vmax.f32 %v156, 0.0
  %v174 = vmax.f32 %v159, 0.0
  %v175 = vmax.f32 %v162, 0.0
  %v176 = vmax.f32 %v165, 0.0
  %v177 = vmax.f32 %v168, 0.0
  %vm178 = vcmp.ne.f32.partialorder %v147, %v147
  %vm179 = vcmp.ne.f32.partialorder %v150, %v150
  %vm180 = vcmp.ne.f32.partialorder %v153, %v153
  %vm181 = vcmp.ne.f32.partialorder %v156, %v156
  %vm182 = vcmp.ne.f32.partialorder %v159, %v159
  %vm183 = vcmp.ne.f32.partialorder %v162, %v162
  %vm184 = vcmp.ne.f32.partialorder %v165, %v165
  %vm185 = vcmp.ne.f32.partialorder %v168, %v168
  %v186 = vadd.f32 %v147, 0.0
  %v187 = vadd.f32 %v150, 0.0
  %v188 = vadd.f32 %v153, 0.0
  %v189 = vadd.f32 %v156, 0.0
  %v190 = vadd.f32 %v159, 0.0
  %v191 = vadd.f32 %v162, 0.0
  %v192 = vadd.f32 %v165, 0.0
  %v193 = vadd.f32 %v168, 0.0
  %v194 = vand.u32 2147483647, %v147
  %v195 = vand.u32 2147483647, %v150
  %v196 = vand.u32 2147483647, %v153
  %v197 = vand.u32 2147483647, %v156
  %v198 = vand.u32 2147483647, %v159
  %v199 = vand.u32 2147483647, %v162
  %v200 = vand.u32 2147483647, %v165
  %v201 = vand.u32 2147483647, %v168
  %v202 = vsub.f32 0.0, %v194
  %v203 = vsub.f32 0.0, %v195
  %v204 = vsub.f32 0.0, %v196
  %v205 = vsub.f32 0.0, %v197
  %v206 = vsub.f32 0.0, %v198
  %v207 = vsub.f32 0.0, %v199
  %v208 = vsub.f32 0.0, %v200
  %v209 = vsub.f32 0.0, %v201
  %v210 = vmul.f32 %v202, 1.442695
  %v211 = vpow.pop %v210
  %v212 = vmul.f32 %v203, 1.442695
  %v213 = vpow.pop %v212
  %v214 = vmul.f32 %v204, 1.442695
  %v215 = vpow.pop %v214
  %v216 = vmul.f32 %v205, 1.442695
  %v217 = vpow.pop %v216
  %v218 = vmul.f32 %v206, 1.442695
  %v219 = vpow.pop %v218
  %v220 = vmul.f32 %v207, 1.442695
  %v221 = vpow.pop %v220
  %v222 = vmul.f32 %v208, 1.442695
  %v223 = vpow.pop %v222
  %v224 = vmul.f32 %v209, 1.442695
  %v225 = vpow.pop %v224
  %v226 = vadd.f32 %v211, 1.0
  %v227 = vlog2.pop %v226
  %v228 = vmul.f32 %v227, 0.6931472
  %v229 = vmul.f32 -0.5, %v211
  %v230 = vadd.f32 %v229, 1.0
  %v231 = vmul.f32 %v230, %v211
  %v232 = vand.u32 2147483647, %v211
  %vm233 = vcmp.lt.f32.partialorder %v232, 0.0004427343
  %v234 = vsel %vm233, %v231, %v228
  %v235 = vadd.f32 %v213, 1.0
  %v236 = vlog2.pop %v235
  %v237 = vmul.f32 %v236, 0.6931472
  %v238 = vmul.f32 -0.5, %v213
  %v239 = vadd.f32 %v238, 1.0
  %v240 = vmul.f32 %v239, %v213
  %v241 = vand.u32 2147483647, %v213
  %vm242 = vcmp.lt.f32.partialorder %v241, 0.0004427343
  %v243 = vsel %vm242, %v240, %v237
  %v244 = vadd.f32 %v215, 1.0
  %v245 = vlog2.pop %v244
  %v246 = vmul.f32 %v245, 0.6931472
  %v247 = vmul.f32 -0.5, %v215
  %v248 = vadd.f32 %v247, 1.0
  %v249 = vmul.f32 %v248, %v215
  %v250 = vand.u32 2147483647, %v215
  %vm251 = vcmp.lt.f32.partialorder %v250, 0.0004427343
  %v252 = vsel %vm251, %v249, %v246
  %v253 = vadd.f32 %v217, 1.0
  %v254 = vlog2.pop %v253
  %v255 = vmul.f32 %v254, 0.6931472
  %v256 = vmul.f32 -0.5, %v217
  %v257 = vadd.f32 %v256, 1.0
  %v258 = vmul.f32 %v257, %v217
  %v259 = vand.u32 2147483647, %v217
  %vm260 = vcmp.lt.f32.partialorder %v259, 0.0004427343
  %v261 = vsel %vm260, %v258, %v255
  %v262 = vadd.f32 %v219, 1.0
  %v263 = vlog2.pop %v262
  %v264 = vmul.f32 %v263, 0.6931472
  %v265 = vmul.f32 -0.5, %v219
  %v266 = vadd.f32 %v265, 1.0
  %v267 = vmul.f32 %v266, %v219
  %v268 = vand.u32 2147483647, %v219
  %vm269 = vcmp.lt.f32.partialorder %v268, 0.0004427343
  %v270 = vsel %vm269, %v267, %v264
  %v271 = vadd.f32 %v221, 1.0
  %v272 = vlog2.pop %v271
  %v273 = vmul.f32 %v272, 0.6931472
  %v274 = vmul.f32 -0.5, %v221
  %v275 = vadd.f32 %v274, 1.0
  %v276 = vmul.f32 %v275, %v221
  %v277 = vand.u32 2147483647, %v221
  %vm278 = vcmp.lt.f32.partialorder %v277, 0.0004427343
  %v279 = vsel %vm278, %v276, %v273
  %v280 = vadd.f32 %v223, 1.0
  %v281 = vlog2.pop %v280
  %v282 = vmul.f32 %v281, 0.6931472
  %v283 = vmul.f32 -0.5, %v223
  %v284 = vadd.f32 %v283, 1.0
  %v285 = vmul.f32 %v284, %v223
  %v286 = vand.u32 2147483647, %v223
  %vm287 = vcmp.lt.f32.partialorder %v286, 0.0004427343
  %v288 = vsel %vm287, %v285, %v282
  %v289 = vadd.f32 %v225, 1.0
  %v290 = vlog2.pop %v289
  %v291 = vmul.f32 %v290, 0.6931472
  %v292 = vmul.f32 -0.5, %v225
  %v293 = vadd.f32 %v292, 1.0
  %v294 = vmul.f32 %v293, %v225
  %v295 = vand.u32 2147483647, %v225
  %vm296 = vcmp.lt.f32.partialorder %v295, 0.0004427343
  %v297 = vsel %vm296, %v294, %v291
  %v298 = vadd.f32 %v170, %v234
  %v299 = vadd.f32 %v171, %v243
  %v300 = vadd.f32 %v172, %v252
  %v301 = vadd.f32 %v173, %v261
  %v302 = vadd.f32 %v174, %v270
  %v303 = vadd.f32 %v175, %v279
  %v304 = vadd.f32 %v176, %v288
  %v305 = vadd.f32 %v177, %v297
  %v306 = vsel %vm178, %v186, %v298
  %v307 = vsel %vm179, %v187, %v299
  %v308 = vsel %vm180, %v188, %v300
  %v309 = vsel %vm181, %v189, %v301
  %v310 = vsel %vm182, %v190, %v302
  %v311 = vsel %vm183, %v191, %v303
  %v312 = vsel %vm184, %v192, %v304
  %v313 = vsel %vm185, %v193, %v305
  %v314 = vtanh.pop %v306
  %v315 = vtanh.pop %v307
  %v316 = vtanh.pop %v308
  %v317 = vtanh.pop %v309
  %v318 = vtanh.pop %v310
  %v319 = vtanh.pop %v311
  %v320 = vtanh.pop %v312
  %v321 = vtanh.pop %v313
  %v322 = vmul.f32 %v147, %v314
  %v323 = vmul.f32 %v150, %v315
  %v324 = vmul.f32 %v153, %v316
  %v325 = vmul.f32 %v156, %v317
  %v326 = vmul.f32 %v159, %v318
  %v327 = vmul.f32 %v162, %v319
  %v328 = vmul.f32 %v165, %v320
  %v329 = vmul.f32 %v168, %v321
  %v330 = vld [vmem:[%s3 + $0x80] sm:$0xff]
  %v331 = vld [vmem:[%s3 + $0x88] sm:$0xff]
  %v332 = vld [vmem:[%s3 + $0x90] sm:$0xff]
  %v333 = vld [vmem:[%s3 + $0x98] sm:$0xff]
  %335 = vset.pattern.permute.xlu0 0
  %336 = vperm.xlu0 %335, %v332
  %v337 = vpop.permute.xlu0 %336
  %340 = vset.pattern.permute.xlu0 0
  %341 = vperm.xlu0 %340, %v333
  %v342 = vpop.permute.xlu0 %341
  %vm344 = vcmask 523264
  %v346 = vsel %vm344, %v330, 0
  %v349 = vsel %vm344, %v331, 0
  %351 = vmatpush.msra.mxu0 0.0
  %352 = vmatpush.msra.mxu0 0.0
  %353 = vmatpush.msra.mxu0 0.0
  %354 = vmatpush.msra.mxu0 0.0
  %355 = vmatpush.msra.mxu0 0.0
  %356 = vmatpush.msra.mxu0 0.0
  %357 = vmatpush.msra.mxu0 0.0
  %358 = vmatpush.msra.mxu0 0.0
  %359 = vmatpush.msra.mxu0 %v329
  %360 = vmatpush.msra.mxu0 %v328
  %361 = vmatpush.msra.mxu0 %v327
  %362 = vmatpush.msra.mxu0 %v326
  %363 = vmatpush.msra.mxu0 %v325
  %364 = vmatpush.msra.mxu0 %v324
  %365 = vmatpush.msra.mxu0 %v323
  %366 = vmatpush.msra.mxu0 %v322
  %367 = vmatmul.f32.gmra.mxu0 %v346
  %v368 = vpop.f32.mrf.mxu0
  %v369 = vadd.f32 %v337, %v368
  %370 = vmatmul.f32.gmra.mxu0 %v349
  %v371 = vpop.f32.mrf.mxu0
  %v372 = vadd.f32 %v342, %v371
  %373 = vdwg.mxu0
  %v374 = vld [vmem:[%s3 + $0xa0] sm:$0xff]
  %v375 = vld [vmem:[%s3 + $0xa8] sm:$0xff]
  %v376 = vld [vmem:[%s3 + $0xb0] sm:$0xff]
  %v377 = vld [vmem:[%s3 + $0xb8] sm:$0xff]
  %v378 = vld [vmem:[%s3 + $0xc0] sm:$0xff]
  %v379 = vld [vmem:[%s3 + $0xc8] sm:$0xff]
  %v380 = vld [vmem:[%s3 + $0xd0] sm:$0xff]
  %v381 = vld [vmem:[%s3 + $0xd8] sm:$0xff]
  %v382 = vld [vmem:[%s3 + $0xe0] sm:$0xff]
  %v383 = vld [vmem:[%s3 + $0xe8] sm:$0xff]
  %v384 = vld [vmem:[%s3 + $0xf0] sm:$0xff]
  %v385 = vld [vmem:[%s3 + $0xf8] sm:$0xff]
  %vm386 = vcmask 31744
  %v388 = vsel %vm386, %v374, 0
  %v391 = vsel %vm386, %v375, 0
  %v394 = vsel %vm386, %v376, 0
  %v397 = vsel %vm386, %v377, 0
  %v400 = vsel %vm386, %v378, 0
  %v403 = vsel %vm386, %v379, 0
  %v406 = vsel %vm386, %v380, 0
  %v409 = vsel %vm386, %v381, 0
  %v412 = vsel %vm386, %v382, 0
  %v415 = vsel %vm386, %v383, 0
  %vm417 = vcmask 1043456
  %v419 = vsel %vm417, %v47, 0
  %421 = vmatpush.msra.mxu0 0.0
  %422 = vmatpush.msra.mxu0 0.0
  %423 = vmatpush.msra.mxu0 0.0
  %424 = vmatpush.msra.mxu0 0.0
  %425 = vmatpush.msra.mxu0 0.0
  %426 = vmatpush.msra.mxu0 0.0
  %427 = vmatpush.msra.mxu0 0.0
  %428 = vmatpush.msra.mxu0 0.0
  %429 = vmatpush.msra.mxu0 0.0
  %430 = vmatpush.msra.mxu0 0.0
  %431 = vmatpush.msra.mxu0 0.0
  %432 = vmatpush.msra.mxu0 0.0
  %433 = vmatpush.msra.mxu0 0.0
  %434 = vmatpush.msra.mxu0 0.0
  %435 = vmatpush.msra.mxu0 0.0
  %436 = vmatpush.msra.mxu0 %v419
  %437 = vmatmul.f32.gmra.mxu0 %v388
  %v438 = vpop.f32.mrf.mxu0
  %v439 = vadd.f32 0.0, %v438
  %440 = vmatmul.f32.gmra.mxu0 %v391
  %v441 = vpop.f32.mrf.mxu0
  %v442 = vadd.f32 0.0, %v441
  %443 = vmatmul.f32.gmra.mxu0 %v394
  %v444 = vpop.f32.mrf.mxu0
  %v445 = vadd.f32 0.0, %v444
  %446 = vmatmul.f32.gmra.mxu0 %v397
  %v447 = vpop.f32.mrf.mxu0
  %v448 = vadd.f32 0.0, %v447
  %449 = vmatmul.f32.gmra.mxu0 %v400
  %v450 = vpop.f32.mrf.mxu0
  %v451 = vadd.f32 0.0, %v450
  %452 = vmatmul.f32.gmra.mxu0 %v403
  %v453 = vpop.f32.mrf.mxu0
  %v454 = vadd.f32 0.0, %v453
  %455 = vmatmul.f32.gmra.mxu0 %v406
  %v456 = vpop.f32.mrf.mxu0
  %v457 = vadd.f32 0.0, %v456
  %458 = vmatmul.f32.gmra.mxu0 %v409
  %v459 = vpop.f32.mrf.mxu0
  %v460 = vadd.f32 0.0, %v459
  %461 = vmatmul.f32.gmra.mxu0 %v412
  %v462 = vpop.f32.mrf.mxu0
  %v463 = vadd.f32 0.0, %v462
  %464 = vmatmul.f32.gmra.mxu0 %v415
  %v465 = vpop.f32.mrf.mxu0
  %v466 = vadd.f32 0.0, %v465
  %467 = vdwg.mxu0
  %v469 = vsel %vm104, %v439, 0
  %v472 = vsel %vm104, %v442, 0
  %474 = vmatpush.msra.mxu0 0.0
  %475 = vmatpush.msra.mxu0 0.0
  %476 = vmatpush.msra.mxu0 0.0
  %477 = vmatpush.msra.mxu0 0.0
  %478 = vmatpush.msra.mxu0 0.0
  %479 = vmatpush.msra.mxu0 0.0
  %480 = vmatpush.msra.mxu0 0.0
  %481 = vmatpush.msra.mxu0 0.0
  %482 = vmatpush.msra.mxu0 0.0
  %483 = vmatpush.msra.mxu0 0.0
  %484 = vmatpush.msra.mxu0 0.0
  %485 = vmatpush.msra.mxu0 0.0
  %486 = vmatpush.msra.mxu0 0.0
  %487 = vmatpush.msra.mxu0 0.0
  %488 = vmatpush.msra.mxu0 %v24
  %489 = vmatpush.msra.mxu0 %v23
  %490 = vmatmul.f32.gmra.mxu0 %v469
  %v491 = vpop.f32.mrf.mxu0
  %v492 = vadd.f32 0.0, %v491
  %493 = vmatmul.f32.gmra.mxu0 %v472
  %v494 = vpop.f32.mrf.mxu0
  %v495 = vadd.f32 0.0, %v494
  %496 = vdwg.mxu0
  %498 = vset.pattern.permute.xlu0 0
  %499 = vperm.xlu0 %498, %v384
  %v500 = vpop.permute.xlu0 %499
  %503 = vset.pattern.permute.xlu0 0
  %504 = vperm.xlu0 %503, %v385
  %v505 = vpop.permute.xlu0 %504
  %v507 = vadd.f32 %v500, %v492
  %v508 = vadd.f32 %v505, %v495
  %v510 = vsel %vm104, %v445, 0
  %v513 = vsel %vm104, %v448, 0
  %515 = vmatpush.msra.mxu0 0.0
  %516 = vmatpush.msra.mxu0 0.0
  %517 = vmatpush.msra.mxu0 0.0
  %518 = vmatpush.msra.mxu0 0.0
  %519 = vmatpush.msra.mxu0 0.0
  %520 = vmatpush.msra.mxu0 0.0
  %521 = vmatpush.msra.mxu0 0.0
  %522 = vmatpush.msra.mxu0 0.0
  %523 = vmatpush.msra.mxu0 0.0
  %524 = vmatpush.msra.mxu0 0.0
  %525 = vmatpush.msra.mxu0 0.0
  %526 = vmatpush.msra.mxu0 0.0
  %527 = vmatpush.msra.mxu0 0.0
  %528 = vmatpush.msra.mxu0 0.0
  %529 = vmatpush.msra.mxu0 %v26
  %530 = vmatpush.msra.mxu0 %v25
  %531 = vmatmul.f32.gmra.mxu0 %v510
  %v532 = vpop.f32.mrf.mxu0
  %v533 = vadd.f32 0.0, %v532
  %534 = vmatmul.f32.gmra.mxu0 %v513
  %v535 = vpop.f32.mrf.mxu0
  %v536 = vadd.f32 0.0, %v535
  %537 = vdwg.mxu0
  %v538 = vadd.f32 %v507, %v533
  %v539 = vadd.f32 %v508, %v536
  %v541 = vsel %vm104, %v451, 0
  %v544 = vsel %vm104, %v454, 0
  %546 = vmatpush.msra.mxu0 0.0
  %547 = vmatpush.msra.mxu0 0.0
  %548 = vmatpush.msra.mxu0 0.0
  %549 = vmatpush.msra.mxu0 0.0
  %550 = vmatpush.msra.mxu0 0.0
  %551 = vmatpush.msra.mxu0 0.0
  %552 = vmatpush.msra.mxu0 0.0
  %553 = vmatpush.msra.mxu0 0.0
  %554 = vmatpush.msra.mxu0 0.0
  %555 = vmatpush.msra.mxu0 0.0
  %556 = vmatpush.msra.mxu0 0.0
  %557 = vmatpush.msra.mxu0 0.0
  %558 = vmatpush.msra.mxu0 0.0
  %559 = vmatpush.msra.mxu0 0.0
  %560 = vmatpush.msra.mxu0 %v28
  %561 = vmatpush.msra.mxu0 %v27
  %562 = vmatmul.f32.gmra.mxu0 %v541
  %v563 = vpop.f32.mrf.mxu0
  %v564 = vadd.f32 0.0, %v563
  %565 = vmatmul.f32.gmra.mxu0 %v544
  %v566 = vpop.f32.mrf.mxu0
  %v567 = vadd.f32 0.0, %v566
  %568 = vdwg.mxu0
  %v569 = vadd.f32 %v538, %v564
  %v570 = vadd.f32 %v539, %v567
  %v572 = vsel %vm104, %v457, 0
  %v575 = vsel %vm104, %v460, 0
  %577 = vmatpush.msra.mxu0 0.0
  %578 = vmatpush.msra.mxu0 0.0
  %579 = vmatpush.msra.mxu0 0.0
  %580 = vmatpush.msra.mxu0 0.0
  %581 = vmatpush.msra.mxu0 0.0
  %582 = vmatpush.msra.mxu0 0.0
  %583 = vmatpush.msra.mxu0 0.0
  %584 = vmatpush.msra.mxu0 0.0
  %585 = vmatpush.msra.mxu0 0.0
  %586 = vmatpush.msra.mxu0 0.0
  %587 = vmatpush.msra.mxu0 0.0
  %588 = vmatpush.msra.mxu0 0.0
  %589 = vmatpush.msra.mxu0 0.0
  %590 = vmatpush.msra.mxu0 0.0
  %591 = vmatpush.msra.mxu0 %v30
  %592 = vmatpush.msra.mxu0 %v29
  %593 = vmatmul.f32.gmra.mxu0 %v572
  %v594 = vpop.f32.mrf.mxu0
  %v595 = vadd.f32 0.0, %v594
  %596 = vmatmul.f32.gmra.mxu0 %v575
  %v597 = vpop.f32.mrf.mxu0
  %v598 = vadd.f32 0.0, %v597
  %599 = vdwg.mxu0
  %v600 = vadd.f32 %v569, %v595
  %v601 = vadd.f32 %v570, %v598
  %v603 = vsel %vm104, %v463, 0
  %v606 = vsel %vm104, %v466, 0
  %608 = vmatpush.msra.mxu0 0.0
  %609 = vmatpush.msra.mxu0 0.0
  %610 = vmatpush.msra.mxu0 0.0
  %611 = vmatpush.msra.mxu0 0.0
  %612 = vmatpush.msra.mxu0 0.0
  %613 = vmatpush.msra.mxu0 0.0
  %614 = vmatpush.msra.mxu0 0.0
  %615 = vmatpush.msra.mxu0 0.0
  %616 = vmatpush.msra.mxu0 0.0
  %617 = vmatpush.msra.mxu0 0.0
  %618 = vmatpush.msra.mxu0 0.0
  %619 = vmatpush.msra.mxu0 0.0
  %620 = vmatpush.msra.mxu0 0.0
  %621 = vmatpush.msra.mxu0 0.0
  %622 = vmatpush.msra.mxu0 %v32
  %623 = vmatpush.msra.mxu0 %v31
  %624 = vmatmul.f32.gmra.mxu0 %v603
  %v625 = vpop.f32.mrf.mxu0
  %v626 = vadd.f32 0.0, %v625
  %627 = vmatmul.f32.gmra.mxu0 %v606
  %v628 = vpop.f32.mrf.mxu0
  %v629 = vadd.f32 0.0, %v628
  %630 = vdwg.mxu0
  %v631 = vadd.f32 %v600, %v626
  %v632 = vadd.f32 %v601, %v629
  %v633 = vmax.f32 %v631, 0.0
  %v634 = vmax.f32 %v632, 0.0
  %vm635 = vcmp.ne.f32.partialorder %v631, %v631
  %vm636 = vcmp.ne.f32.partialorder %v632, %v632
  %v637 = vadd.f32 %v631, 0.0
  %v638 = vadd.f32 %v632, 0.0
  %v639 = vand.u32 2147483647, %v631
  %v640 = vand.u32 2147483647, %v632
  %v641 = vsub.f32 0.0, %v639
  %v642 = vsub.f32 0.0, %v640
  %v643 = vmul.f32 %v641, 1.442695
  %v644 = vpow.pop %v643
  %v645 = vmul.f32 %v642, 1.442695
  %v646 = vpow.pop %v645
  %v647 = vadd.f32 %v644, 1.0
  %v648 = vlog2.pop %v647
  %v649 = vmul.f32 %v648, 0.6931472
  %v650 = vmul.f32 -0.5, %v644
  %v651 = vadd.f32 %v650, 1.0
  %v652 = vmul.f32 %v651, %v644
  %v653 = vand.u32 2147483647, %v644
  %vm654 = vcmp.lt.f32.partialorder %v653, 0.0004427343
  %v655 = vsel %vm654, %v652, %v649
  %v656 = vadd.f32 %v646, 1.0
  %v657 = vlog2.pop %v656
  %v658 = vmul.f32 %v657, 0.6931472
  %v659 = vmul.f32 -0.5, %v646
  %v660 = vadd.f32 %v659, 1.0
  %v661 = vmul.f32 %v660, %v646
  %v662 = vand.u32 2147483647, %v646
  %vm663 = vcmp.lt.f32.partialorder %v662, 0.0004427343
  %v664 = vsel %vm663, %v661, %v658
  %v665 = vadd.f32 %v633, %v655
  %v666 = vadd.f32 %v634, %v664
  %v667 = vsel %vm635, %v637, %v665
  %v668 = vsel %vm636, %v638, %v666
  %v669 = vtanh.pop %v667
  %v670 = vtanh.pop %v668
  %v671 = vmul.f32 %v631, %v669
  %v672 = vmul.f32 %v632, %v670
  %v673 = vld [vmem:[%s3 + $0x160] sm:$0xff]
  %v674 = vld [vmem:[%s3 + $0x168] sm:$0xff]
  %v675 = vld [vmem:[%s3 + $0x170] sm:$0xff]
  %v676 = vld [vmem:[%s3 + $0x178] sm:$0xff]
  %vm677 = vcmask 64512
  %v679 = vsel %vm677, %v675, 0
  %v682 = vsel %vm677, %v676, 0
  %684 = vmatpush.msra.mxu0 0.0
  %685 = vmatpush.msra.mxu0 0.0
  %686 = vmatpush.msra.mxu0 0.0
  %687 = vmatpush.msra.mxu0 0.0
  %688 = vmatpush.msra.mxu0 0.0
  %689 = vmatpush.msra.mxu0 0.0
  %690 = vmatpush.msra.mxu0 0.0
  %691 = vmatpush.msra.mxu0 0.0
  %692 = vmatpush.msra.mxu0 0.0
  %693 = vmatpush.msra.mxu0 0.0
  %694 = vmatpush.msra.mxu0 0.0
  %695 = vmatpush.msra.mxu0 0.0
  %696 = vmatpush.msra.mxu0 0.0
  %697 = vmatpush.msra.mxu0 0.0
  %698 = vmatpush.msra.mxu0 0.0
  %699 = vmatpush.msra.mxu0 %v46
  %700 = vmatmul.f32.gmra.mxu0 %v679
  %v701 = vpop.f32.mrf.mxu0
  %v702 = vadd.f32 0.0, %v701
  %703 = vmatmul.f32.gmra.mxu0 %v682
  %v704 = vpop.f32.mrf.mxu0
  %v705 = vadd.f32 0.0, %v704
  %706 = vdwg.mxu0
  %v708 = vsel %vm104, %v673, 0
  %v711 = vsel %vm104, %v674, 0
  %713 = vmatpush.msra.mxu0 0.0
  %714 = vmatpush.msra.mxu0 0.0
  %715 = vmatpush.msra.mxu0 0.0
  %716 = vmatpush.msra.mxu0 0.0
  %717 = vmatpush.msra.mxu0 0.0
  %718 = vmatpush.msra.mxu0 0.0
  %719 = vmatpush.msra.mxu0 0.0
  %720 = vmatpush.msra.mxu0 0.0
  %721 = vmatpush.msra.mxu0 0.0
  %722 = vmatpush.msra.mxu0 0.0
  %723 = vmatpush.msra.mxu0 0.0
  %724 = vmatpush.msra.mxu0 0.0
  %725 = vmatpush.msra.mxu0 0.0
  %726 = vmatpush.msra.mxu0 0.0
  %727 = vmatpush.msra.mxu0 %v372
  %728 = vmatpush.msra.mxu0 %v369
  %729 = vmatmul.f32.gmra.mxu0 %v708
  %v730 = vpop.f32.mrf.mxu0
  %v731 = vadd.f32 %v702, %v730
  %732 = vmatmul.f32.gmra.mxu0 %v711
  %v733 = vpop.f32.mrf.mxu0
  %v734 = vadd.f32 %v705, %v733
  %735 = vdwg.mxu0
  %v736 = vld [vmem:[%s3 + $0x180] sm:$0xff]
  %v737 = vld [vmem:[%s3 + $0x188] sm:$0xff]
  %739 = vset.pattern.permute.xlu0 0
  %740 = vperm.xlu0 %739, %v736
  %v741 = vpop.permute.xlu0 %740
  %744 = vset.pattern.permute.xlu0 0
  %745 = vperm.xlu0 %744, %v737
  %v746 = vpop.permute.xlu0 %745
  %v748 = vadd.f32 %v731, %v741
  %v749 = vadd.f32 %v734, %v746
  %v750 = vmax.f32 %v748, 0.0
  %v751 = vmax.f32 %v749, 0.0
  %vm752 = vcmp.ne.f32.partialorder %v748, %v748
  %vm753 = vcmp.ne.f32.partialorder %v749, %v749
  %v754 = vadd.f32 %v748, 0.0
  %v755 = vadd.f32 %v749, 0.0
  %v756 = vand.u32 2147483647, %v748
  %v757 = vand.u32 2147483647, %v749
  %v758 = vsub.f32 0.0, %v756
  %v759 = vsub.f32 0.0, %v757
  %v760 = vmul.f32 %v758, 1.442695
  %v761 = vpow.pop %v760
  %v762 = vmul.f32 %v759, 1.442695
  %v763 = vpow.pop %v762
  %v764 = vadd.f32 %v761, 1.0
  %v765 = vlog2.pop %v764
  %v766 = vmul.f32 %v765, 0.6931472
  %v767 = vmul.f32 -0.5, %v761
  %v768 = vadd.f32 %v767, 1.0
  %v769 = vmul.f32 %v768, %v761
  %v770 = vand.u32 2147483647, %v761
  %vm771 = vcmp.lt.f32.partialorder %v770, 0.0004427343
  %v772 = vsel %vm771, %v769, %v766
  %v773 = vadd.f32 %v763, 1.0
  %v774 = vlog2.pop %v773
  %v775 = vmul.f32 %v774, 0.6931472
  %v776 = vmul.f32 -0.5, %v763
  %v777 = vadd.f32 %v776, 1.0
  %v778 = vmul.f32 %v777, %v763
  %v779 = vand.u32 2147483647, %v763
  %vm780 = vcmp.lt.f32.partialorder %v779, 0.0004427343
  %v781 = vsel %vm780, %v778, %v775
  %v782 = vadd.f32 %v750, %v772
  %v783 = vadd.f32 %v751, %v781
  %v784 = vsel %vm752, %v754, %v782
  %v785 = vsel %vm753, %v755, %v783
  %v786 = vtanh.pop %v784
  %v787 = vtanh.pop %v785
  %v788 = vmul.f32 %v748, %v786
  %v789 = vmul.f32 %v749, %v787
  %v790 = vld [vmem:[%s3 + $0x190] sm:$0xff]
  %v791 = vld [vmem:[%s3 + $0x198] sm:$0xff]
  %v792 = vld [vmem:[%s3 + $0x1a0] sm:$0xff]
  %v793 = vld [vmem:[%s3 + $0x1a8] sm:$0xff]
  %795 = vset.pattern.permute.xlu0 0
  %796 = vperm.xlu0 %795, %v792
  %v797 = vpop.permute.xlu0 %796
  %800 = vset.pattern.permute.xlu0 0
  %801 = vperm.xlu0 %800, %v793
  %v802 = vpop.permute.xlu0 %801
  %v805 = vsel %vm104, %v790, 0
  %v808 = vsel %vm104, %v791, 0
  %810 = vmatpush.msra.mxu0 0.0
  %811 = vmatpush.msra.mxu0 0.0
  %812 = vmatpush.msra.mxu0 0.0
  %813 = vmatpush.msra.mxu0 0.0
  %814 = vmatpush.msra.mxu0 0.0
  %815 = vmatpush.msra.mxu0 0.0
  %816 = vmatpush.msra.mxu0 0.0
  %817 = vmatpush.msra.mxu0 0.0
  %818 = vmatpush.msra.mxu0 0.0
  %819 = vmatpush.msra.mxu0 0.0
  %820 = vmatpush.msra.mxu0 0.0
  %821 = vmatpush.msra.mxu0 0.0
  %822 = vmatpush.msra.mxu0 0.0
  %823 = vmatpush.msra.mxu0 0.0
  %824 = vmatpush.msra.mxu0 %v789
  %825 = vmatpush.msra.mxu0 %v788
  %826 = vmatmul.f32.gmra.mxu0 %v805
  %v827 = vpop.f32.mrf.mxu0
  %v828 = vadd.f32 %v797, %v827
  %829 = vmatmul.f32.gmra.mxu0 %v808
  %v830 = vpop.f32.mrf.mxu0
  %v831 = vadd.f32 %v802, %v830
  %832 = vdwg.mxu0
  %v833 = vmax.f32 %v828, 0.0
  %v834 = vmax.f32 %v831, 0.0
  %vm835 = vcmp.ne.f32.partialorder %v828, %v828
  %vm836 = vcmp.ne.f32.partialorder %v831, %v831
  %v837 = vadd.f32 %v828, 0.0
  %v838 = vadd.f32 %v831, 0.0
  %v839 = vand.u32 2147483647, %v828
  %v840 = vand.u32 2147483647, %v831
  %v841 = vsub.f32 0.0, %v839
  %v842 = vsub.f32 0.0, %v840
  %v843 = vmul.f32 %v841, 1.442695
  %v844 = vpow.pop %v843
  %v845 = vmul.f32 %v842, 1.442695
  %v846 = vpow.pop %v845
  %v847 = vadd.f32 %v844, 1.0
  %v848 = vlog2.pop %v847
  %v849 = vmul.f32 %v848, 0.6931472
  %v850 = vmul.f32 -0.5, %v844
  %v851 = vadd.f32 %v850, 1.0
  %v852 = vmul.f32 %v851, %v844
  %v853 = vand.u32 2147483647, %v844
  %vm854 = vcmp.lt.f32.partialorder %v853, 0.0004427343
  %v855 = vsel %vm854, %v852, %v849
  %v856 = vadd.f32 %v846, 1.0
  %v857 = vlog2.pop %v856
  %v858 = vmul.f32 %v857, 0.6931472
  %v859 = vmul.f32 -0.5, %v846
  %v860 = vadd.f32 %v859, 1.0
  %v861 = vmul.f32 %v860, %v846
  %v862 = vand.u32 2147483647, %v846
  %vm863 = vcmp.lt.f32.partialorder %v862, 0.0004427343
  %v864 = vsel %vm863, %v861, %v858
  %v865 = vadd.f32 %v833, %v855
  %v866 = vadd.f32 %v834, %v864
  %v867 = vsel %vm835, %v837, %v865
  %v868 = vsel %vm836, %v838, %v866
  %v869 = vtanh.pop %v867
  %v870 = vtanh.pop %v868
  %v871 = vmul.f32 %v828, %v869
  %v872 = vmul.f32 %v831, %v870
  %v873 = vld [vmem:[%s3 + $0x1b0] sm:$0xff]
  %v874 = vld [vmem:[%s3 + $0x1b8] sm:$0xff]
  %v875 = vld [vmem:[%s3 + $0x1c0] sm:$0xff]
  %v876 = vld [vmem:[%s3 + $0x1c8] sm:$0xff]
  %878 = vset.pattern.permute.xlu0 0
  %879 = vperm.xlu0 %878, %v875
  %v880 = vpop.permute.xlu0 %879
  %883 = vset.pattern.permute.xlu0 0
  %884 = vperm.xlu0 %883, %v876
  %v885 = vpop.permute.xlu0 %884
  %v888 = vsel %vm104, %v873, 0
  %v891 = vsel %vm104, %v874, 0
  %893 = vmatpush.msra.mxu0 0.0
  %894 = vmatpush.msra.mxu0 0.0
  %895 = vmatpush.msra.mxu0 0.0
  %896 = vmatpush.msra.mxu0 0.0
  %897 = vmatpush.msra.mxu0 0.0
  %898 = vmatpush.msra.mxu0 0.0
  %899 = vmatpush.msra.mxu0 0.0
  %900 = vmatpush.msra.mxu0 0.0
  %901 = vmatpush.msra.mxu0 0.0
  %902 = vmatpush.msra.mxu0 0.0
  %903 = vmatpush.msra.mxu0 0.0
  %904 = vmatpush.msra.mxu0 0.0
  %905 = vmatpush.msra.mxu0 0.0
  %906 = vmatpush.msra.mxu0 0.0
  %907 = vmatpush.msra.mxu0 %v872
  %908 = vmatpush.msra.mxu0 %v871
  %909 = vmatmul.f32.gmra.mxu0 %v888
  %v910 = vpop.f32.mrf.mxu0
  %v911 = vadd.f32 %v880, %v910
  %912 = vmatmul.f32.gmra.mxu0 %v891
  %v913 = vpop.f32.mrf.mxu0
  %v914 = vadd.f32 %v885, %v913
  %915 = vdwg.mxu0
  %vm916 = vcmask 15360
  %v918 = vsel %vm916, %v911, 0
  %v921 = vsel %vm916, %v914, 0
  %vm923 = vcmask 1041408
  %v925 = vsel %vm923, %v33, 0
  %927 = vmatpush.msra.mxu0 0.0
  %928 = vmatpush.msra.mxu0 0.0
  %929 = vmatpush.msra.mxu0 0.0
  %930 = vmatpush.msra.mxu0 0.0
  %931 = vmatpush.msra.mxu0 0.0
  %932 = vmatpush.msra.mxu0 0.0
  %933 = vmatpush.msra.mxu0 0.0
  %934 = vmatpush.msra.mxu0 0.0
  %935 = vmatpush.msra.mxu0 0.0
  %936 = vmatpush.msra.mxu0 0.0
  %937 = vmatpush.msra.mxu0 0.0
  %938 = vmatpush.msra.mxu0 0.0
  %939 = vmatpush.msra.mxu0 0.0
  %940 = vmatpush.msra.mxu0 0.0
  %941 = vmatpush.msra.mxu0 0.0
  %942 = vmatpush.msra.mxu0 %v925
  %943 = vmatmul.f32.gmra.mxu0 %v918
  %v944 = vpop.f32.mrf.mxu0
  %v945 = vadd.f32 0.0, %v944
  %946 = vmatmul.f32.gmra.mxu0 %v921
  %v947 = vpop.f32.mrf.mxu0
  %v948 = vadd.f32 0.0, %v947
  %949 = vdwg.mxu0
  %v950 = vadd.f32 %v671, %v945
  %v951 = vadd.f32 %v672, %v948
  %v952 = vld [vmem:[%s3 + $0x100] sm:$0xff]
  %v953 = vld [vmem:[%s3 + $0x108] sm:$0xff]
  %v954 = vld [vmem:[%s3 + $0x110] sm:$0xff]
  %v955 = vld [vmem:[%s3 + $0x118] sm:$0xff]
  %v956 = vld [vmem:[%s3 + $0x120] sm:$0xff]
  %v957 = vld [vmem:[%s3 + $0x128] sm:$0xff]
  %v958 = vld [vmem:[%s3 + $0x130] sm:$0xff]
  %v959 = vld [vmem:[%s3 + $0x138] sm:$0xff]
  %v960 = vld [vmem:[%s3 + $0x140] sm:$0xff]
  %v961 = vld [vmem:[%s3 + $0x148] sm:$0xff]
  %v962 = vld [vmem:[%s3 + $0x150] sm:$0xff]
  %v963 = vld [vmem:[%s3 + $0x158] sm:$0xff]
  %v965 = vsel %vm104, %v952, 0
  %v968 = vsel %vm104, %v953, 0
  %v971 = vsel %vm104, %v954, 0
  %v974 = vsel %vm104, %v955, 0
  %v977 = vsel %vm104, %v956, 0
  %v980 = vsel %vm104, %v957, 0
  %v983 = vsel %vm104, %v958, 0
  %v986 = vsel %vm104, %v959, 0
  %v989 = vsel %vm104, %v960, 0
  %v992 = vsel %vm104, %v961, 0
  %994 = vmatpush.msra.mxu0 0.0
  %995 = vmatpush.msra.mxu0 0.0
  %996 = vmatpush.msra.mxu0 0.0
  %997 = vmatpush.msra.mxu0 0.0
  %998 = vmatpush.msra.mxu0 0.0
  %999 = vmatpush.msra.mxu0 0.0
  %1000 = vmatpush.msra.mxu0 0.0
  %1001 = vmatpush.msra.mxu0 0.0
  %1002 = vmatpush.msra.mxu0 0.0
  %1003 = vmatpush.msra.mxu0 0.0
  %1004 = vmatpush.msra.mxu0 0.0
  %1005 = vmatpush.msra.mxu0 0.0
  %1006 = vmatpush.msra.mxu0 0.0
  %1007 = vmatpush.msra.mxu0 0.0
  %1008 = vmatpush.msra.mxu0 %v951
  %1009 = vmatpush.msra.mxu0 %v950
  %1010 = vmatmul.f32.gmra.mxu0 %v965
  %v1011 = vpop.f32.mrf.mxu0
  %v1012 = vadd.f32 0.0, %v1011
  %1013 = vmatmul.f32.gmra.mxu0 %v968
  %v1014 = vpop.f32.mrf.mxu0
  %v1015 = vadd.f32 0.0, %v1014
  %1016 = vmatmul.f32.gmra.mxu0 %v971
  %v1017 = vpop.f32.mrf.mxu0
  %v1018 = vadd.f32 0.0, %v1017
  %1019 = vmatmul.f32.gmra.mxu0 %v974
  %v1020 = vpop.f32.mrf.mxu0
  %v1021 = vadd.f32 0.0, %v1020
  %1022 = vmatmul.f32.gmra.mxu0 %v977
  %v1023 = vpop.f32.mrf.mxu0
  %v1024 = vadd.f32 0.0, %v1023
  %1025 = vmatmul.f32.gmra.mxu0 %v980
  %v1026 = vpop.f32.mrf.mxu0
  %v1027 = vadd.f32 0.0, %v1026
  %1028 = vmatmul.f32.gmra.mxu0 %v983
  %v1029 = vpop.f32.mrf.mxu0
  %v1030 = vadd.f32 0.0, %v1029
  %1031 = vmatmul.f32.gmra.mxu0 %v986
  %v1032 = vpop.f32.mrf.mxu0
  %v1033 = vadd.f32 0.0, %v1032
  %1034 = vmatmul.f32.gmra.mxu0 %v989
  %v1035 = vpop.f32.mrf.mxu0
  %v1036 = vadd.f32 0.0, %v1035
  %1037 = vmatmul.f32.gmra.mxu0 %v992
  %v1038 = vpop.f32.mrf.mxu0
  %v1039 = vadd.f32 0.0, %v1038
  %1040 = vdwg.mxu0
  %v1042 = vsel %vm104, %v1012, 0
  %v1045 = vsel %vm104, %v1015, 0
  %1047 = vmatpush.msra.mxu0 0.0
  %1048 = vmatpush.msra.mxu0 0.0
  %1049 = vmatpush.msra.mxu0 0.0
  %1050 = vmatpush.msra.mxu0 0.0
  %1051 = vmatpush.msra.mxu0 0.0
  %1052 = vmatpush.msra.mxu0 0.0
  %1053 = vmatpush.msra.mxu0 0.0
  %1054 = vmatpush.msra.mxu0 0.0
  %1055 = vmatpush.msra.mxu0 0.0
  %1056 = vmatpush.msra.mxu0 0.0
  %1057 = vmatpush.msra.mxu0 0.0
  %1058 = vmatpush.msra.mxu0 0.0
  %1059 = vmatpush.msra.mxu0 0.0
  %1060 = vmatpush.msra.mxu0 0.0
  %1061 = vmatpush.msra.mxu0 %v24
  %1062 = vmatpush.msra.mxu0 %v23
  %1063 = vmatmul.f32.gmra.mxu0 %v1042
  %v1064 = vpop.f32.mrf.mxu0
  %v1065 = vadd.f32 0.0, %v1064
  %1066 = vmatmul.f32.gmra.mxu0 %v1045
  %v1067 = vpop.f32.mrf.mxu0
  %v1068 = vadd.f32 0.0, %v1067
  %1069 = vdwg.mxu0
  %1071 = vset.pattern.permute.xlu0 0
  %1072 = vperm.xlu0 %1071, %v962
  %v1073 = vpop.permute.xlu0 %1072
  %1076 = vset.pattern.permute.xlu0 0
  %1077 = vperm.xlu0 %1076, %v963
  %v1078 = vpop.permute.xlu0 %1077
  %v1080 = vadd.f32 %v1073, %v1065
  %v1081 = vadd.f32 %v1078, %v1068
  %v1083 = vsel %vm104, %v1018, 0
  %v1086 = vsel %vm104, %v1021, 0
  %1088 = vmatpush.msra.mxu0 0.0
  %1089 = vmatpush.msra.mxu0 0.0
  %1090 = vmatpush.msra.mxu0 0.0
  %1091 = vmatpush.msra.mxu0 0.0
  %1092 = vmatpush.msra.mxu0 0.0
  %1093 = vmatpush.msra.mxu0 0.0
  %1094 = vmatpush.msra.mxu0 0.0
  %1095 = vmatpush.msra.mxu0 0.0
  %1096 = vmatpush.msra.mxu0 0.0
  %1097 = vmatpush.msra.mxu0 0.0
  %1098 = vmatpush.msra.mxu0 0.0
  %1099 = vmatpush.msra.mxu0 0.0
  %1100 = vmatpush.msra.mxu0 0.0
  %1101 = vmatpush.msra.mxu0 0.0
  %1102 = vmatpush.msra.mxu0 %v26
  %1103 = vmatpush.msra.mxu0 %v25
  %1104 = vmatmul.f32.gmra.mxu0 %v1083
  %v1105 = vpop.f32.mrf.mxu0
  %v1106 = vadd.f32 0.0, %v1105
  %1107 = vmatmul.f32.gmra.mxu0 %v1086
  %v1108 = vpop.f32.mrf.mxu0
  %v1109 = vadd.f32 0.0, %v1108
  %1110 = vdwg.mxu0
  %v1111 = vadd.f32 %v1080, %v1106
  %v1112 = vadd.f32 %v1081, %v1109
  %v1114 = vsel %vm104, %v1024, 0
  %v1117 = vsel %vm104, %v1027, 0
  %1119 = vmatpush.msra.mxu0 0.0
  %1120 = vmatpush.msra.mxu0 0.0
  %1121 = vmatpush.msra.mxu0 0.0
  %1122 = vmatpush.msra.mxu0 0.0
  %1123 = vmatpush.msra.mxu0 0.0
  %1124 = vmatpush.msra.mxu0 0.0
  %1125 = vmatpush.msra.mxu0 0.0
  %1126 = vmatpush.msra.mxu0 0.0
  %1127 = vmatpush.msra.mxu0 0.0
  %1128 = vmatpush.msra.mxu0 0.0
  %1129 = vmatpush.msra.mxu0 0.0
  %1130 = vmatpush.msra.mxu0 0.0
  %1131 = vmatpush.msra.mxu0 0.0
  %1132 = vmatpush.msra.mxu0 0.0
  %1133 = vmatpush.msra.mxu0 %v28
  %1134 = vmatpush.msra.mxu0 %v27
  %1135 = vmatmul.f32.gmra.mxu0 %v1114
  %v1136 = vpop.f32.mrf.mxu0
  %v1137 = vadd.f32 0.0, %v1136
  %1138 = vmatmul.f32.gmra.mxu0 %v1117
  %v1139 = vpop.f32.mrf.mxu0
  %v1140 = vadd.f32 0.0, %v1139
  %1141 = vdwg.mxu0
  %v1142 = vadd.f32 %v1111, %v1137
  %v1143 = vadd.f32 %v1112, %v1140
  %v1145 = vsel %vm104, %v1030, 0
  %v1148 = vsel %vm104, %v1033, 0
  %1150 = vmatpush.msra.mxu0 0.0
  %1151 = vmatpush.msra.mxu0 0.0
  %1152 = vmatpush.msra.mxu0 0.0
  %1153 = vmatpush.msra.mxu0 0.0
  %1154 = vmatpush.msra.mxu0 0.0
  %1155 = vmatpush.msra.mxu0 0.0
  %1156 = vmatpush.msra.mxu0 0.0
  %1157 = vmatpush.msra.mxu0 0.0
  %1158 = vmatpush.msra.mxu0 0.0
  %1159 = vmatpush.msra.mxu0 0.0
  %1160 = vmatpush.msra.mxu0 0.0
  %1161 = vmatpush.msra.mxu0 0.0
  %1162 = vmatpush.msra.mxu0 0.0
  %1163 = vmatpush.msra.mxu0 0.0
  %1164 = vmatpush.msra.mxu0 %v30
  %1165 = vmatpush.msra.mxu0 %v29
  %1166 = vmatmul.f32.gmra.mxu0 %v1145
  %v1167 = vpop.f32.mrf.mxu0
  %v1168 = vadd.f32 0.0, %v1167
  %1169 = vmatmul.f32.gmra.mxu0 %v1148
  %v1170 = vpop.f32.mrf.mxu0
  %v1171 = vadd.f32 0.0, %v1170
  %1172 = vdwg.mxu0
  %v1173 = vadd.f32 %v1142, %v1168
  %v1174 = vadd.f32 %v1143, %v1171
  %v1176 = vsel %vm104, %v1036, 0
  %v1179 = vsel %vm104, %v1039, 0
  %1181 = vmatpush.msra.mxu0 0.0
  %1182 = vmatpush.msra.mxu0 0.0
  %1183 = vmatpush.msra.mxu0 0.0
  %1184 = vmatpush.msra.mxu0 0.0
  %1185 = vmatpush.msra.mxu0 0.0
  %1186 = vmatpush.msra.mxu0 0.0
  %1187 = vmatpush.msra.mxu0 0.0
  %1188 = vmatpush.msra.mxu0 0.0
  %1189 = vmatpush.msra.mxu0 0.0
  %1190 = vmatpush.msra.mxu0 0.0
  %1191 = vmatpush.msra.mxu0 0.0
  %1192 = vmatpush.msra.mxu0 0.0
  %1193 = vmatpush.msra.mxu0 0.0
  %1194 = vmatpush.msra.mxu0 0.0
  %1195 = vmatpush.msra.mxu0 %v32
  %1196 = vmatpush.msra.mxu0 %v31
  %1197 = vmatmul.f32.gmra.mxu0 %v1176
  %v1198 = vpop.f32.mrf.mxu0
  %v1199 = vadd.f32 0.0, %v1198
  %1200 = vmatmul.f32.gmra.mxu0 %v1179
  %v1201 = vpop.f32.mrf.mxu0
  %v1202 = vadd.f32 0.0, %v1201
  %1203 = vdwg.mxu0
  %v1204 = vadd.f32 %v1173, %v1199
  %v1205 = vadd.f32 %v1174, %v1202
  %v1206 = vmax.f32 %v1204, 0.0
  %v1207 = vmax.f32 %v1205, 0.0
  %vm1208 = vcmp.ne.f32.partialorder %v1204, %v1204
  %vm1209 = vcmp.ne.f32.partialorder %v1205, %v1205
  %v1210 = vadd.f32 %v1204, 0.0
  %v1211 = vadd.f32 %v1205, 0.0
  %v1212 = vand.u32 2147483647, %v1204
  %v1213 = vand.u32 2147483647, %v1205
  %v1214 = vsub.f32 0.0, %v1212
  %v1215 = vsub.f32 0.0, %v1213
  %v1216 = vmul.f32 %v1214, 1.442695
  %v1217 = vpow.pop %v1216
  %v1218 = vmul.f32 %v1215, 1.442695
  %v1219 = vpow.pop %v1218
  %v1220 = vadd.f32 %v1217, 1.0
  %v1221 = vlog2.pop %v1220
  %v1222 = vmul.f32 %v1221, 0.6931472
  %v1223 = vmul.f32 -0.5, %v1217
  %v1224 = vadd.f32 %v1223, 1.0
  %v1225 = vmul.f32 %v1224, %v1217
  %v1226 = vand.u32 2147483647, %v1217
  %vm1227 = vcmp.lt.f32.partialorder %v1226, 0.0004427343
  %v1228 = vsel %vm1227, %v1225, %v1222
  %v1229 = vadd.f32 %v1219, 1.0
  %v1230 = vlog2.pop %v1229
  %v1231 = vmul.f32 %v1230, 0.6931472
  %v1232 = vmul.f32 -0.5, %v1219
  %v1233 = vadd.f32 %v1232, 1.0
  %v1234 = vmul.f32 %v1233, %v1219
  %v1235 = vand.u32 2147483647, %v1219
  %vm1236 = vcmp.lt.f32.partialorder %v1235, 0.0004427343
  %v1237 = vsel %vm1236, %v1234, %v1231
  %v1238 = vadd.f32 %v1206, %v1228
  %v1239 = vadd.f32 %v1207, %v1237
  %v1240 = vsel %vm1208, %v1210, %v1238
  %v1241 = vsel %vm1209, %v1211, %v1239
  %v1242 = vtanh.pop %v1240
  %v1243 = vtanh.pop %v1241
  %v1244 = vmul.f32 %v1204, %v1242
  %v1245 = vmul.f32 %v1205, %v1243
  %v1246 = vld [vmem:[%s3 + $0x1d0] sm:$0xff]
  %v1247 = vld [vmem:[%s3 + $0x1d8] sm:$0xff]
  %v1248 = vld [vmem:[%s3 + $0x1e0] sm:$0xff]
  %v1249 = vld [vmem:[%s3 + $0x1e8] sm:$0xff]
  %v1251 = vsel %vm386, %v1246, 0
  %v1254 = vsel %vm386, %v1247, 0
  %1256 = vmatpush.msra.mxu0 0.0
  %1257 = vmatpush.msra.mxu0 0.0
  %1258 = vmatpush.msra.mxu0 0.0
  %1259 = vmatpush.msra.mxu0 0.0
  %1260 = vmatpush.msra.mxu0 0.0
  %1261 = vmatpush.msra.mxu0 0.0
  %1262 = vmatpush.msra.mxu0 0.0
  %1263 = vmatpush.msra.mxu0 0.0
  %1264 = vmatpush.msra.mxu0 0.0
  %1265 = vmatpush.msra.mxu0 0.0
  %1266 = vmatpush.msra.mxu0 0.0
  %1267 = vmatpush.msra.mxu0 0.0
  %1268 = vmatpush.msra.mxu0 0.0
  %1269 = vmatpush.msra.mxu0 0.0
  %1270 = vmatpush.msra.mxu0 0.0
  %1271 = vmatpush.msra.mxu0 %v419
  %1272 = vmatmul.f32.gmra.mxu0 %v1251
  %v1273 = vpop.f32.mrf.mxu0
  %v1274 = vadd.f32 0.0, %v1273
  %1275 = vmatmul.f32.gmra.mxu0 %v1254
  %v1276 = vpop.f32.mrf.mxu0
  %v1277 = vadd.f32 0.0, %v1276
  %1278 = vdwg.mxu0
  %1280 = vset.pattern.permute.xlu0 0
  %1281 = vperm.xlu0 %1280, %v1248
  %v1282 = vpop.permute.xlu0 %1281
  %1285 = vset.pattern.permute.xlu0 0
  %1286 = vperm.xlu0 %1285, %v1249
  %v1287 = vpop.permute.xlu0 %1286
  %v1289 = vadd.f32 %v1282, %v1274
  %v1290 = vadd.f32 %v1287, %v1277
  %v1291 = vadd.f32 %v1244, %v1289
  %v1292 = vadd.f32 %v1245, %v1290
  %v1293 = vld [vmem:[%s3 + $0x1f0] sm:$0xff]
  %v1294 = vld [vmem:[%s3 + $0x1f8] sm:$0xff]
  %v1295 = vld [vmem:[%s3 + $0x200] sm:$0xff]
  %v1296 = vld [vmem:[%s3 + $0x208] sm:$0xff]
  %v1297 = vld [vmem:[%s3 + $0x210] sm:$0xff]
  %v1298 = vld [vmem:[%s3 + $0x218] sm:$0xff]
  %v1299 = vld [vmem:[%s3 + $0x220] sm:$0xff]
  %v1300 = vld [vmem:[%s3 + $0x228] sm:$0xff]
  %v1301 = vld [vmem:[%s3 + $0x230] sm:$0xff]
  %v1302 = vld [vmem:[%s3 + $0x238] sm:$0xff]
  %v1303 = vld [vmem:[%s3 + $0x240] sm:$0xff]
  %v1304 = vld [vmem:[%s3 + $0x248] sm:$0xff]
  %v1306 = vsel %vm104, %v1293, 0
  %v1309 = vsel %vm104, %v1294, 0
  %v1312 = vsel %vm104, %v1295, 0
  %v1315 = vsel %vm104, %v1296, 0
  %v1318 = vsel %vm104, %v1297, 0
  %v1321 = vsel %vm104, %v1298, 0
  %v1324 = vsel %vm104, %v1299, 0
  %v1327 = vsel %vm104, %v1300, 0
  %v1330 = vsel %vm104, %v1301, 0
  %v1333 = vsel %vm104, %v1302, 0
  %1335 = vmatpush.msra.mxu0 0.0
  %1336 = vmatpush.msra.mxu0 0.0
  %1337 = vmatpush.msra.mxu0 0.0
  %1338 = vmatpush.msra.mxu0 0.0
  %1339 = vmatpush.msra.mxu0 0.0
  %1340 = vmatpush.msra.mxu0 0.0
  %1341 = vmatpush.msra.mxu0 0.0
  %1342 = vmatpush.msra.mxu0 0.0
  %1343 = vmatpush.msra.mxu0 0.0
  %1344 = vmatpush.msra.mxu0 0.0
  %1345 = vmatpush.msra.mxu0 0.0
  %1346 = vmatpush.msra.mxu0 0.0
  %1347 = vmatpush.msra.mxu0 0.0
  %1348 = vmatpush.msra.mxu0 0.0
  %1349 = vmatpush.msra.mxu0 %v1292
  %1350 = vmatpush.msra.mxu0 %v1291
  %1351 = vmatmul.f32.gmra.mxu0 %v1306
  %v1352 = vpop.f32.mrf.mxu0
  %v1353 = vadd.f32 0.0, %v1352
  %1354 = vmatmul.f32.gmra.mxu0 %v1309
  %v1355 = vpop.f32.mrf.mxu0
  %v1356 = vadd.f32 0.0, %v1355
  %1357 = vmatmul.f32.gmra.mxu0 %v1312
  %v1358 = vpop.f32.mrf.mxu0
  %v1359 = vadd.f32 0.0, %v1358
  %1360 = vmatmul.f32.gmra.mxu0 %v1315
  %v1361 = vpop.f32.mrf.mxu0
  %v1362 = vadd.f32 0.0, %v1361
  %1363 = vmatmul.f32.gmra.mxu0 %v1318
  %v1364 = vpop.f32.mrf.mxu0
  %v1365 = vadd.f32 0.0, %v1364
  %1366 = vmatmul.f32.gmra.mxu0 %v1321
  %v1367 = vpop.f32.mrf.mxu0
  %v1368 = vadd.f32 0.0, %v1367
  %1369 = vmatmul.f32.gmra.mxu0 %v1324
  %v1370 = vpop.f32.mrf.mxu0
  %v1371 = vadd.f32 0.0, %v1370
  %1372 = vmatmul.f32.gmra.mxu0 %v1327
  %v1373 = vpop.f32.mrf.mxu0
  %v1374 = vadd.f32 0.0, %v1373
  %1375 = vmatmul.f32.gmra.mxu0 %v1330
  %v1376 = vpop.f32.mrf.mxu0
  %v1377 = vadd.f32 0.0, %v1376
  %1378 = vmatmul.f32.gmra.mxu0 %v1333
  %v1379 = vpop.f32.mrf.mxu0
  %v1380 = vadd.f32 0.0, %v1379
  %1381 = vdwg.mxu0
  %v1383 = vsel %vm104, %v1353, 0
  %v1386 = vsel %vm104, %v1356, 0
  %1388 = vmatpush.msra.mxu0 0.0
  %1389 = vmatpush.msra.mxu0 0.0
  %1390 = vmatpush.msra.mxu0 0.0
  %1391 = vmatpush.msra.mxu0 0.0
  %1392 = vmatpush.msra.mxu0 0.0
  %1393 = vmatpush.msra.mxu0 0.0
  %1394 = vmatpush.msra.mxu0 0.0
  %1395 = vmatpush.msra.mxu0 0.0
  %1396 = vmatpush.msra.mxu0 0.0
  %1397 = vmatpush.msra.mxu0 0.0
  %1398 = vmatpush.msra.mxu0 0.0
  %1399 = vmatpush.msra.mxu0 0.0
  %1400 = vmatpush.msra.mxu0 0.0
  %1401 = vmatpush.msra.mxu0 0.0
  %1402 = vmatpush.msra.mxu0 %v24
  %1403 = vmatpush.msra.mxu0 %v23
  %1404 = vmatmul.f32.gmra.mxu0 %v1383
  %v1405 = vpop.f32.mrf.mxu0
  %v1406 = vadd.f32 0.0, %v1405
  %1407 = vmatmul.f32.gmra.mxu0 %v1386
  %v1408 = vpop.f32.mrf.mxu0
  %v1409 = vadd.f32 0.0, %v1408
  %1410 = vdwg.mxu0
  %1412 = vset.pattern.permute.xlu0 0
  %1413 = vperm.xlu0 %1412, %v1303
  %v1414 = vpop.permute.xlu0 %1413
  %1417 = vset.pattern.permute.xlu0 0
  %1418 = vperm.xlu0 %1417, %v1304
  %v1419 = vpop.permute.xlu0 %1418
  %v1421 = vadd.f32 %v1414, %v1406
  %v1422 = vadd.f32 %v1419, %v1409
  %v1424 = vsel %vm104, %v1359, 0
  %v1427 = vsel %vm104, %v1362, 0
  %1429 = vmatpush.msra.mxu0 0.0
  %1430 = vmatpush.msra.mxu0 0.0
  %1431 = vmatpush.msra.mxu0 0.0
  %1432 = vmatpush.msra.mxu0 0.0
  %1433 = vmatpush.msra.mxu0 0.0
  %1434 = vmatpush.msra.mxu0 0.0
  %1435 = vmatpush.msra.mxu0 0.0
  %1436 = vmatpush.msra.mxu0 0.0
  %1437 = vmatpush.msra.mxu0 0.0
  %1438 = vmatpush.msra.mxu0 0.0
  %1439 = vmatpush.msra.mxu0 0.0
  %1440 = vmatpush.msra.mxu0 0.0
  %1441 = vmatpush.msra.mxu0 0.0
  %1442 = vmatpush.msra.mxu0 0.0
  %1443 = vmatpush.msra.mxu0 %v26
  %1444 = vmatpush.msra.mxu0 %v25
  %1445 = vmatmul.f32.gmra.mxu0 %v1424
  %v1446 = vpop.f32.mrf.mxu0
  %v1447 = vadd.f32 0.0, %v1446
  %1448 = vmatmul.f32.gmra.mxu0 %v1427
  %v1449 = vpop.f32.mrf.mxu0
  %v1450 = vadd.f32 0.0, %v1449
  %1451 = vdwg.mxu0
  %v1452 = vadd.f32 %v1421, %v1447
  %v1453 = vadd.f32 %v1422, %v1450
  %v1455 = vsel %vm104, %v1365, 0
  %v1458 = vsel %vm104, %v1368, 0
  %1460 = vmatpush.msra.mxu0 0.0
  %1461 = vmatpush.msra.mxu0 0.0
  %1462 = vmatpush.msra.mxu0 0.0
  %1463 = vmatpush.msra.mxu0 0.0
  %1464 = vmatpush.msra.mxu0 0.0
  %1465 = vmatpush.msra.mxu0 0.0
  %1466 = vmatpush.msra.mxu0 0.0
  %1467 = vmatpush.msra.mxu0 0.0
  %1468 = vmatpush.msra.mxu0 0.0
  %1469 = vmatpush.msra.mxu0 0.0
  %1470 = vmatpush.msra.mxu0 0.0
  %1471 = vmatpush.msra.mxu0 0.0
  %1472 = vmatpush.msra.mxu0 0.0
  %1473 = vmatpush.msra.mxu0 0.0
  %1474 = vmatpush.msra.mxu0 %v28
  %1475 = vmatpush.msra.mxu0 %v27
  %1476 = vmatmul.f32.gmra.mxu0 %v1455
  %v1477 = vpop.f32.mrf.mxu0
  %v1478 = vadd.f32 0.0, %v1477
  %1479 = vmatmul.f32.gmra.mxu0 %v1458
  %v1480 = vpop.f32.mrf.mxu0
  %v1481 = vadd.f32 0.0, %v1480
  %1482 = vdwg.mxu0
  %v1483 = vadd.f32 %v1452, %v1478
  %v1484 = vadd.f32 %v1453, %v1481
  %v1486 = vsel %vm104, %v1371, 0
  %v1489 = vsel %vm104, %v1374, 0
  %1491 = vmatpush.msra.mxu0 0.0
  %1492 = vmatpush.msra.mxu0 0.0
  %1493 = vmatpush.msra.mxu0 0.0
  %1494 = vmatpush.msra.mxu0 0.0
  %1495 = vmatpush.msra.mxu0 0.0
  %1496 = vmatpush.msra.mxu0 0.0
  %1497 = vmatpush.msra.mxu0 0.0
  %1498 = vmatpush.msra.mxu0 0.0
  %1499 = vmatpush.msra.mxu0 0.0
  %1500 = vmatpush.msra.mxu0 0.0
  %1501 = vmatpush.msra.mxu0 0.0
  %1502 = vmatpush.msra.mxu0 0.0
  %1503 = vmatpush.msra.mxu0 0.0
  %1504 = vmatpush.msra.mxu0 0.0
  %1505 = vmatpush.msra.mxu0 %v30
  %1506 = vmatpush.msra.mxu0 %v29
  %1507 = vmatmul.f32.gmra.mxu0 %v1486
  %v1508 = vpop.f32.mrf.mxu0
  %v1509 = vadd.f32 0.0, %v1508
  %1510 = vmatmul.f32.gmra.mxu0 %v1489
  %v1511 = vpop.f32.mrf.mxu0
  %v1512 = vadd.f32 0.0, %v1511
  %1513 = vdwg.mxu0
  %v1514 = vadd.f32 %v1483, %v1509
  %v1515 = vadd.f32 %v1484, %v1512
  %v1517 = vsel %vm104, %v1377, 0
  %v1520 = vsel %vm104, %v1380, 0
  %1522 = vmatpush.msra.mxu0 0.0
  %1523 = vmatpush.msra.mxu0 0.0
  %1524 = vmatpush.msra.mxu0 0.0
  %1525 = vmatpush.msra.mxu0 0.0
  %1526 = vmatpush.msra.mxu0 0.0
  %1527 = vmatpush.msra.mxu0 0.0
  %1528 = vmatpush.msra.mxu0 0.0
  %1529 = vmatpush.msra.mxu0 0.0
  %1530 = vmatpush.msra.mxu0 0.0
  %1531 = vmatpush.msra.mxu0 0.0
  %1532 = vmatpush.msra.mxu0 0.0
  %1533 = vmatpush.msra.mxu0 0.0
  %1534 = vmatpush.msra.mxu0 0.0
  %1535 = vmatpush.msra.mxu0 0.0
  %1536 = vmatpush.msra.mxu0 %v32
  %1537 = vmatpush.msra.mxu0 %v31
  %1538 = vmatmul.f32.gmra.mxu0 %v1517
  %v1539 = vpop.f32.mrf.mxu0
  %v1540 = vadd.f32 0.0, %v1539
  %1541 = vmatmul.f32.gmra.mxu0 %v1520
  %v1542 = vpop.f32.mrf.mxu0
  %v1543 = vadd.f32 0.0, %v1542
  %1544 = vdwg.mxu0
  %v1545 = vadd.f32 %v1514, %v1540
  %v1546 = vadd.f32 %v1515, %v1543
  %v1547 = vmax.f32 %v1545, 0.0
  %v1548 = vmax.f32 %v1546, 0.0
  %vm1549 = vcmp.ne.f32.partialorder %v1545, %v1545
  %vm1550 = vcmp.ne.f32.partialorder %v1546, %v1546
  %v1551 = vadd.f32 %v1545, 0.0
  %v1552 = vadd.f32 %v1546, 0.0
  %v1553 = vand.u32 2147483647, %v1545
  %v1554 = vand.u32 2147483647, %v1546
  %v1555 = vsub.f32 0.0, %v1553
  %v1556 = vsub.f32 0.0, %v1554
  %v1557 = vmul.f32 %v1555, 1.442695
  %v1558 = vpow.pop %v1557
  %v1559 = vmul.f32 %v1556, 1.442695
  %v1560 = vpow.pop %v1559
  %v1561 = vadd.f32 %v1558, 1.0
  %v1562 = vlog2.pop %v1561
  %v1563 = vmul.f32 %v1562, 0.6931472
  %v1564 = vmul.f32 -0.5, %v1558
  %v1565 = vadd.f32 %v1564, 1.0
  %v1566 = vmul.f32 %v1565, %v1558
  %v1567 = vand.u32 2147483647, %v1558
  %vm1568 = vcmp.lt.f32.partialorder %v1567, 0.0004427343
  %v1569 = vsel %vm1568, %v1566, %v1563
  %v1570 = vadd.f32 %v1560, 1.0
  %v1571 = vlog2.pop %v1570
  %v1572 = vmul.f32 %v1571, 0.6931472
  %v1573 = vmul.f32 -0.5, %v1560
  %v1574 = vadd.f32 %v1573, 1.0
  %v1575 = vmul.f32 %v1574, %v1560
  %v1576 = vand.u32 2147483647, %v1560
  %vm1577 = vcmp.lt.f32.partialorder %v1576, 0.0004427343
  %v1578 = vsel %vm1577, %v1575, %v1572
  %v1579 = vadd.f32 %v1547, %v1569
  %v1580 = vadd.f32 %v1548, %v1578
  %v1581 = vsel %vm1549, %v1551, %v1579
  %v1582 = vsel %vm1550, %v1552, %v1580
  %v1583 = vtanh.pop %v1581
  %v1584 = vtanh.pop %v1582
  %v1585 = vmul.f32 %v1545, %v1583
  %v1586 = vmul.f32 %v1546, %v1584
  %v1587 = vld [vmem:[%s3 + $0x2b0] sm:$0xff]
  %v1588 = vld [vmem:[%s3 + $0x2b8] sm:$0xff]
  %v1589 = vld [vmem:[%s3 + $0x2c0] sm:$0xff]
  %v1590 = vld [vmem:[%s3 + $0x2c8] sm:$0xff]
  %v1592 = vsel %vm677, %v1589, 0
  %v1595 = vsel %vm677, %v1590, 0
  %1597 = vmatpush.msra.mxu0 0.0
  %1598 = vmatpush.msra.mxu0 0.0
  %1599 = vmatpush.msra.mxu0 0.0
  %1600 = vmatpush.msra.mxu0 0.0
  %1601 = vmatpush.msra.mxu0 0.0
  %1602 = vmatpush.msra.mxu0 0.0
  %1603 = vmatpush.msra.mxu0 0.0
  %1604 = vmatpush.msra.mxu0 0.0
  %1605 = vmatpush.msra.mxu0 0.0
  %1606 = vmatpush.msra.mxu0 0.0
  %1607 = vmatpush.msra.mxu0 0.0
  %1608 = vmatpush.msra.mxu0 0.0
  %1609 = vmatpush.msra.mxu0 0.0
  %1610 = vmatpush.msra.mxu0 0.0
  %1611 = vmatpush.msra.mxu0 0.0
  %1612 = vmatpush.msra.mxu0 %v46
  %1613 = vmatmul.f32.gmra.mxu0 %v1592
  %v1614 = vpop.f32.mrf.mxu0
  %v1615 = vadd.f32 0.0, %v1614
  %1616 = vmatmul.f32.gmra.mxu0 %v1595
  %v1617 = vpop.f32.mrf.mxu0
  %v1618 = vadd.f32 0.0, %v1617
  %1619 = vdwg.mxu0
  %v1621 = vsel %vm104, %v1587, 0
  %v1624 = vsel %vm104, %v1588, 0
  %1626 = vmatpush.msra.mxu0 0.0
  %1627 = vmatpush.msra.mxu0 0.0
  %1628 = vmatpush.msra.mxu0 0.0
  %1629 = vmatpush.msra.mxu0 0.0
  %1630 = vmatpush.msra.mxu0 0.0
  %1631 = vmatpush.msra.mxu0 0.0
  %1632 = vmatpush.msra.mxu0 0.0
  %1633 = vmatpush.msra.mxu0 0.0
  %1634 = vmatpush.msra.mxu0 0.0
  %1635 = vmatpush.msra.mxu0 0.0
  %1636 = vmatpush.msra.mxu0 0.0
  %1637 = vmatpush.msra.mxu0 0.0
  %1638 = vmatpush.msra.mxu0 0.0
  %1639 = vmatpush.msra.mxu0 0.0
  %1640 = vmatpush.msra.mxu0 %v372
  %1641 = vmatpush.msra.mxu0 %v369
  %1642 = vmatmul.f32.gmra.mxu0 %v1621
  %v1643 = vpop.f32.mrf.mxu0
  %v1644 = vadd.f32 %v1615, %v1643
  %1645 = vmatmul.f32.gmra.mxu0 %v1624
  %v1646 = vpop.f32.mrf.mxu0
  %v1647 = vadd.f32 %v1618, %v1646
  %1648 = vdwg.mxu0
  %v1649 = vld [vmem:[%s3 + $0x2d0] sm:$0xff]
  %v1650 = vld [vmem:[%s3 + $0x2d8] sm:$0xff]
  %1652 = vset.pattern.permute.xlu0 0
  %1653 = vperm.xlu0 %1652, %v1649
  %v1654 = vpop.permute.xlu0 %1653
  %1657 = vset.pattern.permute.xlu0 0
  %1658 = vperm.xlu0 %1657, %v1650
  %v1659 = vpop.permute.xlu0 %1658
  %v1661 = vadd.f32 %v1644, %v1654
  %v1662 = vadd.f32 %v1647, %v1659
  %v1663 = vmax.f32 %v1661, 0.0
  %v1664 = vmax.f32 %v1662, 0.0
  %vm1665 = vcmp.ne.f32.partialorder %v1661, %v1661
  %vm1666 = vcmp.ne.f32.partialorder %v1662, %v1662
  %v1667 = vadd.f32 %v1661, 0.0
  %v1668 = vadd.f32 %v1662, 0.0
  %v1669 = vand.u32 2147483647, %v1661
  %v1670 = vand.u32 2147483647, %v1662
  %v1671 = vsub.f32 0.0, %v1669
  %v1672 = vsub.f32 0.0, %v1670
  %v1673 = vmul.f32 %v1671, 1.442695
  %v1674 = vpow.pop %v1673
  %v1675 = vmul.f32 %v1672, 1.442695
  %v1676 = vpow.pop %v1675
  %v1677 = vadd.f32 %v1674, 1.0
  %v1678 = vlog2.pop %v1677
  %v1679 = vmul.f32 %v1678, 0.6931472
  %v1680 = vmul.f32 -0.5, %v1674
  %v1681 = vadd.f32 %v1680, 1.0
  %v1682 = vmul.f32 %v1681, %v1674
  %v1683 = vand.u32 2147483647, %v1674
  %vm1684 = vcmp.lt.f32.partialorder %v1683, 0.0004427343
  %v1685 = vsel %vm1684, %v1682, %v1679
  %v1686 = vadd.f32 %v1676, 1.0
  %v1687 = vlog2.pop %v1686
  %v1688 = vmul.f32 %v1687, 0.6931472
  %v1689 = vmul.f32 -0.5, %v1676
  %v1690 = vadd.f32 %v1689, 1.0
  %v1691 = vmul.f32 %v1690, %v1676
  %v1692 = vand.u32 2147483647, %v1676
  %vm1693 = vcmp.lt.f32.partialorder %v1692, 0.0004427343
  %v1694 = vsel %vm1693, %v1691, %v1688
  %v1695 = vadd.f32 %v1663, %v1685
  %v1696 = vadd.f32 %v1664, %v1694
  %v1697 = vsel %vm1665, %v1667, %v1695
  %v1698 = vsel %vm1666, %v1668, %v1696
  %v1699 = vtanh.pop %v1697
  %v1700 = vtanh.pop %v1698
  %v1701 = vmul.f32 %v1661, %v1699
  %v1702 = vmul.f32 %v1662, %v1700
  %v1703 = vld [vmem:[%s3 + $0x2e0] sm:$0xff]
  %v1704 = vld [vmem:[%s3 + $0x2e8] sm:$0xff]
  %v1705 = vld [vmem:[%s3 + $0x2f0] sm:$0xff]
  %v1706 = vld [vmem:[%s3 + $0x2f8] sm:$0xff]
  %1708 = vset.pattern.permute.xlu0 0
  %1709 = vperm.xlu0 %1708, %v1705
  %v1710 = vpop.permute.xlu0 %1709
  %1713 = vset.pattern.permute.xlu0 0
  %1714 = vperm.xlu0 %1713, %v1706
  %v1715 = vpop.permute.xlu0 %1714
  %v1718 = vsel %vm104, %v1703, 0
  %v1721 = vsel %vm104, %v1704, 0
  %1723 = vmatpush.msra.mxu0 0.0
  %1724 = vmatpush.msra.mxu0 0.0
  %1725 = vmatpush.msra.mxu0 0.0
  %1726 = vmatpush.msra.mxu0 0.0
  %1727 = vmatpush.msra.mxu0 0.0
  %1728 = vmatpush.msra.mxu0 0.0
  %1729 = vmatpush.msra.mxu0 0.0
  %1730 = vmatpush.msra.mxu0 0.0
  %1731 = vmatpush.msra.mxu0 0.0
  %1732 = vmatpush.msra.mxu0 0.0
  %1733 = vmatpush.msra.mxu0 0.0
  %1734 = vmatpush.msra.mxu0 0.0
  %1735 = vmatpush.msra.mxu0 0.0
  %1736 = vmatpush.msra.mxu0 0.0
  %1737 = vmatpush.msra.mxu0 %v1702
  %1738 = vmatpush.msra.mxu0 %v1701
  %1739 = vmatmul.f32.gmra.mxu0 %v1718
  %v1740 = vpop.f32.mrf.mxu0
  %v1741 = vadd.f32 %v1710, %v1740
  %1742 = vmatmul.f32.gmra.mxu0 %v1721
  %v1743 = vpop.f32.mrf.mxu0
  %v1744 = vadd.f32 %v1715, %v1743
  %1745 = vdwg.mxu0
  %v1746 = vmax.f32 %v1741, 0.0
  %v1747 = vmax.f32 %v1744, 0.0
  %vm1748 = vcmp.ne.f32.partialorder %v1741, %v1741
  %vm1749 = vcmp.ne.f32.partialorder %v1744, %v1744
  %v1750 = vadd.f32 %v1741, 0.0
  %v1751 = vadd.f32 %v1744, 0.0
  %v1752 = vand.u32 2147483647, %v1741
  %v1753 = vand.u32 2147483647, %v1744
  %v1754 = vsub.f32 0.0, %v1752
  %v1755 = vsub.f32 0.0, %v1753
  %v1756 = vmul.f32 %v1754, 1.442695
  %v1757 = vpow.pop %v1756
  %v1758 = vmul.f32 %v1755, 1.442695
  %v1759 = vpow.pop %v1758
  %v1760 = vadd.f32 %v1757, 1.0
  %v1761 = vlog2.pop %v1760
  %v1762 = vmul.f32 %v1761, 0.6931472
  %v1763 = vmul.f32 -0.5, %v1757
  %v1764 = vadd.f32 %v1763, 1.0
  %v1765 = vmul.f32 %v1764, %v1757
  %v1766 = vand.u32 2147483647, %v1757
  %vm1767 = vcmp.lt.f32.partialorder %v1766, 0.0004427343
  %v1768 = vsel %vm1767, %v1765, %v1762
  %v1769 = vadd.f32 %v1759, 1.0
  %v1770 = vlog2.pop %v1769
  %v1771 = vmul.f32 %v1770, 0.6931472
  %v1772 = vmul.f32 -0.5, %v1759
  %v1773 = vadd.f32 %v1772, 1.0
  %v1774 = vmul.f32 %v1773, %v1759
  %v1775 = vand.u32 2147483647, %v1759
  %vm1776 = vcmp.lt.f32.partialorder %v1775, 0.0004427343
  %v1777 = vsel %vm1776, %v1774, %v1771
  %v1778 = vadd.f32 %v1746, %v1768
  %v1779 = vadd.f32 %v1747, %v1777
  %v1780 = vsel %vm1748, %v1750, %v1778
  %v1781 = vsel %vm1749, %v1751, %v1779
  %v1782 = vtanh.pop %v1780
  %v1783 = vtanh.pop %v1781
  %v1784 = vmul.f32 %v1741, %v1782
  %v1785 = vmul.f32 %v1744, %v1783
  %v1786 = vld [vmem:[%s3 + $0x300] sm:$0xff]
  %v1787 = vld [vmem:[%s3 + $0x308] sm:$0xff]
  %v1788 = vld [vmem:[%s3 + $0x310] sm:$0xff]
  %v1789 = vld [vmem:[%s3 + $0x318] sm:$0xff]
  %1791 = vset.pattern.permute.xlu0 0
  %1792 = vperm.xlu0 %1791, %v1788
  %v1793 = vpop.permute.xlu0 %1792
  %1796 = vset.pattern.permute.xlu0 0
  %1797 = vperm.xlu0 %1796, %v1789
  %v1798 = vpop.permute.xlu0 %1797
  %v1801 = vsel %vm104, %v1786, 0
  %v1804 = vsel %vm104, %v1787, 0
  %1806 = vmatpush.msra.mxu0 0.0
  %1807 = vmatpush.msra.mxu0 0.0
  %1808 = vmatpush.msra.mxu0 0.0
  %1809 = vmatpush.msra.mxu0 0.0
  %1810 = vmatpush.msra.mxu0 0.0
  %1811 = vmatpush.msra.mxu0 0.0
  %1812 = vmatpush.msra.mxu0 0.0
  %1813 = vmatpush.msra.mxu0 0.0
  %1814 = vmatpush.msra.mxu0 0.0
  %1815 = vmatpush.msra.mxu0 0.0
  %1816 = vmatpush.msra.mxu0 0.0
  %1817 = vmatpush.msra.mxu0 0.0
  %1818 = vmatpush.msra.mxu0 0.0
  %1819 = vmatpush.msra.mxu0 0.0
  %1820 = vmatpush.msra.mxu0 %v1785
  %1821 = vmatpush.msra.mxu0 %v1784
  %1822 = vmatmul.f32.gmra.mxu0 %v1801
  %v1823 = vpop.f32.mrf.mxu0
  %v1824 = vadd.f32 %v1793, %v1823
  %1825 = vmatmul.f32.gmra.mxu0 %v1804
  %v1826 = vpop.f32.mrf.mxu0
  %v1827 = vadd.f32 %v1798, %v1826
  %1828 = vdwg.mxu0
  %v1830 = vsel %vm916, %v1824, 0
  %v1833 = vsel %vm916, %v1827, 0
  %1835 = vmatpush.msra.mxu0 0.0
  %1836 = vmatpush.msra.mxu0 0.0
  %1837 = vmatpush.msra.mxu0 0.0
  %1838 = vmatpush.msra.mxu0 0.0
  %1839 = vmatpush.msra.mxu0 0.0
  %1840 = vmatpush.msra.mxu0 0.0
  %1841 = vmatpush.msra.mxu0 0.0
  %1842 = vmatpush.msra.mxu0 0.0
  %1843 = vmatpush.msra.mxu0 0.0
  %1844 = vmatpush.msra.mxu0 0.0
  %1845 = vmatpush.msra.mxu0 0.0
  %1846 = vmatpush.msra.mxu0 0.0
  %1847 = vmatpush.msra.mxu0 0.0
  %1848 = vmatpush.msra.mxu0 0.0
  %1849 = vmatpush.msra.mxu0 0.0
  %1850 = vmatpush.msra.mxu0 %v925
  %1851 = vmatmul.f32.gmra.mxu0 %v1830
  %v1852 = vpop.f32.mrf.mxu0
  %v1853 = vadd.f32 0.0, %v1852
  %1854 = vmatmul.f32.gmra.mxu0 %v1833
  %v1855 = vpop.f32.mrf.mxu0
  %v1856 = vadd.f32 0.0, %v1855
  %1857 = vdwg.mxu0
  %v1858 = vadd.f32 %v1585, %v1853
  %v1859 = vadd.f32 %v1586, %v1856
  %v1860 = vld [vmem:[%s3 + $0x250] sm:$0xff]
  %v1861 = vld [vmem:[%s3 + $0x258] sm:$0xff]
  %v1862 = vld [vmem:[%s3 + $0x260] sm:$0xff]
  %v1863 = vld [vmem:[%s3 + $0x268] sm:$0xff]
  %v1864 = vld [vmem:[%s3 + $0x270] sm:$0xff]
  %v1865 = vld [vmem:[%s3 + $0x278] sm:$0xff]
  %v1866 = vld [vmem:[%s3 + $0x280] sm:$0xff]
  %v1867 = vld [vmem:[%s3 + $0x288] sm:$0xff]
  %v1868 = vld [vmem:[%s3 + $0x290] sm:$0xff]
  %v1869 = vld [vmem:[%s3 + $0x298] sm:$0xff]
  %v1870 = vld [vmem:[%s3 + $0x2a0] sm:$0xff]
  %v1871 = vld [vmem:[%s3 + $0x2a8] sm:$0xff]
  %v1873 = vsel %vm104, %v1860, 0
  %v1876 = vsel %vm104, %v1861, 0
  %v1879 = vsel %vm104, %v1862, 0
  %v1882 = vsel %vm104, %v1863, 0
  %v1885 = vsel %vm104, %v1864, 0
  %v1888 = vsel %vm104, %v1865, 0
  %v1891 = vsel %vm104, %v1866, 0
  %v1894 = vsel %vm104, %v1867, 0
  %v1897 = vsel %vm104, %v1868, 0
  %v1900 = vsel %vm104, %v1869, 0
  %1902 = vmatpush.msra.mxu0 0.0
  %1903 = vmatpush.msra.mxu0 0.0
  %1904 = vmatpush.msra.mxu0 0.0
  %1905 = vmatpush.msra.mxu0 0.0
  %1906 = vmatpush.msra.mxu0 0.0
  %1907 = vmatpush.msra.mxu0 0.0
  %1908 = vmatpush.msra.mxu0 0.0
  %1909 = vmatpush.msra.mxu0 0.0
  %1910 = vmatpush.msra.mxu0 0.0
  %1911 = vmatpush.msra.mxu0 0.0
  %1912 = vmatpush.msra.mxu0 0.0
  %1913 = vmatpush.msra.mxu0 0.0
  %1914 = vmatpush.msra.mxu0 0.0
  %1915 = vmatpush.msra.mxu0 0.0
  %1916 = vmatpush.msra.mxu0 %v1859
  %1917 = vmatpush.msra.mxu0 %v1858
  %1918 = vmatmul.f32.gmra.mxu0 %v1873
  %v1919 = vpop.f32.mrf.mxu0
  %v1920 = vadd.f32 0.0, %v1919
  %1921 = vmatmul.f32.gmra.mxu0 %v1876
  %v1922 = vpop.f32.mrf.mxu0
  %v1923 = vadd.f32 0.0, %v1922
  %1924 = vmatmul.f32.gmra.mxu0 %v1879
  %v1925 = vpop.f32.mrf.mxu0
  %v1926 = vadd.f32 0.0, %v1925
  %1927 = vmatmul.f32.gmra.mxu0 %v1882
  %v1928 = vpop.f32.mrf.mxu0
  %v1929 = vadd.f32 0.0, %v1928
  %1930 = vmatmul.f32.gmra.mxu0 %v1885
  %v1931 = vpop.f32.mrf.mxu0
  %v1932 = vadd.f32 0.0, %v1931
  %1933 = vmatmul.f32.gmra.mxu0 %v1888
  %v1934 = vpop.f32.mrf.mxu0
  %v1935 = vadd.f32 0.0, %v1934
  %1936 = vmatmul.f32.gmra.mxu0 %v1891
  %v1937 = vpop.f32.mrf.mxu0
  %v1938 = vadd.f32 0.0, %v1937
  %1939 = vmatmul.f32.gmra.mxu0 %v1894
  %v1940 = vpop.f32.mrf.mxu0
  %v1941 = vadd.f32 0.0, %v1940
  %1942 = vmatmul.f32.gmra.mxu0 %v1897
  %v1943 = vpop.f32.mrf.mxu0
  %v1944 = vadd.f32 0.0, %v1943
  %1945 = vmatmul.f32.gmra.mxu0 %v1900
  %v1946 = vpop.f32.mrf.mxu0
  %v1947 = vadd.f32 0.0, %v1946
  %1948 = vdwg.mxu0
  %v1950 = vsel %vm104, %v1920, 0
  %v1953 = vsel %vm104, %v1923, 0
  %1955 = vmatpush.msra.mxu0 0.0
  %1956 = vmatpush.msra.mxu0 0.0
  %1957 = vmatpush.msra.mxu0 0.0
  %1958 = vmatpush.msra.mxu0 0.0
  %1959 = vmatpush.msra.mxu0 0.0
  %1960 = vmatpush.msra.mxu0 0.0
  %1961 = vmatpush.msra.mxu0 0.0
  %1962 = vmatpush.msra.mxu0 0.0
  %1963 = vmatpush.msra.mxu0 0.0
  %1964 = vmatpush.msra.mxu0 0.0
  %1965 = vmatpush.msra.mxu0 0.0
  %1966 = vmatpush.msra.mxu0 0.0
  %1967 = vmatpush.msra.mxu0 0.0
  %1968 = vmatpush.msra.mxu0 0.0
  %1969 = vmatpush.msra.mxu0 %v24
  %1970 = vmatpush.msra.mxu0 %v23
  %1971 = vmatmul.f32.gmra.mxu0 %v1950
  %v1972 = vpop.f32.mrf.mxu0
  %v1973 = vadd.f32 0.0, %v1972
  %1974 = vmatmul.f32.gmra.mxu0 %v1953
  %v1975 = vpop.f32.mrf.mxu0
  %v1976 = vadd.f32 0.0, %v1975
  %1977 = vdwg.mxu0
  %1979 = vset.pattern.permute.xlu0 0
  %1980 = vperm.xlu0 %1979, %v1870
  %v1981 = vpop.permute.xlu0 %1980
  %1984 = vset.pattern.permute.xlu0 0
  %1985 = vperm.xlu0 %1984, %v1871
  %v1986 = vpop.permute.xlu0 %1985
  %v1988 = vadd.f32 %v1981, %v1973
  %v1989 = vadd.f32 %v1986, %v1976
  %v1991 = vsel %vm104, %v1926, 0
  %v1994 = vsel %vm104, %v1929, 0
  %1996 = vmatpush.msra.mxu0 0.0
  %1997 = vmatpush.msra.mxu0 0.0
  %1998 = vmatpush.msra.mxu0 0.0
  %1999 = vmatpush.msra.mxu0 0.0
  %2000 = vmatpush.msra.mxu0 0.0
  %2001 = vmatpush.msra.mxu0 0.0
  %2002 = vmatpush.msra.mxu0 0.0
  %2003 = vmatpush.msra.mxu0 0.0
  %2004 = vmatpush.msra.mxu0 0.0
  %2005 = vmatpush.msra.mxu0 0.0
  %2006 = vmatpush.msra.mxu0 0.0
  %2007 = vmatpush.msra.mxu0 0.0
  %2008 = vmatpush.msra.mxu0 0.0
  %2009 = vmatpush.msra.mxu0 0.0
  %2010 = vmatpush.msra.mxu0 %v26
  %2011 = vmatpush.msra.mxu0 %v25
  %2012 = vmatmul.f32.gmra.mxu0 %v1991
  %v2013 = vpop.f32.mrf.mxu0
  %v2014 = vadd.f32 0.0, %v2013
  %2015 = vmatmul.f32.gmra.mxu0 %v1994
  %v2016 = vpop.f32.mrf.mxu0
  %v2017 = vadd.f32 0.0, %v2016
  %2018 = vdwg.mxu0
  %v2019 = vadd.f32 %v1988, %v2014
  %v2020 = vadd.f32 %v1989, %v2017
  %v2022 = vsel %vm104, %v1932, 0
  %v2025 = vsel %vm104, %v1935, 0
  %2027 = vmatpush.msra.mxu0 0.0
  %2028 = vmatpush.msra.mxu0 0.0
  %2029 = vmatpush.msra.mxu0 0.0
  %2030 = vmatpush.msra.mxu0 0.0
  %2031 = vmatpush.msra.mxu0 0.0
  %2032 = vmatpush.msra.mxu0 0.0
  %2033 = vmatpush.msra.mxu0 0.0
  %2034 = vmatpush.msra.mxu0 0.0
  %2035 = vmatpush.msra.mxu0 0.0
  %2036 = vmatpush.msra.mxu0 0.0
  %2037 = vmatpush.msra.mxu0 0.0
  %2038 = vmatpush.msra.mxu0 0.0
  %2039 = vmatpush.msra.mxu0 0.0
  %2040 = vmatpush.msra.mxu0 0.0
  %2041 = vmatpush.msra.mxu0 %v28
  %2042 = vmatpush.msra.mxu0 %v27
  %2043 = vmatmul.f32.gmra.mxu0 %v2022
  %v2044 = vpop.f32.mrf.mxu0
  %v2045 = vadd.f32 0.0, %v2044
  %2046 = vmatmul.f32.gmra.mxu0 %v2025
  %v2047 = vpop.f32.mrf.mxu0
  %v2048 = vadd.f32 0.0, %v2047
  %2049 = vdwg.mxu0
  %v2050 = vadd.f32 %v2019, %v2045
  %v2051 = vadd.f32 %v2020, %v2048
  %v2053 = vsel %vm104, %v1938, 0
  %v2056 = vsel %vm104, %v1941, 0
  %2058 = vmatpush.msra.mxu0 0.0
  %2059 = vmatpush.msra.mxu0 0.0
  %2060 = vmatpush.msra.mxu0 0.0
  %2061 = vmatpush.msra.mxu0 0.0
  %2062 = vmatpush.msra.mxu0 0.0
  %2063 = vmatpush.msra.mxu0 0.0
  %2064 = vmatpush.msra.mxu0 0.0
  %2065 = vmatpush.msra.mxu0 0.0
  %2066 = vmatpush.msra.mxu0 0.0
  %2067 = vmatpush.msra.mxu0 0.0
  %2068 = vmatpush.msra.mxu0 0.0
  %2069 = vmatpush.msra.mxu0 0.0
  %2070 = vmatpush.msra.mxu0 0.0
  %2071 = vmatpush.msra.mxu0 0.0
  %2072 = vmatpush.msra.mxu0 %v30
  %2073 = vmatpush.msra.mxu0 %v29
  %2074 = vmatmul.f32.gmra.mxu0 %v2053
  %v2075 = vpop.f32.mrf.mxu0
  %v2076 = vadd.f32 0.0, %v2075
  %2077 = vmatmul.f32.gmra.mxu0 %v2056
  %v2078 = vpop.f32.mrf.mxu0
  %v2079 = vadd.f32 0.0, %v2078
  %2080 = vdwg.mxu0
  %v2081 = vadd.f32 %v2050, %v2076
  %v2082 = vadd.f32 %v2051, %v2079
  %v2084 = vsel %vm104, %v1944, 0
  %v2087 = vsel %vm104, %v1947, 0
  %2089 = vmatpush.msra.mxu0 0.0
  %2090 = vmatpush.msra.mxu0 0.0
  %2091 = vmatpush.msra.mxu0 0.0
  %2092 = vmatpush.msra.mxu0 0.0
  %2093 = vmatpush.msra.mxu0 0.0
  %2094 = vmatpush.msra.mxu0 0.0
  %2095 = vmatpush.msra.mxu0 0.0
  %2096 = vmatpush.msra.mxu0 0.0
  %2097 = vmatpush.msra.mxu0 0.0
  %2098 = vmatpush.msra.mxu0 0.0
  %2099 = vmatpush.msra.mxu0 0.0
  %2100 = vmatpush.msra.mxu0 0.0
  %2101 = vmatpush.msra.mxu0 0.0
  %2102 = vmatpush.msra.mxu0 0.0
  %2103 = vmatpush.msra.mxu0 %v32
  %2104 = vmatpush.msra.mxu0 %v31
  %2105 = vmatmul.f32.gmra.mxu0 %v2084
  %v2106 = vpop.f32.mrf.mxu0
  %v2107 = vadd.f32 0.0, %v2106
  %2108 = vmatmul.f32.gmra.mxu0 %v2087
  %v2109 = vpop.f32.mrf.mxu0
  %v2110 = vadd.f32 0.0, %v2109
  %2111 = vdwg.mxu0
  %v2112 = vadd.f32 %v2081, %v2107
  %v2113 = vadd.f32 %v2082, %v2110
  %v2114 = vmax.f32 %v2112, 0.0
  %v2115 = vmax.f32 %v2113, 0.0
  %vm2116 = vcmp.ne.f32.partialorder %v2112, %v2112
  %vm2117 = vcmp.ne.f32.partialorder %v2113, %v2113
  %v2118 = vadd.f32 %v2112, 0.0
  %v2119 = vadd.f32 %v2113, 0.0
  %v2120 = vand.u32 2147483647, %v2112
  %v2121 = vand.u32 2147483647, %v2113
  %v2122 = vsub.f32 0.0, %v2120
  %v2123 = vsub.f32 0.0, %v2121
  %v2124 = vmul.f32 %v2122, 1.442695
  %v2125 = vpow.pop %v2124
  %v2126 = vmul.f32 %v2123, 1.442695
  %v2127 = vpow.pop %v2126
  %v2128 = vadd.f32 %v2125, 1.0
  %v2129 = vlog2.pop %v2128
  %v2130 = vmul.f32 %v2129, 0.6931472
  %v2131 = vmul.f32 -0.5, %v2125
  %v2132 = vadd.f32 %v2131, 1.0
  %v2133 = vmul.f32 %v2132, %v2125
  %v2134 = vand.u32 2147483647, %v2125
  %vm2135 = vcmp.lt.f32.partialorder %v2134, 0.0004427343
  %v2136 = vsel %vm2135, %v2133, %v2130
  %v2137 = vadd.f32 %v2127, 1.0
  %v2138 = vlog2.pop %v2137
  %v2139 = vmul.f32 %v2138, 0.6931472
  %v2140 = vmul.f32 -0.5, %v2127
  %v2141 = vadd.f32 %v2140, 1.0
  %v2142 = vmul.f32 %v2141, %v2127
  %v2143 = vand.u32 2147483647, %v2127
  %vm2144 = vcmp.lt.f32.partialorder %v2143, 0.0004427343
  %v2145 = vsel %vm2144, %v2142, %v2139
  %v2146 = vadd.f32 %v2114, %v2136
  %v2147 = vadd.f32 %v2115, %v2145
  %v2148 = vsel %vm2116, %v2118, %v2146
  %v2149 = vsel %vm2117, %v2119, %v2147
  %v2150 = vtanh.pop %v2148
  %v2151 = vtanh.pop %v2149
  %v2152 = vmul.f32 %v2112, %v2150
  %v2153 = vmul.f32 %v2113, %v2151
  %v2154 = vadd.f32 %v2152, %v1291
  %v2155 = vadd.f32 %v2153, %v1292
  %v2156 = vld [vmem:[%s3 + $0x320] sm:$0xff]
  %v2157 = vld [vmem:[%s3 + $0x328] sm:$0xff]
  %v2158 = vld [vmem:[%s3 + $0x330] sm:$0xff]
  %v2159 = vld [vmem:[%s3 + $0x338] sm:$0xff]
  %v2160 = vld [vmem:[%s3 + $0x340] sm:$0xff]
  %v2161 = vld [vmem:[%s3 + $0x348] sm:$0xff]
  %v2162 = vld [vmem:[%s3 + $0x350] sm:$0xff]
  %v2163 = vld [vmem:[%s3 + $0x358] sm:$0xff]
  %v2165 = vsel %vm104, %v2156, 0
  %v2168 = vsel %vm104, %v2157, 0
  %v2171 = vsel %vm104, %v2158, 0
  %v2174 = vsel %vm104, %v2159, 0
  %v2177 = vsel %vm104, %v2160, 0
  %v2180 = vsel %vm104, %v2161, 0
  %2182 = vmatpush.msra.mxu0 0.0
  %2183 = vmatpush.msra.mxu0 0.0
  %2184 = vmatpush.msra.mxu0 0.0
  %2185 = vmatpush.msra.mxu0 0.0
  %2186 = vmatpush.msra.mxu0 0.0
  %2187 = vmatpush.msra.mxu0 0.0
  %2188 = vmatpush.msra.mxu0 0.0
  %2189 = vmatpush.msra.mxu0 0.0
  %2190 = vmatpush.msra.mxu0 0.0
  %2191 = vmatpush.msra.mxu0 0.0
  %2192 = vmatpush.msra.mxu0 0.0
  %2193 = vmatpush.msra.mxu0 0.0
  %2194 = vmatpush.msra.mxu0 0.0
  %2195 = vmatpush.msra.mxu0 0.0
  %2196 = vmatpush.msra.mxu0 %v2155
  %2197 = vmatpush.msra.mxu0 %v2154
  %2198 = vmatmul.f32.gmra.mxu0 %v2165
  %v2199 = vpop.f32.mrf.mxu0
  %v2200 = vadd.f32 0.0, %v2199
  %2201 = vmatmul.f32.gmra.mxu0 %v2168
  %v2202 = vpop.f32.mrf.mxu0
  %v2203 = vadd.f32 0.0, %v2202
  %2204 = vmatmul.f32.gmra.mxu0 %v2171
  %v2205 = vpop.f32.mrf.mxu0
  %v2206 = vadd.f32 0.0, %v2205
  %2207 = vmatmul.f32.gmra.mxu0 %v2174
  %v2208 = vpop.f32.mrf.mxu0
  %v2209 = vadd.f32 0.0, %v2208
  %2210 = vmatmul.f32.gmra.mxu0 %v2177
  %v2211 = vpop.f32.mrf.mxu0
  %v2212 = vadd.f32 0.0, %v2211
  %2213 = vmatmul.f32.gmra.mxu0 %v2180
  %v2214 = vpop.f32.mrf.mxu0
  %v2215 = vadd.f32 0.0, %v2214
  %2216 = vdwg.mxu0
  %v2218 = vsel %vm104, %v2200, 0
  %v2221 = vsel %vm104, %v2203, 0
  %2223 = vmatpush.msra.mxu0 0.0
  %2224 = vmatpush.msra.mxu0 0.0
  %2225 = vmatpush.msra.mxu0 0.0
  %2226 = vmatpush.msra.mxu0 0.0
  %2227 = vmatpush.msra.mxu0 0.0
  %2228 = vmatpush.msra.mxu0 0.0
  %2229 = vmatpush.msra.mxu0 0.0
  %2230 = vmatpush.msra.mxu0 0.0
  %2231 = vmatpush.msra.mxu0 0.0
  %2232 = vmatpush.msra.mxu0 0.0
  %2233 = vmatpush.msra.mxu0 0.0
  %2234 = vmatpush.msra.mxu0 0.0
  %2235 = vmatpush.msra.mxu0 0.0
  %2236 = vmatpush.msra.mxu0 0.0
  %2237 = vmatpush.msra.mxu0 %v35
  %2238 = vmatpush.msra.mxu0 %v34
  %2239 = vmatmul.f32.gmra.mxu0 %v2218
  %v2240 = vpop.f32.mrf.mxu0
  %v2241 = vadd.f32 0.0, %v2240
  %2242 = vmatmul.f32.gmra.mxu0 %v2221
  %v2243 = vpop.f32.mrf.mxu0
  %v2244 = vadd.f32 0.0, %v2243
  %2245 = vdwg.mxu0
  %2247 = vset.pattern.permute.xlu0 0
  %2248 = vperm.xlu0 %2247, %v2162
  %v2249 = vpop.permute.xlu0 %2248
  %2252 = vset.pattern.permute.xlu0 0
  %2253 = vperm.xlu0 %2252, %v2163
  %v2254 = vpop.permute.xlu0 %2253
  %v2256 = vadd.f32 %v2249, %v2241
  %v2257 = vadd.f32 %v2254, %v2244
  %v2259 = vsel %vm104, %v2206, 0
  %v2262 = vsel %vm104, %v2209, 0
  %2264 = vmatpush.msra.mxu0 0.0
  %2265 = vmatpush.msra.mxu0 0.0
  %2266 = vmatpush.msra.mxu0 0.0
  %2267 = vmatpush.msra.mxu0 0.0
  %2268 = vmatpush.msra.mxu0 0.0
  %2269 = vmatpush.msra.mxu0 0.0
  %2270 = vmatpush.msra.mxu0 0.0
  %2271 = vmatpush.msra.mxu0 0.0
  %2272 = vmatpush.msra.mxu0 0.0
  %2273 = vmatpush.msra.mxu0 0.0
  %2274 = vmatpush.msra.mxu0 0.0
  %2275 = vmatpush.msra.mxu0 0.0
  %2276 = vmatpush.msra.mxu0 0.0
  %2277 = vmatpush.msra.mxu0 0.0
  %2278 = vmatpush.msra.mxu0 %v37
  %2279 = vmatpush.msra.mxu0 %v36
  %2280 = vmatmul.f32.gmra.mxu0 %v2259
  %v2281 = vpop.f32.mrf.mxu0
  %v2282 = vadd.f32 0.0, %v2281
  %2283 = vmatmul.f32.gmra.mxu0 %v2262
  %v2284 = vpop.f32.mrf.mxu0
  %v2285 = vadd.f32 0.0, %v2284
  %2286 = vdwg.mxu0
  %v2287 = vadd.f32 %v2256, %v2282
  %v2288 = vadd.f32 %v2257, %v2285
  %v2290 = vsel %vm104, %v2212, 0
  %v2293 = vsel %vm104, %v2215, 0
  %2295 = vmatpush.msra.mxu0 0.0
  %2296 = vmatpush.msra.mxu0 0.0
  %2297 = vmatpush.msra.mxu0 0.0
  %2298 = vmatpush.msra.mxu0 0.0
  %2299 = vmatpush.msra.mxu0 0.0
  %2300 = vmatpush.msra.mxu0 0.0
  %2301 = vmatpush.msra.mxu0 0.0
  %2302 = vmatpush.msra.mxu0 0.0
  %2303 = vmatpush.msra.mxu0 0.0
  %2304 = vmatpush.msra.mxu0 0.0
  %2305 = vmatpush.msra.mxu0 0.0
  %2306 = vmatpush.msra.mxu0 0.0
  %2307 = vmatpush.msra.mxu0 0.0
  %2308 = vmatpush.msra.mxu0 0.0
  %2309 = vmatpush.msra.mxu0 %v39
  %2310 = vmatpush.msra.mxu0 %v38
  %2311 = vmatmul.f32.gmra.mxu0 %v2290
  %v2312 = vpop.f32.mrf.mxu0
  %v2313 = vadd.f32 0.0, %v2312
  %2314 = vmatmul.f32.gmra.mxu0 %v2293
  %v2315 = vpop.f32.mrf.mxu0
  %v2316 = vadd.f32 0.0, %v2315
  %2317 = vdwg.mxu0
  %v2318 = vadd.f32 %v2287, %v2313
  %v2319 = vadd.f32 %v2288, %v2316
  %v2320 = vld [vmem:[%s3 + $0x360] sm:$0xff]
  %v2321 = vld [vmem:[%s3 + $0x368] sm:$0xff]
  %v2322 = vld [vmem:[%s3 + $0x370] sm:$0xff]
  %v2323 = vld [vmem:[%s3 + $0x378] sm:$0xff]
  %v2324 = vld [vmem:[%s3 + $0x380] sm:$0xff]
  %v2325 = vld [vmem:[%s3 + $0x388] sm:$0xff]
  %v2326 = vld [vmem:[%s3 + $0x390] sm:$0xff]
  %v2327 = vld [vmem:[%s3 + $0x398] sm:$0xff]
  %v2328 = vld [vmem:[%s3 + $0x3a0] sm:$0xff]
  %v2329 = vld [vmem:[%s3 + $0x3a8] sm:$0xff]
  %v2330 = vld [vmem:[%s3 + $0x3b0] sm:$0xff]
  %v2331 = vld [vmem:[%s3 + $0x3b8] sm:$0xff]
  %v2332 = vld [vmem:[%s3 + $0x3c0] sm:$0xff]
  %v2333 = vld [vmem:[%s3 + $0x3c8] sm:$0xff]
  %v2334 = vld [vmem:[%s3 + $0x3d0] sm:$0xff]
  %v2335 = vld [vmem:[%s3 + $0x3d8] sm:$0xff]
  %v2336 = vld [vmem:[%s3 + $0x3e0] sm:$0xff]
  %v2337 = vld [vmem:[%s3 + $0x3e8] sm:$0xff]
  %v2338 = vld [vmem:[%s3 + $0x3f0] sm:$0xff]
  %v2339 = vld [vmem:[%s3 + $0x3f8] sm:$0xff]
  %v2340 = vld [vmem:[%s3 + $0x400] sm:$0xff]
  %v2341 = vld [vmem:[%s3 + $0x408] sm:$0xff]
  %v2342 = vld [vmem:[%s3 + $0x410] sm:$0xff]
  %v2343 = vld [vmem:[%s3 + $0x418] sm:$0xff]
  %v2345 = vsel %vm104, %v2320, 0
  %v2348 = vsel %vm104, %v2321, 0
  %v2351 = vsel %vm104, %v2322, 0
  %v2354 = vsel %vm104, %v2323, 0
  %v2357 = vsel %vm104, %v2324, 0
  %v2360 = vsel %vm104, %v2325, 0
  %v2363 = vsel %vm104, %v2326, 0
  %v2366 = vsel %vm104, %v2327, 0
  %v2369 = vsel %vm104, %v2328, 0
  %v2372 = vsel %vm104, %v2329, 0
  %v2375 = vsel %vm104, %v2330, 0
  %v2378 = vsel %vm104, %v2331, 0
  %v2381 = vsel %vm104, %v2332, 0
  %v2384 = vsel %vm104, %v2333, 0
  %v2387 = vsel %vm104, %v2334, 0
  %v2390 = vsel %vm104, %v2335, 0
  %v2393 = vsel %vm104, %v2336, 0
  %v2396 = vsel %vm104, %v2337, 0
  %v2399 = vsel %vm104, %v2338, 0
  %v2402 = vsel %vm104, %v2339, 0
  %2404 = vmatpush.msra.mxu0 0.0
  %2405 = vmatpush.msra.mxu0 0.0
  %2406 = vmatpush.msra.mxu0 0.0
  %2407 = vmatpush.msra.mxu0 0.0
  %2408 = vmatpush.msra.mxu0 0.0
  %2409 = vmatpush.msra.mxu0 0.0
  %2410 = vmatpush.msra.mxu0 0.0
  %2411 = vmatpush.msra.mxu0 0.0
  %2412 = vmatpush.msra.mxu0 0.0
  %2413 = vmatpush.msra.mxu0 0.0
  %2414 = vmatpush.msra.mxu0 0.0
  %2415 = vmatpush.msra.mxu0 0.0
  %2416 = vmatpush.msra.mxu0 0.0
  %2417 = vmatpush.msra.mxu0 0.0
  %2418 = vmatpush.msra.mxu0 %v2319
  %2419 = vmatpush.msra.mxu0 %v2318
  %2420 = vmatmul.f32.gmra.mxu0 %v2345
  %v2421 = vpop.f32.mrf.mxu0
  %v2422 = vadd.f32 0.0, %v2421
  %2423 = vmatmul.f32.gmra.mxu0 %v2348
  %v2424 = vpop.f32.mrf.mxu0
  %v2425 = vadd.f32 0.0, %v2424
  %2426 = vmatmul.f32.gmra.mxu0 %v2351
  %v2427 = vpop.f32.mrf.mxu0
  %v2428 = vadd.f32 0.0, %v2427
  %2429 = vmatmul.f32.gmra.mxu0 %v2354
  %v2430 = vpop.f32.mrf.mxu0
  %v2431 = vadd.f32 0.0, %v2430
  %2432 = vmatmul.f32.gmra.mxu0 %v2357
  %v2433 = vpop.f32.mrf.mxu0
  %v2434 = vadd.f32 0.0, %v2433
  %2435 = vmatmul.f32.gmra.mxu0 %v2360
  %v2436 = vpop.f32.mrf.mxu0
  %v2437 = vadd.f32 0.0, %v2436
  %2438 = vmatmul.f32.gmra.mxu0 %v2363
  %v2439 = vpop.f32.mrf.mxu0
  %v2440 = vadd.f32 0.0, %v2439
  %2441 = vmatmul.f32.gmra.mxu0 %v2366
  %v2442 = vpop.f32.mrf.mxu0
  %v2443 = vadd.f32 0.0, %v2442
  %2444 = vmatmul.f32.gmra.mxu0 %v2369
  %v2445 = vpop.f32.mrf.mxu0
  %v2446 = vadd.f32 0.0, %v2445
  %2447 = vmatmul.f32.gmra.mxu0 %v2372
  %v2448 = vpop.f32.mrf.mxu0
  %v2449 = vadd.f32 0.0, %v2448
  %2450 = vmatmul.f32.gmra.mxu0 %v2375
  %v2451 = vpop.f32.mrf.mxu0
  %v2452 = vadd.f32 0.0, %v2451
  %2453 = vmatmul.f32.gmra.mxu0 %v2378
  %v2454 = vpop.f32.mrf.mxu0
  %v2455 = vadd.f32 0.0, %v2454
  %2456 = vmatmul.f32.gmra.mxu0 %v2381
  %v2457 = vpop.f32.mrf.mxu0
  %v2458 = vadd.f32 0.0, %v2457
  %2459 = vmatmul.f32.gmra.mxu0 %v2384
  %v2460 = vpop.f32.mrf.mxu0
  %v2461 = vadd.f32 0.0, %v2460
  %2462 = vmatmul.f32.gmra.mxu0 %v2387
  %v2463 = vpop.f32.mrf.mxu0
  %v2464 = vadd.f32 0.0, %v2463
  %2465 = vmatmul.f32.gmra.mxu0 %v2390
  %v2466 = vpop.f32.mrf.mxu0
  %v2467 = vadd.f32 0.0, %v2466
  %2468 = vmatmul.f32.gmra.mxu0 %v2393
  %v2469 = vpop.f32.mrf.mxu0
  %v2470 = vadd.f32 0.0, %v2469
  %2471 = vmatmul.f32.gmra.mxu0 %v2396
  %v2472 = vpop.f32.mrf.mxu0
  %v2473 = vadd.f32 0.0, %v2472
  %2474 = vmatmul.f32.gmra.mxu0 %v2399
  %v2475 = vpop.f32.mrf.mxu0
  %v2476 = vadd.f32 0.0, %v2475
  %2477 = vmatmul.f32.gmra.mxu0 %v2402
  %v2478 = vpop.f32.mrf.mxu0
  %v2479 = vadd.f32 0.0, %v2478
  %2480 = vdwg.mxu0
  %v2482 = vsel %vm677, %v2422, 0
  %v2485 = vsel %vm677, %v2425, 0
  %v2488 = vsel %vm677, %v2428, 0
  %v2491 = vsel %vm677, %v2431, 0
  %2493 = vmatpush.msra.mxu0 0.0
  %2494 = vmatpush.msra.mxu0 0.0
  %2495 = vmatpush.msra.mxu0 0.0
  %2496 = vmatpush.msra.mxu0 0.0
  %2497 = vmatpush.msra.mxu0 0.0
  %2498 = vmatpush.msra.mxu0 0.0
  %2499 = vmatpush.msra.mxu0 0.0
  %2500 = vmatpush.msra.mxu0 0.0
  %2501 = vmatpush.msra.mxu0 0.0
  %2502 = vmatpush.msra.mxu0 0.0
  %2503 = vmatpush.msra.mxu0 0.0
  %2504 = vmatpush.msra.mxu0 0.0
  %2505 = vmatpush.msra.mxu0 0.0
  %2506 = vmatpush.msra.mxu0 0.0
  %2507 = vmatpush.msra.mxu0 0.0
  %2508 = vmatpush.msra.mxu0 %v17
  %2509 = vmatmul.f32.gmra.mxu0 %v2482
  %v2510 = vpop.f32.mrf.mxu0
  %v2511 = vadd.f32 0.0, %v2510
  %2512 = vmatmul.f32.gmra.mxu0 %v2485
  %v2513 = vpop.f32.mrf.mxu0
  %v2514 = vadd.f32 0.0, %v2513
  %2515 = vmatmul.f32.gmra.mxu0 %v2488
  %v2516 = vpop.f32.mrf.mxu0
  %v2517 = vadd.f32 0.0, %v2516
  %2518 = vmatmul.f32.gmra.mxu0 %v2491
  %v2519 = vpop.f32.mrf.mxu0
  %v2520 = vadd.f32 0.0, %v2519
  %2521 = vdwg.mxu0
  %2523 = vset.pattern.permute.xlu0 0
  %2524 = vperm.xlu0 %2523, %v2340
  %v2525 = vpop.permute.xlu0 %2524
  %2528 = vset.pattern.permute.xlu0 0
  %2529 = vperm.xlu0 %2528, %v2341
  %v2530 = vpop.permute.xlu0 %2529
  %2533 = vset.pattern.permute.xlu0 0
  %2534 = vperm.xlu0 %2533, %v2342
  %v2535 = vpop.permute.xlu0 %2534
  %2538 = vset.pattern.permute.xlu0 0
  %2539 = vperm.xlu0 %2538, %v2343
  %v2540 = vpop.permute.xlu0 %2539
  %v2542 = vadd.f32 %v2525, %v2511
  %v2543 = vadd.f32 %v2530, %v2514
  %v2544 = vadd.f32 %v2535, %v2517
  %v2545 = vadd.f32 %v2540, %v2520
  %v2547 = vsel %vm677, %v2434, 0
  %v2550 = vsel %vm677, %v2437, 0
  %v2553 = vsel %vm677, %v2440, 0
  %v2556 = vsel %vm677, %v2443, 0
  %2558 = vmatpush.msra.mxu0 0.0
  %2559 = vmatpush.msra.mxu0 0.0
  %2560 = vmatpush.msra.mxu0 0.0
  %2561 = vmatpush.msra.mxu0 0.0
  %2562 = vmatpush.msra.mxu0 0.0
  %2563 = vmatpush.msra.mxu0 0.0
  %2564 = vmatpush.msra.mxu0 0.0
  %2565 = vmatpush.msra.mxu0 0.0
  %2566 = vmatpush.msra.mxu0 0.0
  %2567 = vmatpush.msra.mxu0 0.0
  %2568 = vmatpush.msra.mxu0 0.0
  %2569 = vmatpush.msra.mxu0 0.0
  %2570 = vmatpush.msra.mxu0 0.0
  %2571 = vmatpush.msra.mxu0 0.0
  %2572 = vmatpush.msra.mxu0 0.0
  %2573 = vmatpush.msra.mxu0 %v18
  %2574 = vmatmul.f32.gmra.mxu0 %v2547
  %v2575 = vpop.f32.mrf.mxu0
  %v2576 = vadd.f32 0.0, %v2575
  %2577 = vmatmul.f32.gmra.mxu0 %v2550
  %v2578 = vpop.f32.mrf.mxu0
  %v2579 = vadd.f32 0.0, %v2578
  %2580 = vmatmul.f32.gmra.mxu0 %v2553
  %v2581 = vpop.f32.mrf.mxu0
  %v2582 = vadd.f32 0.0, %v2581
  %2583 = vmatmul.f32.gmra.mxu0 %v2556
  %v2584 = vpop.f32.mrf.mxu0
  %v2585 = vadd.f32 0.0, %v2584
  %2586 = vdwg.mxu0
  %v2587 = vadd.f32 %v2542, %v2576
  %v2588 = vadd.f32 %v2543, %v2579
  %v2589 = vadd.f32 %v2544, %v2582
  %v2590 = vadd.f32 %v2545, %v2585
  %v2592 = vsel %vm677, %v2446, 0
  %v2595 = vsel %vm677, %v2449, 0
  %v2598 = vsel %vm677, %v2452, 0
  %v2601 = vsel %vm677, %v2455, 0
  %2603 = vmatpush.msra.mxu0 0.0
  %2604 = vmatpush.msra.mxu0 0.0
  %2605 = vmatpush.msra.mxu0 0.0
  %2606 = vmatpush.msra.mxu0 0.0
  %2607 = vmatpush.msra.mxu0 0.0
  %2608 = vmatpush.msra.mxu0 0.0
  %2609 = vmatpush.msra.mxu0 0.0
  %2610 = vmatpush.msra.mxu0 0.0
  %2611 = vmatpush.msra.mxu0 0.0
  %2612 = vmatpush.msra.mxu0 0.0
  %2613 = vmatpush.msra.mxu0 0.0
  %2614 = vmatpush.msra.mxu0 0.0
  %2615 = vmatpush.msra.mxu0 0.0
  %2616 = vmatpush.msra.mxu0 0.0
  %2617 = vmatpush.msra.mxu0 0.0
  %2618 = vmatpush.msra.mxu0 %v19
  %2619 = vmatmul.f32.gmra.mxu0 %v2592
  %v2620 = vpop.f32.mrf.mxu0
  %v2621 = vadd.f32 0.0, %v2620
  %2622 = vmatmul.f32.gmra.mxu0 %v2595
  %v2623 = vpop.f32.mrf.mxu0
  %v2624 = vadd.f32 0.0, %v2623
  %2625 = vmatmul.f32.gmra.mxu0 %v2598
  %v2626 = vpop.f32.mrf.mxu0
  %v2627 = vadd.f32 0.0, %v2626
  %2628 = vmatmul.f32.gmra.mxu0 %v2601
  %v2629 = vpop.f32.mrf.mxu0
  %v2630 = vadd.f32 0.0, %v2629
  %2631 = vdwg.mxu0
  %v2632 = vadd.f32 %v2587, %v2621
  %v2633 = vadd.f32 %v2588, %v2624
  %v2634 = vadd.f32 %v2589, %v2627
  %v2635 = vadd.f32 %v2590, %v2630
  %v2637 = vsel %vm677, %v2458, 0
  %v2640 = vsel %vm677, %v2461, 0
  %v2643 = vsel %vm677, %v2464, 0
  %v2646 = vsel %vm677, %v2467, 0
  %2648 = vmatpush.msra.mxu0 0.0
  %2649 = vmatpush.msra.mxu0 0.0
  %2650 = vmatpush.msra.mxu0 0.0
  %2651 = vmatpush.msra.mxu0 0.0
  %2652 = vmatpush.msra.mxu0 0.0
  %2653 = vmatpush.msra.mxu0 0.0
  %2654 = vmatpush.msra.mxu0 0.0
  %2655 = vmatpush.msra.mxu0 0.0
  %2656 = vmatpush.msra.mxu0 0.0
  %2657 = vmatpush.msra.mxu0 0.0
  %2658 = vmatpush.msra.mxu0 0.0
  %2659 = vmatpush.msra.mxu0 0.0
  %2660 = vmatpush.msra.mxu0 0.0
  %2661 = vmatpush.msra.mxu0 0.0
  %2662 = vmatpush.msra.mxu0 0.0
  %2663 = vmatpush.msra.mxu0 %v20
  %2664 = vmatmul.f32.gmra.mxu0 %v2637
  %v2665 = vpop.f32.mrf.mxu0
  %v2666 = vadd.f32 0.0, %v2665
  %2667 = vmatmul.f32.gmra.mxu0 %v2640
  %v2668 = vpop.f32.mrf.mxu0
  %v2669 = vadd.f32 0.0, %v2668
  %2670 = vmatmul.f32.gmra.mxu0 %v2643
  %v2671 = vpop.f32.mrf.mxu0
  %v2672 = vadd.f32 0.0, %v2671
  %2673 = vmatmul.f32.gmra.mxu0 %v2646
  %v2674 = vpop.f32.mrf.mxu0
  %v2675 = vadd.f32 0.0, %v2674
  %2676 = vdwg.mxu0
  %v2677 = vadd.f32 %v2632, %v2666
  %v2678 = vadd.f32 %v2633, %v2669
  %v2679 = vadd.f32 %v2634, %v2672
  %v2680 = vadd.f32 %v2635, %v2675
  %v2682 = vsel %vm677, %v2470, 0
  %v2685 = vsel %vm677, %v2473, 0
  %v2688 = vsel %vm677, %v2476, 0
  %v2691 = vsel %vm677, %v2479, 0
  %2693 = vmatpush.msra.mxu0 0.0
  %2694 = vmatpush.msra.mxu0 0.0
  %2695 = vmatpush.msra.mxu0 0.0
  %2696 = vmatpush.msra.mxu0 0.0
  %2697 = vmatpush.msra.mxu0 0.0
  %2698 = vmatpush.msra.mxu0 0.0
  %2699 = vmatpush.msra.mxu0 0.0
  %2700 = vmatpush.msra.mxu0 0.0
  %2701 = vmatpush.msra.mxu0 0.0
  %2702 = vmatpush.msra.mxu0 0.0
  %2703 = vmatpush.msra.mxu0 0.0
  %2704 = vmatpush.msra.mxu0 0.0
  %2705 = vmatpush.msra.mxu0 0.0
  %2706 = vmatpush.msra.mxu0 0.0
  %2707 = vmatpush.msra.mxu0 0.0
  %2708 = vmatpush.msra.mxu0 %v21
  %2709 = vmatmul.f32.gmra.mxu0 %v2682
  %v2710 = vpop.f32.mrf.mxu0
  %v2711 = vadd.f32 0.0, %v2710
  %2712 = vmatmul.f32.gmra.mxu0 %v2685
  %v2713 = vpop.f32.mrf.mxu0
  %v2714 = vadd.f32 0.0, %v2713
  %2715 = vmatmul.f32.gmra.mxu0 %v2688
  %v2716 = vpop.f32.mrf.mxu0
  %v2717 = vadd.f32 0.0, %v2716
  %2718 = vmatmul.f32.gmra.mxu0 %v2691
  %v2719 = vpop.f32.mrf.mxu0
  %v2720 = vadd.f32 0.0, %v2719
  %2721 = vdwg.mxu0
  %v2722 = vadd.f32 %v2677, %v2711
  %v2723 = vadd.f32 %v2678, %v2714
  %v2724 = vadd.f32 %v2679, %v2717
  %v2725 = vadd.f32 %v2680, %v2720
  %v2726 = vmax.f32 %v2722, 0.0
  %v2727 = vmax.f32 %v2723, 0.0
  %v2728 = vmax.f32 %v2724, 0.0
  %v2729 = vmax.f32 %v2725, 0.0
  %vm2730 = vcmp.ne.f32.partialorder %v2722, %v2722
  %vm2731 = vcmp.ne.f32.partialorder %v2723, %v2723
  %vm2732 = vcmp.ne.f32.partialorder %v2724, %v2724
  %vm2733 = vcmp.ne.f32.partialorder %v2725, %v2725
  %v2734 = vadd.f32 %v2722, 0.0
  %v2735 = vadd.f32 %v2723, 0.0
  %v2736 = vadd.f32 %v2724, 0.0
  %v2737 = vadd.f32 %v2725, 0.0
  %v2738 = vand.u32 2147483647, %v2722
  %v2739 = vand.u32 2147483647, %v2723
  %v2740 = vand.u32 2147483647, %v2724
  %v2741 = vand.u32 2147483647, %v2725
  %v2742 = vsub.f32 0.0, %v2738
  %v2743 = vsub.f32 0.0, %v2739
  %v2744 = vsub.f32 0.0, %v2740
  %v2745 = vsub.f32 0.0, %v2741
  %v2746 = vmul.f32 %v2742, 1.442695
  %v2747 = vpow.pop %v2746
  %v2748 = vmul.f32 %v2743, 1.442695
  %v2749 = vpow.pop %v2748
  %v2750 = vmul.f32 %v2744, 1.442695
  %v2751 = vpow.pop %v2750
  %v2752 = vmul.f32 %v2745, 1.442695
  %v2753 = vpow.pop %v2752
  %v2754 = vadd.f32 %v2747, 1.0
  %v2755 = vlog2.pop %v2754
  %v2756 = vmul.f32 %v2755, 0.6931472
  %v2757 = vmul.f32 -0.5, %v2747
  %v2758 = vadd.f32 %v2757, 1.0
  %v2759 = vmul.f32 %v2758, %v2747
  %v2760 = vand.u32 2147483647, %v2747
  %vm2761 = vcmp.lt.f32.partialorder %v2760, 0.0004427343
  %v2762 = vsel %vm2761, %v2759, %v2756
  %v2763 = vadd.f32 %v2749, 1.0
  %v2764 = vlog2.pop %v2763
  %v2765 = vmul.f32 %v2764, 0.6931472
  %v2766 = vmul.f32 -0.5, %v2749
  %v2767 = vadd.f32 %v2766, 1.0
  %v2768 = vmul.f32 %v2767, %v2749
  %v2769 = vand.u32 2147483647, %v2749
  %vm2770 = vcmp.lt.f32.partialorder %v2769, 0.0004427343
  %v2771 = vsel %vm2770, %v2768, %v2765
  %v2772 = vadd.f32 %v2751, 1.0
  %v2773 = vlog2.pop %v2772
  %v2774 = vmul.f32 %v2773, 0.6931472
  %v2775 = vmul.f32 -0.5, %v2751
  %v2776 = vadd.f32 %v2775, 1.0
  %v2777 = vmul.f32 %v2776, %v2751
  %v2778 = vand.u32 2147483647, %v2751
  %vm2779 = vcmp.lt.f32.partialorder %v2778, 0.0004427343
  %v2780 = vsel %vm2779, %v2777, %v2774
  %v2781 = vadd.f32 %v2753, 1.0
  %v2782 = vlog2.pop %v2781
  %v2783 = vmul.f32 %v2782, 0.6931472
  %v2784 = vmul.f32 -0.5, %v2753
  %v2785 = vadd.f32 %v2784, 1.0
  %v2786 = vmul.f32 %v2785, %v2753
  %v2787 = vand.u32 2147483647, %v2753
  %vm2788 = vcmp.lt.f32.partialorder %v2787, 0.0004427343
  %v2789 = vsel %vm2788, %v2786, %v2783
  %v2790 = vadd.f32 %v2726, %v2762
  %v2791 = vadd.f32 %v2727, %v2771
  %v2792 = vadd.f32 %v2728, %v2780
  %v2793 = vadd.f32 %v2729, %v2789
  %v2794 = vsel %vm2730, %v2734, %v2790
  %v2795 = vsel %vm2731, %v2735, %v2791
  %v2796 = vsel %vm2732, %v2736, %v2792
  %v2797 = vsel %vm2733, %v2737, %v2793
  %v2798 = vtanh.pop %v2794
  %v2799 = vtanh.pop %v2795
  %v2800 = vtanh.pop %v2796
  %v2801 = vtanh.pop %v2797
  %v2802 = vmul.f32 %v2722, %v2798
  %v2803 = vmul.f32 %v2723, %v2799
  %v2804 = vmul.f32 %v2724, %v2800
  %v2805 = vmul.f32 %v2725, %v2801
  %v2806 = vld [vmem:[%s3 + $0x4e0] sm:$0xff]
  %v2807 = vld [vmem:[%s3 + $0x4e8] sm:$0xff]
  %v2808 = vld [vmem:[%s3 + $0x4f0] sm:$0xff]
  %v2809 = vld [vmem:[%s3 + $0x4f8] sm:$0xff]
  %v2810 = vld [vmem:[%s3 + $0x500] sm:$0xff]
  %v2811 = vld [vmem:[%s3 + $0x508] sm:$0xff]
  %v2812 = vld [vmem:[%s3 + $0x510] sm:$0xff]
  %v2813 = vld [vmem:[%s3 + $0x518] sm:$0xff]
  %v2815 = vsel %vm677, %v2810, 0
  %v2818 = vsel %vm677, %v2811, 0
  %v2821 = vsel %vm677, %v2812, 0
  %v2824 = vsel %vm677, %v2813, 0
  %2826 = vmatpush.msra.mxu0 0.0
  %2827 = vmatpush.msra.mxu0 0.0
  %2828 = vmatpush.msra.mxu0 0.0
  %2829 = vmatpush.msra.mxu0 0.0
  %2830 = vmatpush.msra.mxu0 0.0
  %2831 = vmatpush.msra.mxu0 0.0
  %2832 = vmatpush.msra.mxu0 0.0
  %2833 = vmatpush.msra.mxu0 0.0
  %2834 = vmatpush.msra.mxu0 0.0
  %2835 = vmatpush.msra.mxu0 0.0
  %2836 = vmatpush.msra.mxu0 0.0
  %2837 = vmatpush.msra.mxu0 0.0
  %2838 = vmatpush.msra.mxu0 0.0
  %2839 = vmatpush.msra.mxu0 0.0
  %2840 = vmatpush.msra.mxu0 0.0
  %2841 = vmatpush.msra.mxu0 %v46
  %2842 = vmatmul.f32.gmra.mxu0 %v2815
  %v2843 = vpop.f32.mrf.mxu0
  %v2844 = vadd.f32 0.0, %v2843
  %2845 = vmatmul.f32.gmra.mxu0 %v2818
  %v2846 = vpop.f32.mrf.mxu0
  %v2847 = vadd.f32 0.0, %v2846
  %2848 = vmatmul.f32.gmra.mxu0 %v2821
  %v2849 = vpop.f32.mrf.mxu0
  %v2850 = vadd.f32 0.0, %v2849
  %2851 = vmatmul.f32.gmra.mxu0 %v2824
  %v2852 = vpop.f32.mrf.mxu0
  %v2853 = vadd.f32 0.0, %v2852
  %2854 = vdwg.mxu0
  %v2856 = vsel %vm104, %v2806, 0
  %v2859 = vsel %vm104, %v2807, 0
  %v2862 = vsel %vm104, %v2808, 0
  %v2865 = vsel %vm104, %v2809, 0
  %2867 = vmatpush.msra.mxu0 0.0
  %2868 = vmatpush.msra.mxu0 0.0
  %2869 = vmatpush.msra.mxu0 0.0
  %2870 = vmatpush.msra.mxu0 0.0
  %2871 = vmatpush.msra.mxu0 0.0
  %2872 = vmatpush.msra.mxu0 0.0
  %2873 = vmatpush.msra.mxu0 0.0
  %2874 = vmatpush.msra.mxu0 0.0
  %2875 = vmatpush.msra.mxu0 0.0
  %2876 = vmatpush.msra.mxu0 0.0
  %2877 = vmatpush.msra.mxu0 0.0
  %2878 = vmatpush.msra.mxu0 0.0
  %2879 = vmatpush.msra.mxu0 0.0
  %2880 = vmatpush.msra.mxu0 0.0
  %2881 = vmatpush.msra.mxu0 %v372
  %2882 = vmatpush.msra.mxu0 %v369
  %2883 = vmatmul.f32.gmra.mxu0 %v2856
  %v2884 = vpop.f32.mrf.mxu0
  %v2885 = vadd.f32 %v2844, %v2884
  %2886 = vmatmul.f32.gmra.mxu0 %v2859
  %v2887 = vpop.f32.mrf.mxu0
  %v2888 = vadd.f32 %v2847, %v2887
  %2889 = vmatmul.f32.gmra.mxu0 %v2862
  %v2890 = vpop.f32.mrf.mxu0
  %v2891 = vadd.f32 %v2850, %v2890
  %2892 = vmatmul.f32.gmra.mxu0 %v2865
  %v2893 = vpop.f32.mrf.mxu0
  %v2894 = vadd.f32 %v2853, %v2893
  %2895 = vdwg.mxu0
  %v2896 = vld [vmem:[%s3 + $0x520] sm:$0xff]
  %v2897 = vld [vmem:[%s3 + $0x528] sm:$0xff]
  %v2898 = vld [vmem:[%s3 + $0x530] sm:$0xff]
  %v2899 = vld [vmem:[%s3 + $0x538] sm:$0xff]
  %2901 = vset.pattern.permute.xlu0 0
  %2902 = vperm.xlu0 %2901, %v2896
  %v2903 = vpop.permute.xlu0 %2902
  %2906 = vset.pattern.permute.xlu0 0
  %2907 = vperm.xlu0 %2906, %v2897
  %v2908 = vpop.permute.xlu0 %2907
  %2911 = vset.pattern.permute.xlu0 0
  %2912 = vperm.xlu0 %2911, %v2898
  %v2913 = vpop.permute.xlu0 %2912
  %2916 = vset.pattern.permute.xlu0 0
  %2917 = vperm.xlu0 %2916, %v2899
  %v2918 = vpop.permute.xlu0 %2917
  %v2920 = vadd.f32 %v2885, %v2903
  %v2921 = vadd.f32 %v2888, %v2908
  %v2922 = vadd.f32 %v2891, %v2913
  %v2923 = vadd.f32 %v2894, %v2918
  %v2924 = vmax.f32 %v2920, 0.0
  %v2925 = vmax.f32 %v2921, 0.0
  %v2926 = vmax.f32 %v2922, 0.0
  %v2927 = vmax.f32 %v2923, 0.0
  %vm2928 = vcmp.ne.f32.partialorder %v2920, %v2920
  %vm2929 = vcmp.ne.f32.partialorder %v2921, %v2921
  %vm2930 = vcmp.ne.f32.partialorder %v2922, %v2922
  %vm2931 = vcmp.ne.f32.partialorder %v2923, %v2923
  %v2932 = vadd.f32 %v2920, 0.0
  %v2933 = vadd.f32 %v2921, 0.0
  %v2934 = vadd.f32 %v2922, 0.0
  %v2935 = vadd.f32 %v2923, 0.0
  %v2936 = vand.u32 2147483647, %v2920
  %v2937 = vand.u32 2147483647, %v2921
  %v2938 = vand.u32 2147483647, %v2922
  %v2939 = vand.u32 2147483647, %v2923
  %v2940 = vsub.f32 0.0, %v2936
  %v2941 = vsub.f32 0.0, %v2937
  %v2942 = vsub.f32 0.0, %v2938
  %v2943 = vsub.f32 0.0, %v2939
  %v2944 = vmul.f32 %v2940, 1.442695
  %v2945 = vpow.pop %v2944
  %v2946 = vmul.f32 %v2941, 1.442695
  %v2947 = vpow.pop %v2946
  %v2948 = vmul.f32 %v2942, 1.442695
  %v2949 = vpow.pop %v2948
  %v2950 = vmul.f32 %v2943, 1.442695
  %v2951 = vpow.pop %v2950
  %v2952 = vadd.f32 %v2945, 1.0
  %v2953 = vlog2.pop %v2952
  %v2954 = vmul.f32 %v2953, 0.6931472
  %v2955 = vmul.f32 -0.5, %v2945
  %v2956 = vadd.f32 %v2955, 1.0
  %v2957 = vmul.f32 %v2956, %v2945
  %v2958 = vand.u32 2147483647, %v2945
  %vm2959 = vcmp.lt.f32.partialorder %v2958, 0.0004427343
  %v2960 = vsel %vm2959, %v2957, %v2954
  %v2961 = vadd.f32 %v2947, 1.0
  %v2962 = vlog2.pop %v2961
  %v2963 = vmul.f32 %v2962, 0.6931472
  %v2964 = vmul.f32 -0.5, %v2947
  %v2965 = vadd.f32 %v2964, 1.0
  %v2966 = vmul.f32 %v2965, %v2947
  %v2967 = vand.u32 2147483647, %v2947
  %vm2968 = vcmp.lt.f32.partialorder %v2967, 0.0004427343
  %v2969 = vsel %vm2968, %v2966, %v2963
  %v2970 = vadd.f32 %v2949, 1.0
  %v2971 = vlog2.pop %v2970
  %v2972 = vmul.f32 %v2971, 0.6931472
  %v2973 = vmul.f32 -0.5, %v2949
  %v2974 = vadd.f32 %v2973, 1.0
  %v2975 = vmul.f32 %v2974, %v2949
  %v2976 = vand.u32 2147483647, %v2949
  %vm2977 = vcmp.lt.f32.partialorder %v2976, 0.0004427343
  %v2978 = vsel %vm2977, %v2975, %v2972
  %v2979 = vadd.f32 %v2951, 1.0
  %v2980 = vlog2.pop %v2979
  %v2981 = vmul.f32 %v2980, 0.6931472
  %v2982 = vmul.f32 -0.5, %v2951
  %v2983 = vadd.f32 %v2982, 1.0
  %v2984 = vmul.f32 %v2983, %v2951
  %v2985 = vand.u32 2147483647, %v2951
  %vm2986 = vcmp.lt.f32.partialorder %v2985, 0.0004427343
  %v2987 = vsel %vm2986, %v2984, %v2981
  %v2988 = vadd.f32 %v2924, %v2960
  %v2989 = vadd.f32 %v2925, %v2969
  %v2990 = vadd.f32 %v2926, %v2978
  %v2991 = vadd.f32 %v2927, %v2987
  %v2992 = vsel %vm2928, %v2932, %v2988
  %v2993 = vsel %vm2929, %v2933, %v2989
  %v2994 = vsel %vm2930, %v2934, %v2990
  %v2995 = vsel %vm2931, %v2935, %v2991
  %v2996 = vtanh.pop %v2992
  %v2997 = vtanh.pop %v2993
  %v2998 = vtanh.pop %v2994
  %v2999 = vtanh.pop %v2995
  %v3000 = vmul.f32 %v2920, %v2996
  %v3001 = vmul.f32 %v2921, %v2997
  %v3002 = vmul.f32 %v2922, %v2998
  %v3003 = vmul.f32 %v2923, %v2999
  %v3004 = vld [vmem:[%s3 + $0x540] sm:$0xff]
  %v3005 = vld [vmem:[%s3 + $0x548] sm:$0xff]
  %v3006 = vld [vmem:[%s3 + $0x550] sm:$0xff]
  %v3007 = vld [vmem:[%s3 + $0x558] sm:$0xff]
  %v3008 = vld [vmem:[%s3 + $0x560] sm:$0xff]
  %v3009 = vld [vmem:[%s3 + $0x568] sm:$0xff]
  %v3010 = vld [vmem:[%s3 + $0x570] sm:$0xff]
  %v3011 = vld [vmem:[%s3 + $0x578] sm:$0xff]
  %3013 = vset.pattern.permute.xlu0 0
  %3014 = vperm.xlu0 %3013, %v3008
  %v3015 = vpop.permute.xlu0 %3014
  %3018 = vset.pattern.permute.xlu0 0
  %3019 = vperm.xlu0 %3018, %v3009
  %v3020 = vpop.permute.xlu0 %3019
  %3023 = vset.pattern.permute.xlu0 0
  %3024 = vperm.xlu0 %3023, %v3010
  %v3025 = vpop.permute.xlu0 %3024
  %3028 = vset.pattern.permute.xlu0 0
  %3029 = vperm.xlu0 %3028, %v3011
  %v3030 = vpop.permute.xlu0 %3029
  %vm3032 = vcmask 261120
  %v3034 = vsel %vm3032, %v3004, 0
  %v3037 = vsel %vm3032, %v3005, 0
  %v3040 = vsel %vm3032, %v3006, 0
  %v3043 = vsel %vm3032, %v3007, 0
  %3045 = vmatpush.msra.mxu0 0.0
  %3046 = vmatpush.msra.mxu0 0.0
  %3047 = vmatpush.msra.mxu0 0.0
  %3048 = vmatpush.msra.mxu0 0.0
  %3049 = vmatpush.msra.mxu0 0.0
  %3050 = vmatpush.msra.mxu0 0.0
  %3051 = vmatpush.msra.mxu0 0.0
  %3052 = vmatpush.msra.mxu0 0.0
  %3053 = vmatpush.msra.mxu0 0.0
  %3054 = vmatpush.msra.mxu0 0.0
  %3055 = vmatpush.msra.mxu0 0.0
  %3056 = vmatpush.msra.mxu0 0.0
  %3057 = vmatpush.msra.mxu0 %v3003
  %3058 = vmatpush.msra.mxu0 %v3002
  %3059 = vmatpush.msra.mxu0 %v3001
  %3060 = vmatpush.msra.mxu0 %v3000
  %3061 = vmatmul.f32.gmra.mxu0 %v3034
  %v3062 = vpop.f32.mrf.mxu0
  %v3063 = vadd.f32 %v3015, %v3062
  %3064 = vmatmul.f32.gmra.mxu0 %v3037
  %v3065 = vpop.f32.mrf.mxu0
  %v3066 = vadd.f32 %v3020, %v3065
  %3067 = vmatmul.f32.gmra.mxu0 %v3040
  %v3068 = vpop.f32.mrf.mxu0
  %v3069 = vadd.f32 %v3025, %v3068
  %3070 = vmatmul.f32.gmra.mxu0 %v3043
  %v3071 = vpop.f32.mrf.mxu0
  %v3072 = vadd.f32 %v3030, %v3071
  %3073 = vdwg.mxu0
  %v3074 = vmax.f32 %v3063, 0.0
  %v3075 = vmax.f32 %v3066, 0.0
  %v3076 = vmax.f32 %v3069, 0.0
  %v3077 = vmax.f32 %v3072, 0.0
  %vm3078 = vcmp.ne.f32.partialorder %v3063, %v3063
  %vm3079 = vcmp.ne.f32.partialorder %v3066, %v3066
  %vm3080 = vcmp.ne.f32.partialorder %v3069, %v3069
  %vm3081 = vcmp.ne.f32.partialorder %v3072, %v3072
  %v3082 = vadd.f32 %v3063, 0.0
  %v3083 = vadd.f32 %v3066, 0.0
  %v3084 = vadd.f32 %v3069, 0.0
  %v3085 = vadd.f32 %v3072, 0.0
  %v3086 = vand.u32 2147483647, %v3063
  %v3087 = vand.u32 2147483647, %v3066
  %v3088 = vand.u32 2147483647, %v3069
  %v3089 = vand.u32 2147483647, %v3072
  %v3090 = vsub.f32 0.0, %v3086
  %v3091 = vsub.f32 0.0, %v3087
  %v3092 = vsub.f32 0.0, %v3088
  %v3093 = vsub.f32 0.0, %v3089
  %v3094 = vmul.f32 %v3090, 1.442695
  %v3095 = vpow.pop %v3094
  %v3096 = vmul.f32 %v3091, 1.442695
  %v3097 = vpow.pop %v3096
  %v3098 = vmul.f32 %v3092, 1.442695
  %v3099 = vpow.pop %v3098
  %v3100 = vmul.f32 %v3093, 1.442695
  %v3101 = vpow.pop %v3100
  %v3102 = vadd.f32 %v3095, 1.0
  %v3103 = vlog2.pop %v3102
  %v3104 = vmul.f32 %v3103, 0.6931472
  %v3105 = vmul.f32 -0.5, %v3095
  %v3106 = vadd.f32 %v3105, 1.0
  %v3107 = vmul.f32 %v3106, %v3095
  %v3108 = vand.u32 2147483647, %v3095
  %vm3109 = vcmp.lt.f32.partialorder %v3108, 0.0004427343
  %v3110 = vsel %vm3109, %v3107, %v3104
  %v3111 = vadd.f32 %v3097, 1.0
  %v3112 = vlog2.pop %v3111
  %v3113 = vmul.f32 %v3112, 0.6931472
  %v3114 = vmul.f32 -0.5, %v3097
  %v3115 = vadd.f32 %v3114, 1.0
  %v3116 = vmul.f32 %v3115, %v3097
  %v3117 = vand.u32 2147483647, %v3097
  %vm3118 = vcmp.lt.f32.partialorder %v3117, 0.0004427343
  %v3119 = vsel %vm3118, %v3116, %v3113
  %v3120 = vadd.f32 %v3099, 1.0
  %v3121 = vlog2.pop %v3120
  %v3122 = vmul.f32 %v3121, 0.6931472
  %v3123 = vmul.f32 -0.5, %v3099
  %v3124 = vadd.f32 %v3123, 1.0
  %v3125 = vmul.f32 %v3124, %v3099
  %v3126 = vand.u32 2147483647, %v3099
  %vm3127 = vcmp.lt.f32.partialorder %v3126, 0.0004427343
  %v3128 = vsel %vm3127, %v3125, %v3122
  %v3129 = vadd.f32 %v3101, 1.0
  %v3130 = vlog2.pop %v3129
  %v3131 = vmul.f32 %v3130, 0.6931472
  %v3132 = vmul.f32 -0.5, %v3101
  %v3133 = vadd.f32 %v3132, 1.0
  %v3134 = vmul.f32 %v3133, %v3101
  %v3135 = vand.u32 2147483647, %v3101
  %vm3136 = vcmp.lt.f32.partialorder %v3135, 0.0004427343
  %v3137 = vsel %vm3136, %v3134, %v3131
  %v3138 = vadd.f32 %v3074, %v3110
  %v3139 = vadd.f32 %v3075, %v3119
  %v3140 = vadd.f32 %v3076, %v3128
  %v3141 = vadd.f32 %v3077, %v3137
  %v3142 = vsel %vm3078, %v3082, %v3138
  %v3143 = vsel %vm3079, %v3083, %v3139
  %v3144 = vsel %vm3080, %v3084, %v3140
  %v3145 = vsel %vm3081, %v3085, %v3141
  %v3146 = vtanh.pop %v3142
  %v3147 = vtanh.pop %v3143
  %v3148 = vtanh.pop %v3144
  %v3149 = vtanh.pop %v3145
  %v3150 = vmul.f32 %v3063, %v3146
  %v3151 = vmul.f32 %v3066, %v3147
  %v3152 = vmul.f32 %v3069, %v3148
  %v3153 = vmul.f32 %v3072, %v3149
  %v3154 = vld [vmem:[%s3 + $0x580] sm:$0xff]
  %v3155 = vld [vmem:[%s3 + $0x588] sm:$0xff]
  %v3156 = vld [vmem:[%s3 + $0x590] sm:$0xff]
  %v3157 = vld [vmem:[%s3 + $0x598] sm:$0xff]
  %v3158 = vld [vmem:[%s3 + $0x5a0] sm:$0xff]
  %v3159 = vld [vmem:[%s3 + $0x5a8] sm:$0xff]
  %v3160 = vld [vmem:[%s3 + $0x5b0] sm:$0xff]
  %v3161 = vld [vmem:[%s3 + $0x5b8] sm:$0xff]
  %3163 = vset.pattern.permute.xlu0 0
  %3164 = vperm.xlu0 %3163, %v3158
  %v3165 = vpop.permute.xlu0 %3164
  %3168 = vset.pattern.permute.xlu0 0
  %3169 = vperm.xlu0 %3168, %v3159
  %v3170 = vpop.permute.xlu0 %3169
  %3173 = vset.pattern.permute.xlu0 0
  %3174 = vperm.xlu0 %3173, %v3160
  %v3175 = vpop.permute.xlu0 %3174
  %3178 = vset.pattern.permute.xlu0 0
  %3179 = vperm.xlu0 %3178, %v3161
  %v3180 = vpop.permute.xlu0 %3179
  %v3183 = vsel %vm3032, %v3154, 0
  %v3186 = vsel %vm3032, %v3155, 0
  %v3189 = vsel %vm3032, %v3156, 0
  %v3192 = vsel %vm3032, %v3157, 0
  %3194 = vmatpush.msra.mxu0 0.0
  %3195 = vmatpush.msra.mxu0 0.0
  %3196 = vmatpush.msra.mxu0 0.0
  %3197 = vmatpush.msra.mxu0 0.0
  %3198 = vmatpush.msra.mxu0 0.0
  %3199 = vmatpush.msra.mxu0 0.0
  %3200 = vmatpush.msra.mxu0 0.0
  %3201 = vmatpush.msra.mxu0 0.0
  %3202 = vmatpush.msra.mxu0 0.0
  %3203 = vmatpush.msra.mxu0 0.0
  %3204 = vmatpush.msra.mxu0 0.0
  %3205 = vmatpush.msra.mxu0 0.0
  %3206 = vmatpush.msra.mxu0 %v3153
  %3207 = vmatpush.msra.mxu0 %v3152
  %3208 = vmatpush.msra.mxu0 %v3151
  %3209 = vmatpush.msra.mxu0 %v3150
  %3210 = vmatmul.f32.gmra.mxu0 %v3183
  %v3211 = vpop.f32.mrf.mxu0
  %v3212 = vadd.f32 %v3165, %v3211
  %3213 = vmatmul.f32.gmra.mxu0 %v3186
  %v3214 = vpop.f32.mrf.mxu0
  %v3215 = vadd.f32 %v3170, %v3214
  %3216 = vmatmul.f32.gmra.mxu0 %v3189
  %v3217 = vpop.f32.mrf.mxu0
  %v3218 = vadd.f32 %v3175, %v3217
  %3219 = vmatmul.f32.gmra.mxu0 %v3192
  %v3220 = vpop.f32.mrf.mxu0
  %v3221 = vadd.f32 %v3180, %v3220
  %3222 = vdwg.mxu0
  %v3224 = vsel %vm916, %v3212, 0
  %v3227 = vsel %vm916, %v3215, 0
  %v3230 = vsel %vm916, %v3218, 0
  %v3233 = vsel %vm916, %v3221, 0
  %v3236 = vsel %vm923, %v22, 0
  %3238 = vmatpush.msra.mxu0 0.0
  %3239 = vmatpush.msra.mxu0 0.0
  %3240 = vmatpush.msra.mxu0 0.0
  %3241 = vmatpush.msra.mxu0 0.0
  %3242 = vmatpush.msra.mxu0 0.0
  %3243 = vmatpush.msra.mxu0 0.0
  %3244 = vmatpush.msra.mxu0 0.0
  %3245 = vmatpush.msra.mxu0 0.0
  %3246 = vmatpush.msra.mxu0 0.0
  %3247 = vmatpush.msra.mxu0 0.0
  %3248 = vmatpush.msra.mxu0 0.0
  %3249 = vmatpush.msra.mxu0 0.0
  %3250 = vmatpush.msra.mxu0 0.0
  %3251 = vmatpush.msra.mxu0 0.0
  %3252 = vmatpush.msra.mxu0 0.0
  %3253 = vmatpush.msra.mxu0 %v3236
  %3254 = vmatmul.f32.gmra.mxu0 %v3224
  %v3255 = vpop.f32.mrf.mxu0
  %v3256 = vadd.f32 0.0, %v3255
  %3257 = vmatmul.f32.gmra.mxu0 %v3227
  %v3258 = vpop.f32.mrf.mxu0
  %v3259 = vadd.f32 0.0, %v3258
  %3260 = vmatmul.f32.gmra.mxu0 %v3230
  %v3261 = vpop.f32.mrf.mxu0
  %v3262 = vadd.f32 0.0, %v3261
  %3263 = vmatmul.f32.gmra.mxu0 %v3233
  %v3264 = vpop.f32.mrf.mxu0
  %v3265 = vadd.f32 0.0, %v3264
  %3266 = vdwg.mxu0
  %v3267 = vadd.f32 %v2802, %v3256
  %v3268 = vadd.f32 %v2803, %v3259
  %v3269 = vadd.f32 %v2804, %v3262
  %v3270 = vadd.f32 %v2805, %v3265
  %v3271 = vld [vmem:[%s3 + $0x420] sm:$0xff]
  %v3272 = vld [vmem:[%s3 + $0x428] sm:$0xff]
  %v3273 = vld [vmem:[%s3 + $0x430] sm:$0xff]
  %v3274 = vld [vmem:[%s3 + $0x438] sm:$0xff]
  %v3275 = vld [vmem:[%s3 + $0x440] sm:$0xff]
  %v3276 = vld [vmem:[%s3 + $0x448] sm:$0xff]
  %v3277 = vld [vmem:[%s3 + $0x450] sm:$0xff]
  %v3278 = vld [vmem:[%s3 + $0x458] sm:$0xff]
  %v3279 = vld [vmem:[%s3 + $0x460] sm:$0xff]
  %v3280 = vld [vmem:[%s3 + $0x468] sm:$0xff]
  %v3281 = vld [vmem:[%s3 + $0x470] sm:$0xff]
  %v3282 = vld [vmem:[%s3 + $0x478] sm:$0xff]
  %v3283 = vld [vmem:[%s3 + $0x480] sm:$0xff]
  %v3284 = vld [vmem:[%s3 + $0x488] sm:$0xff]
  %v3285 = vld [vmem:[%s3 + $0x490] sm:$0xff]
  %v3286 = vld [vmem:[%s3 + $0x498] sm:$0xff]
  %v3287 = vld [vmem:[%s3 + $0x4a0] sm:$0xff]
  %v3288 = vld [vmem:[%s3 + $0x4a8] sm:$0xff]
  %v3289 = vld [vmem:[%s3 + $0x4b0] sm:$0xff]
  %v3290 = vld [vmem:[%s3 + $0x4b8] sm:$0xff]
  %v3291 = vld [vmem:[%s3 + $0x4c0] sm:$0xff]
  %v3292 = vld [vmem:[%s3 + $0x4c8] sm:$0xff]
  %v3293 = vld [vmem:[%s3 + $0x4d0] sm:$0xff]
  %v3294 = vld [vmem:[%s3 + $0x4d8] sm:$0xff]
  %v3296 = vsel %vm3032, %v3271, 0
  %v3299 = vsel %vm3032, %v3272, 0
  %v3302 = vsel %vm3032, %v3273, 0
  %v3305 = vsel %vm3032, %v3274, 0
  %v3308 = vsel %vm3032, %v3275, 0
  %v3311 = vsel %vm3032, %v3276, 0
  %v3314 = vsel %vm3032, %v3277, 0
  %v3317 = vsel %vm3032, %v3278, 0
  %v3320 = vsel %vm3032, %v3279, 0
  %v3323 = vsel %vm3032, %v3280, 0
  %v3326 = vsel %vm3032, %v3281, 0
  %v3329 = vsel %vm3032, %v3282, 0
  %v3332 = vsel %vm3032, %v3283, 0
  %v3335 = vsel %vm3032, %v3284, 0
  %v3338 = vsel %vm3032, %v3285, 0
  %v3341 = vsel %vm3032, %v3286, 0
  %v3344 = vsel %vm3032, %v3287, 0
  %v3347 = vsel %vm3032, %v3288, 0
  %v3350 = vsel %vm3032, %v3289, 0
  %v3353 = vsel %vm3032, %v3290, 0
  %3355 = vmatpush.msra.mxu0 0.0
  %3356 = vmatpush.msra.mxu0 0.0
  %3357 = vmatpush.msra.mxu0 0.0
  %3358 = vmatpush.msra.mxu0 0.0
  %3359 = vmatpush.msra.mxu0 0.0
  %3360 = vmatpush.msra.mxu0 0.0
  %3361 = vmatpush.msra.mxu0 0.0
  %3362 = vmatpush.msra.mxu0 0.0
  %3363 = vmatpush.msra.mxu0 0.0
  %3364 = vmatpush.msra.mxu0 0.0
  %3365 = vmatpush.msra.mxu0 0.0
  %3366 = vmatpush.msra.mxu0 0.0
  %3367 = vmatpush.msra.mxu0 %v3270
  %3368 = vmatpush.msra.mxu0 %v3269
  %3369 = vmatpush.msra.mxu0 %v3268
  %3370 = vmatpush.msra.mxu0 %v3267
  %3371 = vmatmul.f32.gmra.mxu0 %v3296
  %v3372 = vpop.f32.mrf.mxu0
  %v3373 = vadd.f32 0.0, %v3372
  %3374 = vmatmul.f32.gmra.mxu0 %v3299
  %v3375 = vpop.f32.mrf.mxu0
  %v3376 = vadd.f32 0.0, %v3375
  %3377 = vmatmul.f32.gmra.mxu0 %v3302
  %v3378 = vpop.f32.mrf.mxu0
  %v3379 = vadd.f32 0.0, %v3378
  %3380 = vmatmul.f32.gmra.mxu0 %v3305
  %v3381 = vpop.f32.mrf.mxu0
  %v3382 = vadd.f32 0.0, %v3381
  %3383 = vmatmul.f32.gmra.mxu0 %v3308
  %v3384 = vpop.f32.mrf.mxu0
  %v3385 = vadd.f32 0.0, %v3384
  %3386 = vmatmul.f32.gmra.mxu0 %v3311
  %v3387 = vpop.f32.mrf.mxu0
  %v3388 = vadd.f32 0.0, %v3387
  %3389 = vmatmul.f32.gmra.mxu0 %v3314
  %v3390 = vpop.f32.mrf.mxu0
  %v3391 = vadd.f32 0.0, %v3390
  %3392 = vmatmul.f32.gmra.mxu0 %v3317
  %v3393 = vpop.f32.mrf.mxu0
  %v3394 = vadd.f32 0.0, %v3393
  %3395 = vmatmul.f32.gmra.mxu0 %v3320
  %v3396 = vpop.f32.mrf.mxu0
  %v3397 = vadd.f32 0.0, %v3396
  %3398 = vmatmul.f32.gmra.mxu0 %v3323
  %v3399 = vpop.f32.mrf.mxu0
  %v3400 = vadd.f32 0.0, %v3399
  %3401 = vmatmul.f32.gmra.mxu0 %v3326
  %v3402 = vpop.f32.mrf.mxu0
  %v3403 = vadd.f32 0.0, %v3402
  %3404 = vmatmul.f32.gmra.mxu0 %v3329
  %v3405 = vpop.f32.mrf.mxu0
  %v3406 = vadd.f32 0.0, %v3405
  %3407 = vmatmul.f32.gmra.mxu0 %v3332
  %v3408 = vpop.f32.mrf.mxu0
  %v3409 = vadd.f32 0.0, %v3408
  %3410 = vmatmul.f32.gmra.mxu0 %v3335
  %v3411 = vpop.f32.mrf.mxu0
  %v3412 = vadd.f32 0.0, %v3411
  %3413 = vmatmul.f32.gmra.mxu0 %v3338
  %v3414 = vpop.f32.mrf.mxu0
  %v3415 = vadd.f32 0.0, %v3414
  %3416 = vmatmul.f32.gmra.mxu0 %v3341
  %v3417 = vpop.f32.mrf.mxu0
  %v3418 = vadd.f32 0.0, %v3417
  %3419 = vmatmul.f32.gmra.mxu0 %v3344
  %v3420 = vpop.f32.mrf.mxu0
  %v3421 = vadd.f32 0.0, %v3420
  %3422 = vmatmul.f32.gmra.mxu0 %v3347
  %v3423 = vpop.f32.mrf.mxu0
  %v3424 = vadd.f32 0.0, %v3423
  %3425 = vmatmul.f32.gmra.mxu0 %v3350
  %v3426 = vpop.f32.mrf.mxu0
  %v3427 = vadd.f32 0.0, %v3426
  %3428 = vmatmul.f32.gmra.mxu0 %v3353
  %v3429 = vpop.f32.mrf.mxu0
  %v3430 = vadd.f32 0.0, %v3429
  %3431 = vdwg.mxu0
  %v3433 = vsel %vm677, %v3373, 0
  %v3436 = vsel %vm677, %v3376, 0
  %v3439 = vsel %vm677, %v3379, 0
  %v3442 = vsel %vm677, %v3382, 0
  %3444 = vmatpush.msra.mxu0 0.0
  %3445 = vmatpush.msra.mxu0 0.0
  %3446 = vmatpush.msra.mxu0 0.0
  %3447 = vmatpush.msra.mxu0 0.0
  %3448 = vmatpush.msra.mxu0 0.0
  %3449 = vmatpush.msra.mxu0 0.0
  %3450 = vmatpush.msra.mxu0 0.0
  %3451 = vmatpush.msra.mxu0 0.0
  %3452 = vmatpush.msra.mxu0 0.0
  %3453 = vmatpush.msra.mxu0 0.0
  %3454 = vmatpush.msra.mxu0 0.0
  %3455 = vmatpush.msra.mxu0 0.0
  %3456 = vmatpush.msra.mxu0 0.0
  %3457 = vmatpush.msra.mxu0 0.0
  %3458 = vmatpush.msra.mxu0 0.0
  %3459 = vmatpush.msra.mxu0 %v17
  %3460 = vmatmul.f32.gmra.mxu0 %v3433
  %v3461 = vpop.f32.mrf.mxu0
  %v3462 = vadd.f32 0.0, %v3461
  %3463 = vmatmul.f32.gmra.mxu0 %v3436
  %v3464 = vpop.f32.mrf.mxu0
  %v3465 = vadd.f32 0.0, %v3464
  %3466 = vmatmul.f32.gmra.mxu0 %v3439
  %v3467 = vpop.f32.mrf.mxu0
  %v3468 = vadd.f32 0.0, %v3467
  %3469 = vmatmul.f32.gmra.mxu0 %v3442
  %v3470 = vpop.f32.mrf.mxu0
  %v3471 = vadd.f32 0.0, %v3470
  %3472 = vdwg.mxu0
  %3474 = vset.pattern.permute.xlu0 0
  %3475 = vperm.xlu0 %3474, %v3291
  %v3476 = vpop.permute.xlu0 %3475
  %3479 = vset.pattern.permute.xlu0 0
  %3480 = vperm.xlu0 %3479, %v3292
  %v3481 = vpop.permute.xlu0 %3480
  %3484 = vset.pattern.permute.xlu0 0
  %3485 = vperm.xlu0 %3484, %v3293
  %v3486 = vpop.permute.xlu0 %3485
  %3489 = vset.pattern.permute.xlu0 0
  %3490 = vperm.xlu0 %3489, %v3294
  %v3491 = vpop.permute.xlu0 %3490
  %v3493 = vadd.f32 %v3476, %v3462
  %v3494 = vadd.f32 %v3481, %v3465
  %v3495 = vadd.f32 %v3486, %v3468
  %v3496 = vadd.f32 %v3491, %v3471
  %v3498 = vsel %vm677, %v3385, 0
  %v3501 = vsel %vm677, %v3388, 0
  %v3504 = vsel %vm677, %v3391, 0
  %v3507 = vsel %vm677, %v3394, 0
  %3509 = vmatpush.msra.mxu0 0.0
  %3510 = vmatpush.msra.mxu0 0.0
  %3511 = vmatpush.msra.mxu0 0.0
  %3512 = vmatpush.msra.mxu0 0.0
  %3513 = vmatpush.msra.mxu0 0.0
  %3514 = vmatpush.msra.mxu0 0.0
  %3515 = vmatpush.msra.mxu0 0.0
  %3516 = vmatpush.msra.mxu0 0.0
  %3517 = vmatpush.msra.mxu0 0.0
  %3518 = vmatpush.msra.mxu0 0.0
  %3519 = vmatpush.msra.mxu0 0.0
  %3520 = vmatpush.msra.mxu0 0.0
  %3521 = vmatpush.msra.mxu0 0.0
  %3522 = vmatpush.msra.mxu0 0.0
  %3523 = vmatpush.msra.mxu0 0.0
  %3524 = vmatpush.msra.mxu0 %v18
  %3525 = vmatmul.f32.gmra.mxu0 %v3498
  %v3526 = vpop.f32.mrf.mxu0
  %v3527 = vadd.f32 0.0, %v3526
  %3528 = vmatmul.f32.gmra.mxu0 %v3501
  %v3529 = vpop.f32.mrf.mxu0
  %v3530 = vadd.f32 0.0, %v3529
  %3531 = vmatmul.f32.gmra.mxu0 %v3504
  %v3532 = vpop.f32.mrf.mxu0
  %v3533 = vadd.f32 0.0, %v3532
  %3534 = vmatmul.f32.gmra.mxu0 %v3507
  %v3535 = vpop.f32.mrf.mxu0
  %v3536 = vadd.f32 0.0, %v3535
  %3537 = vdwg.mxu0
  %v3538 = vadd.f32 %v3493, %v3527
  %v3539 = vadd.f32 %v3494, %v3530
  %v3540 = vadd.f32 %v3495, %v3533
  %v3541 = vadd.f32 %v3496, %v3536
  %v3543 = vsel %vm677, %v3397, 0
  %v3546 = vsel %vm677, %v3400, 0
  %v3549 = vsel %vm677, %v3403, 0
  %v3552 = vsel %vm677, %v3406, 0
  %3554 = vmatpush.msra.mxu0 0.0
  %3555 = vmatpush.msra.mxu0 0.0
  %3556 = vmatpush.msra.mxu0 0.0
  %3557 = vmatpush.msra.mxu0 0.0
  %3558 = vmatpush.msra.mxu0 0.0
  %3559 = vmatpush.msra.mxu0 0.0
  %3560 = vmatpush.msra.mxu0 0.0
  %3561 = vmatpush.msra.mxu0 0.0
  %3562 = vmatpush.msra.mxu0 0.0
  %3563 = vmatpush.msra.mxu0 0.0
  %3564 = vmatpush.msra.mxu0 0.0
  %3565 = vmatpush.msra.mxu0 0.0
  %3566 = vmatpush.msra.mxu0 0.0
  %3567 = vmatpush.msra.mxu0 0.0
  %3568 = vmatpush.msra.mxu0 0.0
  %3569 = vmatpush.msra.mxu0 %v19
  %3570 = vmatmul.f32.gmra.mxu0 %v3543
  %v3571 = vpop.f32.mrf.mxu0
  %v3572 = vadd.f32 0.0, %v3571
  %3573 = vmatmul.f32.gmra.mxu0 %v3546
  %v3574 = vpop.f32.mrf.mxu0
  %v3575 = vadd.f32 0.0, %v3574
  %3576 = vmatmul.f32.gmra.mxu0 %v3549
  %v3577 = vpop.f32.mrf.mxu0
  %v3578 = vadd.f32 0.0, %v3577
  %3579 = vmatmul.f32.gmra.mxu0 %v3552
  %v3580 = vpop.f32.mrf.mxu0
  %v3581 = vadd.f32 0.0, %v3580
  %3582 = vdwg.mxu0
  %v3583 = vadd.f32 %v3538, %v3572
  %v3584 = vadd.f32 %v3539, %v3575
  %v3585 = vadd.f32 %v3540, %v3578
  %v3586 = vadd.f32 %v3541, %v3581
  %v3588 = vsel %vm677, %v3409, 0
  %v3591 = vsel %vm677, %v3412, 0
  %v3594 = vsel %vm677, %v3415, 0
  %v3597 = vsel %vm677, %v3418, 0
  %3599 = vmatpush.msra.mxu0 0.0
  %3600 = vmatpush.msra.mxu0 0.0
  %3601 = vmatpush.msra.mxu0 0.0
  %3602 = vmatpush.msra.mxu0 0.0
  %3603 = vmatpush.msra.mxu0 0.0
  %3604 = vmatpush.msra.mxu0 0.0
  %3605 = vmatpush.msra.mxu0 0.0
  %3606 = vmatpush.msra.mxu0 0.0
  %3607 = vmatpush.msra.mxu0 0.0
  %3608 = vmatpush.msra.mxu0 0.0
  %3609 = vmatpush.msra.mxu0 0.0
  %3610 = vmatpush.msra.mxu0 0.0
  %3611 = vmatpush.msra.mxu0 0.0
  %3612 = vmatpush.msra.mxu0 0.0
  %3613 = vmatpush.msra.mxu0 0.0
  %3614 = vmatpush.msra.mxu0 %v20
  %3615 = vmatmul.f32.gmra.mxu0 %v3588
  %v3616 = vpop.f32.mrf.mxu0
  %v3617 = vadd.f32 0.0, %v3616
  %3618 = vmatmul.f32.gmra.mxu0 %v3591
  %v3619 = vpop.f32.mrf.mxu0
  %v3620 = vadd.f32 0.0, %v3619
  %3621 = vmatmul.f32.gmra.mxu0 %v3594
  %v3622 = vpop.f32.mrf.mxu0
  %v3623 = vadd.f32 0.0, %v3622
  %3624 = vmatmul.f32.gmra.mxu0 %v3597
  %v3625 = vpop.f32.mrf.mxu0
  %v3626 = vadd.f32 0.0, %v3625
  %3627 = vdwg.mxu0
  %v3628 = vadd.f32 %v3583, %v3617
  %v3629 = vadd.f32 %v3584, %v3620
  %v3630 = vadd.f32 %v3585, %v3623
  %v3631 = vadd.f32 %v3586, %v3626
  %v3633 = vsel %vm677, %v3421, 0
  %v3636 = vsel %vm677, %v3424, 0
  %v3639 = vsel %vm677, %v3427, 0
  %v3642 = vsel %vm677, %v3430, 0
  %3644 = vmatpush.msra.mxu0 0.0
  %3645 = vmatpush.msra.mxu0 0.0
  %3646 = vmatpush.msra.mxu0 0.0
  %3647 = vmatpush.msra.mxu0 0.0
  %3648 = vmatpush.msra.mxu0 0.0
  %3649 = vmatpush.msra.mxu0 0.0
  %3650 = vmatpush.msra.mxu0 0.0
  %3651 = vmatpush.msra.mxu0 0.0
  %3652 = vmatpush.msra.mxu0 0.0
  %3653 = vmatpush.msra.mxu0 0.0
  %3654 = vmatpush.msra.mxu0 0.0
  %3655 = vmatpush.msra.mxu0 0.0
  %3656 = vmatpush.msra.mxu0 0.0
  %3657 = vmatpush.msra.mxu0 0.0
  %3658 = vmatpush.msra.mxu0 0.0
  %3659 = vmatpush.msra.mxu0 %v21
  %3660 = vmatmul.f32.gmra.mxu0 %v3633
  %v3661 = vpop.f32.mrf.mxu0
  %v3662 = vadd.f32 0.0, %v3661
  %3663 = vmatmul.f32.gmra.mxu0 %v3636
  %v3664 = vpop.f32.mrf.mxu0
  %v3665 = vadd.f32 0.0, %v3664
  %3666 = vmatmul.f32.gmra.mxu0 %v3639
  %v3667 = vpop.f32.mrf.mxu0
  %v3668 = vadd.f32 0.0, %v3667
  %3669 = vmatmul.f32.gmra.mxu0 %v3642
  %v3670 = vpop.f32.mrf.mxu0
  %v3671 = vadd.f32 0.0, %v3670
  %3672 = vdwg.mxu0
  %v3673 = vadd.f32 %v3628, %v3662
  %v3674 = vadd.f32 %v3629, %v3665
  %v3675 = vadd.f32 %v3630, %v3668
  %v3676 = vadd.f32 %v3631, %v3671
  %v3677 = vmax.f32 %v3673, 0.0
  %v3678 = vmax.f32 %v3674, 0.0
  %v3679 = vmax.f32 %v3675, 0.0
  %v3680 = vmax.f32 %v3676, 0.0
  %vm3681 = vcmp.ne.f32.partialorder %v3673, %v3673
  %vm3682 = vcmp.ne.f32.partialorder %v3674, %v3674
  %vm3683 = vcmp.ne.f32.partialorder %v3675, %v3675
  %vm3684 = vcmp.ne.f32.partialorder %v3676, %v3676
  %v3685 = vadd.f32 %v3673, 0.0
  %v3686 = vadd.f32 %v3674, 0.0
  %v3687 = vadd.f32 %v3675, 0.0
  %v3688 = vadd.f32 %v3676, 0.0
  %v3689 = vand.u32 2147483647, %v3673
  %v3690 = vand.u32 2147483647, %v3674
  %v3691 = vand.u32 2147483647, %v3675
  %v3692 = vand.u32 2147483647, %v3676
  %v3693 = vsub.f32 0.0, %v3689
  %v3694 = vsub.f32 0.0, %v3690
  %v3695 = vsub.f32 0.0, %v3691
  %v3696 = vsub.f32 0.0, %v3692
  %v3697 = vmul.f32 %v3693, 1.442695
  %v3698 = vpow.pop %v3697
  %v3699 = vmul.f32 %v3694, 1.442695
  %v3700 = vpow.pop %v3699
  %v3701 = vmul.f32 %v3695, 1.442695
  %v3702 = vpow.pop %v3701
  %v3703 = vmul.f32 %v3696, 1.442695
  %v3704 = vpow.pop %v3703
  %v3705 = vadd.f32 %v3698, 1.0
  %v3706 = vlog2.pop %v3705
  %v3707 = vmul.f32 %v3706, 0.6931472
  %v3708 = vmul.f32 -0.5, %v3698
  %v3709 = vadd.f32 %v3708, 1.0
  %v3710 = vmul.f32 %v3709, %v3698
  %v3711 = vand.u32 2147483647, %v3698
  %vm3712 = vcmp.lt.f32.partialorder %v3711, 0.0004427343
  %v3713 = vsel %vm3712, %v3710, %v3707
  %v3714 = vadd.f32 %v3700, 1.0
  %v3715 = vlog2.pop %v3714
  %v3716 = vmul.f32 %v3715, 0.6931472
  %v3717 = vmul.f32 -0.5, %v3700
  %v3718 = vadd.f32 %v3717, 1.0
  %v3719 = vmul.f32 %v3718, %v3700
  %v3720 = vand.u32 2147483647, %v3700
  %vm3721 = vcmp.lt.f32.partialorder %v3720, 0.0004427343
  %v3722 = vsel %vm3721, %v3719, %v3716
  %v3723 = vadd.f32 %v3702, 1.0
  %v3724 = vlog2.pop %v3723
  %v3725 = vmul.f32 %v3724, 0.6931472
  %v3726 = vmul.f32 -0.5, %v3702
  %v3727 = vadd.f32 %v3726, 1.0
  %v3728 = vmul.f32 %v3727, %v3702
  %v3729 = vand.u32 2147483647, %v3702
  %vm3730 = vcmp.lt.f32.partialorder %v3729, 0.0004427343
  %v3731 = vsel %vm3730, %v3728, %v3725
  %v3732 = vadd.f32 %v3704, 1.0
  %v3733 = vlog2.pop %v3732
  %v3734 = vmul.f32 %v3733, 0.6931472
  %v3735 = vmul.f32 -0.5, %v3704
  %v3736 = vadd.f32 %v3735, 1.0
  %v3737 = vmul.f32 %v3736, %v3704
  %v3738 = vand.u32 2147483647, %v3704
  %vm3739 = vcmp.lt.f32.partialorder %v3738, 0.0004427343
  %v3740 = vsel %vm3739, %v3737, %v3734
  %v3741 = vadd.f32 %v3677, %v3713
  %v3742 = vadd.f32 %v3678, %v3722
  %v3743 = vadd.f32 %v3679, %v3731
  %v3744 = vadd.f32 %v3680, %v3740
  %v3745 = vsel %vm3681, %v3685, %v3741
  %v3746 = vsel %vm3682, %v3686, %v3742
  %v3747 = vsel %vm3683, %v3687, %v3743
  %v3748 = vsel %vm3684, %v3688, %v3744
  %v3749 = vtanh.pop %v3745
  %v3750 = vtanh.pop %v3746
  %v3751 = vtanh.pop %v3747
  %v3752 = vtanh.pop %v3748
  %v3753 = vmul.f32 %v3673, %v3749
  %v3754 = vmul.f32 %v3674, %v3750
  %v3755 = vmul.f32 %v3675, %v3751
  %v3756 = vmul.f32 %v3676, %v3752
  %v3757 = vld [vmem:[%s3 + $0x5c0] sm:$0xff]
  %v3758 = vld [vmem:[%s3 + $0x5c8] sm:$0xff]
  %v3759 = vld [vmem:[%s3 + $0x5d0] sm:$0xff]
  %v3760 = vld [vmem:[%s3 + $0x5d8] sm:$0xff]
  %v3761 = vld [vmem:[%s3 + $0x5e0] sm:$0xff]
  %v3762 = vld [vmem:[%s3 + $0x5e8] sm:$0xff]
  %v3763 = vld [vmem:[%s3 + $0x5f0] sm:$0xff]
  %v3764 = vld [vmem:[%s3 + $0x5f8] sm:$0xff]
  %v3766 = vsel %vm104, %v3757, 0
  %v3769 = vsel %vm104, %v3758, 0
  %v3772 = vsel %vm104, %v3759, 0
  %v3775 = vsel %vm104, %v3760, 0
  %3777 = vmatpush.msra.mxu0 0.0
  %3778 = vmatpush.msra.mxu0 0.0
  %3779 = vmatpush.msra.mxu0 0.0
  %3780 = vmatpush.msra.mxu0 0.0
  %3781 = vmatpush.msra.mxu0 0.0
  %3782 = vmatpush.msra.mxu0 0.0
  %3783 = vmatpush.msra.mxu0 0.0
  %3784 = vmatpush.msra.mxu0 0.0
  %3785 = vmatpush.msra.mxu0 0.0
  %3786 = vmatpush.msra.mxu0 0.0
  %3787 = vmatpush.msra.mxu0 0.0
  %3788 = vmatpush.msra.mxu0 0.0
  %3789 = vmatpush.msra.mxu0 0.0
  %3790 = vmatpush.msra.mxu0 0.0
  %3791 = vmatpush.msra.mxu0 %v2319
  %3792 = vmatpush.msra.mxu0 %v2318
  %3793 = vmatmul.f32.gmra.mxu0 %v3766
  %v3794 = vpop.f32.mrf.mxu0
  %v3795 = vadd.f32 0.0, %v3794
  %3796 = vmatmul.f32.gmra.mxu0 %v3769
  %v3797 = vpop.f32.mrf.mxu0
  %v3798 = vadd.f32 0.0, %v3797
  %3799 = vmatmul.f32.gmra.mxu0 %v3772
  %v3800 = vpop.f32.mrf.mxu0
  %v3801 = vadd.f32 0.0, %v3800
  %3802 = vmatmul.f32.gmra.mxu0 %v3775
  %v3803 = vpop.f32.mrf.mxu0
  %v3804 = vadd.f32 0.0, %v3803
  %3805 = vdwg.mxu0
  %3807 = vset.pattern.permute.xlu0 0
  %3808 = vperm.xlu0 %3807, %v3761
  %v3809 = vpop.permute.xlu0 %3808
  %3812 = vset.pattern.permute.xlu0 0
  %3813 = vperm.xlu0 %3812, %v3762
  %v3814 = vpop.permute.xlu0 %3813
  %3817 = vset.pattern.permute.xlu0 0
  %3818 = vperm.xlu0 %3817, %v3763
  %v3819 = vpop.permute.xlu0 %3818
  %3822 = vset.pattern.permute.xlu0 0
  %3823 = vperm.xlu0 %3822, %v3764
  %v3824 = vpop.permute.xlu0 %3823
  %v3826 = vadd.f32 %v3809, %v3795
  %v3827 = vadd.f32 %v3814, %v3798
  %v3828 = vadd.f32 %v3819, %v3801
  %v3829 = vadd.f32 %v3824, %v3804
  %v3830 = vadd.f32 %v3753, %v3826
  %v3831 = vadd.f32 %v3754, %v3827
  %v3832 = vadd.f32 %v3755, %v3828
  %v3833 = vadd.f32 %v3756, %v3829
  %v3834 = vld [vmem:[%s3 + $0x600] sm:$0xff]
  %v3835 = vld [vmem:[%s3 + $0x608] sm:$0xff]
  %v3836 = vld [vmem:[%s3 + $0x610] sm:$0xff]
  %v3837 = vld [vmem:[%s3 + $0x618] sm:$0xff]
  %v3838 = vld [vmem:[%s3 + $0x620] sm:$0xff]
  %v3839 = vld [vmem:[%s3 + $0x628] sm:$0xff]
  %v3840 = vld [vmem:[%s3 + $0x630] sm:$0xff]
  %v3841 = vld [vmem:[%s3 + $0x638] sm:$0xff]
  %v3842 = vld [vmem:[%s3 + $0x640] sm:$0xff]
  %v3843 = vld [vmem:[%s3 + $0x648] sm:$0xff]
  %v3844 = vld [vmem:[%s3 + $0x650] sm:$0xff]
  %v3845 = vld [vmem:[%s3 + $0x658] sm:$0xff]
  %v3846 = vld [vmem:[%s3 + $0x660] sm:$0xff]
  %v3847 = vld [vmem:[%s3 + $0x668] sm:$0xff]
  %v3848 = vld [vmem:[%s3 + $0x670] sm:$0xff]
  %v3849 = vld [vmem:[%s3 + $0x678] sm:$0xff]
  %v3850 = vld [vmem:[%s3 + $0x680] sm:$0xff]
  %v3851 = vld [vmem:[%s3 + $0x688] sm:$0xff]
  %v3852 = vld [vmem:[%s3 + $0x690] sm:$0xff]
  %v3853 = vld [vmem:[%s3 + $0x698] sm:$0xff]
  %v3854 = vld [vmem:[%s3 + $0x6a0] sm:$0xff]
  %v3855 = vld [vmem:[%s3 + $0x6a8] sm:$0xff]
  %v3856 = vld [vmem:[%s3 + $0x6b0] sm:$0xff]
  %v3857 = vld [vmem:[%s3 + $0x6b8] sm:$0xff]
  %v3859 = vsel %vm3032, %v3834, 0
  %v3862 = vsel %vm3032, %v3835, 0
  %v3865 = vsel %vm3032, %v3836, 0
  %v3868 = vsel %vm3032, %v3837, 0
  %v3871 = vsel %vm3032, %v3838, 0
  %v3874 = vsel %vm3032, %v3839, 0
  %v3877 = vsel %vm3032, %v3840, 0
  %v3880 = vsel %vm3032, %v3841, 0
  %v3883 = vsel %vm3032, %v3842, 0
  %v3886 = vsel %vm3032, %v3843, 0
  %v3889 = vsel %vm3032, %v3844, 0
  %v3892 = vsel %vm3032, %v3845, 0
  %v3895 = vsel %vm3032, %v3846, 0
  %v3898 = vsel %vm3032, %v3847, 0
  %v3901 = vsel %vm3032, %v3848, 0
  %v3904 = vsel %vm3032, %v3849, 0
  %v3907 = vsel %vm3032, %v3850, 0
  %v3910 = vsel %vm3032, %v3851, 0
  %v3913 = vsel %vm3032, %v3852, 0
  %v3916 = vsel %vm3032, %v3853, 0
  %3918 = vmatpush.msra.mxu0 0.0
  %3919 = vmatpush.msra.mxu0 0.0
  %3920 = vmatpush.msra.mxu0 0.0
  %3921 = vmatpush.msra.mxu0 0.0
  %3922 = vmatpush.msra.mxu0 0.0
  %3923 = vmatpush.msra.mxu0 0.0
  %3924 = vmatpush.msra.mxu0 0.0
  %3925 = vmatpush.msra.mxu0 0.0
  %3926 = vmatpush.msra.mxu0 0.0
  %3927 = vmatpush.msra.mxu0 0.0
  %3928 = vmatpush.msra.mxu0 0.0
  %3929 = vmatpush.msra.mxu0 0.0
  %3930 = vmatpush.msra.mxu0 %v3833
  %3931 = vmatpush.msra.mxu0 %v3832
  %3932 = vmatpush.msra.mxu0 %v3831
  %3933 = vmatpush.msra.mxu0 %v3830
  %3934 = vmatmul.f32.gmra.mxu0 %v3859
  %v3935 = vpop.f32.mrf.mxu0
  %v3936 = vadd.f32 0.0, %v3935
  %3937 = vmatmul.f32.gmra.mxu0 %v3862
  %v3938 = vpop.f32.mrf.mxu0
  %v3939 = vadd.f32 0.0, %v3938
  %3940 = vmatmul.f32.gmra.mxu0 %v3865
  %v3941 = vpop.f32.mrf.mxu0
  %v3942 = vadd.f32 0.0, %v3941
  %3943 = vmatmul.f32.gmra.mxu0 %v3868
  %v3944 = vpop.f32.mrf.mxu0
  %v3945 = vadd.f32 0.0, %v3944
  %3946 = vmatmul.f32.gmra.mxu0 %v3871
  %v3947 = vpop.f32.mrf.mxu0
  %v3948 = vadd.f32 0.0, %v3947
  %3949 = vmatmul.f32.gmra.mxu0 %v3874
  %v3950 = vpop.f32.mrf.mxu0
  %v3951 = vadd.f32 0.0, %v3950
  %3952 = vmatmul.f32.gmra.mxu0 %v3877
  %v3953 = vpop.f32.mrf.mxu0
  %v3954 = vadd.f32 0.0, %v3953
  %3955 = vmatmul.f32.gmra.mxu0 %v3880
  %v3956 = vpop.f32.mrf.mxu0
  %v3957 = vadd.f32 0.0, %v3956
  %3958 = vmatmul.f32.gmra.mxu0 %v3883
  %v3959 = vpop.f32.mrf.mxu0
  %v3960 = vadd.f32 0.0, %v3959
  %3961 = vmatmul.f32.gmra.mxu0 %v3886
  %v3962 = vpop.f32.mrf.mxu0
  %v3963 = vadd.f32 0.0, %v3962
  %3964 = vmatmul.f32.gmra.mxu0 %v3889
  %v3965 = vpop.f32.mrf.mxu0
  %v3966 = vadd.f32 0.0, %v3965
  %3967 = vmatmul.f32.gmra.mxu0 %v3892
  %v3968 = vpop.f32.mrf.mxu0
  %v3969 = vadd.f32 0.0, %v3968
  %3970 = vmatmul.f32.gmra.mxu0 %v3895
  %v3971 = vpop.f32.mrf.mxu0
  %v3972 = vadd.f32 0.0, %v3971
  %3973 = vmatmul.f32.gmra.mxu0 %v3898
  %v3974 = vpop.f32.mrf.mxu0
  %v3975 = vadd.f32 0.0, %v3974
  %3976 = vmatmul.f32.gmra.mxu0 %v3901
  %v3977 = vpop.f32.mrf.mxu0
  %v3978 = vadd.f32 0.0, %v3977
  %3979 = vmatmul.f32.gmra.mxu0 %v3904
  %v3980 = vpop.f32.mrf.mxu0
  %v3981 = vadd.f32 0.0, %v3980
  %3982 = vmatmul.f32.gmra.mxu0 %v3907
  %v3983 = vpop.f32.mrf.mxu0
  %v3984 = vadd.f32 0.0, %v3983
  %3985 = vmatmul.f32.gmra.mxu0 %v3910
  %v3986 = vpop.f32.mrf.mxu0
  %v3987 = vadd.f32 0.0, %v3986
  %3988 = vmatmul.f32.gmra.mxu0 %v3913
  %v3989 = vpop.f32.mrf.mxu0
  %v3990 = vadd.f32 0.0, %v3989
  %3991 = vmatmul.f32.gmra.mxu0 %v3916
  %v3992 = vpop.f32.mrf.mxu0
  %v3993 = vadd.f32 0.0, %v3992
  %3994 = vdwg.mxu0
  %v3996 = vsel %vm677, %v3936, 0
  %v3999 = vsel %vm677, %v3939, 0
  %v4002 = vsel %vm677, %v3942, 0
  %v4005 = vsel %vm677, %v3945, 0
  %4007 = vmatpush.msra.mxu0 0.0
  %4008 = vmatpush.msra.mxu0 0.0
  %4009 = vmatpush.msra.mxu0 0.0
  %4010 = vmatpush.msra.mxu0 0.0
  %4011 = vmatpush.msra.mxu0 0.0
  %4012 = vmatpush.msra.mxu0 0.0
  %4013 = vmatpush.msra.mxu0 0.0
  %4014 = vmatpush.msra.mxu0 0.0
  %4015 = vmatpush.msra.mxu0 0.0
  %4016 = vmatpush.msra.mxu0 0.0
  %4017 = vmatpush.msra.mxu0 0.0
  %4018 = vmatpush.msra.mxu0 0.0
  %4019 = vmatpush.msra.mxu0 0.0
  %4020 = vmatpush.msra.mxu0 0.0
  %4021 = vmatpush.msra.mxu0 0.0
  %4022 = vmatpush.msra.mxu0 %v17
  %4023 = vmatmul.f32.gmra.mxu0 %v3996
  %v4024 = vpop.f32.mrf.mxu0
  %v4025 = vadd.f32 0.0, %v4024
  %4026 = vmatmul.f32.gmra.mxu0 %v3999
  %v4027 = vpop.f32.mrf.mxu0
  %v4028 = vadd.f32 0.0, %v4027
  %4029 = vmatmul.f32.gmra.mxu0 %v4002
  %v4030 = vpop.f32.mrf.mxu0
  %v4031 = vadd.f32 0.0, %v4030
  %4032 = vmatmul.f32.gmra.mxu0 %v4005
  %v4033 = vpop.f32.mrf.mxu0
  %v4034 = vadd.f32 0.0, %v4033
  %4035 = vdwg.mxu0
  %4037 = vset.pattern.permute.xlu0 0
  %4038 = vperm.xlu0 %4037, %v3854
  %v4039 = vpop.permute.xlu0 %4038
  %4042 = vset.pattern.permute.xlu0 0
  %4043 = vperm.xlu0 %4042, %v3855
  %v4044 = vpop.permute.xlu0 %4043
  %4047 = vset.pattern.permute.xlu0 0
  %4048 = vperm.xlu0 %4047, %v3856
  %v4049 = vpop.permute.xlu0 %4048
  %4052 = vset.pattern.permute.xlu0 0
  %4053 = vperm.xlu0 %4052, %v3857
  %v4054 = vpop.permute.xlu0 %4053
  %v4056 = vadd.f32 %v4039, %v4025
  %v4057 = vadd.f32 %v4044, %v4028
  %v4058 = vadd.f32 %v4049, %v4031
  %v4059 = vadd.f32 %v4054, %v4034
  %v4061 = vsel %vm677, %v3948, 0
  %v4064 = vsel %vm677, %v3951, 0
  %v4067 = vsel %vm677, %v3954, 0
  %v4070 = vsel %vm677, %v3957, 0
  %4072 = vmatpush.msra.mxu0 0.0
  %4073 = vmatpush.msra.mxu0 0.0
  %4074 = vmatpush.msra.mxu0 0.0
  %4075 = vmatpush.msra.mxu0 0.0
  %4076 = vmatpush.msra.mxu0 0.0
  %4077 = vmatpush.msra.mxu0 0.0
  %4078 = vmatpush.msra.mxu0 0.0
  %4079 = vmatpush.msra.mxu0 0.0
  %4080 = vmatpush.msra.mxu0 0.0
  %4081 = vmatpush.msra.mxu0 0.0
  %4082 = vmatpush.msra.mxu0 0.0
  %4083 = vmatpush.msra.mxu0 0.0
  %4084 = vmatpush.msra.mxu0 0.0
  %4085 = vmatpush.msra.mxu0 0.0
  %4086 = vmatpush.msra.mxu0 0.0
  %4087 = vmatpush.msra.mxu0 %v18
  %4088 = vmatmul.f32.gmra.mxu0 %v4061
  %v4089 = vpop.f32.mrf.mxu0
  %v4090 = vadd.f32 0.0, %v4089
  %4091 = vmatmul.f32.gmra.mxu0 %v4064
  %v4092 = vpop.f32.mrf.mxu0
  %v4093 = vadd.f32 0.0, %v4092
  %4094 = vmatmul.f32.gmra.mxu0 %v4067
  %v4095 = vpop.f32.mrf.mxu0
  %v4096 = vadd.f32 0.0, %v4095
  %4097 = vmatmul.f32.gmra.mxu0 %v4070
  %v4098 = vpop.f32.mrf.mxu0
  %v4099 = vadd.f32 0.0, %v4098
  %4100 = vdwg.mxu0
  %v4101 = vadd.f32 %v4056, %v4090
  %v4102 = vadd.f32 %v4057, %v4093
  %v4103 = vadd.f32 %v4058, %v4096
  %v4104 = vadd.f32 %v4059, %v4099
  %v4106 = vsel %vm677, %v3960, 0
  %v4109 = vsel %vm677, %v3963, 0
  %v4112 = vsel %vm677, %v3966, 0
  %v4115 = vsel %vm677, %v3969, 0
  %4117 = vmatpush.msra.mxu0 0.0
  %4118 = vmatpush.msra.mxu0 0.0
  %4119 = vmatpush.msra.mxu0 0.0
  %4120 = vmatpush.msra.mxu0 0.0
  %4121 = vmatpush.msra.mxu0 0.0
  %4122 = vmatpush.msra.mxu0 0.0
  %4123 = vmatpush.msra.mxu0 0.0
  %4124 = vmatpush.msra.mxu0 0.0
  %4125 = vmatpush.msra.mxu0 0.0
  %4126 = vmatpush.msra.mxu0 0.0
  %4127 = vmatpush.msra.mxu0 0.0
  %4128 = vmatpush.msra.mxu0 0.0
  %4129 = vmatpush.msra.mxu0 0.0
  %4130 = vmatpush.msra.mxu0 0.0
  %4131 = vmatpush.msra.mxu0 0.0
  %4132 = vmatpush.msra.mxu0 %v19
  %4133 = vmatmul.f32.gmra.mxu0 %v4106
  %v4134 = vpop.f32.mrf.mxu0
  %v4135 = vadd.f32 0.0, %v4134
  %4136 = vmatmul.f32.gmra.mxu0 %v4109
  %v4137 = vpop.f32.mrf.mxu0
  %v4138 = vadd.f32 0.0, %v4137
  %4139 = vmatmul.f32.gmra.mxu0 %v4112
  %v4140 = vpop.f32.mrf.mxu0
  %v4141 = vadd.f32 0.0, %v4140
  %4142 = vmatmul.f32.gmra.mxu0 %v4115
  %v4143 = vpop.f32.mrf.mxu0
  %v4144 = vadd.f32 0.0, %v4143
  %4145 = vdwg.mxu0
  %v4146 = vadd.f32 %v4101, %v4135
  %v4147 = vadd.f32 %v4102, %v4138
  %v4148 = vadd.f32 %v4103, %v4141
  %v4149 = vadd.f32 %v4104, %v4144
  %v4151 = vsel %vm677, %v3972, 0
  %v4154 = vsel %vm677, %v3975, 0
  %v4157 = vsel %vm677, %v3978, 0
  %v4160 = vsel %vm677, %v3981, 0
  %4162 = vmatpush.msra.mxu0 0.0
  %4163 = vmatpush.msra.mxu0 0.0
  %4164 = vmatpush.msra.mxu0 0.0
  %4165 = vmatpush.msra.mxu0 0.0
  %4166 = vmatpush.msra.mxu0 0.0
  %4167 = vmatpush.msra.mxu0 0.0
  %4168 = vmatpush.msra.mxu0 0.0
  %4169 = vmatpush.msra.mxu0 0.0
  %4170 = vmatpush.msra.mxu0 0.0
  %4171 = vmatpush.msra.mxu0 0.0
  %4172 = vmatpush.msra.mxu0 0.0
  %4173 = vmatpush.msra.mxu0 0.0
  %4174 = vmatpush.msra.mxu0 0.0
  %4175 = vmatpush.msra.mxu0 0.0
  %4176 = vmatpush.msra.mxu0 0.0
  %4177 = vmatpush.msra.mxu0 %v20
  %4178 = vmatmul.f32.gmra.mxu0 %v4151
  %v4179 = vpop.f32.mrf.mxu0
  %v4180 = vadd.f32 0.0, %v4179
  %4181 = vmatmul.f32.gmra.mxu0 %v4154
  %v4182 = vpop.f32.mrf.mxu0
  %v4183 = vadd.f32 0.0, %v4182
  %4184 = vmatmul.f32.gmra.mxu0 %v4157
  %v4185 = vpop.f32.mrf.mxu0
  %v4186 = vadd.f32 0.0, %v4185
  %4187 = vmatmul.f32.gmra.mxu0 %v4160
  %v4188 = vpop.f32.mrf.mxu0
  %v4189 = vadd.f32 0.0, %v4188
  %4190 = vdwg.mxu0
  %v4191 = vadd.f32 %v4146, %v4180
  %v4192 = vadd.f32 %v4147, %v4183
  %v4193 = vadd.f32 %v4148, %v4186
  %v4194 = vadd.f32 %v4149, %v4189
  %v4196 = vsel %vm677, %v3984, 0
  %v4199 = vsel %vm677, %v3987, 0
  %v4202 = vsel %vm677, %v3990, 0
  %v4205 = vsel %vm677, %v3993, 0
  %4207 = vmatpush.msra.mxu0 0.0
  %4208 = vmatpush.msra.mxu0 0.0
  %4209 = vmatpush.msra.mxu0 0.0
  %4210 = vmatpush.msra.mxu0 0.0
  %4211 = vmatpush.msra.mxu0 0.0
  %4212 = vmatpush.msra.mxu0 0.0
  %4213 = vmatpush.msra.mxu0 0.0
  %4214 = vmatpush.msra.mxu0 0.0
  %4215 = vmatpush.msra.mxu0 0.0
  %4216 = vmatpush.msra.mxu0 0.0
  %4217 = vmatpush.msra.mxu0 0.0
  %4218 = vmatpush.msra.mxu0 0.0
  %4219 = vmatpush.msra.mxu0 0.0
  %4220 = vmatpush.msra.mxu0 0.0
  %4221 = vmatpush.msra.mxu0 0.0
  %4222 = vmatpush.msra.mxu0 %v21
  %4223 = vmatmul.f32.gmra.mxu0 %v4196
  %v4224 = vpop.f32.mrf.mxu0
  %v4225 = vadd.f32 0.0, %v4224
  %4226 = vmatmul.f32.gmra.mxu0 %v4199
  %v4227 = vpop.f32.mrf.mxu0
  %v4228 = vadd.f32 0.0, %v4227
  %4229 = vmatmul.f32.gmra.mxu0 %v4202
  %v4230 = vpop.f32.mrf.mxu0
  %v4231 = vadd.f32 0.0, %v4230
  %4232 = vmatmul.f32.gmra.mxu0 %v4205
  %v4233 = vpop.f32.mrf.mxu0
  %v4234 = vadd.f32 0.0, %v4233
  %4235 = vdwg.mxu0
  %v4236 = vadd.f32 %v4191, %v4225
  %v4237 = vadd.f32 %v4192, %v4228
  %v4238 = vadd.f32 %v4193, %v4231
  %v4239 = vadd.f32 %v4194, %v4234
  %v4240 = vmax.f32 %v4236, 0.0
  %v4241 = vmax.f32 %v4237, 0.0
  %v4242 = vmax.f32 %v4238, 0.0
  %v4243 = vmax.f32 %v4239, 0.0
  %vm4244 = vcmp.ne.f32.partialorder %v4236, %v4236
  %vm4245 = vcmp.ne.f32.partialorder %v4237, %v4237
  %vm4246 = vcmp.ne.f32.partialorder %v4238, %v4238
  %vm4247 = vcmp.ne.f32.partialorder %v4239, %v4239
  %v4248 = vadd.f32 %v4236, 0.0
  %v4249 = vadd.f32 %v4237, 0.0
  %v4250 = vadd.f32 %v4238, 0.0
  %v4251 = vadd.f32 %v4239, 0.0
  %v4252 = vand.u32 2147483647, %v4236
  %v4253 = vand.u32 2147483647, %v4237
  %v4254 = vand.u32 2147483647, %v4238
  %v4255 = vand.u32 2147483647, %v4239
  %v4256 = vsub.f32 0.0, %v4252
  %v4257 = vsub.f32 0.0, %v4253
  %v4258 = vsub.f32 0.0, %v4254
  %v4259 = vsub.f32 0.0, %v4255
  %v4260 = vmul.f32 %v4256, 1.442695
  %v4261 = vpow.pop %v4260
  %v4262 = vmul.f32 %v4257, 1.442695
  %v4263 = vpow.pop %v4262
  %v4264 = vmul.f32 %v4258, 1.442695
  %v4265 = vpow.pop %v4264
  %v4266 = vmul.f32 %v4259, 1.442695
  %v4267 = vpow.pop %v4266
  %v4268 = vadd.f32 %v4261, 1.0
  %v4269 = vlog2.pop %v4268
  %v4270 = vmul.f32 %v4269, 0.6931472
  %v4271 = vmul.f32 -0.5, %v4261
  %v4272 = vadd.f32 %v4271, 1.0
  %v4273 = vmul.f32 %v4272, %v4261
  %v4274 = vand.u32 2147483647, %v4261
  %vm4275 = vcmp.lt.f32.partialorder %v4274, 0.0004427343
  %v4276 = vsel %vm4275, %v4273, %v4270
  %v4277 = vadd.f32 %v4263, 1.0
  %v4278 = vlog2.pop %v4277
  %v4279 = vmul.f32 %v4278, 0.6931472
  %v4280 = vmul.f32 -0.5, %v4263
  %v4281 = vadd.f32 %v4280, 1.0
  %v4282 = vmul.f32 %v4281, %v4263
  %v4283 = vand.u32 2147483647, %v4263
  %vm4284 = vcmp.lt.f32.partialorder %v4283, 0.0004427343
  %v4285 = vsel %vm4284, %v4282, %v4279
  %v4286 = vadd.f32 %v4265, 1.0
  %v4287 = vlog2.pop %v4286
  %v4288 = vmul.f32 %v4287, 0.6931472
  %v4289 = vmul.f32 -0.5, %v4265
  %v4290 = vadd.f32 %v4289, 1.0
  %v4291 = vmul.f32 %v4290, %v4265
  %v4292 = vand.u32 2147483647, %v4265
  %vm4293 = vcmp.lt.f32.partialorder %v4292, 0.0004427343
  %v4294 = vsel %vm4293, %v4291, %v4288
  %v4295 = vadd.f32 %v4267, 1.0
  %v4296 = vlog2.pop %v4295
  %v4297 = vmul.f32 %v4296, 0.6931472
  %v4298 = vmul.f32 -0.5, %v4267
  %v4299 = vadd.f32 %v4298, 1.0
  %v4300 = vmul.f32 %v4299, %v4267
  %v4301 = vand.u32 2147483647, %v4267
  %vm4302 = vcmp.lt.f32.partialorder %v4301, 0.0004427343
  %v4303 = vsel %vm4302, %v4300, %v4297
  %v4304 = vadd.f32 %v4240, %v4276
  %v4305 = vadd.f32 %v4241, %v4285
  %v4306 = vadd.f32 %v4242, %v4294
  %v4307 = vadd.f32 %v4243, %v4303
  %v4308 = vsel %vm4244, %v4248, %v4304
  %v4309 = vsel %vm4245, %v4249, %v4305
  %v4310 = vsel %vm4246, %v4250, %v4306
  %v4311 = vsel %vm4247, %v4251, %v4307
  %v4312 = vtanh.pop %v4308
  %v4313 = vtanh.pop %v4309
  %v4314 = vtanh.pop %v4310
  %v4315 = vtanh.pop %v4311
  %v4316 = vmul.f32 %v4236, %v4312
  %v4317 = vmul.f32 %v4237, %v4313
  %v4318 = vmul.f32 %v4238, %v4314
  %v4319 = vmul.f32 %v4239, %v4315
  %v4320 = vld [vmem:[%s3 + $0x780] sm:$0xff]
  %v4321 = vld [vmem:[%s3 + $0x788] sm:$0xff]
  %v4322 = vld [vmem:[%s3 + $0x790] sm:$0xff]
  %v4323 = vld [vmem:[%s3 + $0x798] sm:$0xff]
  %v4324 = vld [vmem:[%s3 + $0x7a0] sm:$0xff]
  %v4325 = vld [vmem:[%s3 + $0x7a8] sm:$0xff]
  %v4326 = vld [vmem:[%s3 + $0x7b0] sm:$0xff]
  %v4327 = vld [vmem:[%s3 + $0x7b8] sm:$0xff]
  %v4329 = vsel %vm677, %v4324, 0
  %v4332 = vsel %vm677, %v4325, 0
  %v4335 = vsel %vm677, %v4326, 0
  %v4338 = vsel %vm677, %v4327, 0
  %4340 = vmatpush.msra.mxu0 0.0
  %4341 = vmatpush.msra.mxu0 0.0
  %4342 = vmatpush.msra.mxu0 0.0
  %4343 = vmatpush.msra.mxu0 0.0
  %4344 = vmatpush.msra.mxu0 0.0
  %4345 = vmatpush.msra.mxu0 0.0
  %4346 = vmatpush.msra.mxu0 0.0
  %4347 = vmatpush.msra.mxu0 0.0
  %4348 = vmatpush.msra.mxu0 0.0
  %4349 = vmatpush.msra.mxu0 0.0
  %4350 = vmatpush.msra.mxu0 0.0
  %4351 = vmatpush.msra.mxu0 0.0
  %4352 = vmatpush.msra.mxu0 0.0
  %4353 = vmatpush.msra.mxu0 0.0
  %4354 = vmatpush.msra.mxu0 0.0
  %4355 = vmatpush.msra.mxu0 %v46
  %4356 = vmatmul.f32.gmra.mxu0 %v4329
  %v4357 = vpop.f32.mrf.mxu0
  %v4358 = vadd.f32 0.0, %v4357
  %4359 = vmatmul.f32.gmra.mxu0 %v4332
  %v4360 = vpop.f32.mrf.mxu0
  %v4361 = vadd.f32 0.0, %v4360
  %4362 = vmatmul.f32.gmra.mxu0 %v4335
  %v4363 = vpop.f32.mrf.mxu0
  %v4364 = vadd.f32 0.0, %v4363
  %4365 = vmatmul.f32.gmra.mxu0 %v4338
  %v4366 = vpop.f32.mrf.mxu0
  %v4367 = vadd.f32 0.0, %v4366
  %4368 = vdwg.mxu0
  %v4370 = vsel %vm104, %v4320, 0
  %v4373 = vsel %vm104, %v4321, 0
  %v4376 = vsel %vm104, %v4322, 0
  %v4379 = vsel %vm104, %v4323, 0
  %4381 = vmatpush.msra.mxu0 0.0
  %4382 = vmatpush.msra.mxu0 0.0
  %4383 = vmatpush.msra.mxu0 0.0
  %4384 = vmatpush.msra.mxu0 0.0
  %4385 = vmatpush.msra.mxu0 0.0
  %4386 = vmatpush.msra.mxu0 0.0
  %4387 = vmatpush.msra.mxu0 0.0
  %4388 = vmatpush.msra.mxu0 0.0
  %4389 = vmatpush.msra.mxu0 0.0
  %4390 = vmatpush.msra.mxu0 0.0
  %4391 = vmatpush.msra.mxu0 0.0
  %4392 = vmatpush.msra.mxu0 0.0
  %4393 = vmatpush.msra.mxu0 0.0
  %4394 = vmatpush.msra.mxu0 0.0
  %4395 = vmatpush.msra.mxu0 %v372
  %4396 = vmatpush.msra.mxu0 %v369
  %4397 = vmatmul.f32.gmra.mxu0 %v4370
  %v4398 = vpop.f32.mrf.mxu0
  %v4399 = vadd.f32 %v4358, %v4398
  %4400 = vmatmul.f32.gmra.mxu0 %v4373
  %v4401 = vpop.f32.mrf.mxu0
  %v4402 = vadd.f32 %v4361, %v4401
  %4403 = vmatmul.f32.gmra.mxu0 %v4376
  %v4404 = vpop.f32.mrf.mxu0
  %v4405 = vadd.f32 %v4364, %v4404
  %4406 = vmatmul.f32.gmra.mxu0 %v4379
  %v4407 = vpop.f32.mrf.mxu0
  %v4408 = vadd.f32 %v4367, %v4407
  %4409 = vdwg.mxu0
  %v4410 = vld [vmem:[%s3 + $0x7c0] sm:$0xff]
  %v4411 = vld [vmem:[%s3 + $0x7c8] sm:$0xff]
  %v4412 = vld [vmem:[%s3 + $0x7d0] sm:$0xff]
  %v4413 = vld [vmem:[%s3 + $0x7d8] sm:$0xff]
  %4415 = vset.pattern.permute.xlu0 0
  %4416 = vperm.xlu0 %4415, %v4410
  %v4417 = vpop.permute.xlu0 %4416
  %4420 = vset.pattern.permute.xlu0 0
  %4421 = vperm.xlu0 %4420, %v4411
  %v4422 = vpop.permute.xlu0 %4421
  %4425 = vset.pattern.permute.xlu0 0
  %4426 = vperm.xlu0 %4425, %v4412
  %v4427 = vpop.permute.xlu0 %4426
  %4430 = vset.pattern.permute.xlu0 0
  %4431 = vperm.xlu0 %4430, %v4413
  %v4432 = vpop.permute.xlu0 %4431
  %v4434 = vadd.f32 %v4399, %v4417
  %v4435 = vadd.f32 %v4402, %v4422
  %v4436 = vadd.f32 %v4405, %v4427
  %v4437 = vadd.f32 %v4408, %v4432
  %v4438 = vmax.f32 %v4434, 0.0
  %v4439 = vmax.f32 %v4435, 0.0
  %v4440 = vmax.f32 %v4436, 0.0
  %v4441 = vmax.f32 %v4437, 0.0
  %vm4442 = vcmp.ne.f32.partialorder %v4434, %v4434
  %vm4443 = vcmp.ne.f32.partialorder %v4435, %v4435
  %vm4444 = vcmp.ne.f32.partialorder %v4436, %v4436
  %vm4445 = vcmp.ne.f32.partialorder %v4437, %v4437
  %v4446 = vadd.f32 %v4434, 0.0
  %v4447 = vadd.f32 %v4435, 0.0
  %v4448 = vadd.f32 %v4436, 0.0
  %v4449 = vadd.f32 %v4437, 0.0
  %v4450 = vand.u32 2147483647, %v4434
  %v4451 = vand.u32 2147483647, %v4435
  %v4452 = vand.u32 2147483647, %v4436
  %v4453 = vand.u32 2147483647, %v4437
  %v4454 = vsub.f32 0.0, %v4450
  %v4455 = vsub.f32 0.0, %v4451
  %v4456 = vsub.f32 0.0, %v4452
  %v4457 = vsub.f32 0.0, %v4453
  %v4458 = vmul.f32 %v4454, 1.442695
  %v4459 = vpow.pop %v4458
  %v4460 = vmul.f32 %v4455, 1.442695
  %v4461 = vpow.pop %v4460
  %v4462 = vmul.f32 %v4456, 1.442695
  %v4463 = vpow.pop %v4462
  %v4464 = vmul.f32 %v4457, 1.442695
  %v4465 = vpow.pop %v4464
  %v4466 = vadd.f32 %v4459, 1.0
  %v4467 = vlog2.pop %v4466
  %v4468 = vmul.f32 %v4467, 0.6931472
  %v4469 = vmul.f32 -0.5, %v4459
  %v4470 = vadd.f32 %v4469, 1.0
  %v4471 = vmul.f32 %v4470, %v4459
  %v4472 = vand.u32 2147483647, %v4459
  %vm4473 = vcmp.lt.f32.partialorder %v4472, 0.0004427343
  %v4474 = vsel %vm4473, %v4471, %v4468
  %v4475 = vadd.f32 %v4461, 1.0
  %v4476 = vlog2.pop %v4475
  %v4477 = vmul.f32 %v4476, 0.6931472
  %v4478 = vmul.f32 -0.5, %v4461
  %v4479 = vadd.f32 %v4478, 1.0
  %v4480 = vmul.f32 %v4479, %v4461
  %v4481 = vand.u32 2147483647, %v4461
  %vm4482 = vcmp.lt.f32.partialorder %v4481, 0.0004427343
  %v4483 = vsel %vm4482, %v4480, %v4477
  %v4484 = vadd.f32 %v4463, 1.0
  %v4485 = vlog2.pop %v4484
  %v4486 = vmul.f32 %v4485, 0.6931472
  %v4487 = vmul.f32 -0.5, %v4463
  %v4488 = vadd.f32 %v4487, 1.0
  %v4489 = vmul.f32 %v4488, %v4463
  %v4490 = vand.u32 2147483647, %v4463
  %vm4491 = vcmp.lt.f32.partialorder %v4490, 0.0004427343
  %v4492 = vsel %vm4491, %v4489, %v4486
  %v4493 = vadd.f32 %v4465, 1.0
  %v4494 = vlog2.pop %v4493
  %v4495 = vmul.f32 %v4494, 0.6931472
  %v4496 = vmul.f32 -0.5, %v4465
  %v4497 = vadd.f32 %v4496, 1.0
  %v4498 = vmul.f32 %v4497, %v4465
  %v4499 = vand.u32 2147483647, %v4465
  %vm4500 = vcmp.lt.f32.partialorder %v4499, 0.0004427343
  %v4501 = vsel %vm4500, %v4498, %v4495
  %v4502 = vadd.f32 %v4438, %v4474
  %v4503 = vadd.f32 %v4439, %v4483
  %v4504 = vadd.f32 %v4440, %v4492
  %v4505 = vadd.f32 %v4441, %v4501
  %v4506 = vsel %vm4442, %v4446, %v4502
  %v4507 = vsel %vm4443, %v4447, %v4503
  %v4508 = vsel %vm4444, %v4448, %v4504
  %v4509 = vsel %vm4445, %v4449, %v4505
  %v4510 = vtanh.pop %v4506
  %v4511 = vtanh.pop %v4507
  %v4512 = vtanh.pop %v4508
  %v4513 = vtanh.pop %v4509
  %v4514 = vmul.f32 %v4434, %v4510
  %v4515 = vmul.f32 %v4435, %v4511
  %v4516 = vmul.f32 %v4436, %v4512
  %v4517 = vmul.f32 %v4437, %v4513
  %v4518 = vld [vmem:[%s3 + $0x7e0] sm:$0xff]
  %v4519 = vld [vmem:[%s3 + $0x7e8] sm:$0xff]
  %v4520 = vld [vmem:[%s3 + $0x7f0] sm:$0xff]
  %v4521 = vld [vmem:[%s3 + $0x7f8] sm:$0xff]
  %v4522 = vld [vmem:[%s3 + $0x800] sm:$0xff]
  %v4523 = vld [vmem:[%s3 + $0x808] sm:$0xff]
  %v4524 = vld [vmem:[%s3 + $0x810] sm:$0xff]
  %v4525 = vld [vmem:[%s3 + $0x818] sm:$0xff]
  %4527 = vset.pattern.permute.xlu0 0
  %4528 = vperm.xlu0 %4527, %v4522
  %v4529 = vpop.permute.xlu0 %4528
  %4532 = vset.pattern.permute.xlu0 0
  %4533 = vperm.xlu0 %4532, %v4523
  %v4534 = vpop.permute.xlu0 %4533
  %4537 = vset.pattern.permute.xlu0 0
  %4538 = vperm.xlu0 %4537, %v4524
  %v4539 = vpop.permute.xlu0 %4538
  %4542 = vset.pattern.permute.xlu0 0
  %4543 = vperm.xlu0 %4542, %v4525
  %v4544 = vpop.permute.xlu0 %4543
  %v4547 = vsel %vm3032, %v4518, 0
  %v4550 = vsel %vm3032, %v4519, 0
  %v4553 = vsel %vm3032, %v4520, 0
  %v4556 = vsel %vm3032, %v4521, 0
  %4558 = vmatpush.msra.mxu0 0.0
  %4559 = vmatpush.msra.mxu0 0.0
  %4560 = vmatpush.msra.mxu0 0.0
  %4561 = vmatpush.msra.mxu0 0.0
  %4562 = vmatpush.msra.mxu0 0.0
  %4563 = vmatpush.msra.mxu0 0.0
  %4564 = vmatpush.msra.mxu0 0.0
  %4565 = vmatpush.msra.mxu0 0.0
  %4566 = vmatpush.msra.mxu0 0.0
  %4567 = vmatpush.msra.mxu0 0.0
  %4568 = vmatpush.msra.mxu0 0.0
  %4569 = vmatpush.msra.mxu0 0.0
  %4570 = vmatpush.msra.mxu0 %v4517
  %4571 = vmatpush.msra.mxu0 %v4516
  %4572 = vmatpush.msra.mxu0 %v4515
  %4573 = vmatpush.msra.mxu0 %v4514
  %4574 = vmatmul.f32.gmra.mxu0 %v4547
  %v4575 = vpop.f32.mrf.mxu0
  %v4576 = vadd.f32 %v4529, %v4575
  %4577 = vmatmul.f32.gmra.mxu0 %v4550
  %v4578 = vpop.f32.mrf.mxu0
  %v4579 = vadd.f32 %v4534, %v4578
  %4580 = vmatmul.f32.gmra.mxu0 %v4553
  %v4581 = vpop.f32.mrf.mxu0
  %v4582 = vadd.f32 %v4539, %v4581
  %4583 = vmatmul.f32.gmra.mxu0 %v4556
  %v4584 = vpop.f32.mrf.mxu0
  %v4585 = vadd.f32 %v4544, %v4584
  %4586 = vdwg.mxu0
  %v4587 = vmax.f32 %v4576, 0.0
  %v4588 = vmax.f32 %v4579, 0.0
  %v4589 = vmax.f32 %v4582, 0.0
  %v4590 = vmax.f32 %v4585, 0.0
  %vm4591 = vcmp.ne.f32.partialorder %v4576, %v4576
  %vm4592 = vcmp.ne.f32.partialorder %v4579, %v4579
  %vm4593 = vcmp.ne.f32.partialorder %v4582, %v4582
  %vm4594 = vcmp.ne.f32.partialorder %v4585, %v4585
  %v4595 = vadd.f32 %v4576, 0.0
  %v4596 = vadd.f32 %v4579, 0.0
  %v4597 = vadd.f32 %v4582, 0.0
  %v4598 = vadd.f32 %v4585, 0.0
  %v4599 = vand.u32 2147483647, %v4576
  %v4600 = vand.u32 2147483647, %v4579
  %v4601 = vand.u32 2147483647, %v4582
  %v4602 = vand.u32 2147483647, %v4585
  %v4603 = vsub.f32 0.0, %v4599
  %v4604 = vsub.f32 0.0, %v4600
  %v4605 = vsub.f32 0.0, %v4601
  %v4606 = vsub.f32 0.0, %v4602
  %v4607 = vmul.f32 %v4603, 1.442695
  %v4608 = vpow.pop %v4607
  %v4609 = vmul.f32 %v4604, 1.442695
  %v4610 = vpow.pop %v4609
  %v4611 = vmul.f32 %v4605, 1.442695
  %v4612 = vpow.pop %v4611
  %v4613 = vmul.f32 %v4606, 1.442695
  %v4614 = vpow.pop %v4613
  %v4615 = vadd.f32 %v4608, 1.0
  %v4616 = vlog2.pop %v4615
  %v4617 = vmul.f32 %v4616, 0.6931472
  %v4618 = vmul.f32 -0.5, %v4608
  %v4619 = vadd.f32 %v4618, 1.0
  %v4620 = vmul.f32 %v4619, %v4608
  %v4621 = vand.u32 2147483647, %v4608
  %vm4622 = vcmp.lt.f32.partialorder %v4621, 0.0004427343
  %v4623 = vsel %vm4622, %v4620, %v4617
  %v4624 = vadd.f32 %v4610, 1.0
  %v4625 = vlog2.pop %v4624
  %v4626 = vmul.f32 %v4625, 0.6931472
  %v4627 = vmul.f32 -0.5, %v4610
  %v4628 = vadd.f32 %v4627, 1.0
  %v4629 = vmul.f32 %v4628, %v4610
  %v4630 = vand.u32 2147483647, %v4610
  %vm4631 = vcmp.lt.f32.partialorder %v4630, 0.0004427343
  %v4632 = vsel %vm4631, %v4629, %v4626
  %v4633 = vadd.f32 %v4612, 1.0
  %v4634 = vlog2.pop %v4633
  %v4635 = vmul.f32 %v4634, 0.6931472
  %v4636 = vmul.f32 -0.5, %v4612
  %v4637 = vadd.f32 %v4636, 1.0
  %v4638 = vmul.f32 %v4637, %v4612
  %v4639 = vand.u32 2147483647, %v4612
  %vm4640 = vcmp.lt.f32.partialorder %v4639, 0.0004427343
  %v4641 = vsel %vm4640, %v4638, %v4635
  %v4642 = vadd.f32 %v4614, 1.0
  %v4643 = vlog2.pop %v4642
  %v4644 = vmul.f32 %v4643, 0.6931472
  %v4645 = vmul.f32 -0.5, %v4614
  %v4646 = vadd.f32 %v4645, 1.0
  %v4647 = vmul.f32 %v4646, %v4614
  %v4648 = vand.u32 2147483647, %v4614
  %vm4649 = vcmp.lt.f32.partialorder %v4648, 0.0004427343
  %v4650 = vsel %vm4649, %v4647, %v4644
  %v4651 = vadd.f32 %v4587, %v4623
  %v4652 = vadd.f32 %v4588, %v4632
  %v4653 = vadd.f32 %v4589, %v4641
  %v4654 = vadd.f32 %v4590, %v4650
  %v4655 = vsel %vm4591, %v4595, %v4651
  %v4656 = vsel %vm4592, %v4596, %v4652
  %v4657 = vsel %vm4593, %v4597, %v4653
  %v4658 = vsel %vm4594, %v4598, %v4654
  %v4659 = vtanh.pop %v4655
  %v4660 = vtanh.pop %v4656
  %v4661 = vtanh.pop %v4657
  %v4662 = vtanh.pop %v4658
  %v4663 = vmul.f32 %v4576, %v4659
  %v4664 = vmul.f32 %v4579, %v4660
  %v4665 = vmul.f32 %v4582, %v4661
  %v4666 = vmul.f32 %v4585, %v4662
  %v4667 = vld [vmem:[%s3 + $0x820] sm:$0xff]
  %v4668 = vld [vmem:[%s3 + $0x828] sm:$0xff]
  %v4669 = vld [vmem:[%s3 + $0x830] sm:$0xff]
  %v4670 = vld [vmem:[%s3 + $0x838] sm:$0xff]
  %v4671 = vld [vmem:[%s3 + $0x840] sm:$0xff]
  %v4672 = vld [vmem:[%s3 + $0x848] sm:$0xff]
  %v4673 = vld [vmem:[%s3 + $0x850] sm:$0xff]
  %v4674 = vld [vmem:[%s3 + $0x858] sm:$0xff]
  %4676 = vset.pattern.permute.xlu0 0
  %4677 = vperm.xlu0 %4676, %v4671
  %v4678 = vpop.permute.xlu0 %4677
  %4681 = vset.pattern.permute.xlu0 0
  %4682 = vperm.xlu0 %4681, %v4672
  %v4683 = vpop.permute.xlu0 %4682
  %4686 = vset.pattern.permute.xlu0 0
  %4687 = vperm.xlu0 %4686, %v4673
  %v4688 = vpop.permute.xlu0 %4687
  %4691 = vset.pattern.permute.xlu0 0
  %4692 = vperm.xlu0 %4691, %v4674
  %v4693 = vpop.permute.xlu0 %4692
  %v4696 = vsel %vm3032, %v4667, 0
  %v4699 = vsel %vm3032, %v4668, 0
  %v4702 = vsel %vm3032, %v4669, 0
  %v4705 = vsel %vm3032, %v4670, 0
  %4707 = vmatpush.msra.mxu0 0.0
  %4708 = vmatpush.msra.mxu0 0.0
  %4709 = vmatpush.msra.mxu0 0.0
  %4710 = vmatpush.msra.mxu0 0.0
  %4711 = vmatpush.msra.mxu0 0.0
  %4712 = vmatpush.msra.mxu0 0.0
  %4713 = vmatpush.msra.mxu0 0.0
  %4714 = vmatpush.msra.mxu0 0.0
  %4715 = vmatpush.msra.mxu0 0.0
  %4716 = vmatpush.msra.mxu0 0.0
  %4717 = vmatpush.msra.mxu0 0.0
  %4718 = vmatpush.msra.mxu0 0.0
  %4719 = vmatpush.msra.mxu0 %v4666
  %4720 = vmatpush.msra.mxu0 %v4665
  %4721 = vmatpush.msra.mxu0 %v4664
  %4722 = vmatpush.msra.mxu0 %v4663
  %4723 = vmatmul.f32.gmra.mxu0 %v4696
  %v4724 = vpop.f32.mrf.mxu0
  %v4725 = vadd.f32 %v4678, %v4724
  %4726 = vmatmul.f32.gmra.mxu0 %v4699
  %v4727 = vpop.f32.mrf.mxu0
  %v4728 = vadd.f32 %v4683, %v4727
  %4729 = vmatmul.f32.gmra.mxu0 %v4702
  %v4730 = vpop.f32.mrf.mxu0
  %v4731 = vadd.f32 %v4688, %v4730
  %4732 = vmatmul.f32.gmra.mxu0 %v4705
  %v4733 = vpop.f32.mrf.mxu0
  %v4734 = vadd.f32 %v4693, %v4733
  %4735 = vdwg.mxu0
  %v4737 = vsel %vm916, %v4725, 0
  %v4740 = vsel %vm916, %v4728, 0
  %v4743 = vsel %vm916, %v4731, 0
  %v4746 = vsel %vm916, %v4734, 0
  %4748 = vmatpush.msra.mxu0 0.0
  %4749 = vmatpush.msra.mxu0 0.0
  %4750 = vmatpush.msra.mxu0 0.0
  %4751 = vmatpush.msra.mxu0 0.0
  %4752 = vmatpush.msra.mxu0 0.0
  %4753 = vmatpush.msra.mxu0 0.0
  %4754 = vmatpush.msra.mxu0 0.0
  %4755 = vmatpush.msra.mxu0 0.0
  %4756 = vmatpush.msra.mxu0 0.0
  %4757 = vmatpush.msra.mxu0 0.0
  %4758 = vmatpush.msra.mxu0 0.0
  %4759 = vmatpush.msra.mxu0 0.0
  %4760 = vmatpush.msra.mxu0 0.0
  %4761 = vmatpush.msra.mxu0 0.0
  %4762 = vmatpush.msra.mxu0 0.0
  %4763 = vmatpush.msra.mxu0 %v3236
  %4764 = vmatmul.f32.gmra.mxu0 %v4737
  %v4765 = vpop.f32.mrf.mxu0
  %v4766 = vadd.f32 0.0, %v4765
  %4767 = vmatmul.f32.gmra.mxu0 %v4740
  %v4768 = vpop.f32.mrf.mxu0
  %v4769 = vadd.f32 0.0, %v4768
  %4770 = vmatmul.f32.gmra.mxu0 %v4743
  %v4771 = vpop.f32.mrf.mxu0
  %v4772 = vadd.f32 0.0, %v4771
  %4773 = vmatmul.f32.gmra.mxu0 %v4746
  %v4774 = vpop.f32.mrf.mxu0
  %v4775 = vadd.f32 0.0, %v4774
  %4776 = vdwg.mxu0
  %v4777 = vadd.f32 %v4316, %v4766
  %v4778 = vadd.f32 %v4317, %v4769
  %v4779 = vadd.f32 %v4318, %v4772
  %v4780 = vadd.f32 %v4319, %v4775
  %v4781 = vld [vmem:[%s3 + $0x6c0] sm:$0xff]
  %v4782 = vld [vmem:[%s3 + $0x6c8] sm:$0xff]
  %v4783 = vld [vmem:[%s3 + $0x6d0] sm:$0xff]
  %v4784 = vld [vmem:[%s3 + $0x6d8] sm:$0xff]
  %v4785 = vld [vmem:[%s3 + $0x6e0] sm:$0xff]
  %v4786 = vld [vmem:[%s3 + $0x6e8] sm:$0xff]
  %v4787 = vld [vmem:[%s3 + $0x6f0] sm:$0xff]
  %v4788 = vld [vmem:[%s3 + $0x6f8] sm:$0xff]
  %v4789 = vld [vmem:[%s3 + $0x700] sm:$0xff]
  %v4790 = vld [vmem:[%s3 + $0x708] sm:$0xff]
  %v4791 = vld [vmem:[%s3 + $0x710] sm:$0xff]
  %v4792 = vld [vmem:[%s3 + $0x718] sm:$0xff]
  %v4793 = vld [vmem:[%s3 + $0x720] sm:$0xff]
  %v4794 = vld [vmem:[%s3 + $0x728] sm:$0xff]
  %v4795 = vld [vmem:[%s3 + $0x730] sm:$0xff]
  %v4796 = vld [vmem:[%s3 + $0x738] sm:$0xff]
  %v4797 = vld [vmem:[%s3 + $0x740] sm:$0xff]
  %v4798 = vld [vmem:[%s3 + $0x748] sm:$0xff]
  %v4799 = vld [vmem:[%s3 + $0x750] sm:$0xff]
  %v4800 = vld [vmem:[%s3 + $0x758] sm:$0xff]
  %v4801 = vld [vmem:[%s3 + $0x760] sm:$0xff]
  %v4802 = vld [vmem:[%s3 + $0x768] sm:$0xff]
  %v4803 = vld [vmem:[%s3 + $0x770] sm:$0xff]
  %v4804 = vld [vmem:[%s3 + $0x778] sm:$0xff]
  %v4806 = vsel %vm3032, %v4781, 0
  %v4809 = vsel %vm3032, %v4782, 0
  %v4812 = vsel %vm3032, %v4783, 0
  %v4815 = vsel %vm3032, %v4784, 0
  %v4818 = vsel %vm3032, %v4785, 0
  %v4821 = vsel %vm3032, %v4786, 0
  %v4824 = vsel %vm3032, %v4787, 0
  %v4827 = vsel %vm3032, %v4788, 0
  %v4830 = vsel %vm3032, %v4789, 0
  %v4833 = vsel %vm3032, %v4790, 0
  %v4836 = vsel %vm3032, %v4791, 0
  %v4839 = vsel %vm3032, %v4792, 0
  %v4842 = vsel %vm3032, %v4793, 0
  %v4845 = vsel %vm3032, %v4794, 0
  %v4848 = vsel %vm3032, %v4795, 0
  %v4851 = vsel %vm3032, %v4796, 0
  %v4854 = vsel %vm3032, %v4797, 0
  %v4857 = vsel %vm3032, %v4798, 0
  %v4860 = vsel %vm3032, %v4799, 0
  %v4863 = vsel %vm3032, %v4800, 0
  %4865 = vmatpush.msra.mxu0 0.0
  %4866 = vmatpush.msra.mxu0 0.0
  %4867 = vmatpush.msra.mxu0 0.0
  %4868 = vmatpush.msra.mxu0 0.0
  %4869 = vmatpush.msra.mxu0 0.0
  %4870 = vmatpush.msra.mxu0 0.0
  %4871 = vmatpush.msra.mxu0 0.0
  %4872 = vmatpush.msra.mxu0 0.0
  %4873 = vmatpush.msra.mxu0 0.0
  %4874 = vmatpush.msra.mxu0 0.0
  %4875 = vmatpush.msra.mxu0 0.0
  %4876 = vmatpush.msra.mxu0 0.0
  %4877 = vmatpush.msra.mxu0 %v4780
  %4878 = vmatpush.msra.mxu0 %v4779
  %4879 = vmatpush.msra.mxu0 %v4778
  %4880 = vmatpush.msra.mxu0 %v4777
  %4881 = vmatmul.f32.gmra.mxu0 %v4806
  %v4882 = vpop.f32.mrf.mxu0
  %v4883 = vadd.f32 0.0, %v4882
  %4884 = vmatmul.f32.gmra.mxu0 %v4809
  %v4885 = vpop.f32.mrf.mxu0
  %v4886 = vadd.f32 0.0, %v4885
  %4887 = vmatmul.f32.gmra.mxu0 %v4812
  %v4888 = vpop.f32.mrf.mxu0
  %v4889 = vadd.f32 0.0, %v4888
  %4890 = vmatmul.f32.gmra.mxu0 %v4815
  %v4891 = vpop.f32.mrf.mxu0
  %v4892 = vadd.f32 0.0, %v4891
  %4893 = vmatmul.f32.gmra.mxu0 %v4818
  %v4894 = vpop.f32.mrf.mxu0
  %v4895 = vadd.f32 0.0, %v4894
  %4896 = vmatmul.f32.gmra.mxu0 %v4821
  %v4897 = vpop.f32.mrf.mxu0
  %v4898 = vadd.f32 0.0, %v4897
  %4899 = vmatmul.f32.gmra.mxu0 %v4824
  %v4900 = vpop.f32.mrf.mxu0
  %v4901 = vadd.f32 0.0, %v4900
  %4902 = vmatmul.f32.gmra.mxu0 %v4827
  %v4903 = vpop.f32.mrf.mxu0
  %v4904 = vadd.f32 0.0, %v4903
  %4905 = vmatmul.f32.gmra.mxu0 %v4830
  %v4906 = vpop.f32.mrf.mxu0
  %v4907 = vadd.f32 0.0, %v4906
  %4908 = vmatmul.f32.gmra.mxu0 %v4833
  %v4909 = vpop.f32.mrf.mxu0
  %v4910 = vadd.f32 0.0, %v4909
  %4911 = vmatmul.f32.gmra.mxu0 %v4836
  %v4912 = vpop.f32.mrf.mxu0
  %v4913 = vadd.f32 0.0, %v4912
  %4914 = vmatmul.f32.gmra.mxu0 %v4839
  %v4915 = vpop.f32.mrf.mxu0
  %v4916 = vadd.f32 0.0, %v4915
  %4917 = vmatmul.f32.gmra.mxu0 %v4842
  %v4918 = vpop.f32.mrf.mxu0
  %v4919 = vadd.f32 0.0, %v4918
  %4920 = vmatmul.f32.gmra.mxu0 %v4845
  %v4921 = vpop.f32.mrf.mxu0
  %v4922 = vadd.f32 0.0, %v4921
  %4923 = vmatmul.f32.gmra.mxu0 %v4848
  %v4924 = vpop.f32.mrf.mxu0
  %v4925 = vadd.f32 0.0, %v4924
  %4926 = vmatmul.f32.gmra.mxu0 %v4851
  %v4927 = vpop.f32.mrf.mxu0
  %v4928 = vadd.f32 0.0, %v4927
  %4929 = vmatmul.f32.gmra.mxu0 %v4854
  %v4930 = vpop.f32.mrf.mxu0
  %v4931 = vadd.f32 0.0, %v4930
  %4932 = vmatmul.f32.gmra.mxu0 %v4857
  %v4933 = vpop.f32.mrf.mxu0
  %v4934 = vadd.f32 0.0, %v4933
  %4935 = vmatmul.f32.gmra.mxu0 %v4860
  %v4936 = vpop.f32.mrf.mxu0
  %v4937 = vadd.f32 0.0, %v4936
  %4938 = vmatmul.f32.gmra.mxu0 %v4863
  %v4939 = vpop.f32.mrf.mxu0
  %v4940 = vadd.f32 0.0, %v4939
  %4941 = vdwg.mxu0
  %v4943 = vsel %vm677, %v4883, 0
  %v4946 = vsel %vm677, %v4886, 0
  %v4949 = vsel %vm677, %v4889, 0
  %v4952 = vsel %vm677, %v4892, 0
  %4954 = vmatpush.msra.mxu0 0.0
  %4955 = vmatpush.msra.mxu0 0.0
  %4956 = vmatpush.msra.mxu0 0.0
  %4957 = vmatpush.msra.mxu0 0.0
  %4958 = vmatpush.msra.mxu0 0.0
  %4959 = vmatpush.msra.mxu0 0.0
  %4960 = vmatpush.msra.mxu0 0.0
  %4961 = vmatpush.msra.mxu0 0.0
  %4962 = vmatpush.msra.mxu0 0.0
  %4963 = vmatpush.msra.mxu0 0.0
  %4964 = vmatpush.msra.mxu0 0.0
  %4965 = vmatpush.msra.mxu0 0.0
  %4966 = vmatpush.msra.mxu0 0.0
  %4967 = vmatpush.msra.mxu0 0.0
  %4968 = vmatpush.msra.mxu0 0.0
  %4969 = vmatpush.msra.mxu0 %v17
  %4970 = vmatmul.f32.gmra.mxu0 %v4943
  %v4971 = vpop.f32.mrf.mxu0
  %v4972 = vadd.f32 0.0, %v4971
  %4973 = vmatmul.f32.gmra.mxu0 %v4946
  %v4974 = vpop.f32.mrf.mxu0
  %v4975 = vadd.f32 0.0, %v4974
  %4976 = vmatmul.f32.gmra.mxu0 %v4949
  %v4977 = vpop.f32.mrf.mxu0
  %v4978 = vadd.f32 0.0, %v4977
  %4979 = vmatmul.f32.gmra.mxu0 %v4952
  %v4980 = vpop.f32.mrf.mxu0
  %v4981 = vadd.f32 0.0, %v4980
  %4982 = vdwg.mxu0
  %4984 = vset.pattern.permute.xlu0 0
  %4985 = vperm.xlu0 %4984, %v4801
  %v4986 = vpop.permute.xlu0 %4985
  %4989 = vset.pattern.permute.xlu0 0
  %4990 = vperm.xlu0 %4989, %v4802
  %v4991 = vpop.permute.xlu0 %4990
  %4994 = vset.pattern.permute.xlu0 0
  %4995 = vperm.xlu0 %4994, %v4803
  %v4996 = vpop.permute.xlu0 %4995
  %4999 = vset.pattern.permute.xlu0 0
  %5000 = vperm.xlu0 %4999, %v4804
  %v5001 = vpop.permute.xlu0 %5000
  %v5003 = vadd.f32 %v4986, %v4972
  %v5004 = vadd.f32 %v4991, %v4975
  %v5005 = vadd.f32 %v4996, %v4978
  %v5006 = vadd.f32 %v5001, %v4981
  %v5008 = vsel %vm677, %v4895, 0
  %v5011 = vsel %vm677, %v4898, 0
  %v5014 = vsel %vm677, %v4901, 0
  %v5017 = vsel %vm677, %v4904, 0
  %5019 = vmatpush.msra.mxu0 0.0
  %5020 = vmatpush.msra.mxu0 0.0
  %5021 = vmatpush.msra.mxu0 0.0
  %5022 = vmatpush.msra.mxu0 0.0
  %5023 = vmatpush.msra.mxu0 0.0
  %5024 = vmatpush.msra.mxu0 0.0
  %5025 = vmatpush.msra.mxu0 0.0
  %5026 = vmatpush.msra.mxu0 0.0
  %5027 = vmatpush.msra.mxu0 0.0
  %5028 = vmatpush.msra.mxu0 0.0
  %5029 = vmatpush.msra.mxu0 0.0
  %5030 = vmatpush.msra.mxu0 0.0
  %5031 = vmatpush.msra.mxu0 0.0
  %5032 = vmatpush.msra.mxu0 0.0
  %5033 = vmatpush.msra.mxu0 0.0
  %5034 = vmatpush.msra.mxu0 %v18
  %5035 = vmatmul.f32.gmra.mxu0 %v5008
  %v5036 = vpop.f32.mrf.mxu0
  %v5037 = vadd.f32 0.0, %v5036
  %5038 = vmatmul.f32.gmra.mxu0 %v5011
  %v5039 = vpop.f32.mrf.mxu0
  %v5040 = vadd.f32 0.0, %v5039
  %5041 = vmatmul.f32.gmra.mxu0 %v5014
  %v5042 = vpop.f32.mrf.mxu0
  %v5043 = vadd.f32 0.0, %v5042
  %5044 = vmatmul.f32.gmra.mxu0 %v5017
  %v5045 = vpop.f32.mrf.mxu0
  %v5046 = vadd.f32 0.0, %v5045
  %5047 = vdwg.mxu0
  %v5048 = vadd.f32 %v5003, %v5037
  %v5049 = vadd.f32 %v5004, %v5040
  %v5050 = vadd.f32 %v5005, %v5043
  %v5051 = vadd.f32 %v5006, %v5046
  %v5053 = vsel %vm677, %v4907, 0
  %v5056 = vsel %vm677, %v4910, 0
  %v5059 = vsel %vm677, %v4913, 0
  %v5062 = vsel %vm677, %v4916, 0
  %5064 = vmatpush.msra.mxu0 0.0
  %5065 = vmatpush.msra.mxu0 0.0
  %5066 = vmatpush.msra.mxu0 0.0
  %5067 = vmatpush.msra.mxu0 0.0
  %5068 = vmatpush.msra.mxu0 0.0
  %5069 = vmatpush.msra.mxu0 0.0
  %5070 = vmatpush.msra.mxu0 0.0
  %5071 = vmatpush.msra.mxu0 0.0
  %5072 = vmatpush.msra.mxu0 0.0
  %5073 = vmatpush.msra.mxu0 0.0
  %5074 = vmatpush.msra.mxu0 0.0
  %5075 = vmatpush.msra.mxu0 0.0
  %5076 = vmatpush.msra.mxu0 0.0
  %5077 = vmatpush.msra.mxu0 0.0
  %5078 = vmatpush.msra.mxu0 0.0
  %5079 = vmatpush.msra.mxu0 %v19
  %5080 = vmatmul.f32.gmra.mxu0 %v5053
  %v5081 = vpop.f32.mrf.mxu0
  %v5082 = vadd.f32 0.0, %v5081
  %5083 = vmatmul.f32.gmra.mxu0 %v5056
  %v5084 = vpop.f32.mrf.mxu0
  %v5085 = vadd.f32 0.0, %v5084
  %5086 = vmatmul.f32.gmra.mxu0 %v5059
  %v5087 = vpop.f32.mrf.mxu0
  %v5088 = vadd.f32 0.0, %v5087
  %5089 = vmatmul.f32.gmra.mxu0 %v5062
  %v5090 = vpop.f32.mrf.mxu0
  %v5091 = vadd.f32 0.0, %v5090
  %5092 = vdwg.mxu0
  %v5093 = vadd.f32 %v5048, %v5082
  %v5094 = vadd.f32 %v5049, %v5085
  %v5095 = vadd.f32 %v5050, %v5088
  %v5096 = vadd.f32 %v5051, %v5091
  %v5098 = vsel %vm677, %v4919, 0
  %v5101 = vsel %vm677, %v4922, 0
  %v5104 = vsel %vm677, %v4925, 0
  %v5107 = vsel %vm677, %v4928, 0
  %5109 = vmatpush.msra.mxu0 0.0
  %5110 = vmatpush.msra.mxu0 0.0
  %5111 = vmatpush.msra.mxu0 0.0
  %5112 = vmatpush.msra.mxu0 0.0
  %5113 = vmatpush.msra.mxu0 0.0
  %5114 = vmatpush.msra.mxu0 0.0
  %5115 = vmatpush.msra.mxu0 0.0
  %5116 = vmatpush.msra.mxu0 0.0
  %5117 = vmatpush.msra.mxu0 0.0
  %5118 = vmatpush.msra.mxu0 0.0
  %5119 = vmatpush.msra.mxu0 0.0
  %5120 = vmatpush.msra.mxu0 0.0
  %5121 = vmatpush.msra.mxu0 0.0
  %5122 = vmatpush.msra.mxu0 0.0
  %5123 = vmatpush.msra.mxu0 0.0
  %5124 = vmatpush.msra.mxu0 %v20
  %5125 = vmatmul.f32.gmra.mxu0 %v5098
  %v5126 = vpop.f32.mrf.mxu0
  %v5127 = vadd.f32 0.0, %v5126
  %5128 = vmatmul.f32.gmra.mxu0 %v5101
  %v5129 = vpop.f32.mrf.mxu0
  %v5130 = vadd.f32 0.0, %v5129
  %5131 = vmatmul.f32.gmra.mxu0 %v5104
  %v5132 = vpop.f32.mrf.mxu0
  %v5133 = vadd.f32 0.0, %v5132
  %5134 = vmatmul.f32.gmra.mxu0 %v5107
  %v5135 = vpop.f32.mrf.mxu0
  %v5136 = vadd.f32 0.0, %v5135
  %5137 = vdwg.mxu0
  %v5138 = vadd.f32 %v5093, %v5127
  %v5139 = vadd.f32 %v5094, %v5130
  %v5140 = vadd.f32 %v5095, %v5133
  %v5141 = vadd.f32 %v5096, %v5136
  %v5143 = vsel %vm677, %v4931, 0
  %v5146 = vsel %vm677, %v4934, 0
  %v5149 = vsel %vm677, %v4937, 0
  %v5152 = vsel %vm677, %v4940, 0
  %5154 = vmatpush.msra.mxu0 0.0
  %5155 = vmatpush.msra.mxu0 0.0
  %5156 = vmatpush.msra.mxu0 0.0
  %5157 = vmatpush.msra.mxu0 0.0
  %5158 = vmatpush.msra.mxu0 0.0
  %5159 = vmatpush.msra.mxu0 0.0
  %5160 = vmatpush.msra.mxu0 0.0
  %5161 = vmatpush.msra.mxu0 0.0
  %5162 = vmatpush.msra.mxu0 0.0
  %5163 = vmatpush.msra.mxu0 0.0
  %5164 = vmatpush.msra.mxu0 0.0
  %5165 = vmatpush.msra.mxu0 0.0
  %5166 = vmatpush.msra.mxu0 0.0
  %5167 = vmatpush.msra.mxu0 0.0
  %5168 = vmatpush.msra.mxu0 0.0
  %5169 = vmatpush.msra.mxu0 %v21
  %5170 = vmatmul.f32.gmra.mxu0 %v5143
  %v5171 = vpop.f32.mrf.mxu0
  %v5172 = vadd.f32 0.0, %v5171
  %5173 = vmatmul.f32.gmra.mxu0 %v5146
  %v5174 = vpop.f32.mrf.mxu0
  %v5175 = vadd.f32 0.0, %v5174
  %5176 = vmatmul.f32.gmra.mxu0 %v5149
  %v5177 = vpop.f32.mrf.mxu0
  %v5178 = vadd.f32 0.0, %v5177
  %5179 = vmatmul.f32.gmra.mxu0 %v5152
  %v5180 = vpop.f32.mrf.mxu0
  %v5181 = vadd.f32 0.0, %v5180
  %5182 = vdwg.mxu0
  %v5183 = vadd.f32 %v5138, %v5172
  %v5184 = vadd.f32 %v5139, %v5175
  %v5185 = vadd.f32 %v5140, %v5178
  %v5186 = vadd.f32 %v5141, %v5181
  %v5187 = vmax.f32 %v5183, 0.0
  %v5188 = vmax.f32 %v5184, 0.0
  %v5189 = vmax.f32 %v5185, 0.0
  %v5190 = vmax.f32 %v5186, 0.0
  %vm5191 = vcmp.ne.f32.partialorder %v5183, %v5183
  %vm5192 = vcmp.ne.f32.partialorder %v5184, %v5184
  %vm5193 = vcmp.ne.f32.partialorder %v5185, %v5185
  %vm5194 = vcmp.ne.f32.partialorder %v5186, %v5186
  %v5195 = vadd.f32 %v5183, 0.0
  %v5196 = vadd.f32 %v5184, 0.0
  %v5197 = vadd.f32 %v5185, 0.0
  %v5198 = vadd.f32 %v5186, 0.0
  %v5199 = vand.u32 2147483647, %v5183
  %v5200 = vand.u32 2147483647, %v5184
  %v5201 = vand.u32 2147483647, %v5185
  %v5202 = vand.u32 2147483647, %v5186
  %v5203 = vsub.f32 0.0, %v5199
  %v5204 = vsub.f32 0.0, %v5200
  %v5205 = vsub.f32 0.0, %v5201
  %v5206 = vsub.f32 0.0, %v5202
  %v5207 = vmul.f32 %v5203, 1.442695
  %v5208 = vpow.pop %v5207
  %v5209 = vmul.f32 %v5204, 1.442695
  %v5210 = vpow.pop %v5209
  %v5211 = vmul.f32 %v5205, 1.442695
  %v5212 = vpow.pop %v5211
  %v5213 = vmul.f32 %v5206, 1.442695
  %v5214 = vpow.pop %v5213
  %v5215 = vadd.f32 %v5208, 1.0
  %v5216 = vlog2.pop %v5215
  %v5217 = vmul.f32 %v5216, 0.6931472
  %v5218 = vmul.f32 -0.5, %v5208
  %v5219 = vadd.f32 %v5218, 1.0
  %v5220 = vmul.f32 %v5219, %v5208
  %v5221 = vand.u32 2147483647, %v5208
  %vm5222 = vcmp.lt.f32.partialorder %v5221, 0.0004427343
  %v5223 = vsel %vm5222, %v5220, %v5217
  %v5224 = vadd.f32 %v5210, 1.0
  %v5225 = vlog2.pop %v5224
  %v5226 = vmul.f32 %v5225, 0.6931472
  %v5227 = vmul.f32 -0.5, %v5210
  %v5228 = vadd.f32 %v5227, 1.0
  %v5229 = vmul.f32 %v5228, %v5210
  %v5230 = vand.u32 2147483647, %v5210
  %vm5231 = vcmp.lt.f32.partialorder %v5230, 0.0004427343
  %v5232 = vsel %vm5231, %v5229, %v5226
  %v5233 = vadd.f32 %v5212, 1.0
  %v5234 = vlog2.pop %v5233
  %v5235 = vmul.f32 %v5234, 0.6931472
  %v5236 = vmul.f32 -0.5, %v5212
  %v5237 = vadd.f32 %v5236, 1.0
  %v5238 = vmul.f32 %v5237, %v5212
  %v5239 = vand.u32 2147483647, %v5212
  %vm5240 = vcmp.lt.f32.partialorder %v5239, 0.0004427343
  %v5241 = vsel %vm5240, %v5238, %v5235
  %v5242 = vadd.f32 %v5214, 1.0
  %v5243 = vlog2.pop %v5242
  %v5244 = vmul.f32 %v5243, 0.6931472
  %v5245 = vmul.f32 -0.5, %v5214
  %v5246 = vadd.f32 %v5245, 1.0
  %v5247 = vmul.f32 %v5246, %v5214
  %v5248 = vand.u32 2147483647, %v5214
  %vm5249 = vcmp.lt.f32.partialorder %v5248, 0.0004427343
  %v5250 = vsel %vm5249, %v5247, %v5244
  %v5251 = vadd.f32 %v5187, %v5223
  %v5252 = vadd.f32 %v5188, %v5232
  %v5253 = vadd.f32 %v5189, %v5241
  %v5254 = vadd.f32 %v5190, %v5250
  %v5255 = vsel %vm5191, %v5195, %v5251
  %v5256 = vsel %vm5192, %v5196, %v5252
  %v5257 = vsel %vm5193, %v5197, %v5253
  %v5258 = vsel %vm5194, %v5198, %v5254
  %v5259 = vtanh.pop %v5255
  %v5260 = vtanh.pop %v5256
  %v5261 = vtanh.pop %v5257
  %v5262 = vtanh.pop %v5258
  %v5263 = vmul.f32 %v5183, %v5259
  %v5264 = vmul.f32 %v5184, %v5260
  %v5265 = vmul.f32 %v5185, %v5261
  %v5266 = vmul.f32 %v5186, %v5262
  %v5267 = vadd.f32 %v5263, %v3830
  %v5268 = vadd.f32 %v5264, %v3831
  %v5269 = vadd.f32 %v5265, %v3832
  %v5270 = vadd.f32 %v5266, %v3833
  %v5271 = vld [vmem:[%s3 + $0x860] sm:$0xff]
  %v5272 = vld [vmem:[%s3 + $0x868] sm:$0xff]
  %v5273 = vld [vmem:[%s3 + $0x870] sm:$0xff]
  %v5274 = vld [vmem:[%s3 + $0x878] sm:$0xff]
  %v5275 = vld [vmem:[%s3 + $0x880] sm:$0xff]
  %v5276 = vld [vmem:[%s3 + $0x888] sm:$0xff]
  %v5277 = vld [vmem:[%s3 + $0x890] sm:$0xff]
  %v5278 = vld [vmem:[%s3 + $0x898] sm:$0xff]
  %v5279 = vld [vmem:[%s3 + $0x8a0] sm:$0xff]
  %v5280 = vld [vmem:[%s3 + $0x8a8] sm:$0xff]
  %v5281 = vld [vmem:[%s3 + $0x8b0] sm:$0xff]
  %v5282 = vld [vmem:[%s3 + $0x8b8] sm:$0xff]
  %v5283 = vld [vmem:[%s3 + $0x8c0] sm:$0xff]
  %v5284 = vld [vmem:[%s3 + $0x8c8] sm:$0xff]
  %v5285 = vld [vmem:[%s3 + $0x8d0] sm:$0xff]
  %v5286 = vld [vmem:[%s3 + $0x8d8] sm:$0xff]
  %v5287 = vld [vmem:[%s3 + $0x8e0] sm:$0xff]
  %v5288 = vld [vmem:[%s3 + $0x8e8] sm:$0xff]
  %v5289 = vld [vmem:[%s3 + $0x8f0] sm:$0xff]
  %v5290 = vld [vmem:[%s3 + $0x8f8] sm:$0xff]
  %v5291 = vld [vmem:[%s3 + $0x900] sm:$0xff]
  %v5292 = vld [vmem:[%s3 + $0x908] sm:$0xff]
  %v5293 = vld [vmem:[%s3 + $0x910] sm:$0xff]
  %v5294 = vld [vmem:[%s3 + $0x918] sm:$0xff]
  %v5296 = vsel %vm3032, %v5271, 0
  %v5299 = vsel %vm3032, %v5272, 0
  %v5302 = vsel %vm3032, %v5273, 0
  %v5305 = vsel %vm3032, %v5274, 0
  %v5308 = vsel %vm3032, %v5275, 0
  %v5311 = vsel %vm3032, %v5276, 0
  %v5314 = vsel %vm3032, %v5277, 0
  %v5317 = vsel %vm3032, %v5278, 0
  %v5320 = vsel %vm3032, %v5279, 0
  %v5323 = vsel %vm3032, %v5280, 0
  %v5326 = vsel %vm3032, %v5281, 0
  %v5329 = vsel %vm3032, %v5282, 0
  %v5332 = vsel %vm3032, %v5283, 0
  %v5335 = vsel %vm3032, %v5284, 0
  %v5338 = vsel %vm3032, %v5285, 0
  %v5341 = vsel %vm3032, %v5286, 0
  %v5344 = vsel %vm3032, %v5287, 0
  %v5347 = vsel %vm3032, %v5288, 0
  %v5350 = vsel %vm3032, %v5289, 0
  %v5353 = vsel %vm3032, %v5290, 0
  %5355 = vmatpush.msra.mxu0 0.0
  %5356 = vmatpush.msra.mxu0 0.0
  %5357 = vmatpush.msra.mxu0 0.0
  %5358 = vmatpush.msra.mxu0 0.0
  %5359 = vmatpush.msra.mxu0 0.0
  %5360 = vmatpush.msra.mxu0 0.0
  %5361 = vmatpush.msra.mxu0 0.0
  %5362 = vmatpush.msra.mxu0 0.0
  %5363 = vmatpush.msra.mxu0 0.0
  %5364 = vmatpush.msra.mxu0 0.0
  %5365 = vmatpush.msra.mxu0 0.0
  %5366 = vmatpush.msra.mxu0 0.0
  %5367 = vmatpush.msra.mxu0 %v5270
  %5368 = vmatpush.msra.mxu0 %v5269
  %5369 = vmatpush.msra.mxu0 %v5268
  %5370 = vmatpush.msra.mxu0 %v5267
  %5371 = vmatmul.f32.gmra.mxu0 %v5296
  %v5372 = vpop.f32.mrf.mxu0
  %v5373 = vadd.f32 0.0, %v5372
  %5374 = vmatmul.f32.gmra.mxu0 %v5299
  %v5375 = vpop.f32.mrf.mxu0
  %v5376 = vadd.f32 0.0, %v5375
  %5377 = vmatmul.f32.gmra.mxu0 %v5302
  %v5378 = vpop.f32.mrf.mxu0
  %v5379 = vadd.f32 0.0, %v5378
  %5380 = vmatmul.f32.gmra.mxu0 %v5305
  %v5381 = vpop.f32.mrf.mxu0
  %v5382 = vadd.f32 0.0, %v5381
  %5383 = vmatmul.f32.gmra.mxu0 %v5308
  %v5384 = vpop.f32.mrf.mxu0
  %v5385 = vadd.f32 0.0, %v5384
  %5386 = vmatmul.f32.gmra.mxu0 %v5311
  %v5387 = vpop.f32.mrf.mxu0
  %v5388 = vadd.f32 0.0, %v5387
  %5389 = vmatmul.f32.gmra.mxu0 %v5314
  %v5390 = vpop.f32.mrf.mxu0
  %v5391 = vadd.f32 0.0, %v5390
  %5392 = vmatmul.f32.gmra.mxu0 %v5317
  %v5393 = vpop.f32.mrf.mxu0
  %v5394 = vadd.f32 0.0, %v5393
  %5395 = vmatmul.f32.gmra.mxu0 %v5320
  %v5396 = vpop.f32.mrf.mxu0
  %v5397 = vadd.f32 0.0, %v5396
  %5398 = vmatmul.f32.gmra.mxu0 %v5323
  %v5399 = vpop.f32.mrf.mxu0
  %v5400 = vadd.f32 0.0, %v5399
  %5401 = vmatmul.f32.gmra.mxu0 %v5326
  %v5402 = vpop.f32.mrf.mxu0
  %v5403 = vadd.f32 0.0, %v5402
  %5404 = vmatmul.f32.gmra.mxu0 %v5329
  %v5405 = vpop.f32.mrf.mxu0
  %v5406 = vadd.f32 0.0, %v5405
  %5407 = vmatmul.f32.gmra.mxu0 %v5332
  %v5408 = vpop.f32.mrf.mxu0
  %v5409 = vadd.f32 0.0, %v5408
  %5410 = vmatmul.f32.gmra.mxu0 %v5335
  %v5411 = vpop.f32.mrf.mxu0
  %v5412 = vadd.f32 0.0, %v5411
  %5413 = vmatmul.f32.gmra.mxu0 %v5338
  %v5414 = vpop.f32.mrf.mxu0
  %v5415 = vadd.f32 0.0, %v5414
  %5416 = vmatmul.f32.gmra.mxu0 %v5341
  %v5417 = vpop.f32.mrf.mxu0
  %v5418 = vadd.f32 0.0, %v5417
  %5419 = vmatmul.f32.gmra.mxu0 %v5344
  %v5420 = vpop.f32.mrf.mxu0
  %v5421 = vadd.f32 0.0, %v5420
  %5422 = vmatmul.f32.gmra.mxu0 %v5347
  %v5423 = vpop.f32.mrf.mxu0
  %v5424 = vadd.f32 0.0, %v5423
  %5425 = vmatmul.f32.gmra.mxu0 %v5350
  %v5426 = vpop.f32.mrf.mxu0
  %v5427 = vadd.f32 0.0, %v5426
  %5428 = vmatmul.f32.gmra.mxu0 %v5353
  %v5429 = vpop.f32.mrf.mxu0
  %v5430 = vadd.f32 0.0, %v5429
  %5431 = vdwg.mxu0
  %v5433 = vsel %vm677, %v5373, 0
  %v5436 = vsel %vm677, %v5376, 0
  %v5439 = vsel %vm677, %v5379, 0
  %v5442 = vsel %vm677, %v5382, 0
  %5444 = vmatpush.msra.mxu0 0.0
  %5445 = vmatpush.msra.mxu0 0.0
  %5446 = vmatpush.msra.mxu0 0.0
  %5447 = vmatpush.msra.mxu0 0.0
  %5448 = vmatpush.msra.mxu0 0.0
  %5449 = vmatpush.msra.mxu0 0.0
  %5450 = vmatpush.msra.mxu0 0.0
  %5451 = vmatpush.msra.mxu0 0.0
  %5452 = vmatpush.msra.mxu0 0.0
  %5453 = vmatpush.msra.mxu0 0.0
  %5454 = vmatpush.msra.mxu0 0.0
  %5455 = vmatpush.msra.mxu0 0.0
  %5456 = vmatpush.msra.mxu0 0.0
  %5457 = vmatpush.msra.mxu0 0.0
  %5458 = vmatpush.msra.mxu0 0.0
  %5459 = vmatpush.msra.mxu0 %v17
  %5460 = vmatmul.f32.gmra.mxu0 %v5433
  %v5461 = vpop.f32.mrf.mxu0
  %v5462 = vadd.f32 0.0, %v5461
  %5463 = vmatmul.f32.gmra.mxu0 %v5436
  %v5464 = vpop.f32.mrf.mxu0
  %v5465 = vadd.f32 0.0, %v5464
  %5466 = vmatmul.f32.gmra.mxu0 %v5439
  %v5467 = vpop.f32.mrf.mxu0
  %v5468 = vadd.f32 0.0, %v5467
  %5469 = vmatmul.f32.gmra.mxu0 %v5442
  %v5470 = vpop.f32.mrf.mxu0
  %v5471 = vadd.f32 0.0, %v5470
  %5472 = vdwg.mxu0
  %5474 = vset.pattern.permute.xlu0 0
  %5475 = vperm.xlu0 %5474, %v5291
  %v5476 = vpop.permute.xlu0 %5475
  %5479 = vset.pattern.permute.xlu0 0
  %5480 = vperm.xlu0 %5479, %v5292
  %v5481 = vpop.permute.xlu0 %5480
  %5484 = vset.pattern.permute.xlu0 0
  %5485 = vperm.xlu0 %5484, %v5293
  %v5486 = vpop.permute.xlu0 %5485
  %5489 = vset.pattern.permute.xlu0 0
  %5490 = vperm.xlu0 %5489, %v5294
  %v5491 = vpop.permute.xlu0 %5490
  %v5493 = vadd.f32 %v5476, %v5462
  %v5494 = vadd.f32 %v5481, %v5465
  %v5495 = vadd.f32 %v5486, %v5468
  %v5496 = vadd.f32 %v5491, %v5471
  %v5498 = vsel %vm677, %v5385, 0
  %v5501 = vsel %vm677, %v5388, 0
  %v5504 = vsel %vm677, %v5391, 0
  %v5507 = vsel %vm677, %v5394, 0
  %5509 = vmatpush.msra.mxu0 0.0
  %5510 = vmatpush.msra.mxu0 0.0
  %5511 = vmatpush.msra.mxu0 0.0
  %5512 = vmatpush.msra.mxu0 0.0
  %5513 = vmatpush.msra.mxu0 0.0
  %5514 = vmatpush.msra.mxu0 0.0
  %5515 = vmatpush.msra.mxu0 0.0
  %5516 = vmatpush.msra.mxu0 0.0
  %5517 = vmatpush.msra.mxu0 0.0
  %5518 = vmatpush.msra.mxu0 0.0
  %5519 = vmatpush.msra.mxu0 0.0
  %5520 = vmatpush.msra.mxu0 0.0
  %5521 = vmatpush.msra.mxu0 0.0
  %5522 = vmatpush.msra.mxu0 0.0
  %5523 = vmatpush.msra.mxu0 0.0
  %5524 = vmatpush.msra.mxu0 %v18
  %5525 = vmatmul.f32.gmra.mxu0 %v5498
  %v5526 = vpop.f32.mrf.mxu0
  %v5527 = vadd.f32 0.0, %v5526
  %5528 = vmatmul.f32.gmra.mxu0 %v5501
  %v5529 = vpop.f32.mrf.mxu0
  %v5530 = vadd.f32 0.0, %v5529
  %5531 = vmatmul.f32.gmra.mxu0 %v5504
  %v5532 = vpop.f32.mrf.mxu0
  %v5533 = vadd.f32 0.0, %v5532
  %5534 = vmatmul.f32.gmra.mxu0 %v5507
  %v5535 = vpop.f32.mrf.mxu0
  %v5536 = vadd.f32 0.0, %v5535
  %5537 = vdwg.mxu0
  %v5538 = vadd.f32 %v5493, %v5527
  %v5539 = vadd.f32 %v5494, %v5530
  %v5540 = vadd.f32 %v5495, %v5533
  %v5541 = vadd.f32 %v5496, %v5536
  %v5543 = vsel %vm677, %v5397, 0
  %v5546 = vsel %vm677, %v5400, 0
  %v5549 = vsel %vm677, %v5403, 0
  %v5552 = vsel %vm677, %v5406, 0
  %5554 = vmatpush.msra.mxu0 0.0
  %5555 = vmatpush.msra.mxu0 0.0
  %5556 = vmatpush.msra.mxu0 0.0
  %5557 = vmatpush.msra.mxu0 0.0
  %5558 = vmatpush.msra.mxu0 0.0
  %5559 = vmatpush.msra.mxu0 0.0
  %5560 = vmatpush.msra.mxu0 0.0
  %5561 = vmatpush.msra.mxu0 0.0
  %5562 = vmatpush.msra.mxu0 0.0
  %5563 = vmatpush.msra.mxu0 0.0
  %5564 = vmatpush.msra.mxu0 0.0
  %5565 = vmatpush.msra.mxu0 0.0
  %5566 = vmatpush.msra.mxu0 0.0
  %5567 = vmatpush.msra.mxu0 0.0
  %5568 = vmatpush.msra.mxu0 0.0
  %5569 = vmatpush.msra.mxu0 %v19
  %5570 = vmatmul.f32.gmra.mxu0 %v5543
  %v5571 = vpop.f32.mrf.mxu0
  %v5572 = vadd.f32 0.0, %v5571
  %5573 = vmatmul.f32.gmra.mxu0 %v5546
  %v5574 = vpop.f32.mrf.mxu0
  %v5575 = vadd.f32 0.0, %v5574
  %5576 = vmatmul.f32.gmra.mxu0 %v5549
  %v5577 = vpop.f32.mrf.mxu0
  %v5578 = vadd.f32 0.0, %v5577
  %5579 = vmatmul.f32.gmra.mxu0 %v5552
  %v5580 = vpop.f32.mrf.mxu0
  %v5581 = vadd.f32 0.0, %v5580
  %5582 = vdwg.mxu0
  %v5583 = vadd.f32 %v5538, %v5572
  %v5584 = vadd.f32 %v5539, %v5575
  %v5585 = vadd.f32 %v5540, %v5578
  %v5586 = vadd.f32 %v5541, %v5581
  %v5588 = vsel %vm677, %v5409, 0
  %v5591 = vsel %vm677, %v5412, 0
  %v5594 = vsel %vm677, %v5415, 0
  %v5597 = vsel %vm677, %v5418, 0
  %5599 = vmatpush.msra.mxu0 0.0
  %5600 = vmatpush.msra.mxu0 0.0
  %5601 = vmatpush.msra.mxu0 0.0
  %5602 = vmatpush.msra.mxu0 0.0
  %5603 = vmatpush.msra.mxu0 0.0
  %5604 = vmatpush.msra.mxu0 0.0
  %5605 = vmatpush.msra.mxu0 0.0
  %5606 = vmatpush.msra.mxu0 0.0
  %5607 = vmatpush.msra.mxu0 0.0
  %5608 = vmatpush.msra.mxu0 0.0
  %5609 = vmatpush.msra.mxu0 0.0
  %5610 = vmatpush.msra.mxu0 0.0
  %5611 = vmatpush.msra.mxu0 0.0
  %5612 = vmatpush.msra.mxu0 0.0
  %5613 = vmatpush.msra.mxu0 0.0
  %5614 = vmatpush.msra.mxu0 %v20
  %5615 = vmatmul.f32.gmra.mxu0 %v5588
  %v5616 = vpop.f32.mrf.mxu0
  %v5617 = vadd.f32 0.0, %v5616
  %5618 = vmatmul.f32.gmra.mxu0 %v5591
  %v5619 = vpop.f32.mrf.mxu0
  %v5620 = vadd.f32 0.0, %v5619
  %5621 = vmatmul.f32.gmra.mxu0 %v5594
  %v5622 = vpop.f32.mrf.mxu0
  %v5623 = vadd.f32 0.0, %v5622
  %5624 = vmatmul.f32.gmra.mxu0 %v5597
  %v5625 = vpop.f32.mrf.mxu0
  %v5626 = vadd.f32 0.0, %v5625
  %5627 = vdwg.mxu0
  %v5628 = vadd.f32 %v5583, %v5617
  %v5629 = vadd.f32 %v5584, %v5620
  %v5630 = vadd.f32 %v5585, %v5623
  %v5631 = vadd.f32 %v5586, %v5626
  %v5633 = vsel %vm677, %v5421, 0
  %v5636 = vsel %vm677, %v5424, 0
  %v5639 = vsel %vm677, %v5427, 0
  %v5642 = vsel %vm677, %v5430, 0
  %5644 = vmatpush.msra.mxu0 0.0
  %5645 = vmatpush.msra.mxu0 0.0
  %5646 = vmatpush.msra.mxu0 0.0
  %5647 = vmatpush.msra.mxu0 0.0
  %5648 = vmatpush.msra.mxu0 0.0
  %5649 = vmatpush.msra.mxu0 0.0
  %5650 = vmatpush.msra.mxu0 0.0
  %5651 = vmatpush.msra.mxu0 0.0
  %5652 = vmatpush.msra.mxu0 0.0
  %5653 = vmatpush.msra.mxu0 0.0
  %5654 = vmatpush.msra.mxu0 0.0
  %5655 = vmatpush.msra.mxu0 0.0
  %5656 = vmatpush.msra.mxu0 0.0
  %5657 = vmatpush.msra.mxu0 0.0
  %5658 = vmatpush.msra.mxu0 0.0
  %5659 = vmatpush.msra.mxu0 %v21
  %5660 = vmatmul.f32.gmra.mxu0 %v5633
  %v5661 = vpop.f32.mrf.mxu0
  %v5662 = vadd.f32 0.0, %v5661
  %5663 = vmatmul.f32.gmra.mxu0 %v5636
  %v5664 = vpop.f32.mrf.mxu0
  %v5665 = vadd.f32 0.0, %v5664
  %5666 = vmatmul.f32.gmra.mxu0 %v5639
  %v5667 = vpop.f32.mrf.mxu0
  %v5668 = vadd.f32 0.0, %v5667
  %5669 = vmatmul.f32.gmra.mxu0 %v5642
  %v5670 = vpop.f32.mrf.mxu0
  %v5671 = vadd.f32 0.0, %v5670
  %5672 = vdwg.mxu0
  %v5673 = vadd.f32 %v5628, %v5662
  %v5674 = vadd.f32 %v5629, %v5665
  %v5675 = vadd.f32 %v5630, %v5668
  %v5676 = vadd.f32 %v5631, %v5671
  %v5677 = vmax.f32 %v5673, 0.0
  %v5678 = vmax.f32 %v5674, 0.0
  %v5679 = vmax.f32 %v5675, 0.0
  %v5680 = vmax.f32 %v5676, 0.0
  %vm5681 = vcmp.ne.f32.partialorder %v5673, %v5673
  %vm5682 = vcmp.ne.f32.partialorder %v5674, %v5674
  %vm5683 = vcmp.ne.f32.partialorder %v5675, %v5675
  %vm5684 = vcmp.ne.f32.partialorder %v5676, %v5676
  %v5685 = vadd.f32 %v5673, 0.0
  %v5686 = vadd.f32 %v5674, 0.0
  %v5687 = vadd.f32 %v5675, 0.0
  %v5688 = vadd.f32 %v5676, 0.0
  %v5689 = vand.u32 2147483647, %v5673
  %v5690 = vand.u32 2147483647, %v5674
  %v5691 = vand.u32 2147483647, %v5675
  %v5692 = vand.u32 2147483647, %v5676
  %v5693 = vsub.f32 0.0, %v5689
  %v5694 = vsub.f32 0.0, %v5690
  %v5695 = vsub.f32 0.0, %v5691
  %v5696 = vsub.f32 0.0, %v5692
  %v5697 = vmul.f32 %v5693, 1.442695
  %v5698 = vpow.pop %v5697
  %v5699 = vmul.f32 %v5694, 1.442695
  %v5700 = vpow.pop %v5699
  %v5701 = vmul.f32 %v5695, 1.442695
  %v5702 = vpow.pop %v5701
  %v5703 = vmul.f32 %v5696, 1.442695
  %v5704 = vpow.pop %v5703
  %v5705 = vadd.f32 %v5698, 1.0
  %v5706 = vlog2.pop %v5705
  %v5707 = vmul.f32 %v5706, 0.6931472
  %v5708 = vmul.f32 -0.5, %v5698
  %v5709 = vadd.f32 %v5708, 1.0
  %v5710 = vmul.f32 %v5709, %v5698
  %v5711 = vand.u32 2147483647, %v5698
  %vm5712 = vcmp.lt.f32.partialorder %v5711, 0.0004427343
  %v5713 = vsel %vm5712, %v5710, %v5707
  %v5714 = vadd.f32 %v5700, 1.0
  %v5715 = vlog2.pop %v5714
  %v5716 = vmul.f32 %v5715, 0.6931472
  %v5717 = vmul.f32 -0.5, %v5700
  %v5718 = vadd.f32 %v5717, 1.0
  %v5719 = vmul.f32 %v5718, %v5700
  %v5720 = vand.u32 2147483647, %v5700
  %vm5721 = vcmp.lt.f32.partialorder %v5720, 0.0004427343
  %v5722 = vsel %vm5721, %v5719, %v5716
  %v5723 = vadd.f32 %v5702, 1.0
  %v5724 = vlog2.pop %v5723
  %v5725 = vmul.f32 %v5724, 0.6931472
  %v5726 = vmul.f32 -0.5, %v5702
  %v5727 = vadd.f32 %v5726, 1.0
  %v5728 = vmul.f32 %v5727, %v5702
  %v5729 = vand.u32 2147483647, %v5702
  %vm5730 = vcmp.lt.f32.partialorder %v5729, 0.0004427343
  %v5731 = vsel %vm5730, %v5728, %v5725
  %v5732 = vadd.f32 %v5704, 1.0
  %v5733 = vlog2.pop %v5732
  %v5734 = vmul.f32 %v5733, 0.6931472
  %v5735 = vmul.f32 -0.5, %v5704
  %v5736 = vadd.f32 %v5735, 1.0
  %v5737 = vmul.f32 %v5736, %v5704
  %v5738 = vand.u32 2147483647, %v5704
  %vm5739 = vcmp.lt.f32.partialorder %v5738, 0.0004427343
  %v5740 = vsel %vm5739, %v5737, %v5734
  %v5741 = vadd.f32 %v5677, %v5713
  %v5742 = vadd.f32 %v5678, %v5722
  %v5743 = vadd.f32 %v5679, %v5731
  %v5744 = vadd.f32 %v5680, %v5740
  %v5745 = vsel %vm5681, %v5685, %v5741
  %v5746 = vsel %vm5682, %v5686, %v5742
  %v5747 = vsel %vm5683, %v5687, %v5743
  %v5748 = vsel %vm5684, %v5688, %v5744
  %v5749 = vtanh.pop %v5745
  %v5750 = vtanh.pop %v5746
  %v5751 = vtanh.pop %v5747
  %v5752 = vtanh.pop %v5748
  %v5753 = vmul.f32 %v5673, %v5749
  %v5754 = vmul.f32 %v5674, %v5750
  %v5755 = vmul.f32 %v5675, %v5751
  %v5756 = vmul.f32 %v5676, %v5752
  %v5757 = vld [vmem:[%s3 + $0x9e0] sm:$0xff]
  %v5758 = vld [vmem:[%s3 + $0x9e8] sm:$0xff]
  %v5759 = vld [vmem:[%s3 + $0x9f0] sm:$0xff]
  %v5760 = vld [vmem:[%s3 + $0x9f8] sm:$0xff]
  %v5761 = vld [vmem:[%s3 + $0xa00] sm:$0xff]
  %v5762 = vld [vmem:[%s3 + $0xa08] sm:$0xff]
  %v5763 = vld [vmem:[%s3 + $0xa10] sm:$0xff]
  %v5764 = vld [vmem:[%s3 + $0xa18] sm:$0xff]
  %v5766 = vsel %vm677, %v5761, 0
  %v5769 = vsel %vm677, %v5762, 0
  %v5772 = vsel %vm677, %v5763, 0
  %v5775 = vsel %vm677, %v5764, 0
  %5777 = vmatpush.msra.mxu0 0.0
  %5778 = vmatpush.msra.mxu0 0.0
  %5779 = vmatpush.msra.mxu0 0.0
  %5780 = vmatpush.msra.mxu0 0.0
  %5781 = vmatpush.msra.mxu0 0.0
  %5782 = vmatpush.msra.mxu0 0.0
  %5783 = vmatpush.msra.mxu0 0.0
  %5784 = vmatpush.msra.mxu0 0.0
  %5785 = vmatpush.msra.mxu0 0.0
  %5786 = vmatpush.msra.mxu0 0.0
  %5787 = vmatpush.msra.mxu0 0.0
  %5788 = vmatpush.msra.mxu0 0.0
  %5789 = vmatpush.msra.mxu0 0.0
  %5790 = vmatpush.msra.mxu0 0.0
  %5791 = vmatpush.msra.mxu0 0.0
  %5792 = vmatpush.msra.mxu0 %v46
  %5793 = vmatmul.f32.gmra.mxu0 %v5766
  %v5794 = vpop.f32.mrf.mxu0
  %v5795 = vadd.f32 0.0, %v5794
  %5796 = vmatmul.f32.gmra.mxu0 %v5769
  %v5797 = vpop.f32.mrf.mxu0
  %v5798 = vadd.f32 0.0, %v5797
  %5799 = vmatmul.f32.gmra.mxu0 %v5772
  %v5800 = vpop.f32.mrf.mxu0
  %v5801 = vadd.f32 0.0, %v5800
  %5802 = vmatmul.f32.gmra.mxu0 %v5775
  %v5803 = vpop.f32.mrf.mxu0
  %v5804 = vadd.f32 0.0, %v5803
  %5805 = vdwg.mxu0
  %v5807 = vsel %vm104, %v5757, 0
  %v5810 = vsel %vm104, %v5758, 0
  %v5813 = vsel %vm104, %v5759, 0
  %v5816 = vsel %vm104, %v5760, 0
  %5818 = vmatpush.msra.mxu0 0.0
  %5819 = vmatpush.msra.mxu0 0.0
  %5820 = vmatpush.msra.mxu0 0.0
  %5821 = vmatpush.msra.mxu0 0.0
  %5822 = vmatpush.msra.mxu0 0.0
  %5823 = vmatpush.msra.mxu0 0.0
  %5824 = vmatpush.msra.mxu0 0.0
  %5825 = vmatpush.msra.mxu0 0.0
  %5826 = vmatpush.msra.mxu0 0.0
  %5827 = vmatpush.msra.mxu0 0.0
  %5828 = vmatpush.msra.mxu0 0.0
  %5829 = vmatpush.msra.mxu0 0.0
  %5830 = vmatpush.msra.mxu0 0.0
  %5831 = vmatpush.msra.mxu0 0.0
  %5832 = vmatpush.msra.mxu0 %v372
  %5833 = vmatpush.msra.mxu0 %v369
  %5834 = vmatmul.f32.gmra.mxu0 %v5807
  %v5835 = vpop.f32.mrf.mxu0
  %v5836 = vadd.f32 %v5795, %v5835
  %5837 = vmatmul.f32.gmra.mxu0 %v5810
  %v5838 = vpop.f32.mrf.mxu0
  %v5839 = vadd.f32 %v5798, %v5838
  %5840 = vmatmul.f32.gmra.mxu0 %v5813
  %v5841 = vpop.f32.mrf.mxu0
  %v5842 = vadd.f32 %v5801, %v5841
  %5843 = vmatmul.f32.gmra.mxu0 %v5816
  %v5844 = vpop.f32.mrf.mxu0
  %v5845 = vadd.f32 %v5804, %v5844
  %5846 = vdwg.mxu0
  %v5847 = vld [vmem:[%s3 + $0xa20] sm:$0xff]
  %v5848 = vld [vmem:[%s3 + $0xa28] sm:$0xff]
  %v5849 = vld [vmem:[%s3 + $0xa30] sm:$0xff]
  %v5850 = vld [vmem:[%s3 + $0xa38] sm:$0xff]
  %5852 = vset.pattern.permute.xlu0 0
  %5853 = vperm.xlu0 %5852, %v5847
  %v5854 = vpop.permute.xlu0 %5853
  %5857 = vset.pattern.permute.xlu0 0
  %5858 = vperm.xlu0 %5857, %v5848
  %v5859 = vpop.permute.xlu0 %5858
  %5862 = vset.pattern.permute.xlu0 0
  %5863 = vperm.xlu0 %5862, %v5849
  %v5864 = vpop.permute.xlu0 %5863
  %5867 = vset.pattern.permute.xlu0 0
  %5868 = vperm.xlu0 %5867, %v5850
  %v5869 = vpop.permute.xlu0 %5868
  %v5871 = vadd.f32 %v5836, %v5854
  %v5872 = vadd.f32 %v5839, %v5859
  %v5873 = vadd.f32 %v5842, %v5864
  %v5874 = vadd.f32 %v5845, %v5869
  %v5875 = vmax.f32 %v5871, 0.0
  %v5876 = vmax.f32 %v5872, 0.0
  %v5877 = vmax.f32 %v5873, 0.0
  %v5878 = vmax.f32 %v5874, 0.0
  %vm5879 = vcmp.ne.f32.partialorder %v5871, %v5871
  %vm5880 = vcmp.ne.f32.partialorder %v5872, %v5872
  %vm5881 = vcmp.ne.f32.partialorder %v5873, %v5873
  %vm5882 = vcmp.ne.f32.partialorder %v5874, %v5874
  %v5883 = vadd.f32 %v5871, 0.0
  %v5884 = vadd.f32 %v5872, 0.0
  %v5885 = vadd.f32 %v5873, 0.0
  %v5886 = vadd.f32 %v5874, 0.0
  %v5887 = vand.u32 2147483647, %v5871
  %v5888 = vand.u32 2147483647, %v5872
  %v5889 = vand.u32 2147483647, %v5873
  %v5890 = vand.u32 2147483647, %v5874
  %v5891 = vsub.f32 0.0, %v5887
  %v5892 = vsub.f32 0.0, %v5888
  %v5893 = vsub.f32 0.0, %v5889
  %v5894 = vsub.f32 0.0, %v5890
  %v5895 = vmul.f32 %v5891, 1.442695
  %v5896 = vpow.pop %v5895
  %v5897 = vmul.f32 %v5892, 1.442695
  %v5898 = vpow.pop %v5897
  %v5899 = vmul.f32 %v5893, 1.442695
  %v5900 = vpow.pop %v5899
  %v5901 = vmul.f32 %v5894, 1.442695
  %v5902 = vpow.pop %v5901
  %v5903 = vadd.f32 %v5896, 1.0
  %v5904 = vlog2.pop %v5903
  %v5905 = vmul.f32 %v5904, 0.6931472
  %v5906 = vmul.f32 -0.5, %v5896
  %v5907 = vadd.f32 %v5906, 1.0
  %v5908 = vmul.f32 %v5907, %v5896
  %v5909 = vand.u32 2147483647, %v5896
  %vm5910 = vcmp.lt.f32.partialorder %v5909, 0.0004427343
  %v5911 = vsel %vm5910, %v5908, %v5905
  %v5912 = vadd.f32 %v5898, 1.0
  %v5913 = vlog2.pop %v5912
  %v5914 = vmul.f32 %v5913, 0.6931472
  %v5915 = vmul.f32 -0.5, %v5898
  %v5916 = vadd.f32 %v5915, 1.0
  %v5917 = vmul.f32 %v5916, %v5898
  %v5918 = vand.u32 2147483647, %v5898
  %vm5919 = vcmp.lt.f32.partialorder %v5918, 0.0004427343
  %v5920 = vsel %vm5919, %v5917, %v5914
  %v5921 = vadd.f32 %v5900, 1.0
  %v5922 = vlog2.pop %v5921
  %v5923 = vmul.f32 %v5922, 0.6931472
  %v5924 = vmul.f32 -0.5, %v5900
  %v5925 = vadd.f32 %v5924, 1.0
  %v5926 = vmul.f32 %v5925, %v5900
  %v5927 = vand.u32 2147483647, %v5900
  %vm5928 = vcmp.lt.f32.partialorder %v5927, 0.0004427343
  %v5929 = vsel %vm5928, %v5926, %v5923
  %v5930 = vadd.f32 %v5902, 1.0
  %v5931 = vlog2.pop %v5930
  %v5932 = vmul.f32 %v5931, 0.6931472
  %v5933 = vmul.f32 -0.5, %v5902
  %v5934 = vadd.f32 %v5933, 1.0
  %v5935 = vmul.f32 %v5934, %v5902
  %v5936 = vand.u32 2147483647, %v5902
  %vm5937 = vcmp.lt.f32.partialorder %v5936, 0.0004427343
  %v5938 = vsel %vm5937, %v5935, %v5932
  %v5939 = vadd.f32 %v5875, %v5911
  %v5940 = vadd.f32 %v5876, %v5920
  %v5941 = vadd.f32 %v5877, %v5929
  %v5942 = vadd.f32 %v5878, %v5938
  %v5943 = vsel %vm5879, %v5883, %v5939
  %v5944 = vsel %vm5880, %v5884, %v5940
  %v5945 = vsel %vm5881, %v5885, %v5941
  %v5946 = vsel %vm5882, %v5886, %v5942
  %v5947 = vtanh.pop %v5943
  %v5948 = vtanh.pop %v5944
  %v5949 = vtanh.pop %v5945
  %v5950 = vtanh.pop %v5946
  %v5951 = vmul.f32 %v5871, %v5947
  %v5952 = vmul.f32 %v5872, %v5948
  %v5953 = vmul.f32 %v5873, %v5949
  %v5954 = vmul.f32 %v5874, %v5950
  %v5955 = vld [vmem:[%s3 + $0xa40] sm:$0xff]
  %v5956 = vld [vmem:[%s3 + $0xa48] sm:$0xff]
  %v5957 = vld [vmem:[%s3 + $0xa50] sm:$0xff]
  %v5958 = vld [vmem:[%s3 + $0xa58] sm:$0xff]
  %v5959 = vld [vmem:[%s3 + $0xa60] sm:$0xff]
  %v5960 = vld [vmem:[%s3 + $0xa68] sm:$0xff]
  %v5961 = vld [vmem:[%s3 + $0xa70] sm:$0xff]
  %v5962 = vld [vmem:[%s3 + $0xa78] sm:$0xff]
  %5964 = vset.pattern.permute.xlu0 0
  %5965 = vperm.xlu0 %5964, %v5959
  %v5966 = vpop.permute.xlu0 %5965
  %5969 = vset.pattern.permute.xlu0 0
  %5970 = vperm.xlu0 %5969, %v5960
  %v5971 = vpop.permute.xlu0 %5970
  %5974 = vset.pattern.permute.xlu0 0
  %5975 = vperm.xlu0 %5974, %v5961
  %v5976 = vpop.permute.xlu0 %5975
  %5979 = vset.pattern.permute.xlu0 0
  %5980 = vperm.xlu0 %5979, %v5962
  %v5981 = vpop.permute.xlu0 %5980
  %v5984 = vsel %vm3032, %v5955, 0
  %v5987 = vsel %vm3032, %v5956, 0
  %v5990 = vsel %vm3032, %v5957, 0
  %v5993 = vsel %vm3032, %v5958, 0
  %5995 = vmatpush.msra.mxu0 0.0
  %5996 = vmatpush.msra.mxu0 0.0
  %5997 = vmatpush.msra.mxu0 0.0
  %5998 = vmatpush.msra.mxu0 0.0
  %5999 = vmatpush.msra.mxu0 0.0
  %6000 = vmatpush.msra.mxu0 0.0
  %6001 = vmatpush.msra.mxu0 0.0
  %6002 = vmatpush.msra.mxu0 0.0
  %6003 = vmatpush.msra.mxu0 0.0
  %6004 = vmatpush.msra.mxu0 0.0
  %6005 = vmatpush.msra.mxu0 0.0
  %6006 = vmatpush.msra.mxu0 0.0
  %6007 = vmatpush.msra.mxu0 %v5954
  %6008 = vmatpush.msra.mxu0 %v5953
  %6009 = vmatpush.msra.mxu0 %v5952
  %6010 = vmatpush.msra.mxu0 %v5951
  %6011 = vmatmul.f32.gmra.mxu0 %v5984
  %v6012 = vpop.f32.mrf.mxu0
  %v6013 = vadd.f32 %v5966, %v6012
  %6014 = vmatmul.f32.gmra.mxu0 %v5987
  %v6015 = vpop.f32.mrf.mxu0
  %v6016 = vadd.f32 %v5971, %v6015
  %6017 = vmatmul.f32.gmra.mxu0 %v5990
  %v6018 = vpop.f32.mrf.mxu0
  %v6019 = vadd.f32 %v5976, %v6018
  %6020 = vmatmul.f32.gmra.mxu0 %v5993
  %v6021 = vpop.f32.mrf.mxu0
  %v6022 = vadd.f32 %v5981, %v6021
  %6023 = vdwg.mxu0
  %v6024 = vmax.f32 %v6013, 0.0
  %v6025 = vmax.f32 %v6016, 0.0
  %v6026 = vmax.f32 %v6019, 0.0
  %v6027 = vmax.f32 %v6022, 0.0
  %vm6028 = vcmp.ne.f32.partialorder %v6013, %v6013
  %vm6029 = vcmp.ne.f32.partialorder %v6016, %v6016
  %vm6030 = vcmp.ne.f32.partialorder %v6019, %v6019
  %vm6031 = vcmp.ne.f32.partialorder %v6022, %v6022
  %v6032 = vadd.f32 %v6013, 0.0
  %v6033 = vadd.f32 %v6016, 0.0
  %v6034 = vadd.f32 %v6019, 0.0
  %v6035 = vadd.f32 %v6022, 0.0
  %v6036 = vand.u32 2147483647, %v6013
  %v6037 = vand.u32 2147483647, %v6016
  %v6038 = vand.u32 2147483647, %v6019
  %v6039 = vand.u32 2147483647, %v6022
  %v6040 = vsub.f32 0.0, %v6036
  %v6041 = vsub.f32 0.0, %v6037
  %v6042 = vsub.f32 0.0, %v6038
  %v6043 = vsub.f32 0.0, %v6039
  %v6044 = vmul.f32 %v6040, 1.442695
  %v6045 = vpow.pop %v6044
  %v6046 = vmul.f32 %v6041, 1.442695
  %v6047 = vpow.pop %v6046
  %v6048 = vmul.f32 %v6042, 1.442695
  %v6049 = vpow.pop %v6048
  %v6050 = vmul.f32 %v6043, 1.442695
  %v6051 = vpow.pop %v6050
  %v6052 = vadd.f32 %v6045, 1.0
  %v6053 = vlog2.pop %v6052
  %v6054 = vmul.f32 %v6053, 0.6931472
  %v6055 = vmul.f32 -0.5, %v6045
  %v6056 = vadd.f32 %v6055, 1.0
  %v6057 = vmul.f32 %v6056, %v6045
  %v6058 = vand.u32 2147483647, %v6045
  %vm6059 = vcmp.lt.f32.partialorder %v6058, 0.0004427343
  %v6060 = vsel %vm6059, %v6057, %v6054
  %v6061 = vadd.f32 %v6047, 1.0
  %v6062 = vlog2.pop %v6061
  %v6063 = vmul.f32 %v6062, 0.6931472
  %v6064 = vmul.f32 -0.5, %v6047
  %v6065 = vadd.f32 %v6064, 1.0
  %v6066 = vmul.f32 %v6065, %v6047
  %v6067 = vand.u32 2147483647, %v6047
  %vm6068 = vcmp.lt.f32.partialorder %v6067, 0.0004427343
  %v6069 = vsel %vm6068, %v6066, %v6063
  %v6070 = vadd.f32 %v6049, 1.0
  %v6071 = vlog2.pop %v6070
  %v6072 = vmul.f32 %v6071, 0.6931472
  %v6073 = vmul.f32 -0.5, %v6049
  %v6074 = vadd.f32 %v6073, 1.0
  %v6075 = vmul.f32 %v6074, %v6049
  %v6076 = vand.u32 2147483647, %v6049
  %vm6077 = vcmp.lt.f32.partialorder %v6076, 0.0004427343
  %v6078 = vsel %vm6077, %v6075, %v6072
  %v6079 = vadd.f32 %v6051, 1.0
  %v6080 = vlog2.pop %v6079
  %v6081 = vmul.f32 %v6080, 0.6931472
  %v6082 = vmul.f32 -0.5, %v6051
  %v6083 = vadd.f32 %v6082, 1.0
  %v6084 = vmul.f32 %v6083, %v6051
  %v6085 = vand.u32 2147483647, %v6051
  %vm6086 = vcmp.lt.f32.partialorder %v6085, 0.0004427343
  %v6087 = vsel %vm6086, %v6084, %v6081
  %v6088 = vadd.f32 %v6024, %v6060
  %v6089 = vadd.f32 %v6025, %v6069
  %v6090 = vadd.f32 %v6026, %v6078
  %v6091 = vadd.f32 %v6027, %v6087
  %v6092 = vsel %vm6028, %v6032, %v6088
  %v6093 = vsel %vm6029, %v6033, %v6089
  %v6094 = vsel %vm6030, %v6034, %v6090
  %v6095 = vsel %vm6031, %v6035, %v6091
  %v6096 = vtanh.pop %v6092
  %v6097 = vtanh.pop %v6093
  %v6098 = vtanh.pop %v6094
  %v6099 = vtanh.pop %v6095
  %v6100 = vmul.f32 %v6013, %v6096
  %v6101 = vmul.f32 %v6016, %v6097
  %v6102 = vmul.f32 %v6019, %v6098
  %v6103 = vmul.f32 %v6022, %v6099
  %v6104 = vld [vmem:[%s3 + $0xa80] sm:$0xff]
  %v6105 = vld [vmem:[%s3 + $0xa88] sm:$0xff]
  %v6106 = vld [vmem:[%s3 + $0xa90] sm:$0xff]
  %v6107 = vld [vmem:[%s3 + $0xa98] sm:$0xff]
  %v6108 = vld [vmem:[%s3 + $0xaa0] sm:$0xff]
  %v6109 = vld [vmem:[%s3 + $0xaa8] sm:$0xff]
  %v6110 = vld [vmem:[%s3 + $0xab0] sm:$0xff]
  %v6111 = vld [vmem:[%s3 + $0xab8] sm:$0xff]
  %6113 = vset.pattern.permute.xlu0 0
  %6114 = vperm.xlu0 %6113, %v6108
  %v6115 = vpop.permute.xlu0 %6114
  %6118 = vset.pattern.permute.xlu0 0
  %6119 = vperm.xlu0 %6118, %v6109
  %v6120 = vpop.permute.xlu0 %6119
  %6123 = vset.pattern.permute.xlu0 0
  %6124 = vperm.xlu0 %6123, %v6110
  %v6125 = vpop.permute.xlu0 %6124
  %6128 = vset.pattern.permute.xlu0 0
  %6129 = vperm.xlu0 %6128, %v6111
  %v6130 = vpop.permute.xlu0 %6129
  %v6133 = vsel %vm3032, %v6104, 0
  %v6136 = vsel %vm3032, %v6105, 0
  %v6139 = vsel %vm3032, %v6106, 0
  %v6142 = vsel %vm3032, %v6107, 0
  %6144 = vmatpush.msra.mxu0 0.0
  %6145 = vmatpush.msra.mxu0 0.0
  %6146 = vmatpush.msra.mxu0 0.0
  %6147 = vmatpush.msra.mxu0 0.0
  %6148 = vmatpush.msra.mxu0 0.0
  %6149 = vmatpush.msra.mxu0 0.0
  %6150 = vmatpush.msra.mxu0 0.0
  %6151 = vmatpush.msra.mxu0 0.0
  %6152 = vmatpush.msra.mxu0 0.0
  %6153 = vmatpush.msra.mxu0 0.0
  %6154 = vmatpush.msra.mxu0 0.0
  %6155 = vmatpush.msra.mxu0 0.0
  %6156 = vmatpush.msra.mxu0 %v6103
  %6157 = vmatpush.msra.mxu0 %v6102
  %6158 = vmatpush.msra.mxu0 %v6101
  %6159 = vmatpush.msra.mxu0 %v6100
  %6160 = vmatmul.f32.gmra.mxu0 %v6133
  %v6161 = vpop.f32.mrf.mxu0
  %v6162 = vadd.f32 %v6115, %v6161
  %6163 = vmatmul.f32.gmra.mxu0 %v6136
  %v6164 = vpop.f32.mrf.mxu0
  %v6165 = vadd.f32 %v6120, %v6164
  %6166 = vmatmul.f32.gmra.mxu0 %v6139
  %v6167 = vpop.f32.mrf.mxu0
  %v6168 = vadd.f32 %v6125, %v6167
  %6169 = vmatmul.f32.gmra.mxu0 %v6142
  %v6170 = vpop.f32.mrf.mxu0
  %v6171 = vadd.f32 %v6130, %v6170
  %6172 = vdwg.mxu0
  %v6174 = vsel %vm916, %v6162, 0
  %v6177 = vsel %vm916, %v6165, 0
  %v6180 = vsel %vm916, %v6168, 0
  %v6183 = vsel %vm916, %v6171, 0
  %6185 = vmatpush.msra.mxu0 0.0
  %6186 = vmatpush.msra.mxu0 0.0
  %6187 = vmatpush.msra.mxu0 0.0
  %6188 = vmatpush.msra.mxu0 0.0
  %6189 = vmatpush.msra.mxu0 0.0
  %6190 = vmatpush.msra.mxu0 0.0
  %6191 = vmatpush.msra.mxu0 0.0
  %6192 = vmatpush.msra.mxu0 0.0
  %6193 = vmatpush.msra.mxu0 0.0
  %6194 = vmatpush.msra.mxu0 0.0
  %6195 = vmatpush.msra.mxu0 0.0
  %6196 = vmatpush.msra.mxu0 0.0
  %6197 = vmatpush.msra.mxu0 0.0
  %6198 = vmatpush.msra.mxu0 0.0
  %6199 = vmatpush.msra.mxu0 0.0
  %6200 = vmatpush.msra.mxu0 %v3236
  %6201 = vmatmul.f32.gmra.mxu0 %v6174
  %v6202 = vpop.f32.mrf.mxu0
  %v6203 = vadd.f32 0.0, %v6202
  %6204 = vmatmul.f32.gmra.mxu0 %v6177
  %v6205 = vpop.f32.mrf.mxu0
  %v6206 = vadd.f32 0.0, %v6205
  %6207 = vmatmul.f32.gmra.mxu0 %v6180
  %v6208 = vpop.f32.mrf.mxu0
  %v6209 = vadd.f32 0.0, %v6208
  %6210 = vmatmul.f32.gmra.mxu0 %v6183
  %v6211 = vpop.f32.mrf.mxu0
  %v6212 = vadd.f32 0.0, %v6211
  %6213 = vdwg.mxu0
  %v6214 = vadd.f32 %v5753, %v6203
  %v6215 = vadd.f32 %v5754, %v6206
  %v6216 = vadd.f32 %v5755, %v6209
  %v6217 = vadd.f32 %v5756, %v6212
  %v6218 = vld [vmem:[%s3 + $0x920] sm:$0xff]
  %v6219 = vld [vmem:[%s3 + $0x928] sm:$0xff]
  %v6220 = vld [vmem:[%s3 + $0x930] sm:$0xff]
  %v6221 = vld [vmem:[%s3 + $0x938] sm:$0xff]
  %v6222 = vld [vmem:[%s3 + $0x940] sm:$0xff]
  %v6223 = vld [vmem:[%s3 + $0x948] sm:$0xff]
  %v6224 = vld [vmem:[%s3 + $0x950] sm:$0xff]
  %v6225 = vld [vmem:[%s3 + $0x958] sm:$0xff]
  %v6226 = vld [vmem:[%s3 + $0x960] sm:$0xff]
  %v6227 = vld [vmem:[%s3 + $0x968] sm:$0xff]
  %v6228 = vld [vmem:[%s3 + $0x970] sm:$0xff]
  %v6229 = vld [vmem:[%s3 + $0x978] sm:$0xff]
  %v6230 = vld [vmem:[%s3 + $0x980] sm:$0xff]
  %v6231 = vld [vmem:[%s3 + $0x988] sm:$0xff]
  %v6232 = vld [vmem:[%s3 + $0x990] sm:$0xff]
  %v6233 = vld [vmem:[%s3 + $0x998] sm:$0xff]
  %v6234 = vld [vmem:[%s3 + $0x9a0] sm:$0xff]
  %v6235 = vld [vmem:[%s3 + $0x9a8] sm:$0xff]
  %v6236 = vld [vmem:[%s3 + $0x9b0] sm:$0xff]
  %v6237 = vld [vmem:[%s3 + $0x9b8] sm:$0xff]
  %v6238 = vld [vmem:[%s3 + $0x9c0] sm:$0xff]
  %v6239 = vld [vmem:[%s3 + $0x9c8] sm:$0xff]
  %v6240 = vld [vmem:[%s3 + $0x9d0] sm:$0xff]
  %v6241 = vld [vmem:[%s3 + $0x9d8] sm:$0xff]
  %v6243 = vsel %vm3032, %v6218, 0
  %v6246 = vsel %vm3032, %v6219, 0
  %v6249 = vsel %vm3032, %v6220, 0
  %v6252 = vsel %vm3032, %v6221, 0
  %v6255 = vsel %vm3032, %v6222, 0
  %v6258 = vsel %vm3032, %v6223, 0
  %v6261 = vsel %vm3032, %v6224, 0
  %v6264 = vsel %vm3032, %v6225, 0
  %v6267 = vsel %vm3032, %v6226, 0
  %v6270 = vsel %vm3032, %v6227, 0
  %v6273 = vsel %vm3032, %v6228, 0
  %v6276 = vsel %vm3032, %v6229, 0
  %v6279 = vsel %vm3032, %v6230, 0
  %v6282 = vsel %vm3032, %v6231, 0
  %v6285 = vsel %vm3032, %v6232, 0
  %v6288 = vsel %vm3032, %v6233, 0
  %v6291 = vsel %vm3032, %v6234, 0
  %v6294 = vsel %vm3032, %v6235, 0
  %v6297 = vsel %vm3032, %v6236, 0
  %v6300 = vsel %vm3032, %v6237, 0
  %6302 = vmatpush.msra.mxu0 0.0
  %6303 = vmatpush.msra.mxu0 0.0
  %6304 = vmatpush.msra.mxu0 0.0
  %6305 = vmatpush.msra.mxu0 0.0
  %6306 = vmatpush.msra.mxu0 0.0
  %6307 = vmatpush.msra.mxu0 0.0
  %6308 = vmatpush.msra.mxu0 0.0
  %6309 = vmatpush.msra.mxu0 0.0
  %6310 = vmatpush.msra.mxu0 0.0
  %6311 = vmatpush.msra.mxu0 0.0
  %6312 = vmatpush.msra.mxu0 0.0
  %6313 = vmatpush.msra.mxu0 0.0
  %6314 = vmatpush.msra.mxu0 %v6217
  %6315 = vmatpush.msra.mxu0 %v6216
  %6316 = vmatpush.msra.mxu0 %v6215
  %6317 = vmatpush.msra.mxu0 %v6214
  %6318 = vmatmul.f32.gmra.mxu0 %v6243
  %v6319 = vpop.f32.mrf.mxu0
  %v6320 = vadd.f32 0.0, %v6319
  %6321 = vmatmul.f32.gmra.mxu0 %v6246
  %v6322 = vpop.f32.mrf.mxu0
  %v6323 = vadd.f32 0.0, %v6322
  %6324 = vmatmul.f32.gmra.mxu0 %v6249
  %v6325 = vpop.f32.mrf.mxu0
  %v6326 = vadd.f32 0.0, %v6325
  %6327 = vmatmul.f32.gmra.mxu0 %v6252
  %v6328 = vpop.f32.mrf.mxu0
  %v6329 = vadd.f32 0.0, %v6328
  %6330 = vmatmul.f32.gmra.mxu0 %v6255
  %v6331 = vpop.f32.mrf.mxu0
  %v6332 = vadd.f32 0.0, %v6331
  %6333 = vmatmul.f32.gmra.mxu0 %v6258
  %v6334 = vpop.f32.mrf.mxu0
  %v6335 = vadd.f32 0.0, %v6334
  %6336 = vmatmul.f32.gmra.mxu0 %v6261
  %v6337 = vpop.f32.mrf.mxu0
  %v6338 = vadd.f32 0.0, %v6337
  %6339 = vmatmul.f32.gmra.mxu0 %v6264
  %v6340 = vpop.f32.mrf.mxu0
  %v6341 = vadd.f32 0.0, %v6340
  %6342 = vmatmul.f32.gmra.mxu0 %v6267
  %v6343 = vpop.f32.mrf.mxu0
  %v6344 = vadd.f32 0.0, %v6343
  %6345 = vmatmul.f32.gmra.mxu0 %v6270
  %v6346 = vpop.f32.mrf.mxu0
  %v6347 = vadd.f32 0.0, %v6346
  %6348 = vmatmul.f32.gmra.mxu0 %v6273
  %v6349 = vpop.f32.mrf.mxu0
  %v6350 = vadd.f32 0.0, %v6349
  %6351 = vmatmul.f32.gmra.mxu0 %v6276
  %v6352 = vpop.f32.mrf.mxu0
  %v6353 = vadd.f32 0.0, %v6352
  %6354 = vmatmul.f32.gmra.mxu0 %v6279
  %v6355 = vpop.f32.mrf.mxu0
  %v6356 = vadd.f32 0.0, %v6355
  %6357 = vmatmul.f32.gmra.mxu0 %v6282
  %v6358 = vpop.f32.mrf.mxu0
  %v6359 = vadd.f32 0.0, %v6358
  %6360 = vmatmul.f32.gmra.mxu0 %v6285
  %v6361 = vpop.f32.mrf.mxu0
  %v6362 = vadd.f32 0.0, %v6361
  %6363 = vmatmul.f32.gmra.mxu0 %v6288
  %v6364 = vpop.f32.mrf.mxu0
  %v6365 = vadd.f32 0.0, %v6364
  %6366 = vmatmul.f32.gmra.mxu0 %v6291
  %v6367 = vpop.f32.mrf.mxu0
  %v6368 = vadd.f32 0.0, %v6367
  %6369 = vmatmul.f32.gmra.mxu0 %v6294
  %v6370 = vpop.f32.mrf.mxu0
  %v6371 = vadd.f32 0.0, %v6370
  %6372 = vmatmul.f32.gmra.mxu0 %v6297
  %v6373 = vpop.f32.mrf.mxu0
  %v6374 = vadd.f32 0.0, %v6373
  %6375 = vmatmul.f32.gmra.mxu0 %v6300
  %v6376 = vpop.f32.mrf.mxu0
  %v6377 = vadd.f32 0.0, %v6376
  %6378 = vdwg.mxu0
  %v6380 = vsel %vm677, %v6320, 0
  %v6383 = vsel %vm677, %v6323, 0
  %v6386 = vsel %vm677, %v6326, 0
  %v6389 = vsel %vm677, %v6329, 0
  %6391 = vmatpush.msra.mxu0 0.0
  %6392 = vmatpush.msra.mxu0 0.0
  %6393 = vmatpush.msra.mxu0 0.0
  %6394 = vmatpush.msra.mxu0 0.0
  %6395 = vmatpush.msra.mxu0 0.0
  %6396 = vmatpush.msra.mxu0 0.0
  %6397 = vmatpush.msra.mxu0 0.0
  %6398 = vmatpush.msra.mxu0 0.0
  %6399 = vmatpush.msra.mxu0 0.0
  %6400 = vmatpush.msra.mxu0 0.0
  %6401 = vmatpush.msra.mxu0 0.0
  %6402 = vmatpush.msra.mxu0 0.0
  %6403 = vmatpush.msra.mxu0 0.0
  %6404 = vmatpush.msra.mxu0 0.0
  %6405 = vmatpush.msra.mxu0 0.0
  %6406 = vmatpush.msra.mxu0 %v17
  %6407 = vmatmul.f32.gmra.mxu0 %v6380
  %v6408 = vpop.f32.mrf.mxu0
  %v6409 = vadd.f32 0.0, %v6408
  %6410 = vmatmul.f32.gmra.mxu0 %v6383
  %v6411 = vpop.f32.mrf.mxu0
  %v6412 = vadd.f32 0.0, %v6411
  %6413 = vmatmul.f32.gmra.mxu0 %v6386
  %v6414 = vpop.f32.mrf.mxu0
  %v6415 = vadd.f32 0.0, %v6414
  %6416 = vmatmul.f32.gmra.mxu0 %v6389
  %v6417 = vpop.f32.mrf.mxu0
  %v6418 = vadd.f32 0.0, %v6417
  %6419 = vdwg.mxu0
  %6421 = vset.pattern.permute.xlu0 0
  %6422 = vperm.xlu0 %6421, %v6238
  %v6423 = vpop.permute.xlu0 %6422
  %6426 = vset.pattern.permute.xlu0 0
  %6427 = vperm.xlu0 %6426, %v6239
  %v6428 = vpop.permute.xlu0 %6427
  %6431 = vset.pattern.permute.xlu0 0
  %6432 = vperm.xlu0 %6431, %v6240
  %v6433 = vpop.permute.xlu0 %6432
  %6436 = vset.pattern.permute.xlu0 0
  %6437 = vperm.xlu0 %6436, %v6241
  %v6438 = vpop.permute.xlu0 %6437
  %v6440 = vadd.f32 %v6423, %v6409
  %v6441 = vadd.f32 %v6428, %v6412
  %v6442 = vadd.f32 %v6433, %v6415
  %v6443 = vadd.f32 %v6438, %v6418
  %v6445 = vsel %vm677, %v6332, 0
  %v6448 = vsel %vm677, %v6335, 0
  %v6451 = vsel %vm677, %v6338, 0
  %v6454 = vsel %vm677, %v6341, 0
  %6456 = vmatpush.msra.mxu0 0.0
  %6457 = vmatpush.msra.mxu0 0.0
  %6458 = vmatpush.msra.mxu0 0.0
  %6459 = vmatpush.msra.mxu0 0.0
  %6460 = vmatpush.msra.mxu0 0.0
  %6461 = vmatpush.msra.mxu0 0.0
  %6462 = vmatpush.msra.mxu0 0.0
  %6463 = vmatpush.msra.mxu0 0.0
  %6464 = vmatpush.msra.mxu0 0.0
  %6465 = vmatpush.msra.mxu0 0.0
  %6466 = vmatpush.msra.mxu0 0.0
  %6467 = vmatpush.msra.mxu0 0.0
  %6468 = vmatpush.msra.mxu0 0.0
  %6469 = vmatpush.msra.mxu0 0.0
  %6470 = vmatpush.msra.mxu0 0.0
  %6471 = vmatpush.msra.mxu0 %v18
  %6472 = vmatmul.f32.gmra.mxu0 %v6445
  %v6473 = vpop.f32.mrf.mxu0
  %v6474 = vadd.f32 0.0, %v6473
  %6475 = vmatmul.f32.gmra.mxu0 %v6448
  %v6476 = vpop.f32.mrf.mxu0
  %v6477 = vadd.f32 0.0, %v6476
  %6478 = vmatmul.f32.gmra.mxu0 %v6451
  %v6479 = vpop.f32.mrf.mxu0
  %v6480 = vadd.f32 0.0, %v6479
  %6481 = vmatmul.f32.gmra.mxu0 %v6454
  %v6482 = vpop.f32.mrf.mxu0
  %v6483 = vadd.f32 0.0, %v6482
  %6484 = vdwg.mxu0
  %v6485 = vadd.f32 %v6440, %v6474
  %v6486 = vadd.f32 %v6441, %v6477
  %v6487 = vadd.f32 %v6442, %v6480
  %v6488 = vadd.f32 %v6443, %v6483
  %v6490 = vsel %vm677, %v6344, 0
  %v6493 = vsel %vm677, %v6347, 0
  %v6496 = vsel %vm677, %v6350, 0
  %v6499 = vsel %vm677, %v6353, 0
  %6501 = vmatpush.msra.mxu0 0.0
  %6502 = vmatpush.msra.mxu0 0.0
  %6503 = vmatpush.msra.mxu0 0.0
  %6504 = vmatpush.msra.mxu0 0.0
  %6505 = vmatpush.msra.mxu0 0.0
  %6506 = vmatpush.msra.mxu0 0.0
  %6507 = vmatpush.msra.mxu0 0.0
  %6508 = vmatpush.msra.mxu0 0.0
  %6509 = vmatpush.msra.mxu0 0.0
  %6510 = vmatpush.msra.mxu0 0.0
  %6511 = vmatpush.msra.mxu0 0.0
  %6512 = vmatpush.msra.mxu0 0.0
  %6513 = vmatpush.msra.mxu0 0.0
  %6514 = vmatpush.msra.mxu0 0.0
  %6515 = vmatpush.msra.mxu0 0.0
  %6516 = vmatpush.msra.mxu0 %v19
  %6517 = vmatmul.f32.gmra.mxu0 %v6490
  %v6518 = vpop.f32.mrf.mxu0
  %v6519 = vadd.f32 0.0, %v6518
  %6520 = vmatmul.f32.gmra.mxu0 %v6493
  %v6521 = vpop.f32.mrf.mxu0
  %v6522 = vadd.f32 0.0, %v6521
  %6523 = vmatmul.f32.gmra.mxu0 %v6496
  %v6524 = vpop.f32.mrf.mxu0
  %v6525 = vadd.f32 0.0, %v6524
  %6526 = vmatmul.f32.gmra.mxu0 %v6499
  %v6527 = vpop.f32.mrf.mxu0
  %v6528 = vadd.f32 0.0, %v6527
  %6529 = vdwg.mxu0
  %v6530 = vadd.f32 %v6485, %v6519
  %v6531 = vadd.f32 %v6486, %v6522
  %v6532 = vadd.f32 %v6487, %v6525
  %v6533 = vadd.f32 %v6488, %v6528
  %v6535 = vsel %vm677, %v6356, 0
  %v6538 = vsel %vm677, %v6359, 0
  %v6541 = vsel %vm677, %v6362, 0
  %v6544 = vsel %vm677, %v6365, 0
  %6546 = vmatpush.msra.mxu0 0.0
  %6547 = vmatpush.msra.mxu0 0.0
  %6548 = vmatpush.msra.mxu0 0.0
  %6549 = vmatpush.msra.mxu0 0.0
  %6550 = vmatpush.msra.mxu0 0.0
  %6551 = vmatpush.msra.mxu0 0.0
  %6552 = vmatpush.msra.mxu0 0.0
  %6553 = vmatpush.msra.mxu0 0.0
  %6554 = vmatpush.msra.mxu0 0.0
  %6555 = vmatpush.msra.mxu0 0.0
  %6556 = vmatpush.msra.mxu0 0.0
  %6557 = vmatpush.msra.mxu0 0.0
  %6558 = vmatpush.msra.mxu0 0.0
  %6559 = vmatpush.msra.mxu0 0.0
  %6560 = vmatpush.msra.mxu0 0.0
  %6561 = vmatpush.msra.mxu0 %v20
  %6562 = vmatmul.f32.gmra.mxu0 %v6535
  %v6563 = vpop.f32.mrf.mxu0
  %v6564 = vadd.f32 0.0, %v6563
  %6565 = vmatmul.f32.gmra.mxu0 %v6538
  %v6566 = vpop.f32.mrf.mxu0
  %v6567 = vadd.f32 0.0, %v6566
  %6568 = vmatmul.f32.gmra.mxu0 %v6541
  %v6569 = vpop.f32.mrf.mxu0
  %v6570 = vadd.f32 0.0, %v6569
  %6571 = vmatmul.f32.gmra.mxu0 %v6544
  %v6572 = vpop.f32.mrf.mxu0
  %v6573 = vadd.f32 0.0, %v6572
  %6574 = vdwg.mxu0
  %v6575 = vadd.f32 %v6530, %v6564
  %v6576 = vadd.f32 %v6531, %v6567
  %v6577 = vadd.f32 %v6532, %v6570
  %v6578 = vadd.f32 %v6533, %v6573
  %v6580 = vsel %vm677, %v6368, 0
  %v6583 = vsel %vm677, %v6371, 0
  %v6586 = vsel %vm677, %v6374, 0
  %v6589 = vsel %vm677, %v6377, 0
  %6591 = vmatpush.msra.mxu0 0.0
  %6592 = vmatpush.msra.mxu0 0.0
  %6593 = vmatpush.msra.mxu0 0.0
  %6594 = vmatpush.msra.mxu0 0.0
  %6595 = vmatpush.msra.mxu0 0.0
  %6596 = vmatpush.msra.mxu0 0.0
  %6597 = vmatpush.msra.mxu0 0.0
  %6598 = vmatpush.msra.mxu0 0.0
  %6599 = vmatpush.msra.mxu0 0.0
  %6600 = vmatpush.msra.mxu0 0.0
  %6601 = vmatpush.msra.mxu0 0.0
  %6602 = vmatpush.msra.mxu0 0.0
  %6603 = vmatpush.msra.mxu0 0.0
  %6604 = vmatpush.msra.mxu0 0.0
  %6605 = vmatpush.msra.mxu0 0.0
  %6606 = vmatpush.msra.mxu0 %v21
  %6607 = vmatmul.f32.gmra.mxu0 %v6580
  %v6608 = vpop.f32.mrf.mxu0
  %v6609 = vadd.f32 0.0, %v6608
  %6610 = vmatmul.f32.gmra.mxu0 %v6583
  %v6611 = vpop.f32.mrf.mxu0
  %v6612 = vadd.f32 0.0, %v6611
  %6613 = vmatmul.f32.gmra.mxu0 %v6586
  %v6614 = vpop.f32.mrf.mxu0
  %v6615 = vadd.f32 0.0, %v6614
  %6616 = vmatmul.f32.gmra.mxu0 %v6589
  %v6617 = vpop.f32.mrf.mxu0
  %v6618 = vadd.f32 0.0, %v6617
  %6619 = vdwg.mxu0
  %v6620 = vadd.f32 %v6575, %v6609
  %v6621 = vadd.f32 %v6576, %v6612
  %v6622 = vadd.f32 %v6577, %v6615
  %v6623 = vadd.f32 %v6578, %v6618
  %v6624 = vmax.f32 %v6620, 0.0
  %v6625 = vmax.f32 %v6621, 0.0
  %v6626 = vmax.f32 %v6622, 0.0
  %v6627 = vmax.f32 %v6623, 0.0
  %vm6628 = vcmp.ne.f32.partialorder %v6620, %v6620
  %vm6629 = vcmp.ne.f32.partialorder %v6621, %v6621
  %vm6630 = vcmp.ne.f32.partialorder %v6622, %v6622
  %vm6631 = vcmp.ne.f32.partialorder %v6623, %v6623
  %v6632 = vadd.f32 %v6620, 0.0
  %v6633 = vadd.f32 %v6621, 0.0
  %v6634 = vadd.f32 %v6622, 0.0
  %v6635 = vadd.f32 %v6623, 0.0
  %v6636 = vand.u32 2147483647, %v6620
  %v6637 = vand.u32 2147483647, %v6621
  %v6638 = vand.u32 2147483647, %v6622
  %v6639 = vand.u32 2147483647, %v6623
  %v6640 = vsub.f32 0.0, %v6636
  %v6641 = vsub.f32 0.0, %v6637
  %v6642 = vsub.f32 0.0, %v6638
  %v6643 = vsub.f32 0.0, %v6639
  %v6644 = vmul.f32 %v6640, 1.442695
  %v6645 = vpow.pop %v6644
  %v6646 = vmul.f32 %v6641, 1.442695
  %v6647 = vpow.pop %v6646
  %v6648 = vmul.f32 %v6642, 1.442695
  %v6649 = vpow.pop %v6648
  %v6650 = vmul.f32 %v6643, 1.442695
  %v6651 = vpow.pop %v6650
  %v6652 = vadd.f32 %v6645, 1.0
  %v6653 = vlog2.pop %v6652
  %v6654 = vmul.f32 %v6653, 0.6931472
  %v6655 = vmul.f32 -0.5, %v6645
  %v6656 = vadd.f32 %v6655, 1.0
  %v6657 = vmul.f32 %v6656, %v6645
  %v6658 = vand.u32 2147483647, %v6645
  %vm6659 = vcmp.lt.f32.partialorder %v6658, 0.0004427343
  %v6660 = vsel %vm6659, %v6657, %v6654
  %v6661 = vadd.f32 %v6647, 1.0
  %v6662 = vlog2.pop %v6661
  %v6663 = vmul.f32 %v6662, 0.6931472
  %v6664 = vmul.f32 -0.5, %v6647
  %v6665 = vadd.f32 %v6664, 1.0
  %v6666 = vmul.f32 %v6665, %v6647
  %v6667 = vand.u32 2147483647, %v6647
  %vm6668 = vcmp.lt.f32.partialorder %v6667, 0.0004427343
  %v6669 = vsel %vm6668, %v6666, %v6663
  %v6670 = vadd.f32 %v6649, 1.0
  %v6671 = vlog2.pop %v6670
  %v6672 = vmul.f32 %v6671, 0.6931472
  %v6673 = vmul.f32 -0.5, %v6649
  %v6674 = vadd.f32 %v6673, 1.0
  %v6675 = vmul.f32 %v6674, %v6649
  %v6676 = vand.u32 2147483647, %v6649
  %vm6677 = vcmp.lt.f32.partialorder %v6676, 0.0004427343
  %v6678 = vsel %vm6677, %v6675, %v6672
  %v6679 = vadd.f32 %v6651, 1.0
  %v6680 = vlog2.pop %v6679
  %v6681 = vmul.f32 %v6680, 0.6931472
  %v6682 = vmul.f32 -0.5, %v6651
  %v6683 = vadd.f32 %v6682, 1.0
  %v6684 = vmul.f32 %v6683, %v6651
  %v6685 = vand.u32 2147483647, %v6651
  %vm6686 = vcmp.lt.f32.partialorder %v6685, 0.0004427343
  %v6687 = vsel %vm6686, %v6684, %v6681
  %v6688 = vadd.f32 %v6624, %v6660
  %v6689 = vadd.f32 %v6625, %v6669
  %v6690 = vadd.f32 %v6626, %v6678
  %v6691 = vadd.f32 %v6627, %v6687
  %v6692 = vsel %vm6628, %v6632, %v6688
  %v6693 = vsel %vm6629, %v6633, %v6689
  %v6694 = vsel %vm6630, %v6634, %v6690
  %v6695 = vsel %vm6631, %v6635, %v6691
  %v6696 = vtanh.pop %v6692
  %v6697 = vtanh.pop %v6693
  %v6698 = vtanh.pop %v6694
  %v6699 = vtanh.pop %v6695
  %v6700 = vmul.f32 %v6620, %v6696
  %v6701 = vmul.f32 %v6621, %v6697
  %v6702 = vmul.f32 %v6622, %v6698
  %v6703 = vmul.f32 %v6623, %v6699
  %v6704 = vadd.f32 %v6700, %v5267
  %v6705 = vadd.f32 %v6701, %v5268
  %v6706 = vadd.f32 %v6702, %v5269
  %v6707 = vadd.f32 %v6703, %v5270
  %v6708 = vld [vmem:[%s3 + $0xac0] sm:$0xff]
  %v6709 = vld [vmem:[%s3 + $0xac8] sm:$0xff]
  %v6710 = vld [vmem:[%s3 + $0xad0] sm:$0xff]
  %v6711 = vld [vmem:[%s3 + $0xad8] sm:$0xff]
  %v6712 = vld [vmem:[%s3 + $0xae0] sm:$0xff]
  %v6713 = vld [vmem:[%s3 + $0xae8] sm:$0xff]
  %v6714 = vld [vmem:[%s3 + $0xaf0] sm:$0xff]
  %v6715 = vld [vmem:[%s3 + $0xaf8] sm:$0xff]
  %v6716 = vld [vmem:[%s3 + $0xb00] sm:$0xff]
  %v6717 = vld [vmem:[%s3 + $0xb08] sm:$0xff]
  %v6718 = vld [vmem:[%s3 + $0xb10] sm:$0xff]
  %v6719 = vld [vmem:[%s3 + $0xb18] sm:$0xff]
  %v6720 = vld [vmem:[%s3 + $0xb20] sm:$0xff]
  %v6721 = vld [vmem:[%s3 + $0xb28] sm:$0xff]
  %v6722 = vld [vmem:[%s3 + $0xb30] sm:$0xff]
  %v6723 = vld [vmem:[%s3 + $0xb38] sm:$0xff]
  %v6724 = vld [vmem:[%s3 + $0xb40] sm:$0xff]
  %v6725 = vld [vmem:[%s3 + $0xb48] sm:$0xff]
  %v6726 = vld [vmem:[%s3 + $0xb50] sm:$0xff]
  %v6727 = vld [vmem:[%s3 + $0xb58] sm:$0xff]
  %v6728 = vld [vmem:[%s3 + $0xb60] sm:$0xff]
  %v6729 = vld [vmem:[%s3 + $0xb68] sm:$0xff]
  %v6730 = vld [vmem:[%s3 + $0xb70] sm:$0xff]
  %v6731 = vld [vmem:[%s3 + $0xb78] sm:$0xff]
  %v6733 = vsel %vm3032, %v6708, 0
  %v6736 = vsel %vm3032, %v6709, 0
  %v6739 = vsel %vm3032, %v6710, 0
  %v6742 = vsel %vm3032, %v6711, 0
  %v6745 = vsel %vm3032, %v6712, 0
  %v6748 = vsel %vm3032, %v6713, 0
  %v6751 = vsel %vm3032, %v6714, 0
  %v6754 = vsel %vm3032, %v6715, 0
  %v6757 = vsel %vm3032, %v6716, 0
  %v6760 = vsel %vm3032, %v6717, 0
  %v6763 = vsel %vm3032, %v6718, 0
  %v6766 = vsel %vm3032, %v6719, 0
  %v6769 = vsel %vm3032, %v6720, 0
  %v6772 = vsel %vm3032, %v6721, 0
  %v6775 = vsel %vm3032, %v6722, 0
  %v6778 = vsel %vm3032, %v6723, 0
  %v6781 = vsel %vm3032, %v6724, 0
  %v6784 = vsel %vm3032, %v6725, 0
  %v6787 = vsel %vm3032, %v6726, 0
  %v6790 = vsel %vm3032, %v6727, 0
  %6792 = vmatpush.msra.mxu0 0.0
  %6793 = vmatpush.msra.mxu0 0.0
  %6794 = vmatpush.msra.mxu0 0.0
  %6795 = vmatpush.msra.mxu0 0.0
  %6796 = vmatpush.msra.mxu0 0.0
  %6797 = vmatpush.msra.mxu0 0.0
  %6798 = vmatpush.msra.mxu0 0.0
  %6799 = vmatpush.msra.mxu0 0.0
  %6800 = vmatpush.msra.mxu0 0.0
  %6801 = vmatpush.msra.mxu0 0.0
  %6802 = vmatpush.msra.mxu0 0.0
  %6803 = vmatpush.msra.mxu0 0.0
  %6804 = vmatpush.msra.mxu0 %v6707
  %6805 = vmatpush.msra.mxu0 %v6706
  %6806 = vmatpush.msra.mxu0 %v6705
  %6807 = vmatpush.msra.mxu0 %v6704
  %6808 = vmatmul.f32.gmra.mxu0 %v6733
  %v6809 = vpop.f32.mrf.mxu0
  %v6810 = vadd.f32 0.0, %v6809
  %6811 = vmatmul.f32.gmra.mxu0 %v6736
  %v6812 = vpop.f32.mrf.mxu0
  %v6813 = vadd.f32 0.0, %v6812
  %6814 = vmatmul.f32.gmra.mxu0 %v6739
  %v6815 = vpop.f32.mrf.mxu0
  %v6816 = vadd.f32 0.0, %v6815
  %6817 = vmatmul.f32.gmra.mxu0 %v6742
  %v6818 = vpop.f32.mrf.mxu0
  %v6819 = vadd.f32 0.0, %v6818
  %6820 = vmatmul.f32.gmra.mxu0 %v6745
  %v6821 = vpop.f32.mrf.mxu0
  %v6822 = vadd.f32 0.0, %v6821
  %6823 = vmatmul.f32.gmra.mxu0 %v6748
  %v6824 = vpop.f32.mrf.mxu0
  %v6825 = vadd.f32 0.0, %v6824
  %6826 = vmatmul.f32.gmra.mxu0 %v6751
  %v6827 = vpop.f32.mrf.mxu0
  %v6828 = vadd.f32 0.0, %v6827
  %6829 = vmatmul.f32.gmra.mxu0 %v6754
  %v6830 = vpop.f32.mrf.mxu0
  %v6831 = vadd.f32 0.0, %v6830
  %6832 = vmatmul.f32.gmra.mxu0 %v6757
  %v6833 = vpop.f32.mrf.mxu0
  %v6834 = vadd.f32 0.0, %v6833
  %6835 = vmatmul.f32.gmra.mxu0 %v6760
  %v6836 = vpop.f32.mrf.mxu0
  %v6837 = vadd.f32 0.0, %v6836
  %6838 = vmatmul.f32.gmra.mxu0 %v6763
  %v6839 = vpop.f32.mrf.mxu0
  %v6840 = vadd.f32 0.0, %v6839
  %6841 = vmatmul.f32.gmra.mxu0 %v6766
  %v6842 = vpop.f32.mrf.mxu0
  %v6843 = vadd.f32 0.0, %v6842
  %6844 = vmatmul.f32.gmra.mxu0 %v6769
  %v6845 = vpop.f32.mrf.mxu0
  %v6846 = vadd.f32 0.0, %v6845
  %6847 = vmatmul.f32.gmra.mxu0 %v6772
  %v6848 = vpop.f32.mrf.mxu0
  %v6849 = vadd.f32 0.0, %v6848
  %6850 = vmatmul.f32.gmra.mxu0 %v6775
  %v6851 = vpop.f32.mrf.mxu0
  %v6852 = vadd.f32 0.0, %v6851
  %6853 = vmatmul.f32.gmra.mxu0 %v6778
  %v6854 = vpop.f32.mrf.mxu0
  %v6855 = vadd.f32 0.0, %v6854
  %6856 = vmatmul.f32.gmra.mxu0 %v6781
  %v6857 = vpop.f32.mrf.mxu0
  %v6858 = vadd.f32 0.0, %v6857
  %6859 = vmatmul.f32.gmra.mxu0 %v6784
  %v6860 = vpop.f32.mrf.mxu0
  %v6861 = vadd.f32 0.0, %v6860
  %6862 = vmatmul.f32.gmra.mxu0 %v6787
  %v6863 = vpop.f32.mrf.mxu0
  %v6864 = vadd.f32 0.0, %v6863
  %6865 = vmatmul.f32.gmra.mxu0 %v6790
  %v6866 = vpop.f32.mrf.mxu0
  %v6867 = vadd.f32 0.0, %v6866
  %6868 = vdwg.mxu0
  %v6870 = vsel %vm677, %v6810, 0
  %v6873 = vsel %vm677, %v6813, 0
  %v6876 = vsel %vm677, %v6816, 0
  %v6879 = vsel %vm677, %v6819, 0
  %6881 = vmatpush.msra.mxu0 0.0
  %6882 = vmatpush.msra.mxu0 0.0
  %6883 = vmatpush.msra.mxu0 0.0
  %6884 = vmatpush.msra.mxu0 0.0
  %6885 = vmatpush.msra.mxu0 0.0
  %6886 = vmatpush.msra.mxu0 0.0
  %6887 = vmatpush.msra.mxu0 0.0
  %6888 = vmatpush.msra.mxu0 0.0
  %6889 = vmatpush.msra.mxu0 0.0
  %6890 = vmatpush.msra.mxu0 0.0
  %6891 = vmatpush.msra.mxu0 0.0
  %6892 = vmatpush.msra.mxu0 0.0
  %6893 = vmatpush.msra.mxu0 0.0
  %6894 = vmatpush.msra.mxu0 0.0
  %6895 = vmatpush.msra.mxu0 0.0
  %6896 = vmatpush.msra.mxu0 %v17
  %6897 = vmatmul.f32.gmra.mxu0 %v6870
  %v6898 = vpop.f32.mrf.mxu0
  %v6899 = vadd.f32 0.0, %v6898
  %6900 = vmatmul.f32.gmra.mxu0 %v6873
  %v6901 = vpop.f32.mrf.mxu0
  %v6902 = vadd.f32 0.0, %v6901
  %6903 = vmatmul.f32.gmra.mxu0 %v6876
  %v6904 = vpop.f32.mrf.mxu0
  %v6905 = vadd.f32 0.0, %v6904
  %6906 = vmatmul.f32.gmra.mxu0 %v6879
  %v6907 = vpop.f32.mrf.mxu0
  %v6908 = vadd.f32 0.0, %v6907
  %6909 = vdwg.mxu0
  %6911 = vset.pattern.permute.xlu0 0
  %6912 = vperm.xlu0 %6911, %v6728
  %v6913 = vpop.permute.xlu0 %6912
  %6916 = vset.pattern.permute.xlu0 0
  %6917 = vperm.xlu0 %6916, %v6729
  %v6918 = vpop.permute.xlu0 %6917
  %6921 = vset.pattern.permute.xlu0 0
  %6922 = vperm.xlu0 %6921, %v6730
  %v6923 = vpop.permute.xlu0 %6922
  %6926 = vset.pattern.permute.xlu0 0
  %6927 = vperm.xlu0 %6926, %v6731
  %v6928 = vpop.permute.xlu0 %6927
  %v6930 = vadd.f32 %v6913, %v6899
  %v6931 = vadd.f32 %v6918, %v6902
  %v6932 = vadd.f32 %v6923, %v6905
  %v6933 = vadd.f32 %v6928, %v6908
  %v6935 = vsel %vm677, %v6822, 0
  %v6938 = vsel %vm677, %v6825, 0
  %v6941 = vsel %vm677, %v6828, 0
  %v6944 = vsel %vm677, %v6831, 0
  %6946 = vmatpush.msra.mxu0 0.0
  %6947 = vmatpush.msra.mxu0 0.0
  %6948 = vmatpush.msra.mxu0 0.0
  %6949 = vmatpush.msra.mxu0 0.0
  %6950 = vmatpush.msra.mxu0 0.0
  %6951 = vmatpush.msra.mxu0 0.0
  %6952 = vmatpush.msra.mxu0 0.0
  %6953 = vmatpush.msra.mxu0 0.0
  %6954 = vmatpush.msra.mxu0 0.0
  %6955 = vmatpush.msra.mxu0 0.0
  %6956 = vmatpush.msra.mxu0 0.0
  %6957 = vmatpush.msra.mxu0 0.0
  %6958 = vmatpush.msra.mxu0 0.0
  %6959 = vmatpush.msra.mxu0 0.0
  %6960 = vmatpush.msra.mxu0 0.0
  %6961 = vmatpush.msra.mxu0 %v18
  %6962 = vmatmul.f32.gmra.mxu0 %v6935
  %v6963 = vpop.f32.mrf.mxu0
  %v6964 = vadd.f32 0.0, %v6963
  %6965 = vmatmul.f32.gmra.mxu0 %v6938
  %v6966 = vpop.f32.mrf.mxu0
  %v6967 = vadd.f32 0.0, %v6966
  %6968 = vmatmul.f32.gmra.mxu0 %v6941
  %v6969 = vpop.f32.mrf.mxu0
  %v6970 = vadd.f32 0.0, %v6969
  %6971 = vmatmul.f32.gmra.mxu0 %v6944
  %v6972 = vpop.f32.mrf.mxu0
  %v6973 = vadd.f32 0.0, %v6972
  %6974 = vdwg.mxu0
  %v6975 = vadd.f32 %v6930, %v6964
  %v6976 = vadd.f32 %v6931, %v6967
  %v6977 = vadd.f32 %v6932, %v6970
  %v6978 = vadd.f32 %v6933, %v6973
  %v6980 = vsel %vm677, %v6834, 0
  %v6983 = vsel %vm677, %v6837, 0
  %v6986 = vsel %vm677, %v6840, 0
  %v6989 = vsel %vm677, %v6843, 0
  %6991 = vmatpush.msra.mxu0 0.0
  %6992 = vmatpush.msra.mxu0 0.0
  %6993 = vmatpush.msra.mxu0 0.0
  %6994 = vmatpush.msra.mxu0 0.0
  %6995 = vmatpush.msra.mxu0 0.0
  %6996 = vmatpush.msra.mxu0 0.0
  %6997 = vmatpush.msra.mxu0 0.0
  %6998 = vmatpush.msra.mxu0 0.0
  %6999 = vmatpush.msra.mxu0 0.0
  %7000 = vmatpush.msra.mxu0 0.0
  %7001 = vmatpush.msra.mxu0 0.0
  %7002 = vmatpush.msra.mxu0 0.0
  %7003 = vmatpush.msra.mxu0 0.0
  %7004 = vmatpush.msra.mxu0 0.0
  %7005 = vmatpush.msra.mxu0 0.0
  %7006 = vmatpush.msra.mxu0 %v19
  %7007 = vmatmul.f32.gmra.mxu0 %v6980
  %v7008 = vpop.f32.mrf.mxu0
  %v7009 = vadd.f32 0.0, %v7008
  %7010 = vmatmul.f32.gmra.mxu0 %v6983
  %v7011 = vpop.f32.mrf.mxu0
  %v7012 = vadd.f32 0.0, %v7011
  %7013 = vmatmul.f32.gmra.mxu0 %v6986
  %v7014 = vpop.f32.mrf.mxu0
  %v7015 = vadd.f32 0.0, %v7014
  %7016 = vmatmul.f32.gmra.mxu0 %v6989
  %v7017 = vpop.f32.mrf.mxu0
  %v7018 = vadd.f32 0.0, %v7017
  %7019 = vdwg.mxu0
  %v7020 = vadd.f32 %v6975, %v7009
  %v7021 = vadd.f32 %v6976, %v7012
  %v7022 = vadd.f32 %v6977, %v7015
  %v7023 = vadd.f32 %v6978, %v7018
  %v7025 = vsel %vm677, %v6846, 0
  %v7028 = vsel %vm677, %v6849, 0
  %v7031 = vsel %vm677, %v6852, 0
  %v7034 = vsel %vm677, %v6855, 0
  %7036 = vmatpush.msra.mxu0 0.0
  %7037 = vmatpush.msra.mxu0 0.0
  %7038 = vmatpush.msra.mxu0 0.0
  %7039 = vmatpush.msra.mxu0 0.0
  %7040 = vmatpush.msra.mxu0 0.0
  %7041 = vmatpush.msra.mxu0 0.0
  %7042 = vmatpush.msra.mxu0 0.0
  %7043 = vmatpush.msra.mxu0 0.0
  %7044 = vmatpush.msra.mxu0 0.0
  %7045 = vmatpush.msra.mxu0 0.0
  %7046 = vmatpush.msra.mxu0 0.0
  %7047 = vmatpush.msra.mxu0 0.0
  %7048 = vmatpush.msra.mxu0 0.0
  %7049 = vmatpush.msra.mxu0 0.0
  %7050 = vmatpush.msra.mxu0 0.0
  %7051 = vmatpush.msra.mxu0 %v20
  %7052 = vmatmul.f32.gmra.mxu0 %v7025
  %v7053 = vpop.f32.mrf.mxu0
  %v7054 = vadd.f32 0.0, %v7053
  %7055 = vmatmul.f32.gmra.mxu0 %v7028
  %v7056 = vpop.f32.mrf.mxu0
  %v7057 = vadd.f32 0.0, %v7056
  %7058 = vmatmul.f32.gmra.mxu0 %v7031
  %v7059 = vpop.f32.mrf.mxu0
  %v7060 = vadd.f32 0.0, %v7059
  %7061 = vmatmul.f32.gmra.mxu0 %v7034
  %v7062 = vpop.f32.mrf.mxu0
  %v7063 = vadd.f32 0.0, %v7062
  %7064 = vdwg.mxu0
  %v7065 = vadd.f32 %v7020, %v7054
  %v7066 = vadd.f32 %v7021, %v7057
  %v7067 = vadd.f32 %v7022, %v7060
  %v7068 = vadd.f32 %v7023, %v7063
  %v7070 = vsel %vm677, %v6858, 0
  %v7073 = vsel %vm677, %v6861, 0
  %v7076 = vsel %vm677, %v6864, 0
  %v7079 = vsel %vm677, %v6867, 0
  %7081 = vmatpush.msra.mxu0 0.0
  %7082 = vmatpush.msra.mxu0 0.0
  %7083 = vmatpush.msra.mxu0 0.0
  %7084 = vmatpush.msra.mxu0 0.0
  %7085 = vmatpush.msra.mxu0 0.0
  %7086 = vmatpush.msra.mxu0 0.0
  %7087 = vmatpush.msra.mxu0 0.0
  %7088 = vmatpush.msra.mxu0 0.0
  %7089 = vmatpush.msra.mxu0 0.0
  %7090 = vmatpush.msra.mxu0 0.0
  %7091 = vmatpush.msra.mxu0 0.0
  %7092 = vmatpush.msra.mxu0 0.0
  %7093 = vmatpush.msra.mxu0 0.0
  %7094 = vmatpush.msra.mxu0 0.0
  %7095 = vmatpush.msra.mxu0 0.0
  %7096 = vmatpush.msra.mxu0 %v21
  %7097 = vmatmul.f32.gmra.mxu0 %v7070
  %v7098 = vpop.f32.mrf.mxu0
  %v7099 = vadd.f32 0.0, %v7098
  %7100 = vmatmul.f32.gmra.mxu0 %v7073
  %v7101 = vpop.f32.mrf.mxu0
  %v7102 = vadd.f32 0.0, %v7101
  %7103 = vmatmul.f32.gmra.mxu0 %v7076
  %v7104 = vpop.f32.mrf.mxu0
  %v7105 = vadd.f32 0.0, %v7104
  %7106 = vmatmul.f32.gmra.mxu0 %v7079
  %v7107 = vpop.f32.mrf.mxu0
  %v7108 = vadd.f32 0.0, %v7107
  %7109 = vdwg.mxu0
  %v7110 = vadd.f32 %v7065, %v7099
  %v7111 = vadd.f32 %v7066, %v7102
  %v7112 = vadd.f32 %v7067, %v7105
  %v7113 = vadd.f32 %v7068, %v7108
  %v7114 = vmax.f32 %v7110, 0.0
  %v7115 = vmax.f32 %v7111, 0.0
  %v7116 = vmax.f32 %v7112, 0.0
  %v7117 = vmax.f32 %v7113, 0.0
  %vm7118 = vcmp.ne.f32.partialorder %v7110, %v7110
  %vm7119 = vcmp.ne.f32.partialorder %v7111, %v7111
  %vm7120 = vcmp.ne.f32.partialorder %v7112, %v7112
  %vm7121 = vcmp.ne.f32.partialorder %v7113, %v7113
  %v7122 = vadd.f32 %v7110, 0.0
  %v7123 = vadd.f32 %v7111, 0.0
  %v7124 = vadd.f32 %v7112, 0.0
  %v7125 = vadd.f32 %v7113, 0.0
  %v7126 = vand.u32 2147483647, %v7110
  %v7127 = vand.u32 2147483647, %v7111
  %v7128 = vand.u32 2147483647, %v7112
  %v7129 = vand.u32 2147483647, %v7113
  %v7130 = vsub.f32 0.0, %v7126
  %v7131 = vsub.f32 0.0, %v7127
  %v7132 = vsub.f32 0.0, %v7128
  %v7133 = vsub.f32 0.0, %v7129
  %v7134 = vmul.f32 %v7130, 1.442695
  %v7135 = vpow.pop %v7134
  %v7136 = vmul.f32 %v7131, 1.442695
  %v7137 = vpow.pop %v7136
  %v7138 = vmul.f32 %v7132, 1.442695
  %v7139 = vpow.pop %v7138
  %v7140 = vmul.f32 %v7133, 1.442695
  %v7141 = vpow.pop %v7140
  %v7142 = vadd.f32 %v7135, 1.0
  %v7143 = vlog2.pop %v7142
  %v7144 = vmul.f32 %v7143, 0.6931472
  %v7145 = vmul.f32 -0.5, %v7135
  %v7146 = vadd.f32 %v7145, 1.0
  %v7147 = vmul.f32 %v7146, %v7135
  %v7148 = vand.u32 2147483647, %v7135
  %vm7149 = vcmp.lt.f32.partialorder %v7148, 0.0004427343
  %v7150 = vsel %vm7149, %v7147, %v7144
  %v7151 = vadd.f32 %v7137, 1.0
  %v7152 = vlog2.pop %v7151
  %v7153 = vmul.f32 %v7152, 0.6931472
  %v7154 = vmul.f32 -0.5, %v7137
  %v7155 = vadd.f32 %v7154, 1.0
  %v7156 = vmul.f32 %v7155, %v7137
  %v7157 = vand.u32 2147483647, %v7137
  %vm7158 = vcmp.lt.f32.partialorder %v7157, 0.0004427343
  %v7159 = vsel %vm7158, %v7156, %v7153
  %v7160 = vadd.f32 %v7139, 1.0
  %v7161 = vlog2.pop %v7160
  %v7162 = vmul.f32 %v7161, 0.6931472
  %v7163 = vmul.f32 -0.5, %v7139
  %v7164 = vadd.f32 %v7163, 1.0
  %v7165 = vmul.f32 %v7164, %v7139
  %v7166 = vand.u32 2147483647, %v7139
  %vm7167 = vcmp.lt.f32.partialorder %v7166, 0.0004427343
  %v7168 = vsel %vm7167, %v7165, %v7162
  %v7169 = vadd.f32 %v7141, 1.0
  %v7170 = vlog2.pop %v7169
  %v7171 = vmul.f32 %v7170, 0.6931472
  %v7172 = vmul.f32 -0.5, %v7141
  %v7173 = vadd.f32 %v7172, 1.0
  %v7174 = vmul.f32 %v7173, %v7141
  %v7175 = vand.u32 2147483647, %v7141
  %vm7176 = vcmp.lt.f32.partialorder %v7175, 0.0004427343
  %v7177 = vsel %vm7176, %v7174, %v7171
  %v7178 = vadd.f32 %v7114, %v7150
  %v7179 = vadd.f32 %v7115, %v7159
  %v7180 = vadd.f32 %v7116, %v7168
  %v7181 = vadd.f32 %v7117, %v7177
  %v7182 = vsel %vm7118, %v7122, %v7178
  %v7183 = vsel %vm7119, %v7123, %v7179
  %v7184 = vsel %vm7120, %v7124, %v7180
  %v7185 = vsel %vm7121, %v7125, %v7181
  %v7186 = vtanh.pop %v7182
  %v7187 = vtanh.pop %v7183
  %v7188 = vtanh.pop %v7184
  %v7189 = vtanh.pop %v7185
  %v7190 = vmul.f32 %v7110, %v7186
  %v7191 = vmul.f32 %v7111, %v7187
  %v7192 = vmul.f32 %v7112, %v7188
  %v7193 = vmul.f32 %v7113, %v7189
  %v7194 = vld [vmem:[%s3 + $0xc40] sm:$0xff]
  %v7195 = vld [vmem:[%s3 + $0xc48] sm:$0xff]
  %v7196 = vld [vmem:[%s3 + $0xc50] sm:$0xff]
  %v7197 = vld [vmem:[%s3 + $0xc58] sm:$0xff]
  %v7198 = vld [vmem:[%s3 + $0xc60] sm:$0xff]
  %v7199 = vld [vmem:[%s3 + $0xc68] sm:$0xff]
  %v7200 = vld [vmem:[%s3 + $0xc70] sm:$0xff]
  %v7201 = vld [vmem:[%s3 + $0xc78] sm:$0xff]
  %v7203 = vsel %vm677, %v7198, 0
  %v7206 = vsel %vm677, %v7199, 0
  %v7209 = vsel %vm677, %v7200, 0
  %v7212 = vsel %vm677, %v7201, 0
  %7214 = vmatpush.msra.mxu0 0.0
  %7215 = vmatpush.msra.mxu0 0.0
  %7216 = vmatpush.msra.mxu0 0.0
  %7217 = vmatpush.msra.mxu0 0.0
  %7218 = vmatpush.msra.mxu0 0.0
  %7219 = vmatpush.msra.mxu0 0.0
  %7220 = vmatpush.msra.mxu0 0.0
  %7221 = vmatpush.msra.mxu0 0.0
  %7222 = vmatpush.msra.mxu0 0.0
  %7223 = vmatpush.msra.mxu0 0.0
  %7224 = vmatpush.msra.mxu0 0.0
  %7225 = vmatpush.msra.mxu0 0.0
  %7226 = vmatpush.msra.mxu0 0.0
  %7227 = vmatpush.msra.mxu0 0.0
  %7228 = vmatpush.msra.mxu0 0.0
  %7229 = vmatpush.msra.mxu0 %v46
  %7230 = vmatmul.f32.gmra.mxu0 %v7203
  %v7231 = vpop.f32.mrf.mxu0
  %v7232 = vadd.f32 0.0, %v7231
  %7233 = vmatmul.f32.gmra.mxu0 %v7206
  %v7234 = vpop.f32.mrf.mxu0
  %v7235 = vadd.f32 0.0, %v7234
  %7236 = vmatmul.f32.gmra.mxu0 %v7209
  %v7237 = vpop.f32.mrf.mxu0
  %v7238 = vadd.f32 0.0, %v7237
  %7239 = vmatmul.f32.gmra.mxu0 %v7212
  %v7240 = vpop.f32.mrf.mxu0
  %v7241 = vadd.f32 0.0, %v7240
  %7242 = vdwg.mxu0
  %v7244 = vsel %vm104, %v7194, 0
  %v7247 = vsel %vm104, %v7195, 0
  %v7250 = vsel %vm104, %v7196, 0
  %v7253 = vsel %vm104, %v7197, 0
  %7255 = vmatpush.msra.mxu0 0.0
  %7256 = vmatpush.msra.mxu0 0.0
  %7257 = vmatpush.msra.mxu0 0.0
  %7258 = vmatpush.msra.mxu0 0.0
  %7259 = vmatpush.msra.mxu0 0.0
  %7260 = vmatpush.msra.mxu0 0.0
  %7261 = vmatpush.msra.mxu0 0.0
  %7262 = vmatpush.msra.mxu0 0.0
  %7263 = vmatpush.msra.mxu0 0.0
  %7264 = vmatpush.msra.mxu0 0.0
  %7265 = vmatpush.msra.mxu0 0.0
  %7266 = vmatpush.msra.mxu0 0.0
  %7267 = vmatpush.msra.mxu0 0.0
  %7268 = vmatpush.msra.mxu0 0.0
  %7269 = vmatpush.msra.mxu0 %v372
  %7270 = vmatpush.msra.mxu0 %v369
  %7271 = vmatmul.f32.gmra.mxu0 %v7244
  %v7272 = vpop.f32.mrf.mxu0
  %v7273 = vadd.f32 %v7232, %v7272
  %7274 = vmatmul.f32.gmra.mxu0 %v7247
  %v7275 = vpop.f32.mrf.mxu0
  %v7276 = vadd.f32 %v7235, %v7275
  %7277 = vmatmul.f32.gmra.mxu0 %v7250
  %v7278 = vpop.f32.mrf.mxu0
  %v7279 = vadd.f32 %v7238, %v7278
  %7280 = vmatmul.f32.gmra.mxu0 %v7253
  %v7281 = vpop.f32.mrf.mxu0
  %v7282 = vadd.f32 %v7241, %v7281
  %7283 = vdwg.mxu0
  %v7284 = vld [vmem:[%s3 + $0xc80] sm:$0xff]
  %v7285 = vld [vmem:[%s3 + $0xc88] sm:$0xff]
  %v7286 = vld [vmem:[%s3 + $0xc90] sm:$0xff]
  %v7287 = vld [vmem:[%s3 + $0xc98] sm:$0xff]
  %7289 = vset.pattern.permute.xlu0 0
  %7290 = vperm.xlu0 %7289, %v7284
  %v7291 = vpop.permute.xlu0 %7290
  %7294 = vset.pattern.permute.xlu0 0
  %7295 = vperm.xlu0 %7294, %v7285
  %v7296 = vpop.permute.xlu0 %7295
  %7299 = vset.pattern.permute.xlu0 0
  %7300 = vperm.xlu0 %7299, %v7286
  %v7301 = vpop.permute.xlu0 %7300
  %7304 = vset.pattern.permute.xlu0 0
  %7305 = vperm.xlu0 %7304, %v7287
  %v7306 = vpop.permute.xlu0 %7305
  %v7308 = vadd.f32 %v7273, %v7291
  %v7309 = vadd.f32 %v7276, %v7296
  %v7310 = vadd.f32 %v7279, %v7301
  %v7311 = vadd.f32 %v7282, %v7306
  %v7312 = vmax.f32 %v7308, 0.0
  %v7313 = vmax.f32 %v7309, 0.0
  %v7314 = vmax.f32 %v7310, 0.0
  %v7315 = vmax.f32 %v7311, 0.0
  %vm7316 = vcmp.ne.f32.partialorder %v7308, %v7308
  %vm7317 = vcmp.ne.f32.partialorder %v7309, %v7309
  %vm7318 = vcmp.ne.f32.partialorder %v7310, %v7310
  %vm7319 = vcmp.ne.f32.partialorder %v7311, %v7311
  %v7320 = vadd.f32 %v7308, 0.0
  %v7321 = vadd.f32 %v7309, 0.0
  %v7322 = vadd.f32 %v7310, 0.0
  %v7323 = vadd.f32 %v7311, 0.0
  %v7324 = vand.u32 2147483647, %v7308
  %v7325 = vand.u32 2147483647, %v7309
  %v7326 = vand.u32 2147483647, %v7310
  %v7327 = vand.u32 2147483647, %v7311
  %v7328 = vsub.f32 0.0, %v7324
  %v7329 = vsub.f32 0.0, %v7325
  %v7330 = vsub.f32 0.0, %v7326
  %v7331 = vsub.f32 0.0, %v7327
  %v7332 = vmul.f32 %v7328, 1.442695
  %v7333 = vpow.pop %v7332
  %v7334 = vmul.f32 %v7329, 1.442695
  %v7335 = vpow.pop %v7334
  %v7336 = vmul.f32 %v7330, 1.442695
  %v7337 = vpow.pop %v7336
  %v7338 = vmul.f32 %v7331, 1.442695
  %v7339 = vpow.pop %v7338
  %v7340 = vadd.f32 %v7333, 1.0
  %v7341 = vlog2.pop %v7340
  %v7342 = vmul.f32 %v7341, 0.6931472
  %v7343 = vmul.f32 -0.5, %v7333
  %v7344 = vadd.f32 %v7343, 1.0
  %v7345 = vmul.f32 %v7344, %v7333
  %v7346 = vand.u32 2147483647, %v7333
  %vm7347 = vcmp.lt.f32.partialorder %v7346, 0.0004427343
  %v7348 = vsel %vm7347, %v7345, %v7342
  %v7349 = vadd.f32 %v7335, 1.0
  %v7350 = vlog2.pop %v7349
  %v7351 = vmul.f32 %v7350, 0.6931472
  %v7352 = vmul.f32 -0.5, %v7335
  %v7353 = vadd.f32 %v7352, 1.0
  %v7354 = vmul.f32 %v7353, %v7335
  %v7355 = vand.u32 2147483647, %v7335
  %vm7356 = vcmp.lt.f32.partialorder %v7355, 0.0004427343
  %v7357 = vsel %vm7356, %v7354, %v7351
  %v7358 = vadd.f32 %v7337, 1.0
  %v7359 = vlog2.pop %v7358
  %v7360 = vmul.f32 %v7359, 0.6931472
  %v7361 = vmul.f32 -0.5, %v7337
  %v7362 = vadd.f32 %v7361, 1.0
  %v7363 = vmul.f32 %v7362, %v7337
  %v7364 = vand.u32 2147483647, %v7337
  %vm7365 = vcmp.lt.f32.partialorder %v7364, 0.0004427343
  %v7366 = vsel %vm7365, %v7363, %v7360
  %v7367 = vadd.f32 %v7339, 1.0
  %v7368 = vlog2.pop %v7367
  %v7369 = vmul.f32 %v7368, 0.6931472
  %v7370 = vmul.f32 -0.5, %v7339
  %v7371 = vadd.f32 %v7370, 1.0
  %v7372 = vmul.f32 %v7371, %v7339
  %v7373 = vand.u32 2147483647, %v7339
  %vm7374 = vcmp.lt.f32.partialorder %v7373, 0.0004427343
  %v7375 = vsel %vm7374, %v7372, %v7369
  %v7376 = vadd.f32 %v7312, %v7348
  %v7377 = vadd.f32 %v7313, %v7357
  %v7378 = vadd.f32 %v7314, %v7366
  %v7379 = vadd.f32 %v7315, %v7375
  %v7380 = vsel %vm7316, %v7320, %v7376
  %v7381 = vsel %vm7317, %v7321, %v7377
  %v7382 = vsel %vm7318, %v7322, %v7378
  %v7383 = vsel %vm7319, %v7323, %v7379
  %v7384 = vtanh.pop %v7380
  %v7385 = vtanh.pop %v7381
  %v7386 = vtanh.pop %v7382
  %v7387 = vtanh.pop %v7383
  %v7388 = vmul.f32 %v7308, %v7384
  %v7389 = vmul.f32 %v7309, %v7385
  %v7390 = vmul.f32 %v7310, %v7386
  %v7391 = vmul.f32 %v7311, %v7387
  %v7392 = vld [vmem:[%s3 + $0xca0] sm:$0xff]
  %v7393 = vld [vmem:[%s3 + $0xca8] sm:$0xff]
  %v7394 = vld [vmem:[%s3 + $0xcb0] sm:$0xff]
  %v7395 = vld [vmem:[%s3 + $0xcb8] sm:$0xff]
  %v7396 = vld [vmem:[%s3 + $0xcc0] sm:$0xff]
  %v7397 = vld [vmem:[%s3 + $0xcc8] sm:$0xff]
  %v7398 = vld [vmem:[%s3 + $0xcd0] sm:$0xff]
  %v7399 = vld [vmem:[%s3 + $0xcd8] sm:$0xff]
  %7401 = vset.pattern.permute.xlu0 0
  %7402 = vperm.xlu0 %7401, %v7396
  %v7403 = vpop.permute.xlu0 %7402
  %7406 = vset.pattern.permute.xlu0 0
  %7407 = vperm.xlu0 %7406, %v7397
  %v7408 = vpop.permute.xlu0 %7407
  %7411 = vset.pattern.permute.xlu0 0
  %7412 = vperm.xlu0 %7411, %v7398
  %v7413 = vpop.permute.xlu0 %7412
  %7416 = vset.pattern.permute.xlu0 0
  %7417 = vperm.xlu0 %7416, %v7399
  %v7418 = vpop.permute.xlu0 %7417
  %v7421 = vsel %vm3032, %v7392, 0
  %v7424 = vsel %vm3032, %v7393, 0
  %v7427 = vsel %vm3032, %v7394, 0
  %v7430 = vsel %vm3032, %v7395, 0
  %7432 = vmatpush.msra.mxu0 0.0
  %7433 = vmatpush.msra.mxu0 0.0
  %7434 = vmatpush.msra.mxu0 0.0
  %7435 = vmatpush.msra.mxu0 0.0
  %7436 = vmatpush.msra.mxu0 0.0
  %7437 = vmatpush.msra.mxu0 0.0
  %7438 = vmatpush.msra.mxu0 0.0
  %7439 = vmatpush.msra.mxu0 0.0
  %7440 = vmatpush.msra.mxu0 0.0
  %7441 = vmatpush.msra.mxu0 0.0
  %7442 = vmatpush.msra.mxu0 0.0
  %7443 = vmatpush.msra.mxu0 0.0
  %7444 = vmatpush.msra.mxu0 %v7391
  %7445 = vmatpush.msra.mxu0 %v7390
  %7446 = vmatpush.msra.mxu0 %v7389
  %7447 = vmatpush.msra.mxu0 %v7388
  %7448 = vmatmul.f32.gmra.mxu0 %v7421
  %v7449 = vpop.f32.mrf.mxu0
  %v7450 = vadd.f32 %v7403, %v7449
  %7451 = vmatmul.f32.gmra.mxu0 %v7424
  %v7452 = vpop.f32.mrf.mxu0
  %v7453 = vadd.f32 %v7408, %v7452
  %7454 = vmatmul.f32.gmra.mxu0 %v7427
  %v7455 = vpop.f32.mrf.mxu0
  %v7456 = vadd.f32 %v7413, %v7455
  %7457 = vmatmul.f32.gmra.mxu0 %v7430
  %v7458 = vpop.f32.mrf.mxu0
  %v7459 = vadd.f32 %v7418, %v7458
  %7460 = vdwg.mxu0
  %v7461 = vmax.f32 %v7450, 0.0
  %v7462 = vmax.f32 %v7453, 0.0
  %v7463 = vmax.f32 %v7456, 0.0
  %v7464 = vmax.f32 %v7459, 0.0
  %vm7465 = vcmp.ne.f32.partialorder %v7450, %v7450
  %vm7466 = vcmp.ne.f32.partialorder %v7453, %v7453
  %vm7467 = vcmp.ne.f32.partialorder %v7456, %v7456
  %vm7468 = vcmp.ne.f32.partialorder %v7459, %v7459
  %v7469 = vadd.f32 %v7450, 0.0
  %v7470 = vadd.f32 %v7453, 0.0
  %v7471 = vadd.f32 %v7456, 0.0
  %v7472 = vadd.f32 %v7459, 0.0
  %v7473 = vand.u32 2147483647, %v7450
  %v7474 = vand.u32 2147483647, %v7453
  %v7475 = vand.u32 2147483647, %v7456
  %v7476 = vand.u32 2147483647, %v7459
  %v7477 = vsub.f32 0.0, %v7473
  %v7478 = vsub.f32 0.0, %v7474
  %v7479 = vsub.f32 0.0, %v7475
  %v7480 = vsub.f32 0.0, %v7476
  %v7481 = vmul.f32 %v7477, 1.442695
  %v7482 = vpow.pop %v7481
  %v7483 = vmul.f32 %v7478, 1.442695
  %v7484 = vpow.pop %v7483
  %v7485 = vmul.f32 %v7479, 1.442695
  %v7486 = vpow.pop %v7485
  %v7487 = vmul.f32 %v7480, 1.442695
  %v7488 = vpow.pop %v7487
  %v7489 = vadd.f32 %v7482, 1.0
  %v7490 = vlog2.pop %v7489
  %v7491 = vmul.f32 %v7490, 0.6931472
  %v7492 = vmul.f32 -0.5, %v7482
  %v7493 = vadd.f32 %v7492, 1.0
  %v7494 = vmul.f32 %v7493, %v7482
  %v7495 = vand.u32 2147483647, %v7482
  %vm7496 = vcmp.lt.f32.partialorder %v7495, 0.0004427343
  %v7497 = vsel %vm7496, %v7494, %v7491
  %v7498 = vadd.f32 %v7484, 1.0
  %v7499 = vlog2.pop %v7498
  %v7500 = vmul.f32 %v7499, 0.6931472
  %v7501 = vmul.f32 -0.5, %v7484
  %v7502 = vadd.f32 %v7501, 1.0
  %v7503 = vmul.f32 %v7502, %v7484
  %v7504 = vand.u32 2147483647, %v7484
  %vm7505 = vcmp.lt.f32.partialorder %v7504, 0.0004427343
  %v7506 = vsel %vm7505, %v7503, %v7500
  %v7507 = vadd.f32 %v7486, 1.0
  %v7508 = vlog2.pop %v7507
  %v7509 = vmul.f32 %v7508, 0.6931472
  %v7510 = vmul.f32 -0.5, %v7486
  %v7511 = vadd.f32 %v7510, 1.0
  %v7512 = vmul.f32 %v7511, %v7486
  %v7513 = vand.u32 2147483647, %v7486
  %vm7514 = vcmp.lt.f32.partialorder %v7513, 0.0004427343
  %v7515 = vsel %vm7514, %v7512, %v7509
  %v7516 = vadd.f32 %v7488, 1.0
  %v7517 = vlog2.pop %v7516
  %v7518 = vmul.f32 %v7517, 0.6931472
  %v7519 = vmul.f32 -0.5, %v7488
  %v7520 = vadd.f32 %v7519, 1.0
  %v7521 = vmul.f32 %v7520, %v7488
  %v7522 = vand.u32 2147483647, %v7488
  %vm7523 = vcmp.lt.f32.partialorder %v7522, 0.0004427343
  %v7524 = vsel %vm7523, %v7521, %v7518
  %v7525 = vadd.f32 %v7461, %v7497
  %v7526 = vadd.f32 %v7462, %v7506
  %v7527 = vadd.f32 %v7463, %v7515
  %v7528 = vadd.f32 %v7464, %v7524
  %v7529 = vsel %vm7465, %v7469, %v7525
  %v7530 = vsel %vm7466, %v7470, %v7526
  %v7531 = vsel %vm7467, %v7471, %v7527
  %v7532 = vsel %vm7468, %v7472, %v7528
  %v7533 = vtanh.pop %v7529
  %v7534 = vtanh.pop %v7530
  %v7535 = vtanh.pop %v7531
  %v7536 = vtanh.pop %v7532
  %v7537 = vmul.f32 %v7450, %v7533
  %v7538 = vmul.f32 %v7453, %v7534
  %v7539 = vmul.f32 %v7456, %v7535
  %v7540 = vmul.f32 %v7459, %v7536
  %v7541 = vld [vmem:[%s3 + $0xce0] sm:$0xff]
  %v7542 = vld [vmem:[%s3 + $0xce8] sm:$0xff]
  %v7543 = vld [vmem:[%s3 + $0xcf0] sm:$0xff]
  %v7544 = vld [vmem:[%s3 + $0xcf8] sm:$0xff]
  %v7545 = vld [vmem:[%s3 + $0xd00] sm:$0xff]
  %v7546 = vld [vmem:[%s3 + $0xd08] sm:$0xff]
  %v7547 = vld [vmem:[%s3 + $0xd10] sm:$0xff]
  %v7548 = vld [vmem:[%s3 + $0xd18] sm:$0xff]
  %7550 = vset.pattern.permute.xlu0 0
  %7551 = vperm.xlu0 %7550, %v7545
  %v7552 = vpop.permute.xlu0 %7551
  %7555 = vset.pattern.permute.xlu0 0
  %7556 = vperm.xlu0 %7555, %v7546
  %v7557 = vpop.permute.xlu0 %7556
  %7560 = vset.pattern.permute.xlu0 0
  %7561 = vperm.xlu0 %7560, %v7547
  %v7562 = vpop.permute.xlu0 %7561
  %7565 = vset.pattern.permute.xlu0 0
  %7566 = vperm.xlu0 %7565, %v7548
  %v7567 = vpop.permute.xlu0 %7566
  %v7570 = vsel %vm3032, %v7541, 0
  %v7573 = vsel %vm3032, %v7542, 0
  %v7576 = vsel %vm3032, %v7543, 0
  %v7579 = vsel %vm3032, %v7544, 0
  %7581 = vmatpush.msra.mxu0 0.0
  %7582 = vmatpush.msra.mxu0 0.0
  %7583 = vmatpush.msra.mxu0 0.0
  %7584 = vmatpush.msra.mxu0 0.0
  %7585 = vmatpush.msra.mxu0 0.0
  %7586 = vmatpush.msra.mxu0 0.0
  %7587 = vmatpush.msra.mxu0 0.0
  %7588 = vmatpush.msra.mxu0 0.0
  %7589 = vmatpush.msra.mxu0 0.0
  %7590 = vmatpush.msra.mxu0 0.0
  %7591 = vmatpush.msra.mxu0 0.0
  %7592 = vmatpush.msra.mxu0 0.0
  %7593 = vmatpush.msra.mxu0 %v7540
  %7594 = vmatpush.msra.mxu0 %v7539
  %7595 = vmatpush.msra.mxu0 %v7538
  %7596 = vmatpush.msra.mxu0 %v7537
  %7597 = vmatmul.f32.gmra.mxu0 %v7570
  %v7598 = vpop.f32.mrf.mxu0
  %v7599 = vadd.f32 %v7552, %v7598
  %7600 = vmatmul.f32.gmra.mxu0 %v7573
  %v7601 = vpop.f32.mrf.mxu0
  %v7602 = vadd.f32 %v7557, %v7601
  %7603 = vmatmul.f32.gmra.mxu0 %v7576
  %v7604 = vpop.f32.mrf.mxu0
  %v7605 = vadd.f32 %v7562, %v7604
  %7606 = vmatmul.f32.gmra.mxu0 %v7579
  %v7607 = vpop.f32.mrf.mxu0
  %v7608 = vadd.f32 %v7567, %v7607
  %7609 = vdwg.mxu0
  %v7611 = vsel %vm916, %v7599, 0
  %v7614 = vsel %vm916, %v7602, 0
  %v7617 = vsel %vm916, %v7605, 0
  %v7620 = vsel %vm916, %v7608, 0
  %7622 = vmatpush.msra.mxu0 0.0
  %7623 = vmatpush.msra.mxu0 0.0
  %7624 = vmatpush.msra.mxu0 0.0
  %7625 = vmatpush.msra.mxu0 0.0
  %7626 = vmatpush.msra.mxu0 0.0
  %7627 = vmatpush.msra.mxu0 0.0
  %7628 = vmatpush.msra.mxu0 0.0
  %7629 = vmatpush.msra.mxu0 0.0
  %7630 = vmatpush.msra.mxu0 0.0
  %7631 = vmatpush.msra.mxu0 0.0
  %7632 = vmatpush.msra.mxu0 0.0
  %7633 = vmatpush.msra.mxu0 0.0
  %7634 = vmatpush.msra.mxu0 0.0
  %7635 = vmatpush.msra.mxu0 0.0
  %7636 = vmatpush.msra.mxu0 0.0
  %7637 = vmatpush.msra.mxu0 %v3236
  %7638 = vmatmul.f32.gmra.mxu0 %v7611
  %v7639 = vpop.f32.mrf.mxu0
  %v7640 = vadd.f32 0.0, %v7639
  %7641 = vmatmul.f32.gmra.mxu0 %v7614
  %v7642 = vpop.f32.mrf.mxu0
  %v7643 = vadd.f32 0.0, %v7642
  %7644 = vmatmul.f32.gmra.mxu0 %v7617
  %v7645 = vpop.f32.mrf.mxu0
  %v7646 = vadd.f32 0.0, %v7645
  %7647 = vmatmul.f32.gmra.mxu0 %v7620
  %v7648 = vpop.f32.mrf.mxu0
  %v7649 = vadd.f32 0.0, %v7648
  %7650 = vdwg.mxu0
  %v7651 = vadd.f32 %v7190, %v7640
  %v7652 = vadd.f32 %v7191, %v7643
  %v7653 = vadd.f32 %v7192, %v7646
  %v7654 = vadd.f32 %v7193, %v7649
  %v7655 = vld [vmem:[%s3 + $0xb80] sm:$0xff]
  %v7656 = vld [vmem:[%s3 + $0xb88] sm:$0xff]
  %v7657 = vld [vmem:[%s3 + $0xb90] sm:$0xff]
  %v7658 = vld [vmem:[%s3 + $0xb98] sm:$0xff]
  %v7659 = vld [vmem:[%s3 + $0xba0] sm:$0xff]
  %v7660 = vld [vmem:[%s3 + $0xba8] sm:$0xff]
  %v7661 = vld [vmem:[%s3 + $0xbb0] sm:$0xff]
  %v7662 = vld [vmem:[%s3 + $0xbb8] sm:$0xff]
  %v7663 = vld [vmem:[%s3 + $0xbc0] sm:$0xff]
  %v7664 = vld [vmem:[%s3 + $0xbc8] sm:$0xff]
  %v7665 = vld [vmem:[%s3 + $0xbd0] sm:$0xff]
  %v7666 = vld [vmem:[%s3 + $0xbd8] sm:$0xff]
  %v7667 = vld [vmem:[%s3 + $0xbe0] sm:$0xff]
  %v7668 = vld [vmem:[%s3 + $0xbe8] sm:$0xff]
  %v7669 = vld [vmem:[%s3 + $0xbf0] sm:$0xff]
  %v7670 = vld [vmem:[%s3 + $0xbf8] sm:$0xff]
  %v7671 = vld [vmem:[%s3 + $0xc00] sm:$0xff]
  %v7672 = vld [vmem:[%s3 + $0xc08] sm:$0xff]
  %v7673 = vld [vmem:[%s3 + $0xc10] sm:$0xff]
  %v7674 = vld [vmem:[%s3 + $0xc18] sm:$0xff]
  %v7675 = vld [vmem:[%s3 + $0xc20] sm:$0xff]
  %v7676 = vld [vmem:[%s3 + $0xc28] sm:$0xff]
  %v7677 = vld [vmem:[%s3 + $0xc30] sm:$0xff]
  %v7678 = vld [vmem:[%s3 + $0xc38] sm:$0xff]
  %v7680 = vsel %vm3032, %v7655, 0
  %v7683 = vsel %vm3032, %v7656, 0
  %v7686 = vsel %vm3032, %v7657, 0
  %v7689 = vsel %vm3032, %v7658, 0
  %v7692 = vsel %vm3032, %v7659, 0
  %v7695 = vsel %vm3032, %v7660, 0
  %v7698 = vsel %vm3032, %v7661, 0
  %v7701 = vsel %vm3032, %v7662, 0
  %v7704 = vsel %vm3032, %v7663, 0
  %v7707 = vsel %vm3032, %v7664, 0
  %v7710 = vsel %vm3032, %v7665, 0
  %v7713 = vsel %vm3032, %v7666, 0
  %v7716 = vsel %vm3032, %v7667, 0
  %v7719 = vsel %vm3032, %v7668, 0
  %v7722 = vsel %vm3032, %v7669, 0
  %v7725 = vsel %vm3032, %v7670, 0
  %v7728 = vsel %vm3032, %v7671, 0
  %v7731 = vsel %vm3032, %v7672, 0
  %v7734 = vsel %vm3032, %v7673, 0
  %v7737 = vsel %vm3032, %v7674, 0
  %7739 = vmatpush.msra.mxu0 0.0
  %7740 = vmatpush.msra.mxu0 0.0
  %7741 = vmatpush.msra.mxu0 0.0
  %7742 = vmatpush.msra.mxu0 0.0
  %7743 = vmatpush.msra.mxu0 0.0
  %7744 = vmatpush.msra.mxu0 0.0
  %7745 = vmatpush.msra.mxu0 0.0
  %7746 = vmatpush.msra.mxu0 0.0
  %7747 = vmatpush.msra.mxu0 0.0
  %7748 = vmatpush.msra.mxu0 0.0
  %7749 = vmatpush.msra.mxu0 0.0
  %7750 = vmatpush.msra.mxu0 0.0
  %7751 = vmatpush.msra.mxu0 %v7654
  %7752 = vmatpush.msra.mxu0 %v7653
  %7753 = vmatpush.msra.mxu0 %v7652
  %7754 = vmatpush.msra.mxu0 %v7651
  %7755 = vmatmul.f32.gmra.mxu0 %v7680
  %v7756 = vpop.f32.mrf.mxu0
  %v7757 = vadd.f32 0.0, %v7756
  %7758 = vmatmul.f32.gmra.mxu0 %v7683
  %v7759 = vpop.f32.mrf.mxu0
  %v7760 = vadd.f32 0.0, %v7759
  %7761 = vmatmul.f32.gmra.mxu0 %v7686
  %v7762 = vpop.f32.mrf.mxu0
  %v7763 = vadd.f32 0.0, %v7762
  %7764 = vmatmul.f32.gmra.mxu0 %v7689
  %v7765 = vpop.f32.mrf.mxu0
  %v7766 = vadd.f32 0.0, %v7765
  %7767 = vmatmul.f32.gmra.mxu0 %v7692
  %v7768 = vpop.f32.mrf.mxu0
  %v7769 = vadd.f32 0.0, %v7768
  %7770 = vmatmul.f32.gmra.mxu0 %v7695
  %v7771 = vpop.f32.mrf.mxu0
  %v7772 = vadd.f32 0.0, %v7771
  %7773 = vmatmul.f32.gmra.mxu0 %v7698
  %v7774 = vpop.f32.mrf.mxu0
  %v7775 = vadd.f32 0.0, %v7774
  %7776 = vmatmul.f32.gmra.mxu0 %v7701
  %v7777 = vpop.f32.mrf.mxu0
  %v7778 = vadd.f32 0.0, %v7777
  %7779 = vmatmul.f32.gmra.mxu0 %v7704
  %v7780 = vpop.f32.mrf.mxu0
  %v7781 = vadd.f32 0.0, %v7780
  %7782 = vmatmul.f32.gmra.mxu0 %v7707
  %v7783 = vpop.f32.mrf.mxu0
  %v7784 = vadd.f32 0.0, %v7783
  %7785 = vmatmul.f32.gmra.mxu0 %v7710
  %v7786 = vpop.f32.mrf.mxu0
  %v7787 = vadd.f32 0.0, %v7786
  %7788 = vmatmul.f32.gmra.mxu0 %v7713
  %v7789 = vpop.f32.mrf.mxu0
  %v7790 = vadd.f32 0.0, %v7789
  %7791 = vmatmul.f32.gmra.mxu0 %v7716
  %v7792 = vpop.f32.mrf.mxu0
  %v7793 = vadd.f32 0.0, %v7792
  %7794 = vmatmul.f32.gmra.mxu0 %v7719
  %v7795 = vpop.f32.mrf.mxu0
  %v7796 = vadd.f32 0.0, %v7795
  %7797 = vmatmul.f32.gmra.mxu0 %v7722
  %v7798 = vpop.f32.mrf.mxu0
  %v7799 = vadd.f32 0.0, %v7798
  %7800 = vmatmul.f32.gmra.mxu0 %v7725
  %v7801 = vpop.f32.mrf.mxu0
  %v7802 = vadd.f32 0.0, %v7801
  %7803 = vmatmul.f32.gmra.mxu0 %v7728
  %v7804 = vpop.f32.mrf.mxu0
  %v7805 = vadd.f32 0.0, %v7804
  %7806 = vmatmul.f32.gmra.mxu0 %v7731
  %v7807 = vpop.f32.mrf.mxu0
  %v7808 = vadd.f32 0.0, %v7807
  %7809 = vmatmul.f32.gmra.mxu0 %v7734
  %v7810 = vpop.f32.mrf.mxu0
  %v7811 = vadd.f32 0.0, %v7810
  %7812 = vmatmul.f32.gmra.mxu0 %v7737
  %v7813 = vpop.f32.mrf.mxu0
  %v7814 = vadd.f32 0.0, %v7813
  %7815 = vdwg.mxu0
  %v7817 = vsel %vm677, %v7757, 0
  %v7820 = vsel %vm677, %v7760, 0
  %v7823 = vsel %vm677, %v7763, 0
  %v7826 = vsel %vm677, %v7766, 0
  %7828 = vmatpush.msra.mxu0 0.0
  %7829 = vmatpush.msra.mxu0 0.0
  %7830 = vmatpush.msra.mxu0 0.0
  %7831 = vmatpush.msra.mxu0 0.0
  %7832 = vmatpush.msra.mxu0 0.0
  %7833 = vmatpush.msra.mxu0 0.0
  %7834 = vmatpush.msra.mxu0 0.0
  %7835 = vmatpush.msra.mxu0 0.0
  %7836 = vmatpush.msra.mxu0 0.0
  %7837 = vmatpush.msra.mxu0 0.0
  %7838 = vmatpush.msra.mxu0 0.0
  %7839 = vmatpush.msra.mxu0 0.0
  %7840 = vmatpush.msra.mxu0 0.0
  %7841 = vmatpush.msra.mxu0 0.0
  %7842 = vmatpush.msra.mxu0 0.0
  %7843 = vmatpush.msra.mxu0 %v17
  %7844 = vmatmul.f32.gmra.mxu0 %v7817
  %v7845 = vpop.f32.mrf.mxu0
  %v7846 = vadd.f32 0.0, %v7845
  %7847 = vmatmul.f32.gmra.mxu0 %v7820
  %v7848 = vpop.f32.mrf.mxu0
  %v7849 = vadd.f32 0.0, %v7848
  %7850 = vmatmul.f32.gmra.mxu0 %v7823
  %v7851 = vpop.f32.mrf.mxu0
  %v7852 = vadd.f32 0.0, %v7851
  %7853 = vmatmul.f32.gmra.mxu0 %v7826
  %v7854 = vpop.f32.mrf.mxu0
  %v7855 = vadd.f32 0.0, %v7854
  %7856 = vdwg.mxu0
  %7858 = vset.pattern.permute.xlu0 0
  %7859 = vperm.xlu0 %7858, %v7675
  %v7860 = vpop.permute.xlu0 %7859
  %7863 = vset.pattern.permute.xlu0 0
  %7864 = vperm.xlu0 %7863, %v7676
  %v7865 = vpop.permute.xlu0 %7864
  %7868 = vset.pattern.permute.xlu0 0
  %7869 = vperm.xlu0 %7868, %v7677
  %v7870 = vpop.permute.xlu0 %7869
  %7873 = vset.pattern.permute.xlu0 0
  %7874 = vperm.xlu0 %7873, %v7678
  %v7875 = vpop.permute.xlu0 %7874
  %v7877 = vadd.f32 %v7860, %v7846
  %v7878 = vadd.f32 %v7865, %v7849
  %v7879 = vadd.f32 %v7870, %v7852
  %v7880 = vadd.f32 %v7875, %v7855
  %v7882 = vsel %vm677, %v7769, 0
  %v7885 = vsel %vm677, %v7772, 0
  %v7888 = vsel %vm677, %v7775, 0
  %v7891 = vsel %vm677, %v7778, 0
  %7893 = vmatpush.msra.mxu0 0.0
  %7894 = vmatpush.msra.mxu0 0.0
  %7895 = vmatpush.msra.mxu0 0.0
  %7896 = vmatpush.msra.mxu0 0.0
  %7897 = vmatpush.msra.mxu0 0.0
  %7898 = vmatpush.msra.mxu0 0.0
  %7899 = vmatpush.msra.mxu0 0.0
  %7900 = vmatpush.msra.mxu0 0.0
  %7901 = vmatpush.msra.mxu0 0.0
  %7902 = vmatpush.msra.mxu0 0.0
  %7903 = vmatpush.msra.mxu0 0.0
  %7904 = vmatpush.msra.mxu0 0.0
  %7905 = vmatpush.msra.mxu0 0.0
  %7906 = vmatpush.msra.mxu0 0.0
  %7907 = vmatpush.msra.mxu0 0.0
  %7908 = vmatpush.msra.mxu0 %v18
  %7909 = vmatmul.f32.gmra.mxu0 %v7882
  %v7910 = vpop.f32.mrf.mxu0
  %v7911 = vadd.f32 0.0, %v7910
  %7912 = vmatmul.f32.gmra.mxu0 %v7885
  %v7913 = vpop.f32.mrf.mxu0
  %v7914 = vadd.f32 0.0, %v7913
  %7915 = vmatmul.f32.gmra.mxu0 %v7888
  %v7916 = vpop.f32.mrf.mxu0
  %v7917 = vadd.f32 0.0, %v7916
  %7918 = vmatmul.f32.gmra.mxu0 %v7891
  %v7919 = vpop.f32.mrf.mxu0
  %v7920 = vadd.f32 0.0, %v7919
  %7921 = vdwg.mxu0
  %v7922 = vadd.f32 %v7877, %v7911
  %v7923 = vadd.f32 %v7878, %v7914
  %v7924 = vadd.f32 %v7879, %v7917
  %v7925 = vadd.f32 %v7880, %v7920
  %v7927 = vsel %vm677, %v7781, 0
  %v7930 = vsel %vm677, %v7784, 0
  %v7933 = vsel %vm677, %v7787, 0
  %v7936 = vsel %vm677, %v7790, 0
  %7938 = vmatpush.msra.mxu0 0.0
  %7939 = vmatpush.msra.mxu0 0.0
  %7940 = vmatpush.msra.mxu0 0.0
  %7941 = vmatpush.msra.mxu0 0.0
  %7942 = vmatpush.msra.mxu0 0.0
  %7943 = vmatpush.msra.mxu0 0.0
  %7944 = vmatpush.msra.mxu0 0.0
  %7945 = vmatpush.msra.mxu0 0.0
  %7946 = vmatpush.msra.mxu0 0.0
  %7947 = vmatpush.msra.mxu0 0.0
  %7948 = vmatpush.msra.mxu0 0.0
  %7949 = vmatpush.msra.mxu0 0.0
  %7950 = vmatpush.msra.mxu0 0.0
  %7951 = vmatpush.msra.mxu0 0.0
  %7952 = vmatpush.msra.mxu0 0.0
  %7953 = vmatpush.msra.mxu0 %v19
  %7954 = vmatmul.f32.gmra.mxu0 %v7927
  %v7955 = vpop.f32.mrf.mxu0
  %v7956 = vadd.f32 0.0, %v7955
  %7957 = vmatmul.f32.gmra.mxu0 %v7930
  %v7958 = vpop.f32.mrf.mxu0
  %v7959 = vadd.f32 0.0, %v7958
  %7960 = vmatmul.f32.gmra.mxu0 %v7933
  %v7961 = vpop.f32.mrf.mxu0
  %v7962 = vadd.f32 0.0, %v7961
  %7963 = vmatmul.f32.gmra.mxu0 %v7936
  %v7964 = vpop.f32.mrf.mxu0
  %v7965 = vadd.f32 0.0, %v7964
  %7966 = vdwg.mxu0
  %v7967 = vadd.f32 %v7922, %v7956
  %v7968 = vadd.f32 %v7923, %v7959
  %v7969 = vadd.f32 %v7924, %v7962
  %v7970 = vadd.f32 %v7925, %v7965
  %v7972 = vsel %vm677, %v7793, 0
  %v7975 = vsel %vm677, %v7796, 0
  %v7978 = vsel %vm677, %v7799, 0
  %v7981 = vsel %vm677, %v7802, 0
  %7983 = vmatpush.msra.mxu0 0.0
  %7984 = vmatpush.msra.mxu0 0.0
  %7985 = vmatpush.msra.mxu0 0.0
  %7986 = vmatpush.msra.mxu0 0.0
  %7987 = vmatpush.msra.mxu0 0.0
  %7988 = vmatpush.msra.mxu0 0.0
  %7989 = vmatpush.msra.mxu0 0.0
  %7990 = vmatpush.msra.mxu0 0.0
  %7991 = vmatpush.msra.mxu0 0.0
  %7992 = vmatpush.msra.mxu0 0.0
  %7993 = vmatpush.msra.mxu0 0.0
  %7994 = vmatpush.msra.mxu0 0.0
  %7995 = vmatpush.msra.mxu0 0.0
  %7996 = vmatpush.msra.mxu0 0.0
  %7997 = vmatpush.msra.mxu0 0.0
  %7998 = vmatpush.msra.mxu0 %v20
  %7999 = vmatmul.f32.gmra.mxu0 %v7972
  %v8000 = vpop.f32.mrf.mxu0
  %v8001 = vadd.f32 0.0, %v8000
  %8002 = vmatmul.f32.gmra.mxu0 %v7975
  %v8003 = vpop.f32.mrf.mxu0
  %v8004 = vadd.f32 0.0, %v8003
  %8005 = vmatmul.f32.gmra.mxu0 %v7978
  %v8006 = vpop.f32.mrf.mxu0
  %v8007 = vadd.f32 0.0, %v8006
  %8008 = vmatmul.f32.gmra.mxu0 %v7981
  %v8009 = vpop.f32.mrf.mxu0
  %v8010 = vadd.f32 0.0, %v8009
  %8011 = vdwg.mxu0
  %v8012 = vadd.f32 %v7967, %v8001
  %v8013 = vadd.f32 %v7968, %v8004
  %v8014 = vadd.f32 %v7969, %v8007
  %v8015 = vadd.f32 %v7970, %v8010
  %v8017 = vsel %vm677, %v7805, 0
  %v8020 = vsel %vm677, %v7808, 0
  %v8023 = vsel %vm677, %v7811, 0
  %v8026 = vsel %vm677, %v7814, 0
  %8028 = vmatpush.msra.mxu0 0.0
  %8029 = vmatpush.msra.mxu0 0.0
  %8030 = vmatpush.msra.mxu0 0.0
  %8031 = vmatpush.msra.mxu0 0.0
  %8032 = vmatpush.msra.mxu0 0.0
  %8033 = vmatpush.msra.mxu0 0.0
  %8034 = vmatpush.msra.mxu0 0.0
  %8035 = vmatpush.msra.mxu0 0.0
  %8036 = vmatpush.msra.mxu0 0.0
  %8037 = vmatpush.msra.mxu0 0.0
  %8038 = vmatpush.msra.mxu0 0.0
  %8039 = vmatpush.msra.mxu0 0.0
  %8040 = vmatpush.msra.mxu0 0.0
  %8041 = vmatpush.msra.mxu0 0.0
  %8042 = vmatpush.msra.mxu0 0.0
  %8043 = vmatpush.msra.mxu0 %v21
  %8044 = vmatmul.f32.gmra.mxu0 %v8017
  %v8045 = vpop.f32.mrf.mxu0
  %v8046 = vadd.f32 0.0, %v8045
  %8047 = vmatmul.f32.gmra.mxu0 %v8020
  %v8048 = vpop.f32.mrf.mxu0
  %v8049 = vadd.f32 0.0, %v8048
  %8050 = vmatmul.f32.gmra.mxu0 %v8023
  %v8051 = vpop.f32.mrf.mxu0
  %v8052 = vadd.f32 0.0, %v8051
  %8053 = vmatmul.f32.gmra.mxu0 %v8026
  %v8054 = vpop.f32.mrf.mxu0
  %v8055 = vadd.f32 0.0, %v8054
  %8056 = vdwg.mxu0
  %v8057 = vadd.f32 %v8012, %v8046
  %v8058 = vadd.f32 %v8013, %v8049
  %v8059 = vadd.f32 %v8014, %v8052
  %v8060 = vadd.f32 %v8015, %v8055
  %v8061 = vmax.f32 %v8057, 0.0
  %v8062 = vmax.f32 %v8058, 0.0
  %v8063 = vmax.f32 %v8059, 0.0
  %v8064 = vmax.f32 %v8060, 0.0
  %vm8065 = vcmp.ne.f32.partialorder %v8057, %v8057
  %vm8066 = vcmp.ne.f32.partialorder %v8058, %v8058
  %vm8067 = vcmp.ne.f32.partialorder %v8059, %v8059
  %vm8068 = vcmp.ne.f32.partialorder %v8060, %v8060
  %v8069 = vadd.f32 %v8057, 0.0
  %v8070 = vadd.f32 %v8058, 0.0
  %v8071 = vadd.f32 %v8059, 0.0
  %v8072 = vadd.f32 %v8060, 0.0
  %v8073 = vand.u32 2147483647, %v8057
  %v8074 = vand.u32 2147483647, %v8058
  %v8075 = vand.u32 2147483647, %v8059
  %v8076 = vand.u32 2147483647, %v8060
  %v8077 = vsub.f32 0.0, %v8073
  %v8078 = vsub.f32 0.0, %v8074
  %v8079 = vsub.f32 0.0, %v8075
  %v8080 = vsub.f32 0.0, %v8076
  %v8081 = vmul.f32 %v8077, 1.442695
  %v8082 = vpow.pop %v8081
  %v8083 = vmul.f32 %v8078, 1.442695
  %v8084 = vpow.pop %v8083
  %v8085 = vmul.f32 %v8079, 1.442695
  %v8086 = vpow.pop %v8085
  %v8087 = vmul.f32 %v8080, 1.442695
  %v8088 = vpow.pop %v8087
  %v8089 = vadd.f32 %v8082, 1.0
  %v8090 = vlog2.pop %v8089
  %v8091 = vmul.f32 %v8090, 0.6931472
  %v8092 = vmul.f32 -0.5, %v8082
  %v8093 = vadd.f32 %v8092, 1.0
  %v8094 = vmul.f32 %v8093, %v8082
  %v8095 = vand.u32 2147483647, %v8082
  %vm8096 = vcmp.lt.f32.partialorder %v8095, 0.0004427343
  %v8097 = vsel %vm8096, %v8094, %v8091
  %v8098 = vadd.f32 %v8084, 1.0
  %v8099 = vlog2.pop %v8098
  %v8100 = vmul.f32 %v8099, 0.6931472
  %v8101 = vmul.f32 -0.5, %v8084
  %v8102 = vadd.f32 %v8101, 1.0
  %v8103 = vmul.f32 %v8102, %v8084
  %v8104 = vand.u32 2147483647, %v8084
  %vm8105 = vcmp.lt.f32.partialorder %v8104, 0.0004427343
  %v8106 = vsel %vm8105, %v8103, %v8100
  %v8107 = vadd.f32 %v8086, 1.0
  %v8108 = vlog2.pop %v8107
  %v8109 = vmul.f32 %v8108, 0.6931472
  %v8110 = vmul.f32 -0.5, %v8086
  %v8111 = vadd.f32 %v8110, 1.0
  %v8112 = vmul.f32 %v8111, %v8086
  %v8113 = vand.u32 2147483647, %v8086
  %vm8114 = vcmp.lt.f32.partialorder %v8113, 0.0004427343
  %v8115 = vsel %vm8114, %v8112, %v8109
  %v8116 = vadd.f32 %v8088, 1.0
  %v8117 = vlog2.pop %v8116
  %v8118 = vmul.f32 %v8117, 0.6931472
  %v8119 = vmul.f32 -0.5, %v8088
  %v8120 = vadd.f32 %v8119, 1.0
  %v8121 = vmul.f32 %v8120, %v8088
  %v8122 = vand.u32 2147483647, %v8088
  %vm8123 = vcmp.lt.f32.partialorder %v8122, 0.0004427343
  %v8124 = vsel %vm8123, %v8121, %v8118
  %v8125 = vadd.f32 %v8061, %v8097
  %v8126 = vadd.f32 %v8062, %v8106
  %v8127 = vadd.f32 %v8063, %v8115
  %v8128 = vadd.f32 %v8064, %v8124
  %v8129 = vsel %vm8065, %v8069, %v8125
  %v8130 = vsel %vm8066, %v8070, %v8126
  %v8131 = vsel %vm8067, %v8071, %v8127
  %v8132 = vsel %vm8068, %v8072, %v8128
  %v8133 = vtanh.pop %v8129
  %v8134 = vtanh.pop %v8130
  %v8135 = vtanh.pop %v8131
  %v8136 = vtanh.pop %v8132
  %v8137 = vmul.f32 %v8057, %v8133
  %v8138 = vmul.f32 %v8058, %v8134
  %v8139 = vmul.f32 %v8059, %v8135
  %v8140 = vmul.f32 %v8060, %v8136
  %v8141 = vadd.f32 %v8137, %v6704
  %v8142 = vadd.f32 %v8138, %v6705
  %v8143 = vadd.f32 %v8139, %v6706
  %v8144 = vadd.f32 %v8140, %v6707
  %v8145 = vld [vmem:[%s3 + $0xd20] sm:$0xff]
  %v8146 = vld [vmem:[%s3 + $0xd28] sm:$0xff]
  %v8147 = vld [vmem:[%s3 + $0xd30] sm:$0xff]
  %v8148 = vld [vmem:[%s3 + $0xd38] sm:$0xff]
  %v8149 = vld [vmem:[%s3 + $0xd40] sm:$0xff]
  %v8150 = vld [vmem:[%s3 + $0xd48] sm:$0xff]
  %v8151 = vld [vmem:[%s3 + $0xd50] sm:$0xff]
  %v8152 = vld [vmem:[%s3 + $0xd58] sm:$0xff]
  %v8153 = vld [vmem:[%s3 + $0xd60] sm:$0xff]
  %v8154 = vld [vmem:[%s3 + $0xd68] sm:$0xff]
  %v8155 = vld [vmem:[%s3 + $0xd70] sm:$0xff]
  %v8156 = vld [vmem:[%s3 + $0xd78] sm:$0xff]
  %8167 = vrot.lane.b32.xlu0 %v8145, 96
  %v8168 = vpop.permute.xlu0 %8167
  %8169 = vrot.lane.b32.xlu0 %v8146, 96
  %v8170 = vpop.permute.xlu0 %8169
  %8171 = vrot.lane.b32.xlu0 %v8147, 96
  %v8172 = vpop.permute.xlu0 %8171
  %8173 = vrot.lane.b32.xlu0 %v8148, 96
  %v8174 = vpop.permute.xlu0 %8173
  %8175 = vrot.lane.b32.xlu0 %v8149, 96
  %v8176 = vpop.permute.xlu0 %8175
  %8177 = vrot.lane.b32.xlu0 %v8150, 96
  %v8178 = vpop.permute.xlu0 %8177
  %8179 = vrot.lane.b32.xlu0 %v8151, 96
  %v8180 = vpop.permute.xlu0 %8179
  %8181 = vrot.lane.b32.xlu0 %v8152, 96
  %v8182 = vpop.permute.xlu0 %8181
  %8183 = vrot.lane.b32.xlu0 %v8153, 96
  %v8184 = vpop.permute.xlu0 %8183
  %8185 = vrot.lane.b32.xlu0 %v8154, 96
  %v8186 = vpop.permute.xlu0 %8185
  %v8187 = vsel %vm3032, %v8168, 0
  %v8189 = vsel %vm3032, %v8170, 0
  %v8191 = vsel %vm3032, %v8172, 0
  %v8193 = vsel %vm3032, %v8174, 0
  %v8195 = vsel %vm3032, %v8176, 0
  %v8197 = vsel %vm3032, %v8178, 0
  %v8199 = vsel %vm3032, %v8180, 0
  %v8201 = vsel %vm3032, %v8182, 0
  %v8203 = vsel %vm3032, %v8184, 0
  %v8205 = vsel %vm3032, %v8186, 0
  %8207 = vmatpush.msra.mxu0 0.0
  %8208 = vmatpush.msra.mxu0 0.0
  %8209 = vmatpush.msra.mxu0 0.0
  %8210 = vmatpush.msra.mxu0 0.0
  %8211 = vmatpush.msra.mxu0 0.0
  %8212 = vmatpush.msra.mxu0 0.0
  %8213 = vmatpush.msra.mxu0 0.0
  %8214 = vmatpush.msra.mxu0 0.0
  %8215 = vmatpush.msra.mxu0 0.0
  %8216 = vmatpush.msra.mxu0 0.0
  %8217 = vmatpush.msra.mxu0 0.0
  %8218 = vmatpush.msra.mxu0 0.0
  %8219 = vmatpush.msra.mxu0 %v5270
  %8220 = vmatpush.msra.mxu0 %v5269
  %8221 = vmatpush.msra.mxu0 %v5268
  %8222 = vmatpush.msra.mxu0 %v5267
  %8223 = vmatmul.f32.gmra.mxu0 %v8187
  %v8224 = vpop.f32.mrf.mxu0
  %v8225 = vadd.f32 0.0, %v8224
  %8226 = vmatmul.f32.gmra.mxu0 %v8189
  %v8227 = vpop.f32.mrf.mxu0
  %v8228 = vadd.f32 0.0, %v8227
  %8229 = vmatmul.f32.gmra.mxu0 %v8191
  %v8230 = vpop.f32.mrf.mxu0
  %v8231 = vadd.f32 0.0, %v8230
  %8232 = vmatmul.f32.gmra.mxu0 %v8193
  %v8233 = vpop.f32.mrf.mxu0
  %v8234 = vadd.f32 0.0, %v8233
  %8235 = vmatmul.f32.gmra.mxu0 %v8195
  %v8236 = vpop.f32.mrf.mxu0
  %v8237 = vadd.f32 0.0, %v8236
  %8238 = vmatmul.f32.gmra.mxu0 %v8197
  %v8239 = vpop.f32.mrf.mxu0
  %v8240 = vadd.f32 0.0, %v8239
  %8241 = vmatmul.f32.gmra.mxu0 %v8199
  %v8242 = vpop.f32.mrf.mxu0
  %v8243 = vadd.f32 0.0, %v8242
  %8244 = vmatmul.f32.gmra.mxu0 %v8201
  %v8245 = vpop.f32.mrf.mxu0
  %v8246 = vadd.f32 0.0, %v8245
  %8247 = vmatmul.f32.gmra.mxu0 %v8203
  %v8248 = vpop.f32.mrf.mxu0
  %v8249 = vadd.f32 0.0, %v8248
  %8250 = vmatmul.f32.gmra.mxu0 %v8205
  %v8251 = vpop.f32.mrf.mxu0
  %v8252 = vadd.f32 0.0, %v8251
  %8253 = vdwg.mxu0
  %v8254 = vsel %vm3032, %v8145, 0
  %v8256 = vsel %vm3032, %v8146, 0
  %v8258 = vsel %vm3032, %v8147, 0
  %v8260 = vsel %vm3032, %v8148, 0
  %v8262 = vsel %vm3032, %v8149, 0
  %v8264 = vsel %vm3032, %v8150, 0
  %v8266 = vsel %vm3032, %v8151, 0
  %v8268 = vsel %vm3032, %v8152, 0
  %v8270 = vsel %vm3032, %v8153, 0
  %v8272 = vsel %vm3032, %v8154, 0
  %8274 = vmatpush.msra.mxu0 0.0
  %8275 = vmatpush.msra.mxu0 0.0
  %8276 = vmatpush.msra.mxu0 0.0
  %8277 = vmatpush.msra.mxu0 0.0
  %8278 = vmatpush.msra.mxu0 0.0
  %8279 = vmatpush.msra.mxu0 0.0
  %8280 = vmatpush.msra.mxu0 0.0
  %8281 = vmatpush.msra.mxu0 0.0
  %8282 = vmatpush.msra.mxu0 0.0
  %8283 = vmatpush.msra.mxu0 0.0
  %8284 = vmatpush.msra.mxu0 0.0
  %8285 = vmatpush.msra.mxu0 0.0
  %8286 = vmatpush.msra.mxu0 %v8144
  %8287 = vmatpush.msra.mxu0 %v8143
  %8288 = vmatpush.msra.mxu0 %v8142
  %8289 = vmatpush.msra.mxu0 %v8141
  %8290 = vmatmul.f32.gmra.mxu0 %v8254
  %v8291 = vpop.f32.mrf.mxu0
  %v8292 = vadd.f32 %v8225, %v8291
  %8293 = vmatmul.f32.gmra.mxu0 %v8256
  %v8294 = vpop.f32.mrf.mxu0
  %v8295 = vadd.f32 %v8228, %v8294
  %8296 = vmatmul.f32.gmra.mxu0 %v8258
  %v8297 = vpop.f32.mrf.mxu0
  %v8298 = vadd.f32 %v8231, %v8297
  %8299 = vmatmul.f32.gmra.mxu0 %v8260
  %v8300 = vpop.f32.mrf.mxu0
  %v8301 = vadd.f32 %v8234, %v8300
  %8302 = vmatmul.f32.gmra.mxu0 %v8262
  %v8303 = vpop.f32.mrf.mxu0
  %v8304 = vadd.f32 %v8237, %v8303
  %8305 = vmatmul.f32.gmra.mxu0 %v8264
  %v8306 = vpop.f32.mrf.mxu0
  %v8307 = vadd.f32 %v8240, %v8306
  %8308 = vmatmul.f32.gmra.mxu0 %v8266
  %v8309 = vpop.f32.mrf.mxu0
  %v8310 = vadd.f32 %v8243, %v8309
  %8311 = vmatmul.f32.gmra.mxu0 %v8268
  %v8312 = vpop.f32.mrf.mxu0
  %v8313 = vadd.f32 %v8246, %v8312
  %8314 = vmatmul.f32.gmra.mxu0 %v8270
  %v8315 = vpop.f32.mrf.mxu0
  %v8316 = vadd.f32 %v8249, %v8315
  %8317 = vmatmul.f32.gmra.mxu0 %v8272
  %v8318 = vpop.f32.mrf.mxu0
  %v8319 = vadd.f32 %v8252, %v8318
  %8320 = vdwg.mxu0
  %v8322 = vsel %vm677, %v8292, 0
  %v8325 = vsel %vm677, %v8295, 0
  %8327 = vmatpush.msra.mxu0 0.0
  %8328 = vmatpush.msra.mxu0 0.0
  %8329 = vmatpush.msra.mxu0 0.0
  %8330 = vmatpush.msra.mxu0 0.0
  %8331 = vmatpush.msra.mxu0 0.0
  %8332 = vmatpush.msra.mxu0 0.0
  %8333 = vmatpush.msra.mxu0 0.0
  %8334 = vmatpush.msra.mxu0 0.0
  %8335 = vmatpush.msra.mxu0 0.0
  %8336 = vmatpush.msra.mxu0 0.0
  %8337 = vmatpush.msra.mxu0 0.0
  %8338 = vmatpush.msra.mxu0 0.0
  %8339 = vmatpush.msra.mxu0 0.0
  %8340 = vmatpush.msra.mxu0 0.0
  %8341 = vmatpush.msra.mxu0 0.0
  %8342 = vmatpush.msra.mxu0 %v17
  %8343 = vmatmul.f32.gmra.mxu0 %v8322
  %v8344 = vpop.f32.mrf.mxu0
  %v8345 = vadd.f32 0.0, %v8344
  %8346 = vmatmul.f32.gmra.mxu0 %v8325
  %v8347 = vpop.f32.mrf.mxu0
  %v8348 = vadd.f32 0.0, %v8347
  %8349 = vdwg.mxu0
  %8351 = vset.pattern.permute.xlu0 0
  %8352 = vperm.xlu0 %8351, %v8155
  %v8353 = vpop.permute.xlu0 %8352
  %8356 = vset.pattern.permute.xlu0 0
  %8357 = vperm.xlu0 %8356, %v8156
  %v8358 = vpop.permute.xlu0 %8357
  %v8360 = vadd.f32 %v8353, %v8345
  %v8361 = vadd.f32 %v8358, %v8348
  %v8363 = vsel %vm677, %v8298, 0
  %v8366 = vsel %vm677, %v8301, 0
  %8368 = vmatpush.msra.mxu0 0.0
  %8369 = vmatpush.msra.mxu0 0.0
  %8370 = vmatpush.msra.mxu0 0.0
  %8371 = vmatpush.msra.mxu0 0.0
  %8372 = vmatpush.msra.mxu0 0.0
  %8373 = vmatpush.msra.mxu0 0.0
  %8374 = vmatpush.msra.mxu0 0.0
  %8375 = vmatpush.msra.mxu0 0.0
  %8376 = vmatpush.msra.mxu0 0.0
  %8377 = vmatpush.msra.mxu0 0.0
  %8378 = vmatpush.msra.mxu0 0.0
  %8379 = vmatpush.msra.mxu0 0.0
  %8380 = vmatpush.msra.mxu0 0.0
  %8381 = vmatpush.msra.mxu0 0.0
  %8382 = vmatpush.msra.mxu0 0.0
  %8383 = vmatpush.msra.mxu0 %v18
  %8384 = vmatmul.f32.gmra.mxu0 %v8363
  %v8385 = vpop.f32.mrf.mxu0
  %v8386 = vadd.f32 0.0, %v8385
  %8387 = vmatmul.f32.gmra.mxu0 %v8366
  %v8388 = vpop.f32.mrf.mxu0
  %v8389 = vadd.f32 0.0, %v8388
  %8390 = vdwg.mxu0
  %v8391 = vadd.f32 %v8360, %v8386
  %v8392 = vadd.f32 %v8361, %v8389
  %v8394 = vsel %vm677, %v8304, 0
  %v8397 = vsel %vm677, %v8307, 0
  %8399 = vmatpush.msra.mxu0 0.0
  %8400 = vmatpush.msra.mxu0 0.0
  %8401 = vmatpush.msra.mxu0 0.0
  %8402 = vmatpush.msra.mxu0 0.0
  %8403 = vmatpush.msra.mxu0 0.0
  %8404 = vmatpush.msra.mxu0 0.0
  %8405 = vmatpush.msra.mxu0 0.0
  %8406 = vmatpush.msra.mxu0 0.0
  %8407 = vmatpush.msra.mxu0 0.0
  %8408 = vmatpush.msra.mxu0 0.0
  %8409 = vmatpush.msra.mxu0 0.0
  %8410 = vmatpush.msra.mxu0 0.0
  %8411 = vmatpush.msra.mxu0 0.0
  %8412 = vmatpush.msra.mxu0 0.0
  %8413 = vmatpush.msra.mxu0 0.0
  %8414 = vmatpush.msra.mxu0 %v19
  %8415 = vmatmul.f32.gmra.mxu0 %v8394
  %v8416 = vpop.f32.mrf.mxu0
  %v8417 = vadd.f32 0.0, %v8416
  %8418 = vmatmul.f32.gmra.mxu0 %v8397
  %v8419 = vpop.f32.mrf.mxu0
  %v8420 = vadd.f32 0.0, %v8419
  %8421 = vdwg.mxu0
  %v8422 = vadd.f32 %v8391, %v8417
  %v8423 = vadd.f32 %v8392, %v8420
  %v8425 = vsel %vm677, %v8310, 0
  %v8428 = vsel %vm677, %v8313, 0
  %8430 = vmatpush.msra.mxu0 0.0
  %8431 = vmatpush.msra.mxu0 0.0
  %8432 = vmatpush.msra.mxu0 0.0
  %8433 = vmatpush.msra.mxu0 0.0
  %8434 = vmatpush.msra.mxu0 0.0
  %8435 = vmatpush.msra.mxu0 0.0
  %8436 = vmatpush.msra.mxu0 0.0
  %8437 = vmatpush.msra.mxu0 0.0
  %8438 = vmatpush.msra.mxu0 0.0
  %8439 = vmatpush.msra.mxu0 0.0
  %8440 = vmatpush.msra.mxu0 0.0
  %8441 = vmatpush.msra.mxu0 0.0
  %8442 = vmatpush.msra.mxu0 0.0
  %8443 = vmatpush.msra.mxu0 0.0
  %8444 = vmatpush.msra.mxu0 0.0
  %8445 = vmatpush.msra.mxu0 %v20
  %8446 = vmatmul.f32.gmra.mxu0 %v8425
  %v8447 = vpop.f32.mrf.mxu0
  %v8448 = vadd.f32 0.0, %v8447
  %8449 = vmatmul.f32.gmra.mxu0 %v8428
  %v8450 = vpop.f32.mrf.mxu0
  %v8451 = vadd.f32 0.0, %v8450
  %8452 = vdwg.mxu0
  %v8453 = vadd.f32 %v8422, %v8448
  %v8454 = vadd.f32 %v8423, %v8451
  %v8456 = vsel %vm677, %v8316, 0
  %v8459 = vsel %vm677, %v8319, 0
  %8461 = vmatpush.msra.mxu0 0.0
  %8462 = vmatpush.msra.mxu0 0.0
  %8463 = vmatpush.msra.mxu0 0.0
  %8464 = vmatpush.msra.mxu0 0.0
  %8465 = vmatpush.msra.mxu0 0.0
  %8466 = vmatpush.msra.mxu0 0.0
  %8467 = vmatpush.msra.mxu0 0.0
  %8468 = vmatpush.msra.mxu0 0.0
  %8469 = vmatpush.msra.mxu0 0.0
  %8470 = vmatpush.msra.mxu0 0.0
  %8471 = vmatpush.msra.mxu0 0.0
  %8472 = vmatpush.msra.mxu0 0.0
  %8473 = vmatpush.msra.mxu0 0.0
  %8474 = vmatpush.msra.mxu0 0.0
  %8475 = vmatpush.msra.mxu0 0.0
  %8476 = vmatpush.msra.mxu0 %v21
  %8477 = vmatmul.f32.gmra.mxu0 %v8456
  %v8478 = vpop.f32.mrf.mxu0
  %v8479 = vadd.f32 0.0, %v8478
  %8480 = vmatmul.f32.gmra.mxu0 %v8459
  %v8481 = vpop.f32.mrf.mxu0
  %v8482 = vadd.f32 0.0, %v8481
  %8483 = vdwg.mxu0
  %v8484 = vadd.f32 %v8453, %v8479
  %v8485 = vadd.f32 %v8454, %v8482
  %v8486 = vmax.f32 %v8484, 0.0
  %v8487 = vmax.f32 %v8485, 0.0
  %vm8488 = vcmp.ne.f32.partialorder %v8484, %v8484
  %vm8489 = vcmp.ne.f32.partialorder %v8485, %v8485
  %v8490 = vadd.f32 %v8484, 0.0
  %v8491 = vadd.f32 %v8485, 0.0
  %v8492 = vand.u32 2147483647, %v8484
  %v8493 = vand.u32 2147483647, %v8485
  %v8494 = vsub.f32 0.0, %v8492
  %v8495 = vsub.f32 0.0, %v8493
  %v8496 = vmul.f32 %v8494, 1.442695
  %v8497 = vpow.pop %v8496
  %v8498 = vmul.f32 %v8495, 1.442695
  %v8499 = vpow.pop %v8498
  %v8500 = vadd.f32 %v8497, 1.0
  %v8501 = vlog2.pop %v8500
  %v8502 = vmul.f32 %v8501, 0.6931472
  %v8503 = vmul.f32 -0.5, %v8497
  %v8504 = vadd.f32 %v8503, 1.0
  %v8505 = vmul.f32 %v8504, %v8497
  %v8506 = vand.u32 2147483647, %v8497
  %vm8507 = vcmp.lt.f32.partialorder %v8506, 0.0004427343
  %v8508 = vsel %vm8507, %v8505, %v8502
  %v8509 = vadd.f32 %v8499, 1.0
  %v8510 = vlog2.pop %v8509
  %v8511 = vmul.f32 %v8510, 0.6931472
  %v8512 = vmul.f32 -0.5, %v8499
  %v8513 = vadd.f32 %v8512, 1.0
  %v8514 = vmul.f32 %v8513, %v8499
  %v8515 = vand.u32 2147483647, %v8499
  %vm8516 = vcmp.lt.f32.partialorder %v8515, 0.0004427343
  %v8517 = vsel %vm8516, %v8514, %v8511
  %v8518 = vadd.f32 %v8486, %v8508
  %v8519 = vadd.f32 %v8487, %v8517
  %v8520 = vsel %vm8488, %v8490, %v8518
  %v8521 = vsel %vm8489, %v8491, %v8519
  %v8522 = vtanh.pop %v8520
  %v8523 = vtanh.pop %v8521
  %v8524 = vmul.f32 %v8484, %v8522
  %v8525 = vmul.f32 %v8485, %v8523
  %v8526 = vld [vmem:[%s3 + $0xde0] sm:$0xff]
  %v8527 = vld [vmem:[%s3 + $0xde8] sm:$0xff]
  %v8528 = vld [vmem:[%s3 + $0xdf0] sm:$0xff]
  %v8529 = vld [vmem:[%s3 + $0xdf8] sm:$0xff]
  %v8531 = vsel %vm677, %v8528, 0
  %v8534 = vsel %vm677, %v8529, 0
  %8536 = vmatpush.msra.mxu0 0.0
  %8537 = vmatpush.msra.mxu0 0.0
  %8538 = vmatpush.msra.mxu0 0.0
  %8539 = vmatpush.msra.mxu0 0.0
  %8540 = vmatpush.msra.mxu0 0.0
  %8541 = vmatpush.msra.mxu0 0.0
  %8542 = vmatpush.msra.mxu0 0.0
  %8543 = vmatpush.msra.mxu0 0.0
  %8544 = vmatpush.msra.mxu0 0.0
  %8545 = vmatpush.msra.mxu0 0.0
  %8546 = vmatpush.msra.mxu0 0.0
  %8547 = vmatpush.msra.mxu0 0.0
  %8548 = vmatpush.msra.mxu0 0.0
  %8549 = vmatpush.msra.mxu0 0.0
  %8550 = vmatpush.msra.mxu0 0.0
  %8551 = vmatpush.msra.mxu0 %v46
  %8552 = vmatmul.f32.gmra.mxu0 %v8531
  %v8553 = vpop.f32.mrf.mxu0
  %v8554 = vadd.f32 0.0, %v8553
  %8555 = vmatmul.f32.gmra.mxu0 %v8534
  %v8556 = vpop.f32.mrf.mxu0
  %v8557 = vadd.f32 0.0, %v8556
  %8558 = vdwg.mxu0
  %v8560 = vsel %vm104, %v8526, 0
  %v8563 = vsel %vm104, %v8527, 0
  %8565 = vmatpush.msra.mxu0 0.0
  %8566 = vmatpush.msra.mxu0 0.0
  %8567 = vmatpush.msra.mxu0 0.0
  %8568 = vmatpush.msra.mxu0 0.0
  %8569 = vmatpush.msra.mxu0 0.0
  %8570 = vmatpush.msra.mxu0 0.0
  %8571 = vmatpush.msra.mxu0 0.0
  %8572 = vmatpush.msra.mxu0 0.0
  %8573 = vmatpush.msra.mxu0 0.0
  %8574 = vmatpush.msra.mxu0 0.0
  %8575 = vmatpush.msra.mxu0 0.0
  %8576 = vmatpush.msra.mxu0 0.0
  %8577 = vmatpush.msra.mxu0 0.0
  %8578 = vmatpush.msra.mxu0 0.0
  %8579 = vmatpush.msra.mxu0 %v372
  %8580 = vmatpush.msra.mxu0 %v369
  %8581 = vmatmul.f32.gmra.mxu0 %v8560
  %v8582 = vpop.f32.mrf.mxu0
  %v8583 = vadd.f32 %v8554, %v8582
  %8584 = vmatmul.f32.gmra.mxu0 %v8563
  %v8585 = vpop.f32.mrf.mxu0
  %v8586 = vadd.f32 %v8557, %v8585
  %8587 = vdwg.mxu0
  %v8588 = vld [vmem:[%s3 + $0xe00] sm:$0xff]
  %v8589 = vld [vmem:[%s3 + $0xe08] sm:$0xff]
  %8591 = vset.pattern.permute.xlu0 0
  %8592 = vperm.xlu0 %8591, %v8588
  %v8593 = vpop.permute.xlu0 %8592
  %8596 = vset.pattern.permute.xlu0 0
  %8597 = vperm.xlu0 %8596, %v8589
  %v8598 = vpop.permute.xlu0 %8597
  %v8600 = vadd.f32 %v8583, %v8593
  %v8601 = vadd.f32 %v8586, %v8598
  %v8602 = vmax.f32 %v8600, 0.0
  %v8603 = vmax.f32 %v8601, 0.0
  %vm8604 = vcmp.ne.f32.partialorder %v8600, %v8600
  %vm8605 = vcmp.ne.f32.partialorder %v8601, %v8601
  %v8606 = vadd.f32 %v8600, 0.0
  %v8607 = vadd.f32 %v8601, 0.0
  %v8608 = vand.u32 2147483647, %v8600
  %v8609 = vand.u32 2147483647, %v8601
  %v8610 = vsub.f32 0.0, %v8608
  %v8611 = vsub.f32 0.0, %v8609
  %v8612 = vmul.f32 %v8610, 1.442695
  %v8613 = vpow.pop %v8612
  %v8614 = vmul.f32 %v8611, 1.442695
  %v8615 = vpow.pop %v8614
  %v8616 = vadd.f32 %v8613, 1.0
  %v8617 = vlog2.pop %v8616
  %v8618 = vmul.f32 %v8617, 0.6931472
  %v8619 = vmul.f32 -0.5, %v8613
  %v8620 = vadd.f32 %v8619, 1.0
  %v8621 = vmul.f32 %v8620, %v8613
  %v8622 = vand.u32 2147483647, %v8613
  %vm8623 = vcmp.lt.f32.partialorder %v8622, 0.0004427343
  %v8624 = vsel %vm8623, %v8621, %v8618
  %v8625 = vadd.f32 %v8615, 1.0
  %v8626 = vlog2.pop %v8625
  %v8627 = vmul.f32 %v8626, 0.6931472
  %v8628 = vmul.f32 -0.5, %v8615
  %v8629 = vadd.f32 %v8628, 1.0
  %v8630 = vmul.f32 %v8629, %v8615
  %v8631 = vand.u32 2147483647, %v8615
  %vm8632 = vcmp.lt.f32.partialorder %v8631, 0.0004427343
  %v8633 = vsel %vm8632, %v8630, %v8627
  %v8634 = vadd.f32 %v8602, %v8624
  %v8635 = vadd.f32 %v8603, %v8633
  %v8636 = vsel %vm8604, %v8606, %v8634
  %v8637 = vsel %vm8605, %v8607, %v8635
  %v8638 = vtanh.pop %v8636
  %v8639 = vtanh.pop %v8637
  %v8640 = vmul.f32 %v8600, %v8638
  %v8641 = vmul.f32 %v8601, %v8639
  %v8642 = vld [vmem:[%s3 + $0xe10] sm:$0xff]
  %v8643 = vld [vmem:[%s3 + $0xe18] sm:$0xff]
  %v8644 = vld [vmem:[%s3 + $0xe20] sm:$0xff]
  %v8645 = vld [vmem:[%s3 + $0xe28] sm:$0xff]
  %8647 = vset.pattern.permute.xlu0 0
  %8648 = vperm.xlu0 %8647, %v8644
  %v8649 = vpop.permute.xlu0 %8648
  %8652 = vset.pattern.permute.xlu0 0
  %8653 = vperm.xlu0 %8652, %v8645
  %v8654 = vpop.permute.xlu0 %8653
  %v8657 = vsel %vm104, %v8642, 0
  %v8660 = vsel %vm104, %v8643, 0
  %8662 = vmatpush.msra.mxu0 0.0
  %8663 = vmatpush.msra.mxu0 0.0
  %8664 = vmatpush.msra.mxu0 0.0
  %8665 = vmatpush.msra.mxu0 0.0
  %8666 = vmatpush.msra.mxu0 0.0
  %8667 = vmatpush.msra.mxu0 0.0
  %8668 = vmatpush.msra.mxu0 0.0
  %8669 = vmatpush.msra.mxu0 0.0
  %8670 = vmatpush.msra.mxu0 0.0
  %8671 = vmatpush.msra.mxu0 0.0
  %8672 = vmatpush.msra.mxu0 0.0
  %8673 = vmatpush.msra.mxu0 0.0
  %8674 = vmatpush.msra.mxu0 0.0
  %8675 = vmatpush.msra.mxu0 0.0
  %8676 = vmatpush.msra.mxu0 %v8641
  %8677 = vmatpush.msra.mxu0 %v8640
  %8678 = vmatmul.f32.gmra.mxu0 %v8657
  %v8679 = vpop.f32.mrf.mxu0
  %v8680 = vadd.f32 %v8649, %v8679
  %8681 = vmatmul.f32.gmra.mxu0 %v8660
  %v8682 = vpop.f32.mrf.mxu0
  %v8683 = vadd.f32 %v8654, %v8682
  %8684 = vdwg.mxu0
  %v8685 = vmax.f32 %v8680, 0.0
  %v8686 = vmax.f32 %v8683, 0.0
  %vm8687 = vcmp.ne.f32.partialorder %v8680, %v8680
  %vm8688 = vcmp.ne.f32.partialorder %v8683, %v8683
  %v8689 = vadd.f32 %v8680, 0.0
  %v8690 = vadd.f32 %v8683, 0.0
  %v8691 = vand.u32 2147483647, %v8680
  %v8692 = vand.u32 2147483647, %v8683
  %v8693 = vsub.f32 0.0, %v8691
  %v8694 = vsub.f32 0.0, %v8692
  %v8695 = vmul.f32 %v8693, 1.442695
  %v8696 = vpow.pop %v8695
  %v8697 = vmul.f32 %v8694, 1.442695
  %v8698 = vpow.pop %v8697
  %v8699 = vadd.f32 %v8696, 1.0
  %v8700 = vlog2.pop %v8699
  %v8701 = vmul.f32 %v8700, 0.6931472
  %v8702 = vmul.f32 -0.5, %v8696
  %v8703 = vadd.f32 %v8702, 1.0
  %v8704 = vmul.f32 %v8703, %v8696
  %v8705 = vand.u32 2147483647, %v8696
  %vm8706 = vcmp.lt.f32.partialorder %v8705, 0.0004427343
  %v8707 = vsel %vm8706, %v8704, %v8701
  %v8708 = vadd.f32 %v8698, 1.0
  %v8709 = vlog2.pop %v8708
  %v8710 = vmul.f32 %v8709, 0.6931472
  %v8711 = vmul.f32 -0.5, %v8698
  %v8712 = vadd.f32 %v8711, 1.0
  %v8713 = vmul.f32 %v8712, %v8698
  %v8714 = vand.u32 2147483647, %v8698
  %vm8715 = vcmp.lt.f32.partialorder %v8714, 0.0004427343
  %v8716 = vsel %vm8715, %v8713, %v8710
  %v8717 = vadd.f32 %v8685, %v8707
  %v8718 = vadd.f32 %v8686, %v8716
  %v8719 = vsel %vm8687, %v8689, %v8717
  %v8720 = vsel %vm8688, %v8690, %v8718
  %v8721 = vtanh.pop %v8719
  %v8722 = vtanh.pop %v8720
  %v8723 = vmul.f32 %v8680, %v8721
  %v8724 = vmul.f32 %v8683, %v8722
  %v8725 = vld [vmem:[%s3 + $0xe30] sm:$0xff]
  %v8726 = vld [vmem:[%s3 + $0xe38] sm:$0xff]
  %v8727 = vld [vmem:[%s3 + $0xe40] sm:$0xff]
  %v8728 = vld [vmem:[%s3 + $0xe48] sm:$0xff]
  %8730 = vset.pattern.permute.xlu0 0
  %8731 = vperm.xlu0 %8730, %v8727
  %v8732 = vpop.permute.xlu0 %8731
  %8735 = vset.pattern.permute.xlu0 0
  %8736 = vperm.xlu0 %8735, %v8728
  %v8737 = vpop.permute.xlu0 %8736
  %v8740 = vsel %vm104, %v8725, 0
  %v8743 = vsel %vm104, %v8726, 0
  %8745 = vmatpush.msra.mxu0 0.0
  %8746 = vmatpush.msra.mxu0 0.0
  %8747 = vmatpush.msra.mxu0 0.0
  %8748 = vmatpush.msra.mxu0 0.0
  %8749 = vmatpush.msra.mxu0 0.0
  %8750 = vmatpush.msra.mxu0 0.0
  %8751 = vmatpush.msra.mxu0 0.0
  %8752 = vmatpush.msra.mxu0 0.0
  %8753 = vmatpush.msra.mxu0 0.0
  %8754 = vmatpush.msra.mxu0 0.0
  %8755 = vmatpush.msra.mxu0 0.0
  %8756 = vmatpush.msra.mxu0 0.0
  %8757 = vmatpush.msra.mxu0 0.0
  %8758 = vmatpush.msra.mxu0 0.0
  %8759 = vmatpush.msra.mxu0 %v8724
  %8760 = vmatpush.msra.mxu0 %v8723
  %8761 = vmatmul.f32.gmra.mxu0 %v8740
  %v8762 = vpop.f32.mrf.mxu0
  %v8763 = vadd.f32 %v8732, %v8762
  %8764 = vmatmul.f32.gmra.mxu0 %v8743
  %v8765 = vpop.f32.mrf.mxu0
  %v8766 = vadd.f32 %v8737, %v8765
  %8767 = vdwg.mxu0
  %v8769 = vsel %vm916, %v8763, 0
  %v8772 = vsel %vm916, %v8766, 0
  %8774 = vmatpush.msra.mxu0 0.0
  %8775 = vmatpush.msra.mxu0 0.0
  %8776 = vmatpush.msra.mxu0 0.0
  %8777 = vmatpush.msra.mxu0 0.0
  %8778 = vmatpush.msra.mxu0 0.0
  %8779 = vmatpush.msra.mxu0 0.0
  %8780 = vmatpush.msra.mxu0 0.0
  %8781 = vmatpush.msra.mxu0 0.0
  %8782 = vmatpush.msra.mxu0 0.0
  %8783 = vmatpush.msra.mxu0 0.0
  %8784 = vmatpush.msra.mxu0 0.0
  %8785 = vmatpush.msra.mxu0 0.0
  %8786 = vmatpush.msra.mxu0 0.0
  %8787 = vmatpush.msra.mxu0 0.0
  %8788 = vmatpush.msra.mxu0 0.0
  %8789 = vmatpush.msra.mxu0 %v3236
  %8790 = vmatmul.f32.gmra.mxu0 %v8769
  %v8791 = vpop.f32.mrf.mxu0
  %v8792 = vadd.f32 0.0, %v8791
  %8793 = vmatmul.f32.gmra.mxu0 %v8772
  %v8794 = vpop.f32.mrf.mxu0
  %v8795 = vadd.f32 0.0, %v8794
  %8796 = vdwg.mxu0
  %v8797 = vadd.f32 %v8524, %v8792
  %v8798 = vadd.f32 %v8525, %v8795
  %v8799 = vld [vmem:[%s3 + $0xd80] sm:$0xff]
  %v8800 = vld [vmem:[%s3 + $0xd88] sm:$0xff]
  %v8801 = vld [vmem:[%s3 + $0xd90] sm:$0xff]
  %v8802 = vld [vmem:[%s3 + $0xd98] sm:$0xff]
  %v8803 = vld [vmem:[%s3 + $0xda0] sm:$0xff]
  %v8804 = vld [vmem:[%s3 + $0xda8] sm:$0xff]
  %v8805 = vld [vmem:[%s3 + $0xdb0] sm:$0xff]
  %v8806 = vld [vmem:[%s3 + $0xdb8] sm:$0xff]
  %v8807 = vld [vmem:[%s3 + $0xdc0] sm:$0xff]
  %v8808 = vld [vmem:[%s3 + $0xdc8] sm:$0xff]
  %v8809 = vld [vmem:[%s3 + $0xdd0] sm:$0xff]
  %v8810 = vld [vmem:[%s3 + $0xdd8] sm:$0xff]
  %v8812 = vsel %vm104, %v8799, 0
  %v8815 = vsel %vm104, %v8800, 0
  %v8818 = vsel %vm104, %v8801, 0
  %v8821 = vsel %vm104, %v8802, 0
  %v8824 = vsel %vm104, %v8803, 0
  %v8827 = vsel %vm104, %v8804, 0
  %v8830 = vsel %vm104, %v8805, 0
  %v8833 = vsel %vm104, %v8806, 0
  %v8836 = vsel %vm104, %v8807, 0
  %v8839 = vsel %vm104, %v8808, 0
  %8841 = vmatpush.msra.mxu0 0.0
  %8842 = vmatpush.msra.mxu0 0.0
  %8843 = vmatpush.msra.mxu0 0.0
  %8844 = vmatpush.msra.mxu0 0.0
  %8845 = vmatpush.msra.mxu0 0.0
  %8846 = vmatpush.msra.mxu0 0.0
  %8847 = vmatpush.msra.mxu0 0.0
  %8848 = vmatpush.msra.mxu0 0.0
  %8849 = vmatpush.msra.mxu0 0.0
  %8850 = vmatpush.msra.mxu0 0.0
  %8851 = vmatpush.msra.mxu0 0.0
  %8852 = vmatpush.msra.mxu0 0.0
  %8853 = vmatpush.msra.mxu0 0.0
  %8854 = vmatpush.msra.mxu0 0.0
  %8855 = vmatpush.msra.mxu0 %v8798
  %8856 = vmatpush.msra.mxu0 %v8797
  %8857 = vmatmul.f32.gmra.mxu0 %v8812
  %v8858 = vpop.f32.mrf.mxu0
  %v8859 = vadd.f32 0.0, %v8858
  %8860 = vmatmul.f32.gmra.mxu0 %v8815
  %v8861 = vpop.f32.mrf.mxu0
  %v8862 = vadd.f32 0.0, %v8861
  %8863 = vmatmul.f32.gmra.mxu0 %v8818
  %v8864 = vpop.f32.mrf.mxu0
  %v8865 = vadd.f32 0.0, %v8864
  %8866 = vmatmul.f32.gmra.mxu0 %v8821
  %v8867 = vpop.f32.mrf.mxu0
  %v8868 = vadd.f32 0.0, %v8867
  %8869 = vmatmul.f32.gmra.mxu0 %v8824
  %v8870 = vpop.f32.mrf.mxu0
  %v8871 = vadd.f32 0.0, %v8870
  %8872 = vmatmul.f32.gmra.mxu0 %v8827
  %v8873 = vpop.f32.mrf.mxu0
  %v8874 = vadd.f32 0.0, %v8873
  %8875 = vmatmul.f32.gmra.mxu0 %v8830
  %v8876 = vpop.f32.mrf.mxu0
  %v8877 = vadd.f32 0.0, %v8876
  %8878 = vmatmul.f32.gmra.mxu0 %v8833
  %v8879 = vpop.f32.mrf.mxu0
  %v8880 = vadd.f32 0.0, %v8879
  %8881 = vmatmul.f32.gmra.mxu0 %v8836
  %v8882 = vpop.f32.mrf.mxu0
  %v8883 = vadd.f32 0.0, %v8882
  %8884 = vmatmul.f32.gmra.mxu0 %v8839
  %v8885 = vpop.f32.mrf.mxu0
  %v8886 = vadd.f32 0.0, %v8885
  %8887 = vdwg.mxu0
  %v8889 = vsel %vm677, %v8859, 0
  %v8892 = vsel %vm677, %v8862, 0
  %8894 = vmatpush.msra.mxu0 0.0
  %8895 = vmatpush.msra.mxu0 0.0
  %8896 = vmatpush.msra.mxu0 0.0
  %8897 = vmatpush.msra.mxu0 0.0
  %8898 = vmatpush.msra.mxu0 0.0
  %8899 = vmatpush.msra.mxu0 0.0
  %8900 = vmatpush.msra.mxu0 0.0
  %8901 = vmatpush.msra.mxu0 0.0
  %8902 = vmatpush.msra.mxu0 0.0
  %8903 = vmatpush.msra.mxu0 0.0
  %8904 = vmatpush.msra.mxu0 0.0
  %8905 = vmatpush.msra.mxu0 0.0
  %8906 = vmatpush.msra.mxu0 0.0
  %8907 = vmatpush.msra.mxu0 0.0
  %8908 = vmatpush.msra.mxu0 0.0
  %8909 = vmatpush.msra.mxu0 %v17
  %8910 = vmatmul.f32.gmra.mxu0 %v8889
  %v8911 = vpop.f32.mrf.mxu0
  %v8912 = vadd.f32 0.0, %v8911
  %8913 = vmatmul.f32.gmra.mxu0 %v8892
  %v8914 = vpop.f32.mrf.mxu0
  %v8915 = vadd.f32 0.0, %v8914
  %8916 = vdwg.mxu0
  %8918 = vset.pattern.permute.xlu0 0
  %8919 = vperm.xlu0 %8918, %v8809
  %v8920 = vpop.permute.xlu0 %8919
  %8923 = vset.pattern.permute.xlu0 0
  %8924 = vperm.xlu0 %8923, %v8810
  %v8925 = vpop.permute.xlu0 %8924
  %v8927 = vadd.f32 %v8920, %v8912
  %v8928 = vadd.f32 %v8925, %v8915
  %v8930 = vsel %vm677, %v8865, 0
  %v8933 = vsel %vm677, %v8868, 0
  %8935 = vmatpush.msra.mxu0 0.0
  %8936 = vmatpush.msra.mxu0 0.0
  %8937 = vmatpush.msra.mxu0 0.0
  %8938 = vmatpush.msra.mxu0 0.0
  %8939 = vmatpush.msra.mxu0 0.0
  %8940 = vmatpush.msra.mxu0 0.0
  %8941 = vmatpush.msra.mxu0 0.0
  %8942 = vmatpush.msra.mxu0 0.0
  %8943 = vmatpush.msra.mxu0 0.0
  %8944 = vmatpush.msra.mxu0 0.0
  %8945 = vmatpush.msra.mxu0 0.0
  %8946 = vmatpush.msra.mxu0 0.0
  %8947 = vmatpush.msra.mxu0 0.0
  %8948 = vmatpush.msra.mxu0 0.0
  %8949 = vmatpush.msra.mxu0 0.0
  %8950 = vmatpush.msra.mxu0 %v18
  %8951 = vmatmul.f32.gmra.mxu0 %v8930
  %v8952 = vpop.f32.mrf.mxu0
  %v8953 = vadd.f32 0.0, %v8952
  %8954 = vmatmul.f32.gmra.mxu0 %v8933
  %v8955 = vpop.f32.mrf.mxu0
  %v8956 = vadd.f32 0.0, %v8955
  %8957 = vdwg.mxu0
  %v8958 = vadd.f32 %v8927, %v8953
  %v8959 = vadd.f32 %v8928, %v8956
  %v8961 = vsel %vm677, %v8871, 0
  %v8964 = vsel %vm677, %v8874, 0
  %8966 = vmatpush.msra.mxu0 0.0
  %8967 = vmatpush.msra.mxu0 0.0
  %8968 = vmatpush.msra.mxu0 0.0
  %8969 = vmatpush.msra.mxu0 0.0
  %8970 = vmatpush.msra.mxu0 0.0
  %8971 = vmatpush.msra.mxu0 0.0
  %8972 = vmatpush.msra.mxu0 0.0
  %8973 = vmatpush.msra.mxu0 0.0
  %8974 = vmatpush.msra.mxu0 0.0
  %8975 = vmatpush.msra.mxu0 0.0
  %8976 = vmatpush.msra.mxu0 0.0
  %8977 = vmatpush.msra.mxu0 0.0
  %8978 = vmatpush.msra.mxu0 0.0
  %8979 = vmatpush.msra.mxu0 0.0
  %8980 = vmatpush.msra.mxu0 0.0
  %8981 = vmatpush.msra.mxu0 %v19
  %8982 = vmatmul.f32.gmra.mxu0 %v8961
  %v8983 = vpop.f32.mrf.mxu0
  %v8984 = vadd.f32 0.0, %v8983
  %8985 = vmatmul.f32.gmra.mxu0 %v8964
  %v8986 = vpop.f32.mrf.mxu0
  %v8987 = vadd.f32 0.0, %v8986
  %8988 = vdwg.mxu0
  %v8989 = vadd.f32 %v8958, %v8984
  %v8990 = vadd.f32 %v8959, %v8987
  %v8992 = vsel %vm677, %v8877, 0
  %v8995 = vsel %vm677, %v8880, 0
  %8997 = vmatpush.msra.mxu0 0.0
  %8998 = vmatpush.msra.mxu0 0.0
  %8999 = vmatpush.msra.mxu0 0.0
  %9000 = vmatpush.msra.mxu0 0.0
  %9001 = vmatpush.msra.mxu0 0.0
  %9002 = vmatpush.msra.mxu0 0.0
  %9003 = vmatpush.msra.mxu0 0.0
  %9004 = vmatpush.msra.mxu0 0.0
  %9005 = vmatpush.msra.mxu0 0.0
  %9006 = vmatpush.msra.mxu0 0.0
  %9007 = vmatpush.msra.mxu0 0.0
  %9008 = vmatpush.msra.mxu0 0.0
  %9009 = vmatpush.msra.mxu0 0.0
  %9010 = vmatpush.msra.mxu0 0.0
  %9011 = vmatpush.msra.mxu0 0.0
  %9012 = vmatpush.msra.mxu0 %v20
  %9013 = vmatmul.f32.gmra.mxu0 %v8992
  %v9014 = vpop.f32.mrf.mxu0
  %v9015 = vadd.f32 0.0, %v9014
  %9016 = vmatmul.f32.gmra.mxu0 %v8995
  %v9017 = vpop.f32.mrf.mxu0
  %v9018 = vadd.f32 0.0, %v9017
  %9019 = vdwg.mxu0
  %v9020 = vadd.f32 %v8989, %v9015
  %v9021 = vadd.f32 %v8990, %v9018
  %v9023 = vsel %vm677, %v8883, 0
  %v9026 = vsel %vm677, %v8886, 0
  %9028 = vmatpush.msra.mxu0 0.0
  %9029 = vmatpush.msra.mxu0 0.0
  %9030 = vmatpush.msra.mxu0 0.0
  %9031 = vmatpush.msra.mxu0 0.0
  %9032 = vmatpush.msra.mxu0 0.0
  %9033 = vmatpush.msra.mxu0 0.0
  %9034 = vmatpush.msra.mxu0 0.0
  %9035 = vmatpush.msra.mxu0 0.0
  %9036 = vmatpush.msra.mxu0 0.0
  %9037 = vmatpush.msra.mxu0 0.0
  %9038 = vmatpush.msra.mxu0 0.0
  %9039 = vmatpush.msra.mxu0 0.0
  %9040 = vmatpush.msra.mxu0 0.0
  %9041 = vmatpush.msra.mxu0 0.0
  %9042 = vmatpush.msra.mxu0 0.0
  %9043 = vmatpush.msra.mxu0 %v21
  %9044 = vmatmul.f32.gmra.mxu0 %v9023
  %v9045 = vpop.f32.mrf.mxu0
  %v9046 = vadd.f32 0.0, %v9045
  %9047 = vmatmul.f32.gmra.mxu0 %v9026
  %v9048 = vpop.f32.mrf.mxu0
  %v9049 = vadd.f32 0.0, %v9048
  %9050 = vdwg.mxu0
  %v9051 = vadd.f32 %v9020, %v9046
  %v9052 = vadd.f32 %v9021, %v9049
  %v9053 = vmax.f32 %v9051, 0.0
  %v9054 = vmax.f32 %v9052, 0.0
  %vm9055 = vcmp.ne.f32.partialorder %v9051, %v9051
  %vm9056 = vcmp.ne.f32.partialorder %v9052, %v9052
  %v9057 = vadd.f32 %v9051, 0.0
  %v9058 = vadd.f32 %v9052, 0.0
  %v9059 = vand.u32 2147483647, %v9051
  %v9060 = vand.u32 2147483647, %v9052
  %v9061 = vsub.f32 0.0, %v9059
  %v9062 = vsub.f32 0.0, %v9060
  %v9063 = vmul.f32 %v9061, 1.442695
  %v9064 = vpow.pop %v9063
  %v9065 = vmul.f32 %v9062, 1.442695
  %v9066 = vpow.pop %v9065
  %v9067 = vadd.f32 %v9064, 1.0
  %v9068 = vlog2.pop %v9067
  %v9069 = vmul.f32 %v9068, 0.6931472
  %v9070 = vmul.f32 -0.5, %v9064
  %v9071 = vadd.f32 %v9070, 1.0
  %v9072 = vmul.f32 %v9071, %v9064
  %v9073 = vand.u32 2147483647, %v9064
  %vm9074 = vcmp.lt.f32.partialorder %v9073, 0.0004427343
  %v9075 = vsel %vm9074, %v9072, %v9069
  %v9076 = vadd.f32 %v9066, 1.0
  %v9077 = vlog2.pop %v9076
  %v9078 = vmul.f32 %v9077, 0.6931472
  %v9079 = vmul.f32 -0.5, %v9066
  %v9080 = vadd.f32 %v9079, 1.0
  %v9081 = vmul.f32 %v9080, %v9066
  %v9082 = vand.u32 2147483647, %v9066
  %vm9083 = vcmp.lt.f32.partialorder %v9082, 0.0004427343
  %v9084 = vsel %vm9083, %v9081, %v9078
  %v9085 = vadd.f32 %v9053, %v9075
  %v9086 = vadd.f32 %v9054, %v9084
  %v9087 = vsel %vm9055, %v9057, %v9085
  %v9088 = vsel %vm9056, %v9058, %v9086
  %v9089 = vtanh.pop %v9087
  %v9090 = vtanh.pop %v9088
  %v9091 = vmul.f32 %v9051, %v9089
  %v9092 = vmul.f32 %v9052, %v9090
  %v9093 = vld [vmem:[%s3 + $0xe50] sm:$0xff]
  %v9094 = vld [vmem:[%s3 + $0xe58] sm:$0xff]
  %v9095 = vld [vmem:[%s3 + $0xe60] sm:$0xff]
  %v9096 = vld [vmem:[%s3 + $0xe68] sm:$0xff]
  %v9098 = vsel %vm3032, %v9093, 0
  %v9101 = vsel %vm3032, %v9094, 0
  %9103 = vmatpush.msra.mxu0 0.0
  %9104 = vmatpush.msra.mxu0 0.0
  %9105 = vmatpush.msra.mxu0 0.0
  %9106 = vmatpush.msra.mxu0 0.0
  %9107 = vmatpush.msra.mxu0 0.0
  %9108 = vmatpush.msra.mxu0 0.0
  %9109 = vmatpush.msra.mxu0 0.0
  %9110 = vmatpush.msra.mxu0 0.0
  %9111 = vmatpush.msra.mxu0 0.0
  %9112 = vmatpush.msra.mxu0 0.0
  %9113 = vmatpush.msra.mxu0 0.0
  %9114 = vmatpush.msra.mxu0 0.0
  %9115 = vmatpush.msra.mxu0 %v8144
  %9116 = vmatpush.msra.mxu0 %v8143
  %9117 = vmatpush.msra.mxu0 %v8142
  %9118 = vmatpush.msra.mxu0 %v8141
  %9119 = vmatmul.f32.gmra.mxu0 %v9098
  %v9120 = vpop.f32.mrf.mxu0
  %v9121 = vadd.f32 0.0, %v9120
  %9122 = vmatmul.f32.gmra.mxu0 %v9101
  %v9123 = vpop.f32.mrf.mxu0
  %v9124 = vadd.f32 0.0, %v9123
  %9125 = vdwg.mxu0
  %9127 = vset.pattern.permute.xlu0 0
  %9128 = vperm.xlu0 %9127, %v9095
  %v9129 = vpop.permute.xlu0 %9128
  %9132 = vset.pattern.permute.xlu0 0
  %9133 = vperm.xlu0 %9132, %v9096
  %v9134 = vpop.permute.xlu0 %9133
  %v9136 = vadd.f32 %v9129, %v9121
  %v9137 = vadd.f32 %v9134, %v9124
  %9138 = vrot.lane.b32.xlu0 %v9093, 96
  %v9139 = vpop.permute.xlu0 %9138
  %9140 = vrot.lane.b32.xlu0 %v9094, 96
  %v9141 = vpop.permute.xlu0 %9140
  %v9142 = vsel %vm3032, %v9139, 0
  %v9144 = vsel %vm3032, %v9141, 0
  %9146 = vmatpush.msra.mxu0 0.0
  %9147 = vmatpush.msra.mxu0 0.0
  %9148 = vmatpush.msra.mxu0 0.0
  %9149 = vmatpush.msra.mxu0 0.0
  %9150 = vmatpush.msra.mxu0 0.0
  %9151 = vmatpush.msra.mxu0 0.0
  %9152 = vmatpush.msra.mxu0 0.0
  %9153 = vmatpush.msra.mxu0 0.0
  %9154 = vmatpush.msra.mxu0 0.0
  %9155 = vmatpush.msra.mxu0 0.0
  %9156 = vmatpush.msra.mxu0 0.0
  %9157 = vmatpush.msra.mxu0 0.0
  %9158 = vmatpush.msra.mxu0 %v5270
  %9159 = vmatpush.msra.mxu0 %v5269
  %9160 = vmatpush.msra.mxu0 %v5268
  %9161 = vmatpush.msra.mxu0 %v5267
  %9162 = vmatmul.f32.gmra.mxu0 %v9142
  %v9163 = vpop.f32.mrf.mxu0
  %v9164 = vadd.f32 0.0, %v9163
  %9165 = vmatmul.f32.gmra.mxu0 %v9144
  %v9166 = vpop.f32.mrf.mxu0
  %v9167 = vadd.f32 0.0, %v9166
  %9168 = vdwg.mxu0
  %v9169 = vadd.f32 %v9136, %v9164
  %v9170 = vadd.f32 %v9137, %v9167
  %v9171 = vadd.f32 %v9091, %v9169
  %v9172 = vadd.f32 %v9092, %v9170
  %v9173 = vld [vmem:[%s3 + $0xe70] sm:$0xff]
  %v9174 = vld [vmem:[%s3 + $0xe78] sm:$0xff]
  %v9175 = vld [vmem:[%s3 + $0xe80] sm:$0xff]
  %v9176 = vld [vmem:[%s3 + $0xe88] sm:$0xff]
  %v9177 = vld [vmem:[%s3 + $0xe90] sm:$0xff]
  %v9178 = vld [vmem:[%s3 + $0xe98] sm:$0xff]
  %v9179 = vld [vmem:[%s3 + $0xea0] sm:$0xff]
  %v9180 = vld [vmem:[%s3 + $0xea8] sm:$0xff]
  %v9181 = vld [vmem:[%s3 + $0xeb0] sm:$0xff]
  %v9182 = vld [vmem:[%s3 + $0xeb8] sm:$0xff]
  %v9183 = vld [vmem:[%s3 + $0xec0] sm:$0xff]
  %v9184 = vld [vmem:[%s3 + $0xec8] sm:$0xff]
  %v9186 = vsel %vm104, %v9173, 0
  %v9189 = vsel %vm104, %v9174, 0
  %v9192 = vsel %vm104, %v9175, 0
  %v9195 = vsel %vm104, %v9176, 0
  %v9198 = vsel %vm104, %v9177, 0
  %v9201 = vsel %vm104, %v9178, 0
  %v9204 = vsel %vm104, %v9179, 0
  %v9207 = vsel %vm104, %v9180, 0
  %v9210 = vsel %vm104, %v9181, 0
  %v9213 = vsel %vm104, %v9182, 0
  %9215 = vmatpush.msra.mxu0 0.0
  %9216 = vmatpush.msra.mxu0 0.0
  %9217 = vmatpush.msra.mxu0 0.0
  %9218 = vmatpush.msra.mxu0 0.0
  %9219 = vmatpush.msra.mxu0 0.0
  %9220 = vmatpush.msra.mxu0 0.0
  %9221 = vmatpush.msra.mxu0 0.0
  %9222 = vmatpush.msra.mxu0 0.0
  %9223 = vmatpush.msra.mxu0 0.0
  %9224 = vmatpush.msra.mxu0 0.0
  %9225 = vmatpush.msra.mxu0 0.0
  %9226 = vmatpush.msra.mxu0 0.0
  %9227 = vmatpush.msra.mxu0 0.0
  %9228 = vmatpush.msra.mxu0 0.0
  %9229 = vmatpush.msra.mxu0 %v9172
  %9230 = vmatpush.msra.mxu0 %v9171
  %9231 = vmatmul.f32.gmra.mxu0 %v9186
  %v9232 = vpop.f32.mrf.mxu0
  %v9233 = vadd.f32 0.0, %v9232
  %9234 = vmatmul.f32.gmra.mxu0 %v9189
  %v9235 = vpop.f32.mrf.mxu0
  %v9236 = vadd.f32 0.0, %v9235
  %9237 = vmatmul.f32.gmra.mxu0 %v9192
  %v9238 = vpop.f32.mrf.mxu0
  %v9239 = vadd.f32 0.0, %v9238
  %9240 = vmatmul.f32.gmra.mxu0 %v9195
  %v9241 = vpop.f32.mrf.mxu0
  %v9242 = vadd.f32 0.0, %v9241
  %9243 = vmatmul.f32.gmra.mxu0 %v9198
  %v9244 = vpop.f32.mrf.mxu0
  %v9245 = vadd.f32 0.0, %v9244
  %9246 = vmatmul.f32.gmra.mxu0 %v9201
  %v9247 = vpop.f32.mrf.mxu0
  %v9248 = vadd.f32 0.0, %v9247
  %9249 = vmatmul.f32.gmra.mxu0 %v9204
  %v9250 = vpop.f32.mrf.mxu0
  %v9251 = vadd.f32 0.0, %v9250
  %9252 = vmatmul.f32.gmra.mxu0 %v9207
  %v9253 = vpop.f32.mrf.mxu0
  %v9254 = vadd.f32 0.0, %v9253
  %9255 = vmatmul.f32.gmra.mxu0 %v9210
  %v9256 = vpop.f32.mrf.mxu0
  %v9257 = vadd.f32 0.0, %v9256
  %9258 = vmatmul.f32.gmra.mxu0 %v9213
  %v9259 = vpop.f32.mrf.mxu0
  %v9260 = vadd.f32 0.0, %v9259
  %9261 = vdwg.mxu0
  %v9263 = vsel %vm677, %v9233, 0
  %v9266 = vsel %vm677, %v9236, 0
  %9268 = vmatpush.msra.mxu0 0.0
  %9269 = vmatpush.msra.mxu0 0.0
  %9270 = vmatpush.msra.mxu0 0.0
  %9271 = vmatpush.msra.mxu0 0.0
  %9272 = vmatpush.msra.mxu0 0.0
  %9273 = vmatpush.msra.mxu0 0.0
  %9274 = vmatpush.msra.mxu0 0.0
  %9275 = vmatpush.msra.mxu0 0.0
  %9276 = vmatpush.msra.mxu0 0.0
  %9277 = vmatpush.msra.mxu0 0.0
  %9278 = vmatpush.msra.mxu0 0.0
  %9279 = vmatpush.msra.mxu0 0.0
  %9280 = vmatpush.msra.mxu0 0.0
  %9281 = vmatpush.msra.mxu0 0.0
  %9282 = vmatpush.msra.mxu0 0.0
  %9283 = vmatpush.msra.mxu0 %v17
  %9284 = vmatmul.f32.gmra.mxu0 %v9263
  %v9285 = vpop.f32.mrf.mxu0
  %v9286 = vadd.f32 0.0, %v9285
  %9287 = vmatmul.f32.gmra.mxu0 %v9266
  %v9288 = vpop.f32.mrf.mxu0
  %v9289 = vadd.f32 0.0, %v9288
  %9290 = vdwg.mxu0
  %9292 = vset.pattern.permute.xlu0 0
  %9293 = vperm.xlu0 %9292, %v9183
  %v9294 = vpop.permute.xlu0 %9293
  %9297 = vset.pattern.permute.xlu0 0
  %9298 = vperm.xlu0 %9297, %v9184
  %v9299 = vpop.permute.xlu0 %9298
  %v9301 = vadd.f32 %v9294, %v9286
  %v9302 = vadd.f32 %v9299, %v9289
  %v9304 = vsel %vm677, %v9239, 0
  %v9307 = vsel %vm677, %v9242, 0
  %9309 = vmatpush.msra.mxu0 0.0
  %9310 = vmatpush.msra.mxu0 0.0
  %9311 = vmatpush.msra.mxu0 0.0
  %9312 = vmatpush.msra.mxu0 0.0
  %9313 = vmatpush.msra.mxu0 0.0
  %9314 = vmatpush.msra.mxu0 0.0
  %9315 = vmatpush.msra.mxu0 0.0
  %9316 = vmatpush.msra.mxu0 0.0
  %9317 = vmatpush.msra.mxu0 0.0
  %9318 = vmatpush.msra.mxu0 0.0
  %9319 = vmatpush.msra.mxu0 0.0
  %9320 = vmatpush.msra.mxu0 0.0
  %9321 = vmatpush.msra.mxu0 0.0
  %9322 = vmatpush.msra.mxu0 0.0
  %9323 = vmatpush.msra.mxu0 0.0
  %9324 = vmatpush.msra.mxu0 %v18
  %9325 = vmatmul.f32.gmra.mxu0 %v9304
  %v9326 = vpop.f32.mrf.mxu0
  %v9327 = vadd.f32 0.0, %v9326
  %9328 = vmatmul.f32.gmra.mxu0 %v9307
  %v9329 = vpop.f32.mrf.mxu0
  %v9330 = vadd.f32 0.0, %v9329
  %9331 = vdwg.mxu0
  %v9332 = vadd.f32 %v9301, %v9327
  %v9333 = vadd.f32 %v9302, %v9330
  %v9335 = vsel %vm677, %v9245, 0
  %v9338 = vsel %vm677, %v9248, 0
  %9340 = vmatpush.msra.mxu0 0.0
  %9341 = vmatpush.msra.mxu0 0.0
  %9342 = vmatpush.msra.mxu0 0.0
  %9343 = vmatpush.msra.mxu0 0.0
  %9344 = vmatpush.msra.mxu0 0.0
  %9345 = vmatpush.msra.mxu0 0.0
  %9346 = vmatpush.msra.mxu0 0.0
  %9347 = vmatpush.msra.mxu0 0.0
  %9348 = vmatpush.msra.mxu0 0.0
  %9349 = vmatpush.msra.mxu0 0.0
  %9350 = vmatpush.msra.mxu0 0.0
  %9351 = vmatpush.msra.mxu0 0.0
  %9352 = vmatpush.msra.mxu0 0.0
  %9353 = vmatpush.msra.mxu0 0.0
  %9354 = vmatpush.msra.mxu0 0.0
  %9355 = vmatpush.msra.mxu0 %v19
  %9356 = vmatmul.f32.gmra.mxu0 %v9335
  %v9357 = vpop.f32.mrf.mxu0
  %v9358 = vadd.f32 0.0, %v9357
  %9359 = vmatmul.f32.gmra.mxu0 %v9338
  %v9360 = vpop.f32.mrf.mxu0
  %v9361 = vadd.f32 0.0, %v9360
  %9362 = vdwg.mxu0
  %v9363 = vadd.f32 %v9332, %v9358
  %v9364 = vadd.f32 %v9333, %v9361
  %v9366 = vsel %vm677, %v9251, 0
  %v9369 = vsel %vm677, %v9254, 0
  %9371 = vmatpush.msra.mxu0 0.0
  %9372 = vmatpush.msra.mxu0 0.0
  %9373 = vmatpush.msra.mxu0 0.0
  %9374 = vmatpush.msra.mxu0 0.0
  %9375 = vmatpush.msra.mxu0 0.0
  %9376 = vmatpush.msra.mxu0 0.0
  %9377 = vmatpush.msra.mxu0 0.0
  %9378 = vmatpush.msra.mxu0 0.0
  %9379 = vmatpush.msra.mxu0 0.0
  %9380 = vmatpush.msra.mxu0 0.0
  %9381 = vmatpush.msra.mxu0 0.0
  %9382 = vmatpush.msra.mxu0 0.0
  %9383 = vmatpush.msra.mxu0 0.0
  %9384 = vmatpush.msra.mxu0 0.0
  %9385 = vmatpush.msra.mxu0 0.0
  %9386 = vmatpush.msra.mxu0 %v20
  %9387 = vmatmul.f32.gmra.mxu0 %v9366
  %v9388 = vpop.f32.mrf.mxu0
  %v9389 = vadd.f32 0.0, %v9388
  %9390 = vmatmul.f32.gmra.mxu0 %v9369
  %v9391 = vpop.f32.mrf.mxu0
  %v9392 = vadd.f32 0.0, %v9391
  %9393 = vdwg.mxu0
  %v9394 = vadd.f32 %v9363, %v9389
  %v9395 = vadd.f32 %v9364, %v9392
  %v9397 = vsel %vm677, %v9257, 0
  %v9400 = vsel %vm677, %v9260, 0
  %9402 = vmatpush.msra.mxu0 0.0
  %9403 = vmatpush.msra.mxu0 0.0
  %9404 = vmatpush.msra.mxu0 0.0
  %9405 = vmatpush.msra.mxu0 0.0
  %9406 = vmatpush.msra.mxu0 0.0
  %9407 = vmatpush.msra.mxu0 0.0
  %9408 = vmatpush.msra.mxu0 0.0
  %9409 = vmatpush.msra.mxu0 0.0
  %9410 = vmatpush.msra.mxu0 0.0
  %9411 = vmatpush.msra.mxu0 0.0
  %9412 = vmatpush.msra.mxu0 0.0
  %9413 = vmatpush.msra.mxu0 0.0
  %9414 = vmatpush.msra.mxu0 0.0
  %9415 = vmatpush.msra.mxu0 0.0
  %9416 = vmatpush.msra.mxu0 0.0
  %9417 = vmatpush.msra.mxu0 %v21
  %9418 = vmatmul.f32.gmra.mxu0 %v9397
  %v9419 = vpop.f32.mrf.mxu0
  %v9420 = vadd.f32 0.0, %v9419
  %9421 = vmatmul.f32.gmra.mxu0 %v9400
  %v9422 = vpop.f32.mrf.mxu0
  %v9423 = vadd.f32 0.0, %v9422
  %9424 = vdwg.mxu0
  %v9425 = vadd.f32 %v9394, %v9420
  %v9426 = vadd.f32 %v9395, %v9423
  %v9427 = vmax.f32 %v9425, 0.0
  %v9428 = vmax.f32 %v9426, 0.0
  %vm9429 = vcmp.ne.f32.partialorder %v9425, %v9425
  %vm9430 = vcmp.ne.f32.partialorder %v9426, %v9426
  %v9431 = vadd.f32 %v9425, 0.0
  %v9432 = vadd.f32 %v9426, 0.0
  %v9433 = vand.u32 2147483647, %v9425
  %v9434 = vand.u32 2147483647, %v9426
  %v9435 = vsub.f32 0.0, %v9433
  %v9436 = vsub.f32 0.0, %v9434
  %v9437 = vmul.f32 %v9435, 1.442695
  %v9438 = vpow.pop %v9437
  %v9439 = vmul.f32 %v9436, 1.442695
  %v9440 = vpow.pop %v9439
  %v9441 = vadd.f32 %v9438, 1.0
  %v9442 = vlog2.pop %v9441
  %v9443 = vmul.f32 %v9442, 0.6931472
  %v9444 = vmul.f32 -0.5, %v9438
  %v9445 = vadd.f32 %v9444, 1.0
  %v9446 = vmul.f32 %v9445, %v9438
  %v9447 = vand.u32 2147483647, %v9438
  %vm9448 = vcmp.lt.f32.partialorder %v9447, 0.0004427343
  %v9449 = vsel %vm9448, %v9446, %v9443
  %v9450 = vadd.f32 %v9440, 1.0
  %v9451 = vlog2.pop %v9450
  %v9452 = vmul.f32 %v9451, 0.6931472
  %v9453 = vmul.f32 -0.5, %v9440
  %v9454 = vadd.f32 %v9453, 1.0
  %v9455 = vmul.f32 %v9454, %v9440
  %v9456 = vand.u32 2147483647, %v9440
  %vm9457 = vcmp.lt.f32.partialorder %v9456, 0.0004427343
  %v9458 = vsel %vm9457, %v9455, %v9452
  %v9459 = vadd.f32 %v9427, %v9449
  %v9460 = vadd.f32 %v9428, %v9458
  %v9461 = vsel %vm9429, %v9431, %v9459
  %v9462 = vsel %vm9430, %v9432, %v9460
  %v9463 = vtanh.pop %v9461
  %v9464 = vtanh.pop %v9462
  %v9465 = vmul.f32 %v9425, %v9463
  %v9466 = vmul.f32 %v9426, %v9464
  %v9467 = vld [vmem:[%s3 + $0xf30] sm:$0xff]
  %v9468 = vld [vmem:[%s3 + $0xf38] sm:$0xff]
  %v9469 = vld [vmem:[%s3 + $0xf40] sm:$0xff]
  %v9470 = vld [vmem:[%s3 + $0xf48] sm:$0xff]
  %v9472 = vsel %vm677, %v9469, 0
  %v9475 = vsel %vm677, %v9470, 0
  %9477 = vmatpush.msra.mxu0 0.0
  %9478 = vmatpush.msra.mxu0 0.0
  %9479 = vmatpush.msra.mxu0 0.0
  %9480 = vmatpush.msra.mxu0 0.0
  %9481 = vmatpush.msra.mxu0 0.0
  %9482 = vmatpush.msra.mxu0 0.0
  %9483 = vmatpush.msra.mxu0 0.0
  %9484 = vmatpush.msra.mxu0 0.0
  %9485 = vmatpush.msra.mxu0 0.0
  %9486 = vmatpush.msra.mxu0 0.0
  %9487 = vmatpush.msra.mxu0 0.0
  %9488 = vmatpush.msra.mxu0 0.0
  %9489 = vmatpush.msra.mxu0 0.0
  %9490 = vmatpush.msra.mxu0 0.0
  %9491 = vmatpush.msra.mxu0 0.0
  %9492 = vmatpush.msra.mxu0 %v46
  %9493 = vmatmul.f32.gmra.mxu0 %v9472
  %v9494 = vpop.f32.mrf.mxu0
  %v9495 = vadd.f32 0.0, %v9494
  %9496 = vmatmul.f32.gmra.mxu0 %v9475
  %v9497 = vpop.f32.mrf.mxu0
  %v9498 = vadd.f32 0.0, %v9497
  %9499 = vdwg.mxu0
  %v9501 = vsel %vm104, %v9467, 0
  %v9504 = vsel %vm104, %v9468, 0
  %9506 = vmatpush.msra.mxu0 0.0
  %9507 = vmatpush.msra.mxu0 0.0
  %9508 = vmatpush.msra.mxu0 0.0
  %9509 = vmatpush.msra.mxu0 0.0
  %9510 = vmatpush.msra.mxu0 0.0
  %9511 = vmatpush.msra.mxu0 0.0
  %9512 = vmatpush.msra.mxu0 0.0
  %9513 = vmatpush.msra.mxu0 0.0
  %9514 = vmatpush.msra.mxu0 0.0
  %9515 = vmatpush.msra.mxu0 0.0
  %9516 = vmatpush.msra.mxu0 0.0
  %9517 = vmatpush.msra.mxu0 0.0
  %9518 = vmatpush.msra.mxu0 0.0
  %9519 = vmatpush.msra.mxu0 0.0
  %9520 = vmatpush.msra.mxu0 %v372
  %9521 = vmatpush.msra.mxu0 %v369
  %9522 = vmatmul.f32.gmra.mxu0 %v9501
  %v9523 = vpop.f32.mrf.mxu0
  %v9524 = vadd.f32 %v9495, %v9523
  %9525 = vmatmul.f32.gmra.mxu0 %v9504
  %v9526 = vpop.f32.mrf.mxu0
  %v9527 = vadd.f32 %v9498, %v9526
  %9528 = vdwg.mxu0
  %v9529 = vld [vmem:[%s3 + $0xf50] sm:$0xff]
  %v9530 = vld [vmem:[%s3 + $0xf58] sm:$0xff]
  %9532 = vset.pattern.permute.xlu0 0
  %9533 = vperm.xlu0 %9532, %v9529
  %v9534 = vpop.permute.xlu0 %9533
  %9537 = vset.pattern.permute.xlu0 0
  %9538 = vperm.xlu0 %9537, %v9530
  %v9539 = vpop.permute.xlu0 %9538
  %v9541 = vadd.f32 %v9524, %v9534
  %v9542 = vadd.f32 %v9527, %v9539
  %v9543 = vmax.f32 %v9541, 0.0
  %v9544 = vmax.f32 %v9542, 0.0
  %vm9545 = vcmp.ne.f32.partialorder %v9541, %v9541
  %vm9546 = vcmp.ne.f32.partialorder %v9542, %v9542
  %v9547 = vadd.f32 %v9541, 0.0
  %v9548 = vadd.f32 %v9542, 0.0
  %v9549 = vand.u32 2147483647, %v9541
  %v9550 = vand.u32 2147483647, %v9542
  %v9551 = vsub.f32 0.0, %v9549
  %v9552 = vsub.f32 0.0, %v9550
  %v9553 = vmul.f32 %v9551, 1.442695
  %v9554 = vpow.pop %v9553
  %v9555 = vmul.f32 %v9552, 1.442695
  %v9556 = vpow.pop %v9555
  %v9557 = vadd.f32 %v9554, 1.0
  %v9558 = vlog2.pop %v9557
  %v9559 = vmul.f32 %v9558, 0.6931472
  %v9560 = vmul.f32 -0.5, %v9554
  %v9561 = vadd.f32 %v9560, 1.0
  %v9562 = vmul.f32 %v9561, %v9554
  %v9563 = vand.u32 2147483647, %v9554
  %vm9564 = vcmp.lt.f32.partialorder %v9563, 0.0004427343
  %v9565 = vsel %vm9564, %v9562, %v9559
  %v9566 = vadd.f32 %v9556, 1.0
  %v9567 = vlog2.pop %v9566
  %v9568 = vmul.f32 %v9567, 0.6931472
  %v9569 = vmul.f32 -0.5, %v9556
  %v9570 = vadd.f32 %v9569, 1.0
  %v9571 = vmul.f32 %v9570, %v9556
  %v9572 = vand.u32 2147483647, %v9556
  %vm9573 = vcmp.lt.f32.partialorder %v9572, 0.0004427343
  %v9574 = vsel %vm9573, %v9571, %v9568
  %v9575 = vadd.f32 %v9543, %v9565
  %v9576 = vadd.f32 %v9544, %v9574
  %v9577 = vsel %vm9545, %v9547, %v9575
  %v9578 = vsel %vm9546, %v9548, %v9576
  %v9579 = vtanh.pop %v9577
  %v9580 = vtanh.pop %v9578
  %v9581 = vmul.f32 %v9541, %v9579
  %v9582 = vmul.f32 %v9542, %v9580
  %v9583 = vld [vmem:[%s3 + $0xf60] sm:$0xff]
  %v9584 = vld [vmem:[%s3 + $0xf68] sm:$0xff]
  %v9585 = vld [vmem:[%s3 + $0xf70] sm:$0xff]
  %v9586 = vld [vmem:[%s3 + $0xf78] sm:$0xff]
  %9588 = vset.pattern.permute.xlu0 0
  %9589 = vperm.xlu0 %9588, %v9585
  %v9590 = vpop.permute.xlu0 %9589
  %9593 = vset.pattern.permute.xlu0 0
  %9594 = vperm.xlu0 %9593, %v9586
  %v9595 = vpop.permute.xlu0 %9594
  %v9598 = vsel %vm104, %v9583, 0
  %v9601 = vsel %vm104, %v9584, 0
  %9603 = vmatpush.msra.mxu0 0.0
  %9604 = vmatpush.msra.mxu0 0.0
  %9605 = vmatpush.msra.mxu0 0.0
  %9606 = vmatpush.msra.mxu0 0.0
  %9607 = vmatpush.msra.mxu0 0.0
  %9608 = vmatpush.msra.mxu0 0.0
  %9609 = vmatpush.msra.mxu0 0.0
  %9610 = vmatpush.msra.mxu0 0.0
  %9611 = vmatpush.msra.mxu0 0.0
  %9612 = vmatpush.msra.mxu0 0.0
  %9613 = vmatpush.msra.mxu0 0.0
  %9614 = vmatpush.msra.mxu0 0.0
  %9615 = vmatpush.msra.mxu0 0.0
  %9616 = vmatpush.msra.mxu0 0.0
  %9617 = vmatpush.msra.mxu0 %v9582
  %9618 = vmatpush.msra.mxu0 %v9581
  %9619 = vmatmul.f32.gmra.mxu0 %v9598
  %v9620 = vpop.f32.mrf.mxu0
  %v9621 = vadd.f32 %v9590, %v9620
  %9622 = vmatmul.f32.gmra.mxu0 %v9601
  %v9623 = vpop.f32.mrf.mxu0
  %v9624 = vadd.f32 %v9595, %v9623
  %9625 = vdwg.mxu0
  %v9626 = vmax.f32 %v9621, 0.0
  %v9627 = vmax.f32 %v9624, 0.0
  %vm9628 = vcmp.ne.f32.partialorder %v9621, %v9621
  %vm9629 = vcmp.ne.f32.partialorder %v9624, %v9624
  %v9630 = vadd.f32 %v9621, 0.0
  %v9631 = vadd.f32 %v9624, 0.0
  %v9632 = vand.u32 2147483647, %v9621
  %v9633 = vand.u32 2147483647, %v9624
  %v9634 = vsub.f32 0.0, %v9632
  %v9635 = vsub.f32 0.0, %v9633
  %v9636 = vmul.f32 %v9634, 1.442695
  %v9637 = vpow.pop %v9636
  %v9638 = vmul.f32 %v9635, 1.442695
  %v9639 = vpow.pop %v9638
  %v9640 = vadd.f32 %v9637, 1.0
  %v9641 = vlog2.pop %v9640
  %v9642 = vmul.f32 %v9641, 0.6931472
  %v9643 = vmul.f32 -0.5, %v9637
  %v9644 = vadd.f32 %v9643, 1.0
  %v9645 = vmul.f32 %v9644, %v9637
  %v9646 = vand.u32 2147483647, %v9637
  %vm9647 = vcmp.lt.f32.partialorder %v9646, 0.0004427343
  %v9648 = vsel %vm9647, %v9645, %v9642
  %v9649 = vadd.f32 %v9639, 1.0
  %v9650 = vlog2.pop %v9649
  %v9651 = vmul.f32 %v9650, 0.6931472
  %v9652 = vmul.f32 -0.5, %v9639
  %v9653 = vadd.f32 %v9652, 1.0
  %v9654 = vmul.f32 %v9653, %v9639
  %v9655 = vand.u32 2147483647, %v9639
  %vm9656 = vcmp.lt.f32.partialorder %v9655, 0.0004427343
  %v9657 = vsel %vm9656, %v9654, %v9651
  %v9658 = vadd.f32 %v9626, %v9648
  %v9659 = vadd.f32 %v9627, %v9657
  %v9660 = vsel %vm9628, %v9630, %v9658
  %v9661 = vsel %vm9629, %v9631, %v9659
  %v9662 = vtanh.pop %v9660
  %v9663 = vtanh.pop %v9661
  %v9664 = vmul.f32 %v9621, %v9662
  %v9665 = vmul.f32 %v9624, %v9663
  %v9666 = vld [vmem:[%s3 + $0xf80] sm:$0xff]
  %v9667 = vld [vmem:[%s3 + $0xf88] sm:$0xff]
  %v9668 = vld [vmem:[%s3 + $0xf90] sm:$0xff]
  %v9669 = vld [vmem:[%s3 + $0xf98] sm:$0xff]
  %9671 = vset.pattern.permute.xlu0 0
  %9672 = vperm.xlu0 %9671, %v9668
  %v9673 = vpop.permute.xlu0 %9672
  %9676 = vset.pattern.permute.xlu0 0
  %9677 = vperm.xlu0 %9676, %v9669
  %v9678 = vpop.permute.xlu0 %9677
  %v9681 = vsel %vm104, %v9666, 0
  %v9684 = vsel %vm104, %v9667, 0
  %9686 = vmatpush.msra.mxu0 0.0
  %9687 = vmatpush.msra.mxu0 0.0
  %9688 = vmatpush.msra.mxu0 0.0
  %9689 = vmatpush.msra.mxu0 0.0
  %9690 = vmatpush.msra.mxu0 0.0
  %9691 = vmatpush.msra.mxu0 0.0
  %9692 = vmatpush.msra.mxu0 0.0
  %9693 = vmatpush.msra.mxu0 0.0
  %9694 = vmatpush.msra.mxu0 0.0
  %9695 = vmatpush.msra.mxu0 0.0
  %9696 = vmatpush.msra.mxu0 0.0
  %9697 = vmatpush.msra.mxu0 0.0
  %9698 = vmatpush.msra.mxu0 0.0
  %9699 = vmatpush.msra.mxu0 0.0
  %9700 = vmatpush.msra.mxu0 %v9665
  %9701 = vmatpush.msra.mxu0 %v9664
  %9702 = vmatmul.f32.gmra.mxu0 %v9681
  %v9703 = vpop.f32.mrf.mxu0
  %v9704 = vadd.f32 %v9673, %v9703
  %9705 = vmatmul.f32.gmra.mxu0 %v9684
  %v9706 = vpop.f32.mrf.mxu0
  %v9707 = vadd.f32 %v9678, %v9706
  %9708 = vdwg.mxu0
  %v9710 = vsel %vm916, %v9704, 0
  %v9713 = vsel %vm916, %v9707, 0
  %9715 = vmatpush.msra.mxu0 0.0
  %9716 = vmatpush.msra.mxu0 0.0
  %9717 = vmatpush.msra.mxu0 0.0
  %9718 = vmatpush.msra.mxu0 0.0
  %9719 = vmatpush.msra.mxu0 0.0
  %9720 = vmatpush.msra.mxu0 0.0
  %9721 = vmatpush.msra.mxu0 0.0
  %9722 = vmatpush.msra.mxu0 0.0
  %9723 = vmatpush.msra.mxu0 0.0
  %9724 = vmatpush.msra.mxu0 0.0
  %9725 = vmatpush.msra.mxu0 0.0
  %9726 = vmatpush.msra.mxu0 0.0
  %9727 = vmatpush.msra.mxu0 0.0
  %9728 = vmatpush.msra.mxu0 0.0
  %9729 = vmatpush.msra.mxu0 0.0
  %9730 = vmatpush.msra.mxu0 %v3236
  %9731 = vmatmul.f32.gmra.mxu0 %v9710
  %v9732 = vpop.f32.mrf.mxu0
  %v9733 = vadd.f32 0.0, %v9732
  %9734 = vmatmul.f32.gmra.mxu0 %v9713
  %v9735 = vpop.f32.mrf.mxu0
  %v9736 = vadd.f32 0.0, %v9735
  %9737 = vdwg.mxu0
  %v9738 = vadd.f32 %v9465, %v9733
  %v9739 = vadd.f32 %v9466, %v9736
  %v9740 = vld [vmem:[%s3 + $0xed0] sm:$0xff]
  %v9741 = vld [vmem:[%s3 + $0xed8] sm:$0xff]
  %v9742 = vld [vmem:[%s3 + $0xee0] sm:$0xff]
  %v9743 = vld [vmem:[%s3 + $0xee8] sm:$0xff]
  %v9744 = vld [vmem:[%s3 + $0xef0] sm:$0xff]
  %v9745 = vld [vmem:[%s3 + $0xef8] sm:$0xff]
  %v9746 = vld [vmem:[%s3 + $0xf00] sm:$0xff]
  %v9747 = vld [vmem:[%s3 + $0xf08] sm:$0xff]
  %v9748 = vld [vmem:[%s3 + $0xf10] sm:$0xff]
  %v9749 = vld [vmem:[%s3 + $0xf18] sm:$0xff]
  %v9750 = vld [vmem:[%s3 + $0xf20] sm:$0xff]
  %v9751 = vld [vmem:[%s3 + $0xf28] sm:$0xff]
  %v9753 = vsel %vm104, %v9740, 0
  %v9756 = vsel %vm104, %v9741, 0
  %v9759 = vsel %vm104, %v9742, 0
  %v9762 = vsel %vm104, %v9743, 0
  %v9765 = vsel %vm104, %v9744, 0
  %v9768 = vsel %vm104, %v9745, 0
  %v9771 = vsel %vm104, %v9746, 0
  %v9774 = vsel %vm104, %v9747, 0
  %v9777 = vsel %vm104, %v9748, 0
  %v9780 = vsel %vm104, %v9749, 0
  %9782 = vmatpush.msra.mxu0 0.0
  %9783 = vmatpush.msra.mxu0 0.0
  %9784 = vmatpush.msra.mxu0 0.0
  %9785 = vmatpush.msra.mxu0 0.0
  %9786 = vmatpush.msra.mxu0 0.0
  %9787 = vmatpush.msra.mxu0 0.0
  %9788 = vmatpush.msra.mxu0 0.0
  %9789 = vmatpush.msra.mxu0 0.0
  %9790 = vmatpush.msra.mxu0 0.0
  %9791 = vmatpush.msra.mxu0 0.0
  %9792 = vmatpush.msra.mxu0 0.0
  %9793 = vmatpush.msra.mxu0 0.0
  %9794 = vmatpush.msra.mxu0 0.0
  %9795 = vmatpush.msra.mxu0 0.0
  %9796 = vmatpush.msra.mxu0 %v9739
  %9797 = vmatpush.msra.mxu0 %v9738
  %9798 = vmatmul.f32.gmra.mxu0 %v9753
  %v9799 = vpop.f32.mrf.mxu0
  %v9800 = vadd.f32 0.0, %v9799
  %9801 = vmatmul.f32.gmra.mxu0 %v9756
  %v9802 = vpop.f32.mrf.mxu0
  %v9803 = vadd.f32 0.0, %v9802
  %9804 = vmatmul.f32.gmra.mxu0 %v9759
  %v9805 = vpop.f32.mrf.mxu0
  %v9806 = vadd.f32 0.0, %v9805
  %9807 = vmatmul.f32.gmra.mxu0 %v9762
  %v9808 = vpop.f32.mrf.mxu0
  %v9809 = vadd.f32 0.0, %v9808
  %9810 = vmatmul.f32.gmra.mxu0 %v9765
  %v9811 = vpop.f32.mrf.mxu0
  %v9812 = vadd.f32 0.0, %v9811
  %9813 = vmatmul.f32.gmra.mxu0 %v9768
  %v9814 = vpop.f32.mrf.mxu0
  %v9815 = vadd.f32 0.0, %v9814
  %9816 = vmatmul.f32.gmra.mxu0 %v9771
  %v9817 = vpop.f32.mrf.mxu0
  %v9818 = vadd.f32 0.0, %v9817
  %9819 = vmatmul.f32.gmra.mxu0 %v9774
  %v9820 = vpop.f32.mrf.mxu0
  %v9821 = vadd.f32 0.0, %v9820
  %9822 = vmatmul.f32.gmra.mxu0 %v9777
  %v9823 = vpop.f32.mrf.mxu0
  %v9824 = vadd.f32 0.0, %v9823
  %9825 = vmatmul.f32.gmra.mxu0 %v9780
  %v9826 = vpop.f32.mrf.mxu0
  %v9827 = vadd.f32 0.0, %v9826
  %9828 = vdwg.mxu0
  %v9830 = vsel %vm677, %v9800, 0
  %v9833 = vsel %vm677, %v9803, 0
  %9835 = vmatpush.msra.mxu0 0.0
  %9836 = vmatpush.msra.mxu0 0.0
  %9837 = vmatpush.msra.mxu0 0.0
  %9838 = vmatpush.msra.mxu0 0.0
  %9839 = vmatpush.msra.mxu0 0.0
  %9840 = vmatpush.msra.mxu0 0.0
  %9841 = vmatpush.msra.mxu0 0.0
  %9842 = vmatpush.msra.mxu0 0.0
  %9843 = vmatpush.msra.mxu0 0.0
  %9844 = vmatpush.msra.mxu0 0.0
  %9845 = vmatpush.msra.mxu0 0.0
  %9846 = vmatpush.msra.mxu0 0.0
  %9847 = vmatpush.msra.mxu0 0.0
  %9848 = vmatpush.msra.mxu0 0.0
  %9849 = vmatpush.msra.mxu0 0.0
  %9850 = vmatpush.msra.mxu0 %v17
  %9851 = vmatmul.f32.gmra.mxu0 %v9830
  %v9852 = vpop.f32.mrf.mxu0
  %v9853 = vadd.f32 0.0, %v9852
  %9854 = vmatmul.f32.gmra.mxu0 %v9833
  %v9855 = vpop.f32.mrf.mxu0
  %v9856 = vadd.f32 0.0, %v9855
  %9857 = vdwg.mxu0
  %9859 = vset.pattern.permute.xlu0 0
  %9860 = vperm.xlu0 %9859, %v9750
  %v9861 = vpop.permute.xlu0 %9860
  %9864 = vset.pattern.permute.xlu0 0
  %9865 = vperm.xlu0 %9864, %v9751
  %v9866 = vpop.permute.xlu0 %9865
  %v9868 = vadd.f32 %v9861, %v9853
  %v9869 = vadd.f32 %v9866, %v9856
  %v9871 = vsel %vm677, %v9806, 0
  %v9874 = vsel %vm677, %v9809, 0
  %9876 = vmatpush.msra.mxu0 0.0
  %9877 = vmatpush.msra.mxu0 0.0
  %9878 = vmatpush.msra.mxu0 0.0
  %9879 = vmatpush.msra.mxu0 0.0
  %9880 = vmatpush.msra.mxu0 0.0
  %9881 = vmatpush.msra.mxu0 0.0
  %9882 = vmatpush.msra.mxu0 0.0
  %9883 = vmatpush.msra.mxu0 0.0
  %9884 = vmatpush.msra.mxu0 0.0
  %9885 = vmatpush.msra.mxu0 0.0
  %9886 = vmatpush.msra.mxu0 0.0
  %9887 = vmatpush.msra.mxu0 0.0
  %9888 = vmatpush.msra.mxu0 0.0
  %9889 = vmatpush.msra.mxu0 0.0
  %9890 = vmatpush.msra.mxu0 0.0
  %9891 = vmatpush.msra.mxu0 %v18
  %9892 = vmatmul.f32.gmra.mxu0 %v9871
  %v9893 = vpop.f32.mrf.mxu0
  %v9894 = vadd.f32 0.0, %v9893
  %9895 = vmatmul.f32.gmra.mxu0 %v9874
  %v9896 = vpop.f32.mrf.mxu0
  %v9897 = vadd.f32 0.0, %v9896
  %9898 = vdwg.mxu0
  %v9899 = vadd.f32 %v9868, %v9894
  %v9900 = vadd.f32 %v9869, %v9897
  %v9902 = vsel %vm677, %v9812, 0
  %v9905 = vsel %vm677, %v9815, 0
  %9907 = vmatpush.msra.mxu0 0.0
  %9908 = vmatpush.msra.mxu0 0.0
  %9909 = vmatpush.msra.mxu0 0.0
  %9910 = vmatpush.msra.mxu0 0.0
  %9911 = vmatpush.msra.mxu0 0.0
  %9912 = vmatpush.msra.mxu0 0.0
  %9913 = vmatpush.msra.mxu0 0.0
  %9914 = vmatpush.msra.mxu0 0.0
  %9915 = vmatpush.msra.mxu0 0.0
  %9916 = vmatpush.msra.mxu0 0.0
  %9917 = vmatpush.msra.mxu0 0.0
  %9918 = vmatpush.msra.mxu0 0.0
  %9919 = vmatpush.msra.mxu0 0.0
  %9920 = vmatpush.msra.mxu0 0.0
  %9921 = vmatpush.msra.mxu0 0.0
  %9922 = vmatpush.msra.mxu0 %v19
  %9923 = vmatmul.f32.gmra.mxu0 %v9902
  %v9924 = vpop.f32.mrf.mxu0
  %v9925 = vadd.f32 0.0, %v9924
  %9926 = vmatmul.f32.gmra.mxu0 %v9905
  %v9927 = vpop.f32.mrf.mxu0
  %v9928 = vadd.f32 0.0, %v9927
  %9929 = vdwg.mxu0
  %v9930 = vadd.f32 %v9899, %v9925
  %v9931 = vadd.f32 %v9900, %v9928
  %v9933 = vsel %vm677, %v9818, 0
  %v9936 = vsel %vm677, %v9821, 0
  %9938 = vmatpush.msra.mxu0 0.0
  %9939 = vmatpush.msra.mxu0 0.0
  %9940 = vmatpush.msra.mxu0 0.0
  %9941 = vmatpush.msra.mxu0 0.0
  %9942 = vmatpush.msra.mxu0 0.0
  %9943 = vmatpush.msra.mxu0 0.0
  %9944 = vmatpush.msra.mxu0 0.0
  %9945 = vmatpush.msra.mxu0 0.0
  %9946 = vmatpush.msra.mxu0 0.0
  %9947 = vmatpush.msra.mxu0 0.0
  %9948 = vmatpush.msra.mxu0 0.0
  %9949 = vmatpush.msra.mxu0 0.0
  %9950 = vmatpush.msra.mxu0 0.0
  %9951 = vmatpush.msra.mxu0 0.0
  %9952 = vmatpush.msra.mxu0 0.0
  %9953 = vmatpush.msra.mxu0 %v20
  %9954 = vmatmul.f32.gmra.mxu0 %v9933
  %v9955 = vpop.f32.mrf.mxu0
  %v9956 = vadd.f32 0.0, %v9955
  %9957 = vmatmul.f32.gmra.mxu0 %v9936
  %v9958 = vpop.f32.mrf.mxu0
  %v9959 = vadd.f32 0.0, %v9958
  %9960 = vdwg.mxu0
  %v9961 = vadd.f32 %v9930, %v9956
  %v9962 = vadd.f32 %v9931, %v9959
  %v9964 = vsel %vm677, %v9824, 0
  %v9967 = vsel %vm677, %v9827, 0
  %9969 = vmatpush.msra.mxu0 0.0
  %9970 = vmatpush.msra.mxu0 0.0
  %9971 = vmatpush.msra.mxu0 0.0
  %9972 = vmatpush.msra.mxu0 0.0
  %9973 = vmatpush.msra.mxu0 0.0
  %9974 = vmatpush.msra.mxu0 0.0
  %9975 = vmatpush.msra.mxu0 0.0
  %9976 = vmatpush.msra.mxu0 0.0
  %9977 = vmatpush.msra.mxu0 0.0
  %9978 = vmatpush.msra.mxu0 0.0
  %9979 = vmatpush.msra.mxu0 0.0
  %9980 = vmatpush.msra.mxu0 0.0
  %9981 = vmatpush.msra.mxu0 0.0
  %9982 = vmatpush.msra.mxu0 0.0
  %9983 = vmatpush.msra.mxu0 0.0
  %9984 = vmatpush.msra.mxu0 %v21
  %9985 = vmatmul.f32.gmra.mxu0 %v9964
  %v9986 = vpop.f32.mrf.mxu0
  %v9987 = vadd.f32 0.0, %v9986
  %9988 = vmatmul.f32.gmra.mxu0 %v9967
  %v9989 = vpop.f32.mrf.mxu0
  %v9990 = vadd.f32 0.0, %v9989
  %9991 = vdwg.mxu0
  %v9992 = vadd.f32 %v9961, %v9987
  %v9993 = vadd.f32 %v9962, %v9990
  %v9994 = vmax.f32 %v9992, 0.0
  %v9995 = vmax.f32 %v9993, 0.0
  %vm9996 = vcmp.ne.f32.partialorder %v9992, %v9992
  %vm9997 = vcmp.ne.f32.partialorder %v9993, %v9993
  %v9998 = vadd.f32 %v9992, 0.0
  %v9999 = vadd.f32 %v9993, 0.0
  %v10000 = vand.u32 2147483647, %v9992
  %v10001 = vand.u32 2147483647, %v9993
  %v10002 = vsub.f32 0.0, %v10000
  %v10003 = vsub.f32 0.0, %v10001
  %v10004 = vmul.f32 %v10002, 1.442695
  %v10005 = vpow.pop %v10004
  %v10006 = vmul.f32 %v10003, 1.442695
  %v10007 = vpow.pop %v10006
  %v10008 = vadd.f32 %v10005, 1.0
  %v10009 = vlog2.pop %v10008
  %v10010 = vmul.f32 %v10009, 0.6931472
  %v10011 = vmul.f32 -0.5, %v10005
  %v10012 = vadd.f32 %v10011, 1.0
  %v10013 = vmul.f32 %v10012, %v10005
  %v10014 = vand.u32 2147483647, %v10005
  %vm10015 = vcmp.lt.f32.partialorder %v10014, 0.0004427343
  %v10016 = vsel %vm10015, %v10013, %v10010
  %v10017 = vadd.f32 %v10007, 1.0
  %v10018 = vlog2.pop %v10017
  %v10019 = vmul.f32 %v10018, 0.6931472
  %v10020 = vmul.f32 -0.5, %v10007
  %v10021 = vadd.f32 %v10020, 1.0
  %v10022 = vmul.f32 %v10021, %v10007
  %v10023 = vand.u32 2147483647, %v10007
  %vm10024 = vcmp.lt.f32.partialorder %v10023, 0.0004427343
  %v10025 = vsel %vm10024, %v10022, %v10019
  %v10026 = vadd.f32 %v9994, %v10016
  %v10027 = vadd.f32 %v9995, %v10025
  %v10028 = vsel %vm9996, %v9998, %v10026
  %v10029 = vsel %vm9997, %v9999, %v10027
  %v10030 = vtanh.pop %v10028
  %v10031 = vtanh.pop %v10029
  %v10032 = vmul.f32 %v9992, %v10030
  %v10033 = vmul.f32 %v9993, %v10031
  %v10034 = vadd.f32 %v10032, %v9171
  %v10035 = vadd.f32 %v10033, %v9172
  %v10036 = vld [vmem:[%s3 + $0xfa0] sm:$0xff]
  %v10037 = vld [vmem:[%s3 + $0xfa8] sm:$0xff]
  %v10038 = vld [vmem:[%s3 + $0xfb0] sm:$0xff]
  %v10039 = vld [vmem:[%s3 + $0xfb8] sm:$0xff]
  %v10040 = vld [vmem:[%s3 + $0xfc0] sm:$0xff]
  %v10041 = vld [vmem:[%s3 + $0xfc8] sm:$0xff]
  %v10042 = vld [vmem:[%s3 + $0xfd0] sm:$0xff]
  %v10043 = vld [vmem:[%s3 + $0xfd8] sm:$0xff]
  %v10044 = vld [vmem:[%s3 + $0xfe0] sm:$0xff]
  %v10045 = vld [vmem:[%s3 + $0xfe8] sm:$0xff]
  %v10047 = vsel %vm104, %v10036, 0
  %v10050 = vsel %vm104, %v10037, 0
  %v10053 = vsel %vm104, %v10038, 0
  %v10056 = vsel %vm104, %v10039, 0
  %v10059 = vsel %vm104, %v10040, 0
  %v10062 = vsel %vm104, %v10041, 0
  %v10065 = vsel %vm104, %v10042, 0
  %v10068 = vsel %vm104, %v10043, 0
  %10070 = vmatpush.msra.mxu0 0.0
  %10071 = vmatpush.msra.mxu0 0.0
  %10072 = vmatpush.msra.mxu0 0.0
  %10073 = vmatpush.msra.mxu0 0.0
  %10074 = vmatpush.msra.mxu0 0.0
  %10075 = vmatpush.msra.mxu0 0.0
  %10076 = vmatpush.msra.mxu0 0.0
  %10077 = vmatpush.msra.mxu0 0.0
  %10078 = vmatpush.msra.mxu0 0.0
  %10079 = vmatpush.msra.mxu0 0.0
  %10080 = vmatpush.msra.mxu0 0.0
  %10081 = vmatpush.msra.mxu0 0.0
  %10082 = vmatpush.msra.mxu0 0.0
  %10083 = vmatpush.msra.mxu0 0.0
  %10084 = vmatpush.msra.mxu0 %v10035
  %10085 = vmatpush.msra.mxu0 %v10034
  %10086 = vmatmul.f32.gmra.mxu0 %v10047
  %v10087 = vpop.f32.mrf.mxu0
  %v10088 = vadd.f32 0.0, %v10087
  %10089 = vmatmul.f32.gmra.mxu0 %v10050
  %v10090 = vpop.f32.mrf.mxu0
  %v10091 = vadd.f32 0.0, %v10090
  %10092 = vmatmul.f32.gmra.mxu0 %v10053
  %v10093 = vpop.f32.mrf.mxu0
  %v10094 = vadd.f32 0.0, %v10093
  %10095 = vmatmul.f32.gmra.mxu0 %v10056
  %v10096 = vpop.f32.mrf.mxu0
  %v10097 = vadd.f32 0.0, %v10096
  %10098 = vmatmul.f32.gmra.mxu0 %v10059
  %v10099 = vpop.f32.mrf.mxu0
  %v10100 = vadd.f32 0.0, %v10099
  %10101 = vmatmul.f32.gmra.mxu0 %v10062
  %v10102 = vpop.f32.mrf.mxu0
  %v10103 = vadd.f32 0.0, %v10102
  %10104 = vmatmul.f32.gmra.mxu0 %v10065
  %v10105 = vpop.f32.mrf.mxu0
  %v10106 = vadd.f32 0.0, %v10105
  %10107 = vmatmul.f32.gmra.mxu0 %v10068
  %v10108 = vpop.f32.mrf.mxu0
  %v10109 = vadd.f32 0.0, %v10108
  %10110 = vdwg.mxu0
  %v10112 = vsel %vm677, %v10088, 0
  %v10115 = vsel %vm677, %v10091, 0
  %10117 = vmatpush.msra.mxu0 0.0
  %10118 = vmatpush.msra.mxu0 0.0
  %10119 = vmatpush.msra.mxu0 0.0
  %10120 = vmatpush.msra.mxu0 0.0
  %10121 = vmatpush.msra.mxu0 0.0
  %10122 = vmatpush.msra.mxu0 0.0
  %10123 = vmatpush.msra.mxu0 0.0
  %10124 = vmatpush.msra.mxu0 0.0
  %10125 = vmatpush.msra.mxu0 0.0
  %10126 = vmatpush.msra.mxu0 0.0
  %10127 = vmatpush.msra.mxu0 0.0
  %10128 = vmatpush.msra.mxu0 0.0
  %10129 = vmatpush.msra.mxu0 0.0
  %10130 = vmatpush.msra.mxu0 0.0
  %10131 = vmatpush.msra.mxu0 0.0
  %10132 = vmatpush.msra.mxu0 %v40
  %10133 = vmatmul.f32.gmra.mxu0 %v10112
  %v10134 = vpop.f32.mrf.mxu0
  %v10135 = vadd.f32 0.0, %v10134
  %10136 = vmatmul.f32.gmra.mxu0 %v10115
  %v10137 = vpop.f32.mrf.mxu0
  %v10138 = vadd.f32 0.0, %v10137
  %10139 = vdwg.mxu0
  %10141 = vset.pattern.permute.xlu0 0
  %10142 = vperm.xlu0 %10141, %v10044
  %v10143 = vpop.permute.xlu0 %10142
  %10146 = vset.pattern.permute.xlu0 0
  %10147 = vperm.xlu0 %10146, %v10045
  %v10148 = vpop.permute.xlu0 %10147
  %v10150 = vadd.f32 %v10143, %v10135
  %v10151 = vadd.f32 %v10148, %v10138
  %v10153 = vsel %vm677, %v10094, 0
  %v10156 = vsel %vm677, %v10097, 0
  %10158 = vmatpush.msra.mxu0 0.0
  %10159 = vmatpush.msra.mxu0 0.0
  %10160 = vmatpush.msra.mxu0 0.0
  %10161 = vmatpush.msra.mxu0 0.0
  %10162 = vmatpush.msra.mxu0 0.0
  %10163 = vmatpush.msra.mxu0 0.0
  %10164 = vmatpush.msra.mxu0 0.0
  %10165 = vmatpush.msra.mxu0 0.0
  %10166 = vmatpush.msra.mxu0 0.0
  %10167 = vmatpush.msra.mxu0 0.0
  %10168 = vmatpush.msra.mxu0 0.0
  %10169 = vmatpush.msra.mxu0 0.0
  %10170 = vmatpush.msra.mxu0 0.0
  %10171 = vmatpush.msra.mxu0 0.0
  %10172 = vmatpush.msra.mxu0 0.0
  %10173 = vmatpush.msra.mxu0 %v41
  %10174 = vmatmul.f32.gmra.mxu0 %v10153
  %v10175 = vpop.f32.mrf.mxu0
  %v10176 = vadd.f32 0.0, %v10175
  %10177 = vmatmul.f32.gmra.mxu0 %v10156
  %v10178 = vpop.f32.mrf.mxu0
  %v10179 = vadd.f32 0.0, %v10178
  %10180 = vdwg.mxu0
  %v10181 = vadd.f32 %v10150, %v10176
  %v10182 = vadd.f32 %v10151, %v10179
  %v10184 = vsel %vm677, %v10100, 0
  %v10187 = vsel %vm677, %v10103, 0
  %10189 = vmatpush.msra.mxu0 0.0
  %10190 = vmatpush.msra.mxu0 0.0
  %10191 = vmatpush.msra.mxu0 0.0
  %10192 = vmatpush.msra.mxu0 0.0
  %10193 = vmatpush.msra.mxu0 0.0
  %10194 = vmatpush.msra.mxu0 0.0
  %10195 = vmatpush.msra.mxu0 0.0
  %10196 = vmatpush.msra.mxu0 0.0
  %10197 = vmatpush.msra.mxu0 0.0
  %10198 = vmatpush.msra.mxu0 0.0
  %10199 = vmatpush.msra.mxu0 0.0
  %10200 = vmatpush.msra.mxu0 0.0
  %10201 = vmatpush.msra.mxu0 0.0
  %10202 = vmatpush.msra.mxu0 0.0
  %10203 = vmatpush.msra.mxu0 0.0
  %10204 = vmatpush.msra.mxu0 %v42
  %10205 = vmatmul.f32.gmra.mxu0 %v10184
  %v10206 = vpop.f32.mrf.mxu0
  %v10207 = vadd.f32 0.0, %v10206
  %10208 = vmatmul.f32.gmra.mxu0 %v10187
  %v10209 = vpop.f32.mrf.mxu0
  %v10210 = vadd.f32 0.0, %v10209
  %10211 = vdwg.mxu0
  %v10212 = vadd.f32 %v10181, %v10207
  %v10213 = vadd.f32 %v10182, %v10210
  %v10215 = vsel %vm677, %v10106, 0
  %v10218 = vsel %vm677, %v10109, 0
  %10220 = vmatpush.msra.mxu0 0.0
  %10221 = vmatpush.msra.mxu0 0.0
  %10222 = vmatpush.msra.mxu0 0.0
  %10223 = vmatpush.msra.mxu0 0.0
  %10224 = vmatpush.msra.mxu0 0.0
  %10225 = vmatpush.msra.mxu0 0.0
  %10226 = vmatpush.msra.mxu0 0.0
  %10227 = vmatpush.msra.mxu0 0.0
  %10228 = vmatpush.msra.mxu0 0.0
  %10229 = vmatpush.msra.mxu0 0.0
  %10230 = vmatpush.msra.mxu0 0.0
  %10231 = vmatpush.msra.mxu0 0.0
  %10232 = vmatpush.msra.mxu0 0.0
  %10233 = vmatpush.msra.mxu0 0.0
  %10234 = vmatpush.msra.mxu0 0.0
  %10235 = vmatpush.msra.mxu0 %v43
  %10236 = vmatmul.f32.gmra.mxu0 %v10215
  %v10237 = vpop.f32.mrf.mxu0
  %v10238 = vadd.f32 0.0, %v10237
  %10239 = vmatmul.f32.gmra.mxu0 %v10218
  %v10240 = vpop.f32.mrf.mxu0
  %v10241 = vadd.f32 0.0, %v10240
  %10242 = vdwg.mxu0
  %v10243 = vadd.f32 %v10212, %v10238
  %v10244 = vadd.f32 %v10213, %v10241
  %v10245 = vld [vmem:[%s3 + $0xff0] sm:$0xff]
  %v10246 = vld [vmem:[%s3 + $0xff8] sm:$0xff]
  %v10247 = vld [vmem:[%s3 + $0x1000] sm:$0xff]
  %v10248 = vld [vmem:[%s3 + $0x1008] sm:$0xff]
  %v10249 = vld [vmem:[%s3 + $0x1010] sm:$0xff]
  %v10250 = vld [vmem:[%s3 + $0x1018] sm:$0xff]
  %v10251 = vld [vmem:[%s3 + $0x1020] sm:$0xff]
  %v10252 = vld [vmem:[%s3 + $0x1028] sm:$0xff]
  %v10253 = vld [vmem:[%s3 + $0x1030] sm:$0xff]
  %v10254 = vld [vmem:[%s3 + $0x1038] sm:$0xff]
  %v10255 = vld [vmem:[%s3 + $0x1040] sm:$0xff]
  %v10256 = vld [vmem:[%s3 + $0x1048] sm:$0xff]
  %v10258 = vsel %vm104, %v10245, 0
  %v10261 = vsel %vm104, %v10246, 0
  %v10264 = vsel %vm104, %v10247, 0
  %v10267 = vsel %vm104, %v10248, 0
  %v10270 = vsel %vm104, %v10249, 0
  %v10273 = vsel %vm104, %v10250, 0
  %v10276 = vsel %vm104, %v10251, 0
  %v10279 = vsel %vm104, %v10252, 0
  %v10282 = vsel %vm104, %v10253, 0
  %v10285 = vsel %vm104, %v10254, 0
  %10287 = vmatpush.msra.mxu0 0.0
  %10288 = vmatpush.msra.mxu0 0.0
  %10289 = vmatpush.msra.mxu0 0.0
  %10290 = vmatpush.msra.mxu0 0.0
  %10291 = vmatpush.msra.mxu0 0.0
  %10292 = vmatpush.msra.mxu0 0.0
  %10293 = vmatpush.msra.mxu0 0.0
  %10294 = vmatpush.msra.mxu0 0.0
  %10295 = vmatpush.msra.mxu0 0.0
  %10296 = vmatpush.msra.mxu0 0.0
  %10297 = vmatpush.msra.mxu0 0.0
  %10298 = vmatpush.msra.mxu0 0.0
  %10299 = vmatpush.msra.mxu0 0.0
  %10300 = vmatpush.msra.mxu0 0.0
  %10301 = vmatpush.msra.mxu0 %v10244
  %10302 = vmatpush.msra.mxu0 %v10243
  %10303 = vmatmul.f32.gmra.mxu0 %v10258
  %v10304 = vpop.f32.mrf.mxu0
  %v10305 = vadd.f32 0.0, %v10304
  %10306 = vmatmul.f32.gmra.mxu0 %v10261
  %v10307 = vpop.f32.mrf.mxu0
  %v10308 = vadd.f32 0.0, %v10307
  %10309 = vmatmul.f32.gmra.mxu0 %v10264
  %v10310 = vpop.f32.mrf.mxu0
  %v10311 = vadd.f32 0.0, %v10310
  %10312 = vmatmul.f32.gmra.mxu0 %v10267
  %v10313 = vpop.f32.mrf.mxu0
  %v10314 = vadd.f32 0.0, %v10313
  %10315 = vmatmul.f32.gmra.mxu0 %v10270
  %v10316 = vpop.f32.mrf.mxu0
  %v10317 = vadd.f32 0.0, %v10316
  %10318 = vmatmul.f32.gmra.mxu0 %v10273
  %v10319 = vpop.f32.mrf.mxu0
  %v10320 = vadd.f32 0.0, %v10319
  %10321 = vmatmul.f32.gmra.mxu0 %v10276
  %v10322 = vpop.f32.mrf.mxu0
  %v10323 = vadd.f32 0.0, %v10322
  %10324 = vmatmul.f32.gmra.mxu0 %v10279
  %v10325 = vpop.f32.mrf.mxu0
  %v10326 = vadd.f32 0.0, %v10325
  %10327 = vmatmul.f32.gmra.mxu0 %v10282
  %v10328 = vpop.f32.mrf.mxu0
  %v10329 = vadd.f32 0.0, %v10328
  %10330 = vmatmul.f32.gmra.mxu0 %v10285
  %v10331 = vpop.f32.mrf.mxu0
  %v10332 = vadd.f32 0.0, %v10331
  %10333 = vdwg.mxu0
  %v10335 = vsel %vm104, %v10305, 0
  %v10338 = vsel %vm104, %v10308, 0
  %10340 = vmatpush.msra.mxu0 0.0
  %10341 = vmatpush.msra.mxu0 0.0
  %10342 = vmatpush.msra.mxu0 0.0
  %10343 = vmatpush.msra.mxu0 0.0
  %10344 = vmatpush.msra.mxu0 0.0
  %10345 = vmatpush.msra.mxu0 0.0
  %10346 = vmatpush.msra.mxu0 0.0
  %10347 = vmatpush.msra.mxu0 0.0
  %10348 = vmatpush.msra.mxu0 0.0
  %10349 = vmatpush.msra.mxu0 0.0
  %10350 = vmatpush.msra.mxu0 0.0
  %10351 = vmatpush.msra.mxu0 0.0
  %10352 = vmatpush.msra.mxu0 0.0
  %10353 = vmatpush.msra.mxu0 0.0
  %10354 = vmatpush.msra.mxu0 %v24
  %10355 = vmatpush.msra.mxu0 %v23
  %10356 = vmatmul.f32.gmra.mxu0 %v10335
  %v10357 = vpop.f32.mrf.mxu0
  %v10358 = vadd.f32 0.0, %v10357
  %10359 = vmatmul.f32.gmra.mxu0 %v10338
  %v10360 = vpop.f32.mrf.mxu0
  %v10361 = vadd.f32 0.0, %v10360
  %10362 = vdwg.mxu0
  %10364 = vset.pattern.permute.xlu0 0
  %10365 = vperm.xlu0 %10364, %v10255
  %v10366 = vpop.permute.xlu0 %10365
  %10369 = vset.pattern.permute.xlu0 0
  %10370 = vperm.xlu0 %10369, %v10256
  %v10371 = vpop.permute.xlu0 %10370
  %v10373 = vadd.f32 %v10366, %v10358
  %v10374 = vadd.f32 %v10371, %v10361
  %v10376 = vsel %vm104, %v10311, 0
  %v10379 = vsel %vm104, %v10314, 0
  %10381 = vmatpush.msra.mxu0 0.0
  %10382 = vmatpush.msra.mxu0 0.0
  %10383 = vmatpush.msra.mxu0 0.0
  %10384 = vmatpush.msra.mxu0 0.0
  %10385 = vmatpush.msra.mxu0 0.0
  %10386 = vmatpush.msra.mxu0 0.0
  %10387 = vmatpush.msra.mxu0 0.0
  %10388 = vmatpush.msra.mxu0 0.0
  %10389 = vmatpush.msra.mxu0 0.0
  %10390 = vmatpush.msra.mxu0 0.0
  %10391 = vmatpush.msra.mxu0 0.0
  %10392 = vmatpush.msra.mxu0 0.0
  %10393 = vmatpush.msra.mxu0 0.0
  %10394 = vmatpush.msra.mxu0 0.0
  %10395 = vmatpush.msra.mxu0 %v26
  %10396 = vmatpush.msra.mxu0 %v25
  %10397 = vmatmul.f32.gmra.mxu0 %v10376
  %v10398 = vpop.f32.mrf.mxu0
  %v10399 = vadd.f32 0.0, %v10398
  %10400 = vmatmul.f32.gmra.mxu0 %v10379
  %v10401 = vpop.f32.mrf.mxu0
  %v10402 = vadd.f32 0.0, %v10401
  %10403 = vdwg.mxu0
  %v10404 = vadd.f32 %v10373, %v10399
  %v10405 = vadd.f32 %v10374, %v10402
  %v10407 = vsel %vm104, %v10317, 0
  %v10410 = vsel %vm104, %v10320, 0
  %10412 = vmatpush.msra.mxu0 0.0
  %10413 = vmatpush.msra.mxu0 0.0
  %10414 = vmatpush.msra.mxu0 0.0
  %10415 = vmatpush.msra.mxu0 0.0
  %10416 = vmatpush.msra.mxu0 0.0
  %10417 = vmatpush.msra.mxu0 0.0
  %10418 = vmatpush.msra.mxu0 0.0
  %10419 = vmatpush.msra.mxu0 0.0
  %10420 = vmatpush.msra.mxu0 0.0
  %10421 = vmatpush.msra.mxu0 0.0
  %10422 = vmatpush.msra.mxu0 0.0
  %10423 = vmatpush.msra.mxu0 0.0
  %10424 = vmatpush.msra.mxu0 0.0
  %10425 = vmatpush.msra.mxu0 0.0
  %10426 = vmatpush.msra.mxu0 %v28
  %10427 = vmatpush.msra.mxu0 %v27
  %10428 = vmatmul.f32.gmra.mxu0 %v10407
  %v10429 = vpop.f32.mrf.mxu0
  %v10430 = vadd.f32 0.0, %v10429
  %10431 = vmatmul.f32.gmra.mxu0 %v10410
  %v10432 = vpop.f32.mrf.mxu0
  %v10433 = vadd.f32 0.0, %v10432
  %10434 = vdwg.mxu0
  %v10435 = vadd.f32 %v10404, %v10430
  %v10436 = vadd.f32 %v10405, %v10433
  %v10438 = vsel %vm104, %v10323, 0
  %v10441 = vsel %vm104, %v10326, 0
  %10443 = vmatpush.msra.mxu0 0.0
  %10444 = vmatpush.msra.mxu0 0.0
  %10445 = vmatpush.msra.mxu0 0.0
  %10446 = vmatpush.msra.mxu0 0.0
  %10447 = vmatpush.msra.mxu0 0.0
  %10448 = vmatpush.msra.mxu0 0.0
  %10449 = vmatpush.msra.mxu0 0.0
  %10450 = vmatpush.msra.mxu0 0.0
  %10451 = vmatpush.msra.mxu0 0.0
  %10452 = vmatpush.msra.mxu0 0.0
  %10453 = vmatpush.msra.mxu0 0.0
  %10454 = vmatpush.msra.mxu0 0.0
  %10455 = vmatpush.msra.mxu0 0.0
  %10456 = vmatpush.msra.mxu0 0.0
  %10457 = vmatpush.msra.mxu0 %v30
  %10458 = vmatpush.msra.mxu0 %v29
  %10459 = vmatmul.f32.gmra.mxu0 %v10438
  %v10460 = vpop.f32.mrf.mxu0
  %v10461 = vadd.f32 0.0, %v10460
  %10462 = vmatmul.f32.gmra.mxu0 %v10441
  %v10463 = vpop.f32.mrf.mxu0
  %v10464 = vadd.f32 0.0, %v10463
  %10465 = vdwg.mxu0
  %v10466 = vadd.f32 %v10435, %v10461
  %v10467 = vadd.f32 %v10436, %v10464
  %v10469 = vsel %vm104, %v10329, 0
  %v10472 = vsel %vm104, %v10332, 0
  %10474 = vmatpush.msra.mxu0 0.0
  %10475 = vmatpush.msra.mxu0 0.0
  %10476 = vmatpush.msra.mxu0 0.0
  %10477 = vmatpush.msra.mxu0 0.0
  %10478 = vmatpush.msra.mxu0 0.0
  %10479 = vmatpush.msra.mxu0 0.0
  %10480 = vmatpush.msra.mxu0 0.0
  %10481 = vmatpush.msra.mxu0 0.0
  %10482 = vmatpush.msra.mxu0 0.0
  %10483 = vmatpush.msra.mxu0 0.0
  %10484 = vmatpush.msra.mxu0 0.0
  %10485 = vmatpush.msra.mxu0 0.0
  %10486 = vmatpush.msra.mxu0 0.0
  %10487 = vmatpush.msra.mxu0 0.0
  %10488 = vmatpush.msra.mxu0 %v32
  %10489 = vmatpush.msra.mxu0 %v31
  %10490 = vmatmul.f32.gmra.mxu0 %v10469
  %v10491 = vpop.f32.mrf.mxu0
  %v10492 = vadd.f32 0.0, %v10491
  %10493 = vmatmul.f32.gmra.mxu0 %v10472
  %v10494 = vpop.f32.mrf.mxu0
  %v10495 = vadd.f32 0.0, %v10494
  %10496 = vdwg.mxu0
  %v10497 = vadd.f32 %v10466, %v10492
  %v10498 = vadd.f32 %v10467, %v10495
  %v10499 = vmax.f32 %v10497, 0.0
  %v10500 = vmax.f32 %v10498, 0.0
  %vm10501 = vcmp.ne.f32.partialorder %v10497, %v10497
  %vm10502 = vcmp.ne.f32.partialorder %v10498, %v10498
  %v10503 = vadd.f32 %v10497, 0.0
  %v10504 = vadd.f32 %v10498, 0.0
  %v10505 = vand.u32 2147483647, %v10497
  %v10506 = vand.u32 2147483647, %v10498
  %v10507 = vsub.f32 0.0, %v10505
  %v10508 = vsub.f32 0.0, %v10506
  %v10509 = vmul.f32 %v10507, 1.442695
  %v10510 = vpow.pop %v10509
  %v10511 = vmul.f32 %v10508, 1.442695
  %v10512 = vpow.pop %v10511
  %v10513 = vadd.f32 %v10510, 1.0
  %v10514 = vlog2.pop %v10513
  %v10515 = vmul.f32 %v10514, 0.6931472
  %v10516 = vmul.f32 -0.5, %v10510
  %v10517 = vadd.f32 %v10516, 1.0
  %v10518 = vmul.f32 %v10517, %v10510
  %v10519 = vand.u32 2147483647, %v10510
  %vm10520 = vcmp.lt.f32.partialorder %v10519, 0.0004427343
  %v10521 = vsel %vm10520, %v10518, %v10515
  %v10522 = vadd.f32 %v10512, 1.0
  %v10523 = vlog2.pop %v10522
  %v10524 = vmul.f32 %v10523, 0.6931472
  %v10525 = vmul.f32 -0.5, %v10512
  %v10526 = vadd.f32 %v10525, 1.0
  %v10527 = vmul.f32 %v10526, %v10512
  %v10528 = vand.u32 2147483647, %v10512
  %vm10529 = vcmp.lt.f32.partialorder %v10528, 0.0004427343
  %v10530 = vsel %vm10529, %v10527, %v10524
  %v10531 = vadd.f32 %v10499, %v10521
  %v10532 = vadd.f32 %v10500, %v10530
  %v10533 = vsel %vm10501, %v10503, %v10531
  %v10534 = vsel %vm10502, %v10504, %v10532
  %v10535 = vtanh.pop %v10533
  %v10536 = vtanh.pop %v10534
  %v10537 = vmul.f32 %v10497, %v10535
  %v10538 = vmul.f32 %v10498, %v10536
  %v10539 = vld [vmem:[%s3 + $0x1050] sm:$0xf]
  %v10540 = vld [vmem:[%s3 + $0x1058] sm:$0xf]
  %v10542 = vsel %vm104, %v10539, 0
  %10544 = vmatpush.msra.mxu0 0.0
  %10545 = vmatpush.msra.mxu0 0.0
  %10546 = vmatpush.msra.mxu0 0.0
  %10547 = vmatpush.msra.mxu0 0.0
  %10548 = vmatpush.msra.mxu0 0.0
  %10549 = vmatpush.msra.mxu0 0.0
  %10550 = vmatpush.msra.mxu0 0.0
  %10551 = vmatpush.msra.mxu0 0.0
  %10552 = vmatpush.msra.mxu0 0.0
  %10553 = vmatpush.msra.mxu0 0.0
  %10554 = vmatpush.msra.mxu0 0.0
  %10555 = vmatpush.msra.mxu0 0.0
  %10556 = vmatpush.msra.mxu0 0.0
  %10557 = vmatpush.msra.mxu0 0.0
  %10558 = vmatpush.msra.mxu0 %v10538
  %10559 = vmatpush.msra.mxu0 %v10537
  %10560 = vmatmul.f32.gmra.mxu0 %v10542
  %v10561 = vpop.f32.mrf.mxu0
  %v10562 = vadd.f32 0.0, %v10561
  %10563 = vdwg.mxu0
  %10565 = vset.pattern.permute.xlu0 0
  %10566 = vperm.xlu0 %10565, %v10540
  %v10567 = vpop.permute.xlu0 %10566
  %v10569 = vadd.f32 %v10567, %v10562
  %vm10570 = vcmask 125952
  %10571 = vst.msk [vmem:[%s4] sm:$0xf] %vm10570, %v10569
  // Predicated region
  $region18: #{forward.1} parent=0 // pred_check
    _
  $region19: #{forward.1} parent=0 // pred_check_branch
    %10573 = sbr.rel (0) target = $region21
  $region20: #{forward.1} parent=0 // pred_region
    _
  $region21: #{forward.1} parent=0 // pred_fallthru
    _
  // Predicated region
  $region22: #{forward.1} parent=0 // pred_check
    _
  $region23: #{forward.1} parent=0 // pred_check_branch
    %10575 = sbr.rel (0) target = $region25
  $region24: #{forward.1} parent=0 // pred_region
    _
  $region25: #{forward.1} parent=0 // pred_fallthru
    _

</llo_original>
